<compile_context>
chip_gen: v5e
topology: v5e:2x2
jax: 0.10.0
libtpu: 0.0.40
codegen_flags: <defaults>
</compile_context>

<pallas_src>
import functools

import jax
import jax.numpy as jnp
from jax import lax
from jax.experimental import pallas as pl
from jax.experimental.pallas import tpu as pltpu


# ------------------------------- Pallas kernel ------------------------------ #

def _unet_up_block_kernel(x_ref, br_ref, wup_ref, bup_ref, wcomb_ref,
                          bcomb_ref, w2_ref, b2_ref, o_ref,
                          up_pad, br_pad, h_pad, *, slope):
    """One batch element of the whole UNetUpBlock, fully in VMEM.

    x_ref:     (1, H,  W,  Cin)        input of the transposed conv
    br_ref:    (1, 2H, 2W, Cb)         skip connection (bridge)
    wup_ref:   (Cin, 4*Cup)            convT weight, columns = (kh, kw, cout)
    bup_ref:   (1, Cup)
    wcomb_ref: (9*(Cup+Cb), 2*Cout)    [conv_1 | identity-at-centre-tap]
    bcomb_ref: (1, 2*Cout)             [b1 | b_id]
    w2_ref:    (9*Cout, Cout)          conv_2 (im2col layout)
    b2_ref:    (1, Cout)
    o_ref:     (1, 2H, 2W, Cout)
    """
    _, H, W, Cin = x_ref.shape
    _, H2, W2, Cb = br_ref.shape
    Cup = bup_ref.shape[1]
    Cout = b2_ref.shape[1]
    P = H2 * W2

    # ---- ConvTranspose2d(k=2, s=2): one matmul + in-register 2x2 interleave ---
    x2d = x_ref[...].reshape(H * W, Cin)
    y = jnp.dot(x2d, wup_ref[...], preferred_element_type=jnp.float32)  # (HW, 4*Cup)

    # expand every source pixel over its 2x2 output footprint (row-major
    # ordering matches the (2H, 2W) output grid), then pick the weight group
    # that corresponds to each output pixel's (row-parity, col-parity).
    y = y.reshape(H, W, 4 * Cup)
    y = jnp.broadcast_to(y.reshape(H, 1, W, 4 * Cup),
                         (H, 2, W, 4 * Cup)).reshape(H2, W, 4 * Cup)
    y = jnp.broadcast_to(y.reshape(H2, W, 1, 4 * Cup),
                         (H2, W, 2, 4 * Cup)).reshape(H2, W2, 4 * Cup)

    rpar = lax.broadcasted_iota(jnp.int32, (H2, W2, Cup), 0) % 2
    cpar = lax.broadcasted_iota(jnp.int32, (H2, W2, Cup), 1) % 2
    up_img = jnp.where(
        rpar == 0,
        jnp.where(cpar == 0, y[:, :, 0 * Cup:1 * Cup], y[:, :, 1 * Cup:2 * Cup]),
        jnp.where(cpar == 0, y[:, :, 2 * Cup:3 * Cup], y[:, :, 3 * Cup:4 * Cup]),
    ) + bup_ref[...]                                               # (2H, 2W, Cup)

    # ---- zero-padded VMEM images for the 3x3 taps (no jnp.pad / HBM trip) ----
    up_pad[...] = jnp.zeros_like(up_pad)
    br_pad[...] = jnp.zeros_like(br_pad)
    up_pad[1:H2 + 1, 1:W2 + 1, :] = up_img
    br_pad[1:H2 + 1, 1:W2 + 1, :] = (
        br_ref[...].reshape(H2, W2, Cb).astype(jnp.float32))
    upp = up_pad[...]
    brp = br_pad[...]

    # ---- conv_1 (3x3 on cat=[up, bridge]) fused with the 1x1 identity -------
    # im2col: one (P, 9*(Cup+Cb)) x (9*(Cup+Cb), 2*Cout) matmul.
    pieces = []
    for dy in range(3):
        for dx in range(3):
            pieces.append(upp[dy:dy + H2, dx:dx + W2, :].reshape(P, Cup))
            pieces.append(brp[dy:dy + H2, dx:dx + W2, :].reshape(P, Cb))
    patches = jnp.concatenate(pieces, axis=-1)
    r1 = jnp.dot(patches, wcomb_ref[...],
                 preferred_element_type=jnp.float32) + bcomb_ref[...]
    h1 = r1[:, :Cout]
    ident = r1[:, Cout:]
    h1 = jnp.where(h1 >= 0, h1, slope * h1)                         # LeakyReLU

    # ---- conv_2 (3x3) + LeakyReLU, then + identity ---------------------------
    h_pad[...] = jnp.zeros_like(h_pad)
    h_pad[1:H2 + 1, 1:W2 + 1, :] = h1.reshape(H2, W2, Cout)
    hp = h_pad[...]
    p2 = jnp.concatenate(
        [hp[dy:dy + H2, dx:dx + W2, :].reshape(P, Cout)
         for dy in range(3) for dx in range(3)], axis=-1)           # (P, 9*Cout)
    h2 = jnp.dot(p2, w2_ref[...],
                 preferred_element_type=jnp.float32) + b2_ref[...]
    h2 = jnp.where(h2 >= 0, h2, slope * h2)                         # LeakyReLU

    out = h2 + ident
    o_ref[...] = out.reshape(1, H2, W2, Cout).astype(o_ref.dtype)


# ------------------------ one-time parameter preparation -------------------- #

def prepare_params(params):
    """Re-layout the PyTorch-style weights once (outside the forward pass)."""
    up_w, up_b = params["up_w"], params["up_b"]          # (Cin, Cup, 2, 2), (Cup,)
    w1, b1 = params["conv1_w"], params["conv1_b"]        # (Cout, Ctot, 3, 3)
    w2, b2 = params["conv2_w"], params["conv2_b"]        # (Cout, Cout, 3, 3)
    wid, bid = params["id_w"], params["id_b"]            # (Cout, Ctot, 1, 1)

    Cin, Cup = up_w.shape[0], up_w.shape[1]
    Cout, Ctot = w1.shape[0], w1.shape[1]

    # ConvTranspose2d weight: columns ordered (kh, kw, cout).
    wup = jnp.transpose(up_w, (0, 2, 3, 1)).reshape(Cin, 4 * Cup)
    bup = up_b.reshape(1, Cup)

    # conv_1 (im2col rows ordered (ky, kx, cin)) + identity folded into the
    # centre tap -> a single (9*Ctot, 2*Cout) matrix.
    w1f = jnp.transpose(w1, (2, 3, 1, 0)).reshape(9 * Ctot, Cout)
    wid2 = jnp.transpose(wid[:, :, 0, 0], (1, 0))                   # (Ctot, Cout)
    wid_taps = (jnp.zeros((9, Ctot, Cout), w1f.dtype)
                .at[4].set(wid2).reshape(9 * Ctot, Cout))           # centre tap
    wcomb = jnp.concatenate([w1f, wid_taps], axis=1)                # (9*Ctot, 2*Cout)
    bcomb = jnp.concatenate([b1, bid]).reshape(1, 2 * Cout)

    w2f = jnp.transpose(w2, (2, 3, 1, 0)).reshape(9 * Cout, Cout)
    b2r = b2.reshape(1, Cout)
    return dict(wup=wup, bup=bup, wcomb=wcomb, bcomb=bcomb, w2f=w2f, b2r=b2r)


# ------------------------------- forward pass -------------------------------- #

@functools.partial(jax.jit, static_argnames=("relu_slope",))
def unet_up_block_forward(x_nchw, bridge_nchw, prep, relu_slope):
    """Matches UNetUpBlock.forward(x, bridge) (NCHW in / NCHW out)."""
    x = jnp.transpose(x_nchw, (0, 2, 3, 1))
    br = jnp.transpose(bridge_nchw, (0, 2, 3, 1))
    N, H, W, Cin = x.shape
    _, H2, W2, Cb = br.shape
    Cup = prep["bup"].shape[1]
    Cout = prep["b2r"].shape[1]
    Ctot = Cup + Cb

    out = pl.pallas_call(
        functools.partial(_unet_up_block_kernel, slope=relu_slope),
        out_shape=jax.ShapeDtypeStruct((N, H2, W2, Cout), x.dtype),
        grid=(N,),
        in_specs=[
            pl.BlockSpec((1, H, W, Cin), lambda n: (n, 0, 0, 0)),
            pl.BlockSpec((1, H2, W2, Cb), lambda n: (n, 0, 0, 0)),
            pl.BlockSpec((Cin, 4 * Cup), lambda n: (0, 0)),
            pl.BlockSpec((1, Cup), lambda n: (0, 0)),
            pl.BlockSpec((9 * Ctot, 2 * Cout), lambda n: (0, 0)),
            pl.BlockSpec((1, 2 * Cout), lambda n: (0, 0)),
            pl.BlockSpec((9 * Cout, Cout), lambda n: (0, 0)),
            pl.BlockSpec((1, Cout), lambda n: (0, 0)),
        ],
        out_specs=pl.BlockSpec((1, H2, W2, Cout), lambda n: (n, 0, 0, 0)),
        scratch_shapes=[
            pltpu.VMEM((H2 + 2, W2 + 2, Cup), jnp.float32),   # padded up
            pltpu.VMEM((H2 + 2, W2 + 2, Cb), jnp.float32),    # padded bridge
            pltpu.VMEM((H2 + 2, W2 + 2, Cout), jnp.float32),  # padded conv_1 out
        ],
        compiler_params=pltpu.CompilerParams(
            dimension_semantics=("parallel",)),
    )(x, br, prep["wup"], prep["bup"], prep["wcomb"], prep["bcomb"],
      prep["w2f"], prep["b2r"])
    return jnp.transpose(out, (0, 3, 1, 2))


# ----------------------------- pure-JAX reference ---------------------------- #

def _ref_forward(x_nchw, bridge_nchw, p, slope):
    x = jnp.transpose(x_nchw, (0, 2, 3, 1))
    bridge = jnp.transpose(bridge_nchw, (0, 2, 3, 1))
    N, H, W, Cin = x.shape
    Cout = p["up_w"].shape[1]
    y = jnp.einsum("nhwc,cokl->nhkwlo", x, p["up_w"])
    up = y.reshape(N, 2 * H, 2 * W, Cout) + p["up_b"]
    cat = jnp.concatenate([up, bridge], axis=-1)
    dn = ("NHWC", "HWIO", "NHWC")

    def conv(v, w_t, b):
        w = jnp.transpose(w_t, (2, 3, 1, 0))
        return lax.conv_general_dilated(v, w, (1, 1), "SAME",
                                        dimension_numbers=dn) + b

    def lrelu(v):
        return jnp.where(v >= 0, v, slope * v)

    h = lrelu(conv(cat, p["conv1_w"], p["conv1_b"]))
    out = lrelu(conv(h, p["conv2_w"], p["conv2_b"]))
    out = out + conv(cat, p["id_w"], p["id_b"])
    return jnp.transpose(out, (0, 3, 1, 2))


# ------------------------------------ main ----------------------------------- #

if __name__ == "__main__":
    # UNetUpBlock(in_size=8, out_size=4, relu_slope=0.2)
    IN_SIZE, OUT_SIZE, RELU_SLOPE = 8, 4, 0.2
    N, H, W = 2, 8, 8                        # x: (N, in_size, H, W)

    key = jax.random.PRNGKey(0)
    ks = jax.random.split(key, 12)
    f32 = jnp.float32
    params = {
        # nn.ConvTranspose2d(in, out, 2, 2): weight (in, out, 2, 2), bias (out,)
        "up_w":    0.1 * jax.random.normal(ks[0], (IN_SIZE, OUT_SIZE, 2, 2), f32),
        "up_b":    0.1 * jax.random.normal(ks[1], (OUT_SIZE,), f32),
        # nn.Conv2d(in, out, 3, padding=1)
        "conv1_w": 0.1 * jax.random.normal(ks[2], (OUT_SIZE, IN_SIZE, 3, 3), f32),
        "conv1_b": 0.1 * jax.random.normal(ks[3], (OUT_SIZE,), f32),
        # nn.Conv2d(out, out, 3, padding=1)
        "conv2_w": 0.1 * jax.random.normal(ks[4], (OUT_SIZE, OUT_SIZE, 3, 3), f32),
        "conv2_b": 0.1 * jax.random.normal(ks[5], (OUT_SIZE,), f32),
        # nn.Conv2d(in, out, 1, 1, 0)
        "id_w":    0.1 * jax.random.normal(ks[6], (OUT_SIZE, IN_SIZE, 1, 1), f32),
        "id_b":    0.1 * jax.random.normal(ks[7], (OUT_SIZE,), f32),
    }

    x = jax.random.normal(ks[8], (N, IN_SIZE, H, W), f32)
    bridge = jax.random.normal(ks[9], (N, IN_SIZE - OUT_SIZE, 2 * H, 2 * W), f32)

    prep = prepare_params(params)            # one-time weight re-layout

    out = unet_up_block_forward(x, bridge, prep, RELU_SLOPE)
    out = jax.block_until_ready(out)

    ref = _ref_forward(x, bridge, params, RELU_SLOPE)
    assert out.shape == (N, OUT_SIZE, 2 * H, 2 * W), out.shape
    assert jnp.allclose(out, ref, atol=1e-4, rtol=1e-4), \
        float(jnp.max(jnp.abs(out - ref)))
    print("KERNEL_OK")
</pallas_src>

<mosaic_0001>
module attributes {stable_mosaic.version = 11 : i64} {
  func.func @_unet_up_block_kernel(%arg0: i32, %arg1: memref<1x8x8x8xf32, #tpu.memory_space<vmem>>, %arg2: memref<1x16x16x4xf32, #tpu.memory_space<vmem>>, %arg3: memref<8x16xf32, #tpu.memory_space<vmem>>, %arg4: memref<1x4xf32, #tpu.memory_space<vmem>>, %arg5: memref<72x8xf32, #tpu.memory_space<vmem>>, %arg6: memref<1x8xf32, #tpu.memory_space<vmem>>, %arg7: memref<36x4xf32, #tpu.memory_space<vmem>>, %arg8: memref<1x4xf32, #tpu.memory_space<vmem>>, %arg9: memref<1x16x16x4xf32, #tpu.memory_space<vmem>>, %arg10: memref<18x18x4xf32, #tpu.memory_space<vmem>>, %arg11: memref<18x18x4xf32, #tpu.memory_space<vmem>>, %arg12: memref<18x18x4xf32, #tpu.memory_space<vmem>>) attributes {dimension_semantics = [#tpu.dimension_semantics<parallel>], iteration_bounds = array<i64: 2>, scalar_prefetch = 0 : i64, scratch_operands = 3 : i64, tpu.core_type = #tpu.core_type<tc>, window_params = [{transform_indices = @transform_0, window_bounds = array<i64: 1, 8, 8, 8>}, {transform_indices = @transform_1, window_bounds = array<i64: 1, 16, 16, 4>}, {pipeline_mode = #tpu.pipeline_mode<synchronous>, transform_indices = @transform_2, window_bounds = array<i64: 8, 16>}, {pipeline_mode = #tpu.pipeline_mode<synchronous>, transform_indices = @transform_3, window_bounds = array<i64: 1, 4>}, {pipeline_mode = #tpu.pipeline_mode<synchronous>, transform_indices = @transform_4, window_bounds = array<i64: 72, 8>}, {pipeline_mode = #tpu.pipeline_mode<synchronous>, transform_indices = @transform_5, window_bounds = array<i64: 1, 8>}, {pipeline_mode = #tpu.pipeline_mode<synchronous>, transform_indices = @transform_6, window_bounds = array<i64: 36, 4>}, {pipeline_mode = #tpu.pipeline_mode<synchronous>, transform_indices = @transform_7, window_bounds = array<i64: 1, 4>}, {transform_indices = @transform_8, window_bounds = array<i64: 1, 16, 16, 4>}]} {
    %c0 = arith.constant 0 : index
    %c0_0 = arith.constant 0 : index
    %c0_1 = arith.constant 0 : index
    %c0_2 = arith.constant 0 : index
    %0 = vector.load %arg1[%c0, %c0_0, %c0_1, %c0_2] : memref<1x8x8x8xf32, #tpu.memory_space<vmem>>, vector<1x8x8x8xf32>
    %1 = vector.shape_cast %0 : vector<1x8x8x8xf32> to vector<64x8xf32>
    %c0_3 = arith.constant 0 : index
    %c0_4 = arith.constant 0 : index
    %2 = vector.load %arg3[%c0_3, %c0_4] : memref<8x16xf32, #tpu.memory_space<vmem>>, vector<8x16xf32>
    %cst = arith.constant dense<0.000000e+00> : vector<64x16xf32>
    %3 = tpu.matmul %1, %2, %cst {dimension_numbers = #tpu.dot_dimension_numbers<[1], [0], [0], [1], [0, 0, 1, 1], [], []>} : vector<64x8xf32>, vector<8x16xf32>, vector<64x16xf32> -> vector<64x16xf32>
    %4 = vector.shape_cast %3 : vector<64x16xf32> to vector<8x8x16xf32>
    %5 = vector.shape_cast %4 : vector<8x8x16xf32> to vector<8x1x8x16xf32>
    %6 = vector.shape_cast %5 : vector<8x1x8x16xf32> to vector<8x1x8x16xf32>
    %7 = vector.broadcast %6 : vector<8x1x8x16xf32> to vector<8x2x8x16xf32>
    %8 = vector.shape_cast %7 : vector<8x2x8x16xf32> to vector<16x8x16xf32>
    %9 = vector.shape_cast %8 : vector<16x8x16xf32> to vector<16x8x1x16xf32>
    %10 = vector.shape_cast %9 : vector<16x8x1x16xf32> to vector<16x8x1x16xf32>
    %11 = vector.broadcast %10 : vector<16x8x1x16xf32> to vector<16x8x2x16xf32>
    %12 = vector.shape_cast %11 : vector<16x8x2x16xf32> to vector<16x16x16xf32>
    %13 = tpu.iota {dimensions = array<i32: 0>} : vector<16x16x4xi32>
    %c2_i32 = arith.constant 2 : i32
    %c0_i32 = arith.constant 0 : i32
    %14 = arith.cmpi eq, %c2_i32, %c0_i32 : i32
    %c1_i32 = arith.constant 1 : i32
    %15 = arith.select %14, %c1_i32, %c2_i32 : i32
    %16 = vector.broadcast %15 : i32 to vector<16x16x4xi32>
    %17 = arith.remsi %13, %16 : vector<16x16x4xi32>
    %c0_i32_5 = arith.constant 0 : i32
    %18 = vector.broadcast %c0_i32_5 : i32 to vector<16x16x4xi32>
    %19 = arith.cmpi ne, %17, %18 : vector<16x16x4xi32>
    %c0_i32_6 = arith.constant 0 : i32
    %20 = vector.broadcast %c0_i32_6 : i32 to vector<16x16x4xi32>
    %21 = arith.cmpi slt, %17, %20 : vector<16x16x4xi32>
    %c0_i32_7 = arith.constant 0 : i32
    %22 = arith.cmpi slt, %15, %c0_i32_7 : i32
    %23 = vector.broadcast %22 : i1 to vector<16x16x4xi1>
    %24 = vector.broadcast %23 : vector<16x16x4xi1> to vector<16x16x4xi1>
    %25 = arith.xori %21, %24 : vector<16x16x4xi1>
    %26 = arith.andi %25, %19 : vector<16x16x4xi1>
    %27 = vector.broadcast %15 : i32 to vector<16x16x4xi32>
    %28 = arith.addi %17, %27 : vector<16x16x4xi32>
    %29 = arith.select %26, %28, %17 : vector<16x16x4xi1>, vector<16x16x4xi32>
    %30 = tpu.iota {dimensions = array<i32: 1>} : vector<16x16x4xi32>
    %c2_i32_8 = arith.constant 2 : i32
    %c0_i32_9 = arith.constant 0 : i32
    %31 = arith.cmpi eq, %c2_i32_8, %c0_i32_9 : i32
    %c1_i32_10 = arith.constant 1 : i32
    %32 = arith.select %31, %c1_i32_10, %c2_i32_8 : i32
    %33 = vector.broadcast %32 : i32 to vector<16x16x4xi32>
    %34 = arith.remsi %30, %33 : vector<16x16x4xi32>
    %c0_i32_11 = arith.constant 0 : i32
    %35 = vector.broadcast %c0_i32_11 : i32 to vector<16x16x4xi32>
    %36 = arith.cmpi ne, %34, %35 : vector<16x16x4xi32>
    %c0_i32_12 = arith.constant 0 : i32
    %37 = vector.broadcast %c0_i32_12 : i32 to vector<16x16x4xi32>
    %38 = arith.cmpi slt, %34, %37 : vector<16x16x4xi32>
    %c0_i32_13 = arith.constant 0 : i32
    %39 = arith.cmpi slt, %32, %c0_i32_13 : i32
    %40 = vector.broadcast %39 : i1 to vector<16x16x4xi1>
    %41 = vector.broadcast %40 : vector<16x16x4xi1> to vector<16x16x4xi1>
    %42 = arith.xori %38, %41 : vector<16x16x4xi1>
    %43 = arith.andi %42, %36 : vector<16x16x4xi1>
    %44 = vector.broadcast %32 : i32 to vector<16x16x4xi32>
    %45 = arith.addi %34, %44 : vector<16x16x4xi32>
    %46 = arith.select %43, %45, %34 : vector<16x16x4xi1>, vector<16x16x4xi32>
    %c0_i32_14 = arith.constant 0 : i32
    %47 = vector.broadcast %c0_i32_14 : i32 to vector<16x16x4xi32>
    %48 = arith.cmpi eq, %29, %47 : vector<16x16x4xi32>
    %c0_i32_15 = arith.constant 0 : i32
    %49 = vector.broadcast %c0_i32_15 : i32 to vector<16x16x4xi32>
    %50 = arith.cmpi eq, %46, %49 : vector<16x16x4xi32>
    %51 = vector.extract_strided_slice %12 {offsets = [0, 0, 0], sizes = [16, 16, 4], strides = [1, 1, 1]} : vector<16x16x16xf32> to vector<16x16x4xf32>
    %52 = vector.extract_strided_slice %12 {offsets = [0, 0, 4], sizes = [16, 16, 4], strides = [1, 1, 1]} : vector<16x16x16xf32> to vector<16x16x4xf32>
    %53 = arith.select %50, %51, %52 : vector<16x16x4xi1>, vector<16x16x4xf32>
    %c0_i32_16 = arith.constant 0 : i32
    %54 = vector.broadcast %c0_i32_16 : i32 to vector<16x16x4xi32>
    %55 = arith.cmpi eq, %46, %54 : vector<16x16x4xi32>
    %56 = vector.extract_strided_slice %12 {offsets = [0, 0, 8], sizes = [16, 16, 4], strides = [1, 1, 1]} : vector<16x16x16xf32> to vector<16x16x4xf32>
    %57 = vector.extract_strided_slice %12 {offsets = [0, 0, 12], sizes = [16, 16, 4], strides = [1, 1, 1]} : vector<16x16x16xf32> to vector<16x16x4xf32>
    %58 = arith.select %55, %56, %57 : vector<16x16x4xi1>, vector<16x16x4xf32>
    %59 = arith.select %48, %53, %58 : vector<16x16x4xi1>, vector<16x16x4xf32>
    %c0_17 = arith.constant 0 : index
    %c0_18 = arith.constant 0 : index
    %60 = vector.load %arg4[%c0_17, %c0_18] : memref<1x4xf32, #tpu.memory_space<vmem>>, vector<1x4xf32>
    %61 = vector.shape_cast %60 : vector<1x4xf32> to vector<1x1x4xf32>
    %62 = vector.broadcast %61 : vector<1x1x4xf32> to vector<16x16x4xf32>
    %63 = arith.addf %59, %62 : vector<16x16x4xf32>
    %cst_19 = arith.constant 0.000000e+00 : f32
    %64 = vector.broadcast %cst_19 : f32 to vector<18x18x4xf32>
    %c0_20 = arith.constant 0 : index
    %c0_21 = arith.constant 0 : index
    %c0_22 = arith.constant 0 : index
    %65 = vector.load %arg10[%c0_20, %c0_21, %c0_22] : memref<18x18x4xf32, #tpu.memory_space<vmem>>, vector<18x18x4xf32>
    tpu.vector_store %arg10[%c0_20, %c0_21, %c0_22], %64 {strides = array<i32>} : memref<18x18x4xf32, #tpu.memory_space<vmem>>, vector<18x18x4xf32>,
    %cst_23 = arith.constant 0.000000e+00 : f32
    %66 = vector.broadcast %cst_23 : f32 to vector<18x18x4xf32>
    %c0_24 = arith.constant 0 : index
    %c0_25 = arith.constant 0 : index
    %c0_26 = arith.constant 0 : index
    %67 = vector.load %arg11[%c0_24, %c0_25, %c0_26] : memref<18x18x4xf32, #tpu.memory_space<vmem>>, vector<18x18x4xf32>
    tpu.vector_store %arg11[%c0_24, %c0_25, %c0_26], %66 {strides = array<i32>} : memref<18x18x4xf32, #tpu.memory_space<vmem>>, vector<18x18x4xf32>,
    %c1 = arith.constant 1 : index
    %c1_27 = arith.constant 1 : index
    %c0_28 = arith.constant 0 : index
    %68 = vector.load %arg10[%c1, %c1_27, %c0_28] : memref<18x18x4xf32, #tpu.memory_space<vmem>>, vector<16x16x4xf32>
    tpu.vector_store %arg10[%c1, %c1_27, %c0_28], %63 {strides = array<i32>} : memref<18x18x4xf32, #tpu.memory_space<vmem>>, vector<16x16x4xf32>,
    %c0_29 = arith.constant 0 : index
    %c0_30 = arith.constant 0 : index
    %c0_31 = arith.constant 0 : index
    %c0_32 = arith.constant 0 : index
    %69 = vector.load %arg2[%c0_29, %c0_30, %c0_31, %c0_32] : memref<1x16x16x4xf32, #tpu.memory_space<vmem>>, vector<1x16x16x4xf32>
    %70 = vector.shape_cast %69 : vector<1x16x16x4xf32> to vector<16x16x4xf32>
    %c1_33 = arith.constant 1 : index
    %c1_34 = arith.constant 1 : index
    %c0_35 = arith.constant 0 : index
    %71 = vector.load %arg11[%c1_33, %c1_34, %c0_35] : memref<18x18x4xf32, #tpu.memory_space<vmem>>, vector<16x16x4xf32>
    tpu.vector_store %arg11[%c1_33, %c1_34, %c0_35], %70 {strides = array<i32>} : memref<18x18x4xf32, #tpu.memory_space<vmem>>, vector<16x16x4xf32>,
    %c0_36 = arith.constant 0 : index
    %c0_37 = arith.constant 0 : index
    %c0_38 = arith.constant 0 : index
    %72 = vector.load %arg10[%c0_36, %c0_37, %c0_38] : memref<18x18x4xf32, #tpu.memory_space<vmem>>, vector<18x18x4xf32>
    %c0_39 = arith.constant 0 : index
    %c0_40 = arith.constant 0 : index
    %c0_41 = arith.constant 0 : index
    %73 = vector.load %arg11[%c0_39, %c0_40, %c0_41] : memref<18x18x4xf32, #tpu.memory_space<vmem>>, vector<18x18x4xf32>
    %74 = vector.extract_strided_slice %72 {offsets = [0, 0, 0], sizes = [16, 16, 4], strides = [1, 1, 1]} : vector<18x18x4xf32> to vector<16x16x4xf32>
    %75 = vector.shape_cast %74 : vector<16x16x4xf32> to vector<256x4xf32>
    %76 = vector.extract_strided_slice %73 {offsets = [0, 0, 0], sizes = [16, 16, 4], strides = [1, 1, 1]} : vector<18x18x4xf32> to vector<16x16x4xf32>
    %77 = vector.shape_cast %76 : vector<16x16x4xf32> to vector<256x4xf32>
    %78 = vector.extract_strided_slice %72 {offsets = [0, 1, 0], sizes = [16, 16, 4], strides = [1, 1, 1]} : vector<18x18x4xf32> to vector<16x16x4xf32>
    %79 = vector.shape_cast %78 : vector<16x16x4xf32> to vector<256x4xf32>
    %80 = vector.extract_strided_slice %73 {offsets = [0, 1, 0], sizes = [16, 16, 4], strides = [1, 1, 1]} : vector<18x18x4xf32> to vector<16x16x4xf32>
    %81 = vector.shape_cast %80 : vector<16x16x4xf32> to vector<256x4xf32>
    %82 = vector.extract_strided_slice %72 {offsets = [0, 2, 0], sizes = [16, 16, 4], strides = [1, 1, 1]} : vector<18x18x4xf32> to vector<16x16x4xf32>
    %83 = vector.shape_cast %82 : vector<16x16x4xf32> to vector<256x4xf32>
    %84 = vector.extract_strided_slice %73 {offsets = [0, 2, 0], sizes = [16, 16, 4], strides = [1, 1, 1]} : vector<18x18x4xf32> to vector<16x16x4xf32>
    %85 = vector.shape_cast %84 : vector<16x16x4xf32> to vector<256x4xf32>
    %86 = vector.extract_strided_slice %72 {offsets = [1, 0, 0], sizes = [16, 16, 4], strides = [1, 1, 1]} : vector<18x18x4xf32> to vector<16x16x4xf32>
    %87 = vector.shape_cast %86 : vector<16x16x4xf32> to vector<256x4xf32>
    %88 = vector.extract_strided_slice %73 {offsets = [1, 0, 0], sizes = [16, 16, 4], strides = [1, 1, 1]} : vector<18x18x4xf32> to vector<16x16x4xf32>
    %89 = vector.shape_cast %88 : vector<16x16x4xf32> to vector<256x4xf32>
    %90 = vector.extract_strided_slice %72 {offsets = [1, 1, 0], sizes = [16, 16, 4], strides = [1, 1, 1]} : vector<18x18x4xf32> to vector<16x16x4xf32>
    %91 = vector.shape_cast %90 : vector<16x16x4xf32> to vector<256x4xf32>
    %92 = vector.extract_strided_slice %73 {offsets = [1, 1, 0], sizes = [16, 16, 4], strides = [1, 1, 1]} : vector<18x18x4xf32> to vector<16x16x4xf32>
    %93 = vector.shape_cast %92 : vector<16x16x4xf32> to vector<256x4xf32>
    %94 = vector.extract_strided_slice %72 {offsets = [1, 2, 0], sizes = [16, 16, 4], strides = [1, 1, 1]} : vector<18x18x4xf32> to vector<16x16x4xf32>
    %95 = vector.shape_cast %94 : vector<16x16x4xf32> to vector<256x4xf32>
    %96 = vector.extract_strided_slice %73 {offsets = [1, 2, 0], sizes = [16, 16, 4], strides = [1, 1, 1]} : vector<18x18x4xf32> to vector<16x16x4xf32>
    %97 = vector.shape_cast %96 : vector<16x16x4xf32> to vector<256x4xf32>
    %98 = vector.extract_strided_slice %72 {offsets = [2, 0, 0], sizes = [16, 16, 4], strides = [1, 1, 1]} : vector<18x18x4xf32> to vector<16x16x4xf32>
    %99 = vector.shape_cast %98 : vector<16x16x4xf32> to vector<256x4xf32>
    %100 = vector.extract_strided_slice %73 {offsets = [2, 0, 0], sizes = [16, 16, 4], strides = [1, 1, 1]} : vector<18x18x4xf32> to vector<16x16x4xf32>
    %101 = vector.shape_cast %100 : vector<16x16x4xf32> to vector<256x4xf32>
    %102 = vector.extract_strided_slice %72 {offsets = [2, 1, 0], sizes = [16, 16, 4], strides = [1, 1, 1]} : vector<18x18x4xf32> to vector<16x16x4xf32>
    %103 = vector.shape_cast %102 : vector<16x16x4xf32> to vector<256x4xf32>
    %104 = vector.extract_strided_slice %73 {offsets = [2, 1, 0], sizes = [16, 16, 4], strides = [1, 1, 1]} : vector<18x18x4xf32> to vector<16x16x4xf32>
    %105 = vector.shape_cast %104 : vector<16x16x4xf32> to vector<256x4xf32>
    %106 = vector.extract_strided_slice %72 {offsets = [2, 2, 0], sizes = [16, 16, 4], strides = [1, 1, 1]} : vector<18x18x4xf32> to vector<16x16x4xf32>
    %107 = vector.shape_cast %106 : vector<16x16x4xf32> to vector<256x4xf32>
    %108 = vector.extract_strided_slice %73 {offsets = [2, 2, 0], sizes = [16, 16, 4], strides = [1, 1, 1]} : vector<18x18x4xf32> to vector<16x16x4xf32>
    %109 = vector.shape_cast %108 : vector<16x16x4xf32> to vector<256x4xf32>
    %110 = tpu.concatenate %75, %77, %79, %81, %83, %85, %87, %89, %91, %93, %95, %97, %99, %101, %103, %105 in 1 : vector<256x4xf32>, vector<256x4xf32>, vector<256x4xf32>, vector<256x4xf32>, vector<256x4xf32>, vector<256x4xf32>, vector<256x4xf32>, vector<256x4xf32>, vector<256x4xf32>, vector<256x4xf32>, vector<256x4xf32>, vector<256x4xf32>, vector<256x4xf32>, vector<256x4xf32>, vector<256x4xf32>, vector<256x4xf32> -> vector<256x64xf32>
    %111 = tpu.concatenate %107, %109 in 1 : vector<256x4xf32>, vector<256x4xf32> -> vector<256x8xf32>
    %112 = tpu.concatenate %110, %111 in 1 : vector<256x64xf32>, vector<256x8xf32> -> vector<256x72xf32>
    %c0_42 = arith.constant 0 : index
    %c0_43 = arith.constant 0 : index
    %113 = vector.load %arg5[%c0_42, %c0_43] : memref<72x8xf32, #tpu.memory_space<vmem>>, vector<72x8xf32>
    %cst_44 = arith.constant dense<0.000000e+00> : vector<256x8xf32>
    %114 = tpu.matmul %112, %113, %cst_44 {dimension_numbers = #tpu.dot_dimension_numbers<[1], [0], [0], [1], [0, 0, 1, 1], [], []>} : vector<256x72xf32>, vector<72x8xf32>, vector<256x8xf32> -> vector<256x8xf32>
    %c0_45 = arith.constant 0 : index
    %c0_46 = arith.constant 0 : index
    %115 = vector.load %arg6[%c0_45, %c0_46] : memref<1x8xf32, #tpu.memory_space<vmem>>, vector<1x8xf32>
    %116 = vector.broadcast %115 : vector<1x8xf32> to vector<256x8xf32>
    %117 = arith.addf %114, %116 : vector<256x8xf32>
    %118 = vector.extract_strided_slice %117 {offsets = [0, 0], sizes = [256, 4], strides = [1, 1]} : vector<256x8xf32> to vector<256x4xf32>
    %119 = vector.extract_strided_slice %117 {offsets = [0, 4], sizes = [256, 4], strides = [1, 1]} : vector<256x8xf32> to vector<256x4xf32>
    %cst_47 = arith.constant 0.000000e+00 : f32
    %120 = vector.broadcast %cst_47 : f32 to vector<256x4xf32>
    %121 = arith.cmpf oge, %118, %120 : vector<256x4xf32>
    %cst_48 = arith.constant 2.000000e-01 : f32
    %122 = vector.broadcast %cst_48 : f32 to vector<256x4xf32>
    %123 = arith.mulf %122, %118 : vector<256x4xf32>
    %124 = arith.select %121, %118, %123 : vector<256x4xi1>, vector<256x4xf32>
    %cst_49 = arith.constant 0.000000e+00 : f32
    %125 = vector.broadcast %cst_49 : f32 to vector<18x18x4xf32>
    %c0_50 = arith.constant 0 : index
    %c0_51 = arith.constant 0 : index
    %c0_52 = arith.constant 0 : index
    %126 = vector.load %arg12[%c0_50, %c0_51, %c0_52] : memref<18x18x4xf32, #tpu.memory_space<vmem>>, vector<18x18x4xf32>
    tpu.vector_store %arg12[%c0_50, %c0_51, %c0_52], %125 {strides = array<i32>} : memref<18x18x4xf32, #tpu.memory_space<vmem>>, vector<18x18x4xf32>,
    %127 = vector.shape_cast %124 : vector<256x4xf32> to vector<16x16x4xf32>
    %c1_53 = arith.constant 1 : index
    %c1_54 = arith.constant 1 : index
    %c0_55 = arith.constant 0 : index
    %128 = vector.load %arg12[%c1_53, %c1_54, %c0_55] : memref<18x18x4xf32, #tpu.memory_space<vmem>>, vector<16x16x4xf32>
    tpu.vector_store %arg12[%c1_53, %c1_54, %c0_55], %127 {strides = array<i32>} : memref<18x18x4xf32, #tpu.memory_space<vmem>>, vector<16x16x4xf32>,
    %c0_56 = arith.constant 0 : index
    %c0_57 = arith.constant 0 : index
    %c0_58 = arith.constant 0 : index
    %129 = vector.load %arg12[%c0_56, %c0_57, %c0_58] : memref<18x18x4xf32, #tpu.memory_space<vmem>>, vector<18x18x4xf32>
    %130 = vector.extract_strided_slice %129 {offsets = [0, 0, 0], sizes = [16, 16, 4], strides = [1, 1, 1]} : vector<18x18x4xf32> to vector<16x16x4xf32>
    %131 = vector.shape_cast %130 : vector<16x16x4xf32> to vector<256x4xf32>
    %132 = vector.extract_strided_slice %129 {offsets = [0, 1, 0], sizes = [16, 16, 4], strides = [1, 1, 1]} : vector<18x18x4xf32> to vector<16x16x4xf32>
    %133 = vector.shape_cast %132 : vector<16x16x4xf32> to vector<256x4xf32>
    %134 = vector.extract_strided_slice %129 {offsets = [0, 2, 0], sizes = [16, 16, 4], strides = [1, 1, 1]} : vector<18x18x4xf32> to vector<16x16x4xf32>
    %135 = vector.shape_cast %134 : vector<16x16x4xf32> to vector<256x4xf32>
    %136 = vector.extract_strided_slice %129 {offsets = [1, 0, 0], sizes = [16, 16, 4], strides = [1, 1, 1]} : vector<18x18x4xf32> to vector<16x16x4xf32>
    %137 = vector.shape_cast %136 : vector<16x16x4xf32> to vector<256x4xf32>
    %138 = vector.extract_strided_slice %129 {offsets = [1, 1, 0], sizes = [16, 16, 4], strides = [1, 1, 1]} : vector<18x18x4xf32> to vector<16x16x4xf32>
    %139 = vector.shape_cast %138 : vector<16x16x4xf32> to vector<256x4xf32>
    %140 = vector.extract_strided_slice %129 {offsets = [1, 2, 0], sizes = [16, 16, 4], strides = [1, 1, 1]} : vector<18x18x4xf32> to vector<16x16x4xf32>
    %141 = vector.shape_cast %140 : vector<16x16x4xf32> to vector<256x4xf32>
    %142 = vector.extract_strided_slice %129 {offsets = [2, 0, 0], sizes = [16, 16, 4], strides = [1, 1, 1]} : vector<18x18x4xf32> to vector<16x16x4xf32>
    %143 = vector.shape_cast %142 : vector<16x16x4xf32> to vector<256x4xf32>
    %144 = vector.extract_strided_slice %129 {offsets = [2, 1, 0], sizes = [16, 16, 4], strides = [1, 1, 1]} : vector<18x18x4xf32> to vector<16x16x4xf32>
    %145 = vector.shape_cast %144 : vector<16x16x4xf32> to vector<256x4xf32>
    %146 = vector.extract_strided_slice %129 {offsets = [2, 2, 0], sizes = [16, 16, 4], strides = [1, 1, 1]} : vector<18x18x4xf32> to vector<16x16x4xf32>
    %147 = vector.shape_cast %146 : vector<16x16x4xf32> to vector<256x4xf32>
    %148 = tpu.concatenate %131, %133, %135, %137, %139, %141, %143, %145, %147 in 1 : vector<256x4xf32>, vector<256x4xf32>, vector<256x4xf32>, vector<256x4xf32>, vector<256x4xf32>, vector<256x4xf32>, vector<256x4xf32>, vector<256x4xf32>, vector<256x4xf32> -> vector<256x36xf32>
    %c0_59 = arith.constant 0 : index
    %c0_60 = arith.constant 0 : index
    %149 = vector.load %arg7[%c0_59, %c0_60] : memref<36x4xf32, #tpu.memory_space<vmem>>, vector<36x4xf32>
    %cst_61 = arith.constant dense<0.000000e+00> : vector<256x4xf32>
    %150 = tpu.matmul %148, %149, %cst_61 {dimension_numbers = #tpu.dot_dimension_numbers<[1], [0], [0], [1], [0, 0, 1, 1], [], []>} : vector<256x36xf32>, vector<36x4xf32>, vector<256x4xf32> -> vector<256x4xf32>
    %c0_62 = arith.constant 0 : index
    %c0_63 = arith.constant 0 : index
    %151 = vector.load %arg8[%c0_62, %c0_63] : memref<1x4xf32, #tpu.memory_space<vmem>>, vector<1x4xf32>
    %152 = vector.broadcast %151 : vector<1x4xf32> to vector<256x4xf32>
    %153 = arith.addf %150, %152 : vector<256x4xf32>
    %cst_64 = arith.constant 0.000000e+00 : f32
    %154 = vector.broadcast %cst_64 : f32 to vector<256x4xf32>
    %155 = arith.cmpf oge, %153, %154 : vector<256x4xf32>
    %cst_65 = arith.constant 2.000000e-01 : f32
    %156 = vector.broadcast %cst_65 : f32 to vector<256x4xf32>
    %157 = arith.mulf %156, %153 : vector<256x4xf32>
    %158 = arith.select %155, %153, %157 : vector<256x4xi1>, vector<256x4xf32>
    %159 = arith.addf %158, %119 : vector<256x4xf32>
    %160 = vector.shape_cast %159 : vector<256x4xf32> to vector<1x16x16x4xf32>
    %c0_66 = arith.constant 0 : index
    %c0_67 = arith.constant 0 : index
    %c0_68 = arith.constant 0 : index
    %c0_69 = arith.constant 0 : index
    %161 = vector.load %arg9[%c0_66, %c0_67, %c0_68, %c0_69] : memref<1x16x16x4xf32, #tpu.memory_space<vmem>>, vector<1x16x16x4xf32>
    tpu.vector_store %arg9[%c0_66, %c0_67, %c0_68, %c0_69], %160 {strides = array<i32>} : memref<1x16x16x4xf32, #tpu.memory_space<vmem>>, vector<1x16x16x4xf32>,
    return
  }
  func.func @transform_0(%arg0: i32) -> (i32, i32, i32, i32) {
    %c0_i32 = arith.constant 0 : i32
    %c0_i32_0 = arith.constant 0 : i32
    %c0_i32_1 = arith.constant 0 : i32
    %c0_i32_2 = arith.constant 0 : i32
    return %arg0, %c0_i32, %c0_i32_0, %c0_i32_1 : i32, i32, i32, i32
  }
  func.func @transform_1(%arg0: i32) -> (i32, i32, i32, i32) {
    %c0_i32 = arith.constant 0 : i32
    %c0_i32_0 = arith.constant 0 : i32
    %c0_i32_1 = arith.constant 0 : i32
    %c0_i32_2 = arith.constant 0 : i32
    return %arg0, %c0_i32, %c0_i32_0, %c0_i32_1 : i32, i32, i32, i32
  }
  func.func @transform_2(%arg0: i32) -> (i32, i32) {
    %c0_i32 = arith.constant 0 : i32
    %c0_i32_0 = arith.constant 0 : i32
    %c0_i32_1 = arith.constant 0 : i32
    return %c0_i32, %c0_i32_0 : i32, i32
  }
  func.func @transform_3(%arg0: i32) -> (i32, i32) {
    %c0_i32 = arith.constant 0 : i32
    %c0_i32_0 = arith.constant 0 : i32
    %c0_i32_1 = arith.constant 0 : i32
    return %c0_i32, %c0_i32_0 : i32, i32
  }
  func.func @transform_4(%arg0: i32) -> (i32, i32) {
    %c0_i32 = arith.constant 0 : i32
    %c0_i32_0 = arith.constant 0 : i32
    %c0_i32_1 = arith.constant 0 : i32
    return %c0_i32, %c0_i32_0 : i32, i32
  }
  func.func @transform_5(%arg0: i32) -> (i32, i32) {
    %c0_i32 = arith.constant 0 : i32
    %c0_i32_0 = arith.constant 0 : i32
    %c0_i32_1 = arith.constant 0 : i32
    return %c0_i32, %c0_i32_0 : i32, i32
  }
  func.func @transform_6(%arg0: i32) -> (i32, i32) {
    %c0_i32 = arith.constant 0 : i32
    %c0_i32_0 = arith.constant 0 : i32
    %c0_i32_1 = arith.constant 0 : i32
    return %c0_i32, %c0_i32_0 : i32, i32
  }
  func.func @transform_7(%arg0: i32) -> (i32, i32) {
    %c0_i32 = arith.constant 0 : i32
    %c0_i32_0 = arith.constant 0 : i32
    %c0_i32_1 = arith.constant 0 : i32
    return %c0_i32, %c0_i32_0 : i32, i32
  }
  func.func @transform_8(%arg0: i32) -> (i32, i32, i32, i32) {
    %c0_i32 = arith.constant 0 : i32
    %c0_i32_0 = arith.constant 0 : i32
    %c0_i32_1 = arith.constant 0 : i32
    %c0_i32_2 = arith.constant 0 : i32
    return %arg0, %c0_i32, %c0_i32_0, %c0_i32_1 : i32, i32, i32, i32
  }
}

</mosaic_0001>

<llo_original>
// kernel: unet_up_block_forward.1
$region0: #{unet_up_block_forward.1}
  #allocation0 [shape = 'u32[]', space=smem, size = 0x4, offset = 0x4, fixed_abs, tag = 'smem constant byte address 0x4 - core index']
  #allocation1 [shape = 'u32[72,128]{1,0:T(1,128)}', space=vmem, size = 0x9000, scoped, tag = 'internal scratch']
  #allocation2 [shape = 'f32[18,18,4]{2,1,0:T(8,128)}', space=vmem, size = 0x36000, scoped, tag = 'scratch operand']
  #allocation3 [shape = 'f32[18,18,4]{2,1,0:T(8,128)}', space=vmem, size = 0x36000, scoped, tag = 'scratch operand']
  #allocation4 [shape = 'f32[18,18,4]{2,1,0:T(8,128)}', space=vmem, size = 0x36000, scoped, tag = 'scratch operand']
  %s0 = inlined_call_operand.vmem [shape: f32[2,8,8,8], index: 0, kind: input, shape index: {}]
  %s1 = inlined_call_operand.vmem [shape: f32[2,16,16,4], index: 1, kind: input, shape index: {}]
  %s2 = inlined_call_operand.vmem [shape: f32[8,16], index: 2, kind: input, shape index: {}]
  %s3 = inlined_call_operand.vmem [shape: f32[1,4], index: 3, kind: input, shape index: {}]
  %s4 = inlined_call_operand.vmem [shape: f32[72,8], index: 4, kind: input, shape index: {}]
  %s5 = inlined_call_operand.vmem [shape: f32[1,8], index: 5, kind: input, shape index: {}]
  %s6 = inlined_call_operand.vmem [shape: f32[36,4], index: 6, kind: input, shape index: {}]
  %s7 = inlined_call_operand.vmem [shape: f32[1,4], index: 7, kind: input, shape index: {}]
  %s8 = inlined_call_operand.vmem [shape: f32[2,16,16,4], index: 8, kind: output, shape index: {}]
  %s9 = sld [smem:[#allocation0]]
  $region65: #{unet_up_block_forward.1} parent=0
    _
  %s11 = ssub.s32 1, %s9
  %s12 = scalar_select 0, %s11, %s9
  loop: start=0, step=1, limit=4
  $region2: #{unet_up_block_forward.1} parent=0 // loop_pre_header
    _
  $region3: #{unet_up_block_forward.1} parent=0 // loop_header
    %s14 = sphi 0, %s18
    %p15 = scmp.ge.s32.totalorder %s14, 4
    %s24 = sphi 0, %s26
    %s27 = sphi 0, %s24
    %s28 = sphi 0, %s27
    %s44 = sphi 0, %s28
    %s50 = sphi 0, %s52
    %s53 = sphi 0, %s50
    %s54 = sphi 0, %s53
    %s70 = sphi 0, %s54
    %s74 = sphi 0, %s74
    %s76 = sphi 0, %s74
    %s77 = sphi 0, %s76
    %s91 = sphi 0, %s77
    %s95 = sphi 0, %s95
    %s97 = sphi 0, %s95
    %s98 = sphi 0, %s97
    %s112 = sphi 0, %s98
    %s116 = sphi 0, %s116
    %s118 = sphi 0, %s116
    %s119 = sphi 0, %s118
    %s133 = sphi 0, %s119
    %s137 = sphi 0, %s137
    %s139 = sphi 0, %s137
    %s140 = sphi 0, %s139
    %s154 = sphi 0, %s140
    %s158 = sphi 0, %s158
    %s160 = sphi 0, %s158
    %s161 = sphi 0, %s160
    %s175 = sphi 0, %s161
    %s179 = sphi 0, %s179
    %s181 = sphi 0, %s179
    %s182 = sphi 0, %s181
    %s196 = sphi 0, %s182
    %s202 = sphi 0, %s204
    %s205 = sphi 0, %s202
    %s206 = sphi 0, %s205
    %s222 = sphi 0, %s206
  $region4: #{unet_up_block_forward.1} parent=0 // loop_header_branch
    %17 = sbr.rel (%p15) target = $region8
  $region5: #{unet_up_block_forward.1} parent=0 // loop_body
    %s19 = ssub.s32 %s14, 1
    %s20 = ssub.s32 %s14, 2
    %s21 = sadd.s32 %s14, 1
    %s22 = ssub.s32 %s14, %s21
    %p23 = scmp.eq.s32.totalorder %s22, 0
    %s25 = sadd.s32 %s24, 1
    %s26 = scalar_select %p23, %s24, %s25
    %p29 = pneg %p23
    %p30 = scmp.eq.s32.totalorder %s14, 1
    %p31 = por %p29, %p30
    %p32 = scmp.ne.s32.totalorder %s24, %s27
    %p33 = scmp.eq.s32.totalorder %s14, 0
    %p34 = por %p32, %p33
    %p35 = scmp.ne.s32.totalorder %s24, %s27
    %p36 = scmp.eq.s32.totalorder %s19, 1
    %p37 = por %p35, %p36
    %p38 = scmp.ne.s32.totalorder %s27, %s28
    %p39 = scmp.eq.s32.totalorder %s19, 0
    %p40 = por %p38, %p39
    %p41 = scmp.ne.s32.totalorder %s27, %s28
    %p42 = scmp.eq.s32.totalorder %s20, 1
    %p43 = por %p41, %p42
    %p45 = scmp.ne.s32.totalorder %s28, %s44
    %p46 = scmp.eq.s32.totalorder %s20, 0
    %p47 = por %p45, %p46
    %s48 = ssub.s32 %s14, %s21
    %p49 = scmp.eq.s32.totalorder %s48, 0
    %s51 = sadd.s32 %s50, 1
    %s52 = scalar_select %p49, %s50, %s51
    %p55 = pneg %p49
    %p56 = scmp.eq.s32.totalorder %s14, 1
    %p57 = por %p55, %p56
    %p58 = scmp.ne.s32.totalorder %s50, %s53
    %p59 = scmp.eq.s32.totalorder %s14, 0
    %p60 = por %p58, %p59
    %p61 = scmp.ne.s32.totalorder %s50, %s53
    %p62 = scmp.eq.s32.totalorder %s19, 1
    %p63 = por %p61, %p62
    %p64 = scmp.ne.s32.totalorder %s53, %s54
    %p65 = scmp.eq.s32.totalorder %s19, 0
    %p66 = por %p64, %p65
    %p67 = scmp.ne.s32.totalorder %s53, %s54
    %p68 = scmp.eq.s32.totalorder %s20, 1
    %p69 = por %p67, %p68
    %p71 = scmp.ne.s32.totalorder %s54, %s70
    %p72 = scmp.eq.s32.totalorder %s20, 0
    %p73 = por %p71, %p72
    %s75 = sadd.s32 %s74, 1
    %p78 = scmp.eq.s32.totalorder %s14, 1
    %p79 = scmp.ne.s32.totalorder %s74, %s76
    %p80 = scmp.eq.s32.totalorder %s14, 0
    %p81 = por %p79, %p80
    %p82 = scmp.ne.s32.totalorder %s74, %s76
    %p83 = scmp.eq.s32.totalorder %s19, 1
    %p84 = por %p82, %p83
    %p85 = scmp.ne.s32.totalorder %s76, %s77
    %p86 = scmp.eq.s32.totalorder %s19, 0
    %p87 = por %p85, %p86
    %p88 = scmp.ne.s32.totalorder %s76, %s77
    %p89 = scmp.eq.s32.totalorder %s20, 1
    %p90 = por %p88, %p89
    %p92 = scmp.ne.s32.totalorder %s77, %s91
    %p93 = scmp.eq.s32.totalorder %s20, 0
    %p94 = por %p92, %p93
    %s96 = sadd.s32 %s95, 1
    %p99 = scmp.eq.s32.totalorder %s14, 1
    %p100 = scmp.ne.s32.totalorder %s95, %s97
    %p101 = scmp.eq.s32.totalorder %s14, 0
    %p102 = por %p100, %p101
    %p103 = scmp.ne.s32.totalorder %s95, %s97
    %p104 = scmp.eq.s32.totalorder %s19, 1
    %p105 = por %p103, %p104
    %p106 = scmp.ne.s32.totalorder %s97, %s98
    %p107 = scmp.eq.s32.totalorder %s19, 0
    %p108 = por %p106, %p107
    %p109 = scmp.ne.s32.totalorder %s97, %s98
    %p110 = scmp.eq.s32.totalorder %s20, 1
    %p111 = por %p109, %p110
    %p113 = scmp.ne.s32.totalorder %s98, %s112
    %p114 = scmp.eq.s32.totalorder %s20, 0
    %p115 = por %p113, %p114
    %s117 = sadd.s32 %s116, 1
    %p120 = scmp.eq.s32.totalorder %s14, 1
    %p121 = scmp.ne.s32.totalorder %s116, %s118
    %p122 = scmp.eq.s32.totalorder %s14, 0
    %p123 = por %p121, %p122
    %p124 = scmp.ne.s32.totalorder %s116, %s118
    %p125 = scmp.eq.s32.totalorder %s19, 1
    %p126 = por %p124, %p125
    %p127 = scmp.ne.s32.totalorder %s118, %s119
    %p128 = scmp.eq.s32.totalorder %s19, 0
    %p129 = por %p127, %p128
    %p130 = scmp.ne.s32.totalorder %s118, %s119
    %p131 = scmp.eq.s32.totalorder %s20, 1
    %p132 = por %p130, %p131
    %p134 = scmp.ne.s32.totalorder %s119, %s133
    %p135 = scmp.eq.s32.totalorder %s20, 0
    %p136 = por %p134, %p135
    %s138 = sadd.s32 %s137, 1
    %p141 = scmp.eq.s32.totalorder %s14, 1
    %p142 = scmp.ne.s32.totalorder %s137, %s139
    %p143 = scmp.eq.s32.totalorder %s14, 0
    %p144 = por %p142, %p143
    %p145 = scmp.ne.s32.totalorder %s137, %s139
    %p146 = scmp.eq.s32.totalorder %s19, 1
    %p147 = por %p145, %p146
    %p148 = scmp.ne.s32.totalorder %s139, %s140
    %p149 = scmp.eq.s32.totalorder %s19, 0
    %p150 = por %p148, %p149
    %p151 = scmp.ne.s32.totalorder %s139, %s140
    %p152 = scmp.eq.s32.totalorder %s20, 1
    %p153 = por %p151, %p152
    %p155 = scmp.ne.s32.totalorder %s140, %s154
    %p156 = scmp.eq.s32.totalorder %s20, 0
    %p157 = por %p155, %p156
    %s159 = sadd.s32 %s158, 1
    %p162 = scmp.eq.s32.totalorder %s14, 1
    %p163 = scmp.ne.s32.totalorder %s158, %s160
    %p164 = scmp.eq.s32.totalorder %s14, 0
    %p165 = por %p163, %p164
    %p166 = scmp.ne.s32.totalorder %s158, %s160
    %p167 = scmp.eq.s32.totalorder %s19, 1
    %p168 = por %p166, %p167
    %p169 = scmp.ne.s32.totalorder %s160, %s161
    %p170 = scmp.eq.s32.totalorder %s19, 0
    %p171 = por %p169, %p170
    %p172 = scmp.ne.s32.totalorder %s160, %s161
    %p173 = scmp.eq.s32.totalorder %s20, 1
    %p174 = por %p172, %p173
    %p176 = scmp.ne.s32.totalorder %s161, %s175
    %p177 = scmp.eq.s32.totalorder %s20, 0
    %p178 = por %p176, %p177
    %s180 = sadd.s32 %s179, 1
    %p183 = scmp.eq.s32.totalorder %s14, 1
    %p184 = scmp.ne.s32.totalorder %s179, %s181
    %p185 = scmp.eq.s32.totalorder %s14, 0
    %p186 = por %p184, %p185
    %p187 = scmp.ne.s32.totalorder %s179, %s181
    %p188 = scmp.eq.s32.totalorder %s19, 1
    %p189 = por %p187, %p188
    %p190 = scmp.ne.s32.totalorder %s181, %s182
    %p191 = scmp.eq.s32.totalorder %s19, 0
    %p192 = por %p190, %p191
    %p193 = scmp.ne.s32.totalorder %s181, %s182
    %p194 = scmp.eq.s32.totalorder %s20, 1
    %p195 = por %p193, %p194
    %p197 = scmp.ne.s32.totalorder %s182, %s196
    %p198 = scmp.eq.s32.totalorder %s20, 0
    %p199 = por %p197, %p198
    %s200 = ssub.s32 %s14, %s21
    %p201 = scmp.eq.s32.totalorder %s200, 0
    %s203 = sadd.s32 %s202, 1
    %s204 = scalar_select %p201, %s202, %s203
    %p207 = pneg %p201
    %p208 = scmp.eq.s32.totalorder %s14, 1
    %p209 = por %p207, %p208
    %p210 = scmp.ne.s32.totalorder %s202, %s205
    %p211 = scmp.eq.s32.totalorder %s14, 0
    %p212 = por %p210, %p211
    %p213 = scmp.ne.s32.totalorder %s202, %s205
    %p214 = scmp.eq.s32.totalorder %s19, 1
    %p215 = por %p213, %p214
    %p216 = scmp.ne.s32.totalorder %s205, %s206
    %p217 = scmp.eq.s32.totalorder %s19, 0
    %p218 = por %p216, %p217
    %p219 = scmp.ne.s32.totalorder %s205, %s206
    %p220 = scmp.eq.s32.totalorder %s20, 1
    %p221 = por %p219, %p220
    %p223 = scmp.ne.s32.totalorder %s206, %s222
    %p224 = scmp.eq.s32.totalorder %s20, 0
    %p225 = por %p223, %p224
    %p226 = scmp.le.s32.totalorder 1, %s14
    %p227 = scmp.lt.s32.totalorder %s14, 3
    %p228 = pnand %p226, %p227
    %p229 = pneg %p228
    // Predicated region
    $region9: #{unet_up_block_forward.1} parent=5 // pred_check
      _
    $region10: #{unet_up_block_forward.1} parent=5 // pred_check_branch
      %231 = sbr.rel (%p228) target = $region12
    $region11: #{unet_up_block_forward.1} parent=5 // pred_region
      %s232 = ssub.s32 %s14, 1
      // Predicated region
      $region13: #{unet_up_block_forward.1} parent=11 // pred_check
        %p233 = pneg %p87
      $region14: #{unet_up_block_forward.1} parent=11 // pred_check_branch
        %235 = sbr.rel (%p233) target = $region16
      $region15: #{unet_up_block_forward.1} parent=11 // pred_region
        _
      $region16: #{unet_up_block_forward.1} parent=11 // pred_fallthru
        _
      // Predicated region
      $region17: #{unet_up_block_forward.1} parent=11 // pred_check
        %p236 = pneg %p108
      $region18: #{unet_up_block_forward.1} parent=11 // pred_check_branch
        %238 = sbr.rel (%p236) target = $region20
      $region19: #{unet_up_block_forward.1} parent=11 // pred_region
        _
      $region20: #{unet_up_block_forward.1} parent=11 // pred_fallthru
        _
      // Predicated region
      $region21: #{unet_up_block_forward.1} parent=11 // pred_check
        %p239 = pneg %p129
      $region22: #{unet_up_block_forward.1} parent=11 // pred_check_branch
        %241 = sbr.rel (%p239) target = $region24
      $region23: #{unet_up_block_forward.1} parent=11 // pred_region
        _
      $region24: #{unet_up_block_forward.1} parent=11 // pred_fallthru
        _
      // Predicated region
      $region25: #{unet_up_block_forward.1} parent=11 // pred_check
        %p242 = pneg %p150
      $region26: #{unet_up_block_forward.1} parent=11 // pred_check_branch
        %244 = sbr.rel (%p242) target = $region28
      $region27: #{unet_up_block_forward.1} parent=11 // pred_region
        _
      $region28: #{unet_up_block_forward.1} parent=11 // pred_fallthru
        _
      // Predicated region
      $region29: #{unet_up_block_forward.1} parent=11 // pred_check
        %p245 = pneg %p171
      $region30: #{unet_up_block_forward.1} parent=11 // pred_check_branch
        %247 = sbr.rel (%p245) target = $region32
      $region31: #{unet_up_block_forward.1} parent=11 // pred_region
        _
      $region32: #{unet_up_block_forward.1} parent=11 // pred_fallthru
        _
      // Predicated region
      $region33: #{unet_up_block_forward.1} parent=11 // pred_check
        %p248 = pneg %p192
      $region34: #{unet_up_block_forward.1} parent=11 // pred_check_branch
        %250 = sbr.rel (%p248) target = $region36
      $region35: #{unet_up_block_forward.1} parent=11 // pred_region
        _
      $region36: #{unet_up_block_forward.1} parent=11 // pred_fallthru
        _
    $region12: #{unet_up_block_forward.1} parent=5 // pred_fallthru
      _
    %p251 = scmp.lt.s32.totalorder %s14, 2
    // Predicated region
    $region37: #{unet_up_block_forward.1} parent=5 // pred_check
      %p252 = pneg %p251
    $region38: #{unet_up_block_forward.1} parent=5 // pred_check_branch
      %254 = sbr.rel (%p252) target = $region40
    $region39: #{unet_up_block_forward.1} parent=5 // pred_region
      // Predicated region
      $region41: #{unet_up_block_forward.1} parent=39 // pred_check
        %p255 = pneg %p34
      $region42: #{unet_up_block_forward.1} parent=39 // pred_check_branch
        %257 = sbr.rel (%p255) target = $region44
      $region43: #{unet_up_block_forward.1} parent=39 // pred_region
        %p258 = scmp.lt.s32.totalorder %s14, 1
        %s259 = scalar_select %p258, %s14, 1
        %s260 = smul.addr %s259, 8
        %s261 = smul.addr %s260, 8
        %s262 = scalar_lea.vmem %s0, %s261
      $region44: #{unet_up_block_forward.1} parent=39 // pred_fallthru
        _
      // Predicated region
      $region45: #{unet_up_block_forward.1} parent=39 // pred_check
        %p263 = pneg %p60
      $region46: #{unet_up_block_forward.1} parent=39 // pred_check_branch
        %265 = sbr.rel (%p263) target = $region48
      $region47: #{unet_up_block_forward.1} parent=39 // pred_region
        %p266 = scmp.lt.s32.totalorder %s14, 1
        %s267 = scalar_select %p266, %s14, 1
        %s268 = smul.addr %s267, 32
        %s269 = smul.addr %s268, 8
        %s270 = scalar_lea.vmem %s1, %s269
      $region48: #{unet_up_block_forward.1} parent=39 // pred_fallthru
        _
    $region40: #{unet_up_block_forward.1} parent=5 // pred_fallthru
      _
    %p271 = scmp.le.s32.totalorder 1, %s14
    %p272 = scmp.lt.s32.totalorder %s14, 3
    %p273 = pnand %p271, %p272
    %p274 = pneg %p273
    // Predicated region
    $region49: #{unet_up_block_forward.1} parent=5 // pred_check
      _
    $region50: #{unet_up_block_forward.1} parent=5 // pred_check_branch
      %276 = sbr.rel (%p273) target = $region52
    $region51: #{unet_up_block_forward.1} parent=5 // pred_region
      %s277 = ssub.s32 %s14, 1
      %p278 = scmp.lt.s32.totalorder %s19, 1
      %s279 = scalar_select %p278, %s19, 1
      %s280 = smul.addr %s279, 8
      %s281 = smul.addr %s280, 8
      %s282 = scalar_lea.vmem %s0, %s281
      %p283 = pneg %p40
      %p284 = pneg %p37
      %p285 = scmp.lt.s32.totalorder %s19, 1
      %s286 = scalar_select %p285, %s19, 1
      %s287 = smul.addr %s286, 32
      %s288 = smul.addr %s287, 8
      %s289 = scalar_lea.vmem %s1, %s288
      %p290 = pneg %p66
      %p291 = pneg %p63
      %p292 = pneg %p87
      %p293 = pneg %p84
      %p294 = pneg %p108
      %p295 = pneg %p105
      %p296 = pneg %p129
      %p297 = pneg %p126
      %p298 = pneg %p150
      %p299 = pneg %p147
      %p300 = pneg %p171
      %p301 = pneg %p168
      %p302 = pneg %p192
      %p303 = pneg %p189
      %p304 = pneg %p218
      %p305 = pneg %p215
      %p306 = scmp.lt.s32.totalorder %s19, 1
      %s307 = scalar_select %p306, %s19, 1
      %s308 = smul.addr %s307, 32
      %s309 = smul.addr %s308, 8
      %s310 = scalar_lea.vmem %s8, %s309
      %p311 = scmp.lt.s32.totalorder %s19, 1
      %s312 = scalar_select %p311, %s19, 1
      %s313 = smul.addr %s312, 8
      %s314 = smul.addr %s313, 8
      %s315 = scalar_lea.vmem %s0, %s314
      %p316 = scmp.lt.s32.totalorder %s19, 1
      %s317 = scalar_select %p316, %s19, 1
      %s318 = smul.addr %s317, 32
      %s319 = smul.addr %s318, 8
      %s320 = scalar_lea.vmem %s1, %s319
      %p321 = scmp.lt.s32.totalorder %s19, 1
      %s322 = scalar_select %p321, %s19, 1
      %s323 = smul.addr %s322, 32
      %s324 = smul.addr %s323, 8
      %s325 = scalar_lea.vmem %s8, %s324
      %v326 = vld [vmem:[%s315] sm:$0xff]
      %v327 = vld [vmem:[%s315 + $0x8] sm:$0xff]
      %v328 = vld [vmem:[%s315 + $0x10] sm:$0xff]
      %v329 = vld [vmem:[%s315 + $0x18] sm:$0xff]
      %v330 = vld [vmem:[%s315 + $0x20] sm:$0xff]
      %v331 = vld [vmem:[%s315 + $0x28] sm:$0xff]
      %v332 = vld [vmem:[%s315 + $0x30] sm:$0xff]
      %v333 = vld [vmem:[%s315 + $0x38] sm:$0xff]
      %v334 = vld [vmem:[%s2] sm:$0xff]
      %vm335 = vcmask 64512
      %v337 = vsel %vm335, %v326, 0
      %v340 = vsel %vm335, %v327, 0
      %v343 = vsel %vm335, %v328, 0
      %v346 = vsel %vm335, %v329, 0
      %v349 = vsel %vm335, %v330, 0
      %v352 = vsel %vm335, %v331, 0
      %v355 = vsel %vm335, %v332, 0
      %v358 = vsel %vm335, %v333, 0
      %360 = vmatpush.msra.mxu0 0.0
      %361 = vmatpush.msra.mxu0 0.0
      %362 = vmatpush.msra.mxu0 0.0
      %363 = vmatpush.msra.mxu0 0.0
      %364 = vmatpush.msra.mxu0 0.0
      %365 = vmatpush.msra.mxu0 0.0
      %366 = vmatpush.msra.mxu0 0.0
      %367 = vmatpush.msra.mxu0 0.0
      %368 = vmatpush.msra.mxu0 0.0
      %369 = vmatpush.msra.mxu0 0.0
      %370 = vmatpush.msra.mxu0 0.0
      %371 = vmatpush.msra.mxu0 0.0
      %372 = vmatpush.msra.mxu0 0.0
      %373 = vmatpush.msra.mxu0 0.0
      %374 = vmatpush.msra.mxu0 0.0
      %375 = vmatpush.msra.mxu0 %v334
      %376 = vmatmul.f32.gmra.mxu0 %v337
      %v377 = vpop.f32.mrf.mxu0
      %v378 = vadd.f32 0.0, %v377
      %379 = vmatmul.f32.gmra.mxu0 %v340
      %v380 = vpop.f32.mrf.mxu0
      %v381 = vadd.f32 0.0, %v380
      %382 = vmatmul.f32.gmra.mxu0 %v343
      %v383 = vpop.f32.mrf.mxu0
      %v384 = vadd.f32 0.0, %v383
      %385 = vmatmul.f32.gmra.mxu0 %v346
      %v386 = vpop.f32.mrf.mxu0
      %v387 = vadd.f32 0.0, %v386
      %388 = vmatmul.f32.gmra.mxu0 %v349
      %v389 = vpop.f32.mrf.mxu0
      %v390 = vadd.f32 0.0, %v389
      %391 = vmatmul.f32.gmra.mxu0 %v352
      %v392 = vpop.f32.mrf.mxu0
      %v393 = vadd.f32 0.0, %v392
      %394 = vmatmul.f32.gmra.mxu0 %v355
      %v395 = vpop.f32.mrf.mxu0
      %v396 = vadd.f32 0.0, %v395
      %397 = vmatmul.f32.gmra.mxu0 %v358
      %v398 = vpop.f32.mrf.mxu0
      %v399 = vadd.f32 0.0, %v398
      %400 = vdwg.mxu0
      %v409 = vrot.slane %v378, 1
      %v410 = vrot.slane %v378, 2
      %v411 = vrot.slane %v378, 3
      %v412 = vrot.slane %v378, 4
      %v413 = vrot.slane %v378, 5
      %v414 = vrot.slane %v378, 6
      %v415 = vrot.slane %v378, 7
      %v416 = vrot.slane %v381, 1
      %v417 = vrot.slane %v381, 2
      %v418 = vrot.slane %v381, 3
      %v419 = vrot.slane %v381, 4
      %v420 = vrot.slane %v381, 5
      %v421 = vrot.slane %v381, 6
      %v422 = vrot.slane %v381, 7
      %v423 = vrot.slane %v384, 1
      %v424 = vrot.slane %v384, 2
      %v425 = vrot.slane %v384, 3
      %v426 = vrot.slane %v384, 4
      %v427 = vrot.slane %v384, 5
      %v428 = vrot.slane %v384, 6
      %v429 = vrot.slane %v384, 7
      %v430 = vrot.slane %v387, 1
      %v431 = vrot.slane %v387, 2
      %v432 = vrot.slane %v387, 3
      %v433 = vrot.slane %v387, 4
      %v434 = vrot.slane %v387, 5
      %v435 = vrot.slane %v387, 6
      %v436 = vrot.slane %v387, 7
      %v437 = vrot.slane %v390, 1
      %v438 = vrot.slane %v390, 2
      %v439 = vrot.slane %v390, 3
      %v440 = vrot.slane %v390, 4
      %v441 = vrot.slane %v390, 5
      %v442 = vrot.slane %v390, 6
      %v443 = vrot.slane %v390, 7
      %v444 = vrot.slane %v393, 1
      %v445 = vrot.slane %v393, 2
      %v446 = vrot.slane %v393, 3
      %v447 = vrot.slane %v393, 4
      %v448 = vrot.slane %v393, 5
      %v449 = vrot.slane %v393, 6
      %v450 = vrot.slane %v393, 7
      %v451 = vrot.slane %v396, 1
      %v452 = vrot.slane %v396, 2
      %v453 = vrot.slane %v396, 3
      %v454 = vrot.slane %v396, 4
      %v455 = vrot.slane %v396, 5
      %v456 = vrot.slane %v396, 6
      %v457 = vrot.slane %v396, 7
      %v458 = vrot.slane %v399, 1
      %v459 = vrot.slane %v399, 2
      %v460 = vrot.slane %v399, 3
      %v461 = vrot.slane %v399, 4
      %v462 = vrot.slane %v399, 5
      %v463 = vrot.slane %v399, 6
      %v464 = vrot.slane %v399, 7
      %v465 = vperm.slane %v378, 0
      %v466 = vperm.slane %v409, 0
      %v467 = vperm.slane %v410, 0
      %v468 = vperm.slane %v411, 0
      %v469 = vperm.slane %v412, 0
      %v470 = vperm.slane %v413, 0
      %v471 = vperm.slane %v414, 0
      %v472 = vperm.slane %v415, 0
      %v473 = vperm.slane %v381, 0
      %v474 = vperm.slane %v416, 0
      %v475 = vperm.slane %v417, 0
      %v476 = vperm.slane %v418, 0
      %v477 = vperm.slane %v419, 0
      %v478 = vperm.slane %v420, 0
      %v479 = vperm.slane %v421, 0
      %v480 = vperm.slane %v422, 0
      %v481 = vperm.slane %v384, 0
      %v482 = vperm.slane %v423, 0
      %v483 = vperm.slane %v424, 0
      %v484 = vperm.slane %v425, 0
      %v485 = vperm.slane %v426, 0
      %v486 = vperm.slane %v427, 0
      %v487 = vperm.slane %v428, 0
      %v488 = vperm.slane %v429, 0
      %v489 = vperm.slane %v387, 0
      %v490 = vperm.slane %v430, 0
      %v491 = vperm.slane %v431, 0
      %v492 = vperm.slane %v432, 0
      %v493 = vperm.slane %v433, 0
      %v494 = vperm.slane %v434, 0
      %v495 = vperm.slane %v435, 0
      %v496 = vperm.slane %v436, 0
      %v497 = vperm.slane %v390, 0
      %v498 = vperm.slane %v437, 0
      %v499 = vperm.slane %v438, 0
      %v500 = vperm.slane %v439, 0
      %v501 = vperm.slane %v440, 0
      %v502 = vperm.slane %v441, 0
      %v503 = vperm.slane %v442, 0
      %v504 = vperm.slane %v443, 0
      %v505 = vperm.slane %v393, 0
      %v506 = vperm.slane %v444, 0
      %v507 = vperm.slane %v445, 0
      %v508 = vperm.slane %v446, 0
      %v509 = vperm.slane %v447, 0
      %v510 = vperm.slane %v448, 0
      %v511 = vperm.slane %v449, 0
      %v512 = vperm.slane %v450, 0
      %v513 = vperm.slane %v396, 0
      %v514 = vperm.slane %v451, 0
      %v515 = vperm.slane %v452, 0
      %v516 = vperm.slane %v453, 0
      %v517 = vperm.slane %v454, 0
      %v518 = vperm.slane %v455, 0
      %v519 = vperm.slane %v456, 0
      %v520 = vperm.slane %v457, 0
      %v521 = vperm.slane %v399, 0
      %v522 = vperm.slane %v458, 0
      %v523 = vperm.slane %v459, 0
      %v524 = vperm.slane %v460, 0
      %v525 = vperm.slane %v461, 0
      %v526 = vperm.slane %v462, 0
      %v527 = vperm.slane %v463, 0
      %v528 = vperm.slane %v464, 0
      %v529 = vlaneseq
      %v530 = vshrl.u32 %v529, 7
      %v531 = vadd.s32 %v530, 8
      %vm532 = vcmp.lt.s32.totalorder %v530, 0
      %v533 = vsub.s32 0, %v530
      %v534 = vsel %vm532, %v533, %v530
      %v535 = vshrl.u32 %v534, 1
      %v536 = vand.u32 %v534, 1
      %v537 = vsub.s32 0, %v536
      %v538 = vsel %vm532, %v537, %v536
      %vm539 = vcmp.lt.s32.totalorder %v531, 0
      %v540 = vsub.s32 0, %v531
      %v541 = vsel %vm539, %v540, %v531
      %v542 = vshrl.u32 %v541, 1
      %v543 = vand.u32 %v541, 1
      %v544 = vsub.s32 0, %v543
      %v545 = vsel %vm539, %v544, %v543
      %vm546 = vcmp.ne.s32.totalorder %v538, 0
      %vm547 = vcmp.ne.s32.totalorder %v545, 0
      %vm548 = vcmp.lt.s32.totalorder %v538, 0
      %vm549 = vcmp.lt.s32.totalorder %v545, 0
      %vm550 = vmand %vm548, %vm546
      %vm551 = vmand %vm549, %vm547
      %v552 = vadd.s32 %v538, 2
      %v553 = vadd.s32 %v545, 2
      %v554 = vsel %vm550, %v552, %v538
      %v555 = vsel %vm551, %v553, %v545
      %vm556 = vcmp.eq.s32.totalorder %v554, 0
      %vm557 = vcmp.eq.s32.totalorder %v555, 0
      %558 = vst [vmem:[#allocation1] ss:$4 sm:$0xff] %v465
      %s559 = scalar_lea.vmem [#allocation1], 1
      %560 = vst [vmem:[%s559] ss:$4 sm:$0xff] %v466
      %s561 = scalar_lea.vmem [#allocation1], 2
      %562 = vst [vmem:[%s561] ss:$4 sm:$0xff] %v467
      %s563 = scalar_lea.vmem [#allocation1], 3
      %564 = vst [vmem:[%s563] ss:$4 sm:$0xff] %v468
      %s565 = scalar_lea.vmem [#allocation1], 32
      %566 = vst [vmem:[%s565] ss:$4 sm:$0xff] %v469
      %s567 = scalar_lea.vmem [#allocation1], 33
      %568 = vst [vmem:[%s567] ss:$4 sm:$0xff] %v470
      %s569 = scalar_lea.vmem [#allocation1], 34
      %570 = vst [vmem:[%s569] ss:$4 sm:$0xff] %v471
      %s571 = scalar_lea.vmem [#allocation1], 35
      %572 = vst [vmem:[%s571] ss:$4 sm:$0xff] %v472
      %v573 = vld.sshfl [vmem:[#allocation1] sm:$0xff pattern:$0x73625140]
      %v574 = vld.sshfl [vmem:[#allocation1 + $0x20] sm:$0xff pattern:$0x73625140]
      %575 = vst [vmem:[#allocation1] ss:$4 sm:$0xff] %v465
      %576 = vst [vmem:[%s559] ss:$4 sm:$0xff] %v466
      %577 = vst [vmem:[%s561] ss:$4 sm:$0xff] %v467
      %578 = vst [vmem:[%s563] ss:$4 sm:$0xff] %v468
      %579 = vst [vmem:[%s565] ss:$4 sm:$0xff] %v469
      %580 = vst [vmem:[%s567] ss:$4 sm:$0xff] %v470
      %581 = vst [vmem:[%s569] ss:$4 sm:$0xff] %v471
      %582 = vst [vmem:[%s571] ss:$4 sm:$0xff] %v472
      %v583 = vld.sshfl [vmem:[#allocation1] sm:$0xff pattern:$0x73625140]
      %v584 = vld.sshfl [vmem:[#allocation1 + $0x20] sm:$0xff pattern:$0x73625140]
      %585 = vst [vmem:[#allocation1] ss:$4 sm:$0xff] %v473
      %586 = vst [vmem:[%s559] ss:$4 sm:$0xff] %v474
      %587 = vst [vmem:[%s561] ss:$4 sm:$0xff] %v475
      %588 = vst [vmem:[%s563] ss:$4 sm:$0xff] %v476
      %589 = vst [vmem:[%s565] ss:$4 sm:$0xff] %v477
      %590 = vst [vmem:[%s567] ss:$4 sm:$0xff] %v478
      %591 = vst [vmem:[%s569] ss:$4 sm:$0xff] %v479
      %592 = vst [vmem:[%s571] ss:$4 sm:$0xff] %v480
      %v593 = vld.sshfl [vmem:[#allocation1] sm:$0xff pattern:$0x73625140]
      %v594 = vld.sshfl [vmem:[#allocation1 + $0x20] sm:$0xff pattern:$0x73625140]
      %595 = vst [vmem:[#allocation1] ss:$4 sm:$0xff] %v473
      %596 = vst [vmem:[%s559] ss:$4 sm:$0xff] %v474
      %597 = vst [vmem:[%s561] ss:$4 sm:$0xff] %v475
      %598 = vst [vmem:[%s563] ss:$4 sm:$0xff] %v476
      %599 = vst [vmem:[%s565] ss:$4 sm:$0xff] %v477
      %600 = vst [vmem:[%s567] ss:$4 sm:$0xff] %v478
      %601 = vst [vmem:[%s569] ss:$4 sm:$0xff] %v479
      %602 = vst [vmem:[%s571] ss:$4 sm:$0xff] %v480
      %v603 = vld.sshfl [vmem:[#allocation1] sm:$0xff pattern:$0x73625140]
      %v604 = vld.sshfl [vmem:[#allocation1 + $0x20] sm:$0xff pattern:$0x73625140]
      %605 = vst [vmem:[#allocation1] ss:$4 sm:$0xff] %v481
      %606 = vst [vmem:[%s559] ss:$4 sm:$0xff] %v482
      %607 = vst [vmem:[%s561] ss:$4 sm:$0xff] %v483
      %608 = vst [vmem:[%s563] ss:$4 sm:$0xff] %v484
      %609 = vst [vmem:[%s565] ss:$4 sm:$0xff] %v485
      %610 = vst [vmem:[%s567] ss:$4 sm:$0xff] %v486
      %611 = vst [vmem:[%s569] ss:$4 sm:$0xff] %v487
      %612 = vst [vmem:[%s571] ss:$4 sm:$0xff] %v488
      %v613 = vld.sshfl [vmem:[#allocation1] sm:$0xff pattern:$0x73625140]
      %v614 = vld.sshfl [vmem:[#allocation1 + $0x20] sm:$0xff pattern:$0x73625140]
      %615 = vst [vmem:[#allocation1] ss:$4 sm:$0xff] %v481
      %616 = vst [vmem:[%s559] ss:$4 sm:$0xff] %v482
      %617 = vst [vmem:[%s561] ss:$4 sm:$0xff] %v483
      %618 = vst [vmem:[%s563] ss:$4 sm:$0xff] %v484
      %619 = vst [vmem:[%s565] ss:$4 sm:$0xff] %v485
      %620 = vst [vmem:[%s567] ss:$4 sm:$0xff] %v486
      %621 = vst [vmem:[%s569] ss:$4 sm:$0xff] %v487
      %622 = vst [vmem:[%s571] ss:$4 sm:$0xff] %v488
      %v623 = vld.sshfl [vmem:[#allocation1] sm:$0xff pattern:$0x73625140]
      %v624 = vld.sshfl [vmem:[#allocation1 + $0x20] sm:$0xff pattern:$0x73625140]
      %625 = vst [vmem:[#allocation1] ss:$4 sm:$0xff] %v489
      %626 = vst [vmem:[%s559] ss:$4 sm:$0xff] %v490
      %627 = vst [vmem:[%s561] ss:$4 sm:$0xff] %v491
      %628 = vst [vmem:[%s563] ss:$4 sm:$0xff] %v492
      %629 = vst [vmem:[%s565] ss:$4 sm:$0xff] %v493
      %630 = vst [vmem:[%s567] ss:$4 sm:$0xff] %v494
      %631 = vst [vmem:[%s569] ss:$4 sm:$0xff] %v495
      %632 = vst [vmem:[%s571] ss:$4 sm:$0xff] %v496
      %v633 = vld.sshfl [vmem:[#allocation1] sm:$0xff pattern:$0x73625140]
      %v634 = vld.sshfl [vmem:[#allocation1 + $0x20] sm:$0xff pattern:$0x73625140]
      %635 = vst [vmem:[#allocation1] ss:$4 sm:$0xff] %v489
      %636 = vst [vmem:[%s559] ss:$4 sm:$0xff] %v490
      %637 = vst [vmem:[%s561] ss:$4 sm:$0xff] %v491
      %638 = vst [vmem:[%s563] ss:$4 sm:$0xff] %v492
      %639 = vst [vmem:[%s565] ss:$4 sm:$0xff] %v493
      %640 = vst [vmem:[%s567] ss:$4 sm:$0xff] %v494
      %641 = vst [vmem:[%s569] ss:$4 sm:$0xff] %v495
      %642 = vst [vmem:[%s571] ss:$4 sm:$0xff] %v496
      %v643 = vld.sshfl [vmem:[#allocation1] sm:$0xff pattern:$0x73625140]
      %v644 = vld.sshfl [vmem:[#allocation1 + $0x20] sm:$0xff pattern:$0x73625140]
      %645 = vst [vmem:[#allocation1] ss:$4 sm:$0xff] %v497
      %646 = vst [vmem:[%s559] ss:$4 sm:$0xff] %v498
      %647 = vst [vmem:[%s561] ss:$4 sm:$0xff] %v499
      %648 = vst [vmem:[%s563] ss:$4 sm:$0xff] %v500
      %649 = vst [vmem:[%s565] ss:$4 sm:$0xff] %v501
      %650 = vst [vmem:[%s567] ss:$4 sm:$0xff] %v502
      %651 = vst [vmem:[%s569] ss:$4 sm:$0xff] %v503
      %652 = vst [vmem:[%s571] ss:$4 sm:$0xff] %v504
      %v653 = vld.sshfl [vmem:[#allocation1] sm:$0xff pattern:$0x73625140]
      %v654 = vld.sshfl [vmem:[#allocation1 + $0x20] sm:$0xff pattern:$0x73625140]
      %655 = vst [vmem:[#allocation1] ss:$4 sm:$0xff] %v497
      %656 = vst [vmem:[%s559] ss:$4 sm:$0xff] %v498
      %657 = vst [vmem:[%s561] ss:$4 sm:$0xff] %v499
      %658 = vst [vmem:[%s563] ss:$4 sm:$0xff] %v500
      %659 = vst [vmem:[%s565] ss:$4 sm:$0xff] %v501
      %660 = vst [vmem:[%s567] ss:$4 sm:$0xff] %v502
      %661 = vst [vmem:[%s569] ss:$4 sm:$0xff] %v503
      %662 = vst [vmem:[%s571] ss:$4 sm:$0xff] %v504
      %v663 = vld.sshfl [vmem:[#allocation1] sm:$0xff pattern:$0x73625140]
      %v664 = vld.sshfl [vmem:[#allocation1 + $0x20] sm:$0xff pattern:$0x73625140]
      %665 = vst [vmem:[#allocation1] ss:$4 sm:$0xff] %v505
      %666 = vst [vmem:[%s559] ss:$4 sm:$0xff] %v506
      %667 = vst [vmem:[%s561] ss:$4 sm:$0xff] %v507
      %668 = vst [vmem:[%s563] ss:$4 sm:$0xff] %v508
      %669 = vst [vmem:[%s565] ss:$4 sm:$0xff] %v509
      %670 = vst [vmem:[%s567] ss:$4 sm:$0xff] %v510
      %671 = vst [vmem:[%s569] ss:$4 sm:$0xff] %v511
      %672 = vst [vmem:[%s571] ss:$4 sm:$0xff] %v512
      %v673 = vld.sshfl [vmem:[#allocation1] sm:$0xff pattern:$0x73625140]
      %v674 = vld.sshfl [vmem:[#allocation1 + $0x20] sm:$0xff pattern:$0x73625140]
      %675 = vst [vmem:[#allocation1] ss:$4 sm:$0xff] %v505
      %676 = vst [vmem:[%s559] ss:$4 sm:$0xff] %v506
      %677 = vst [vmem:[%s561] ss:$4 sm:$0xff] %v507
      %678 = vst [vmem:[%s563] ss:$4 sm:$0xff] %v508
      %679 = vst [vmem:[%s565] ss:$4 sm:$0xff] %v509
      %680 = vst [vmem:[%s567] ss:$4 sm:$0xff] %v510
      %681 = vst [vmem:[%s569] ss:$4 sm:$0xff] %v511
      %682 = vst [vmem:[%s571] ss:$4 sm:$0xff] %v512
      %v683 = vld.sshfl [vmem:[#allocation1] sm:$0xff pattern:$0x73625140]
      %v684 = vld.sshfl [vmem:[#allocation1 + $0x20] sm:$0xff pattern:$0x73625140]
      %685 = vst [vmem:[#allocation1] ss:$4 sm:$0xff] %v513
      %686 = vst [vmem:[%s559] ss:$4 sm:$0xff] %v514
      %687 = vst [vmem:[%s561] ss:$4 sm:$0xff] %v515
      %688 = vst [vmem:[%s563] ss:$4 sm:$0xff] %v516
      %689 = vst [vmem:[%s565] ss:$4 sm:$0xff] %v517
      %690 = vst [vmem:[%s567] ss:$4 sm:$0xff] %v518
      %691 = vst [vmem:[%s569] ss:$4 sm:$0xff] %v519
      %692 = vst [vmem:[%s571] ss:$4 sm:$0xff] %v520
      %v693 = vld.sshfl [vmem:[#allocation1] sm:$0xff pattern:$0x73625140]
      %v694 = vld.sshfl [vmem:[#allocation1 + $0x20] sm:$0xff pattern:$0x73625140]
      %695 = vst [vmem:[#allocation1] ss:$4 sm:$0xff] %v513
      %696 = vst [vmem:[%s559] ss:$4 sm:$0xff] %v514
      %697 = vst [vmem:[%s561] ss:$4 sm:$0xff] %v515
      %698 = vst [vmem:[%s563] ss:$4 sm:$0xff] %v516
      %699 = vst [vmem:[%s565] ss:$4 sm:$0xff] %v517
      %700 = vst [vmem:[%s567] ss:$4 sm:$0xff] %v518
      %701 = vst [vmem:[%s569] ss:$4 sm:$0xff] %v519
      %702 = vst [vmem:[%s571] ss:$4 sm:$0xff] %v520
      %v703 = vld.sshfl [vmem:[#allocation1] sm:$0xff pattern:$0x73625140]
      %v704 = vld.sshfl [vmem:[#allocation1 + $0x20] sm:$0xff pattern:$0x73625140]
      %705 = vst [vmem:[#allocation1] ss:$4 sm:$0xff] %v521
      %706 = vst [vmem:[%s559] ss:$4 sm:$0xff] %v522
      %707 = vst [vmem:[%s561] ss:$4 sm:$0xff] %v523
      %708 = vst [vmem:[%s563] ss:$4 sm:$0xff] %v524
      %709 = vst [vmem:[%s565] ss:$4 sm:$0xff] %v525
      %710 = vst [vmem:[%s567] ss:$4 sm:$0xff] %v526
      %711 = vst [vmem:[%s569] ss:$4 sm:$0xff] %v527
      %712 = vst [vmem:[%s571] ss:$4 sm:$0xff] %v528
      %v713 = vld.sshfl [vmem:[#allocation1] sm:$0xff pattern:$0x73625140]
      %v714 = vld.sshfl [vmem:[#allocation1 + $0x20] sm:$0xff pattern:$0x73625140]
      %715 = vst [vmem:[#allocation1] ss:$4 sm:$0xff] %v521
      %716 = vst [vmem:[%s559] ss:$4 sm:$0xff] %v522
      %717 = vst [vmem:[%s561] ss:$4 sm:$0xff] %v523
      %718 = vst [vmem:[%s563] ss:$4 sm:$0xff] %v524
      %719 = vst [vmem:[%s565] ss:$4 sm:$0xff] %v525
      %720 = vst [vmem:[%s567] ss:$4 sm:$0xff] %v526
      %721 = vst [vmem:[%s569] ss:$4 sm:$0xff] %v527
      %722 = vst [vmem:[%s571] ss:$4 sm:$0xff] %v528
      %v723 = vld.sshfl [vmem:[#allocation1] sm:$0xff pattern:$0x73625140]
      %v724 = vld.sshfl [vmem:[#allocation1 + $0x20] sm:$0xff pattern:$0x73625140]
      %757 = vst [vmem:[#allocation1] ss:$4 sm:$0xff] %v465
      %s758 = scalar_lea.vmem [#allocation1], 1
      %759 = vst [vmem:[%s758] ss:$4 sm:$0xff] %v466
      %s760 = scalar_lea.vmem [#allocation1], 2
      %761 = vst [vmem:[%s760] ss:$4 sm:$0xff] %v467
      %s762 = scalar_lea.vmem [#allocation1], 3
      %763 = vst [vmem:[%s762] ss:$4 sm:$0xff] %v468
      %s764 = scalar_lea.vmem [#allocation1], 32
      %765 = vst [vmem:[%s764] ss:$4 sm:$0xff] %v469
      %s766 = scalar_lea.vmem [#allocation1], 33
      %767 = vst [vmem:[%s766] ss:$4 sm:$0xff] %v470
      %s768 = scalar_lea.vmem [#allocation1], 34
      %769 = vst [vmem:[%s768] ss:$4 sm:$0xff] %v471
      %s770 = scalar_lea.vmem [#allocation1], 35
      %771 = vst [vmem:[%s770] ss:$4 sm:$0xff] %v472
      %v772 = vld.sshfl [vmem:[#allocation1] sm:$0xff pattern:$0x73625140]
      %v773 = vld.sshfl [vmem:[#allocation1 + $0x20] sm:$0xff pattern:$0x73625140]
      %774 = vst [vmem:[#allocation1] ss:$4 sm:$0xff] %v465
      %775 = vst [vmem:[%s758] ss:$4 sm:$0xff] %v466
      %776 = vst [vmem:[%s760] ss:$4 sm:$0xff] %v467
      %777 = vst [vmem:[%s762] ss:$4 sm:$0xff] %v468
      %778 = vst [vmem:[%s764] ss:$4 sm:$0xff] %v469
      %779 = vst [vmem:[%s766] ss:$4 sm:$0xff] %v470
      %780 = vst [vmem:[%s768] ss:$4 sm:$0xff] %v471
      %781 = vst [vmem:[%s770] ss:$4 sm:$0xff] %v472
      %v782 = vld.sshfl [vmem:[#allocation1] sm:$0xff pattern:$0x73625140]
      %v783 = vld.sshfl [vmem:[#allocation1 + $0x20] sm:$0xff pattern:$0x73625140]
      %784 = vst [vmem:[#allocation1] ss:$4 sm:$0xff] %v473
      %785 = vst [vmem:[%s758] ss:$4 sm:$0xff] %v474
      %786 = vst [vmem:[%s760] ss:$4 sm:$0xff] %v475
      %787 = vst [vmem:[%s762] ss:$4 sm:$0xff] %v476
      %788 = vst [vmem:[%s764] ss:$4 sm:$0xff] %v477
      %789 = vst [vmem:[%s766] ss:$4 sm:$0xff] %v478
      %790 = vst [vmem:[%s768] ss:$4 sm:$0xff] %v479
      %791 = vst [vmem:[%s770] ss:$4 sm:$0xff] %v480
      %v792 = vld.sshfl [vmem:[#allocation1] sm:$0xff pattern:$0x73625140]
      %v793 = vld.sshfl [vmem:[#allocation1 + $0x20] sm:$0xff pattern:$0x73625140]
      %794 = vst [vmem:[#allocation1] ss:$4 sm:$0xff] %v473
      %795 = vst [vmem:[%s758] ss:$4 sm:$0xff] %v474
      %796 = vst [vmem:[%s760] ss:$4 sm:$0xff] %v475
      %797 = vst [vmem:[%s762] ss:$4 sm:$0xff] %v476
      %798 = vst [vmem:[%s764] ss:$4 sm:$0xff] %v477
      %799 = vst [vmem:[%s766] ss:$4 sm:$0xff] %v478
      %800 = vst [vmem:[%s768] ss:$4 sm:$0xff] %v479
      %801 = vst [vmem:[%s770] ss:$4 sm:$0xff] %v480
      %v802 = vld.sshfl [vmem:[#allocation1] sm:$0xff pattern:$0x73625140]
      %v803 = vld.sshfl [vmem:[#allocation1 + $0x20] sm:$0xff pattern:$0x73625140]
      %804 = vst [vmem:[#allocation1] ss:$4 sm:$0xff] %v481
      %805 = vst [vmem:[%s758] ss:$4 sm:$0xff] %v482
      %806 = vst [vmem:[%s760] ss:$4 sm:$0xff] %v483
      %807 = vst [vmem:[%s762] ss:$4 sm:$0xff] %v484
      %808 = vst [vmem:[%s764] ss:$4 sm:$0xff] %v485
      %809 = vst [vmem:[%s766] ss:$4 sm:$0xff] %v486
      %810 = vst [vmem:[%s768] ss:$4 sm:$0xff] %v487
      %811 = vst [vmem:[%s770] ss:$4 sm:$0xff] %v488
      %v812 = vld.sshfl [vmem:[#allocation1] sm:$0xff pattern:$0x73625140]
      %v813 = vld.sshfl [vmem:[#allocation1 + $0x20] sm:$0xff pattern:$0x73625140]
      %814 = vst [vmem:[#allocation1] ss:$4 sm:$0xff] %v481
      %815 = vst [vmem:[%s758] ss:$4 sm:$0xff] %v482
      %816 = vst [vmem:[%s760] ss:$4 sm:$0xff] %v483
      %817 = vst [vmem:[%s762] ss:$4 sm:$0xff] %v484
      %818 = vst [vmem:[%s764] ss:$4 sm:$0xff] %v485
      %819 = vst [vmem:[%s766] ss:$4 sm:$0xff] %v486
      %820 = vst [vmem:[%s768] ss:$4 sm:$0xff] %v487
      %821 = vst [vmem:[%s770] ss:$4 sm:$0xff] %v488
      %v822 = vld.sshfl [vmem:[#allocation1] sm:$0xff pattern:$0x73625140]
      %v823 = vld.sshfl [vmem:[#allocation1 + $0x20] sm:$0xff pattern:$0x73625140]
      %824 = vst [vmem:[#allocation1] ss:$4 sm:$0xff] %v489
      %825 = vst [vmem:[%s758] ss:$4 sm:$0xff] %v490
      %826 = vst [vmem:[%s760] ss:$4 sm:$0xff] %v491
      %827 = vst [vmem:[%s762] ss:$4 sm:$0xff] %v492
      %828 = vst [vmem:[%s764] ss:$4 sm:$0xff] %v493
      %829 = vst [vmem:[%s766] ss:$4 sm:$0xff] %v494
      %830 = vst [vmem:[%s768] ss:$4 sm:$0xff] %v495
      %831 = vst [vmem:[%s770] ss:$4 sm:$0xff] %v496
      %v832 = vld.sshfl [vmem:[#allocation1] sm:$0xff pattern:$0x73625140]
      %v833 = vld.sshfl [vmem:[#allocation1 + $0x20] sm:$0xff pattern:$0x73625140]
      %834 = vst [vmem:[#allocation1] ss:$4 sm:$0xff] %v489
      %835 = vst [vmem:[%s758] ss:$4 sm:$0xff] %v490
      %836 = vst [vmem:[%s760] ss:$4 sm:$0xff] %v491
      %837 = vst [vmem:[%s762] ss:$4 sm:$0xff] %v492
      %838 = vst [vmem:[%s764] ss:$4 sm:$0xff] %v493
      %839 = vst [vmem:[%s766] ss:$4 sm:$0xff] %v494
      %840 = vst [vmem:[%s768] ss:$4 sm:$0xff] %v495
      %841 = vst [vmem:[%s770] ss:$4 sm:$0xff] %v496
      %v842 = vld.sshfl [vmem:[#allocation1] sm:$0xff pattern:$0x73625140]
      %v843 = vld.sshfl [vmem:[#allocation1 + $0x20] sm:$0xff pattern:$0x73625140]
      %844 = vst [vmem:[#allocation1] ss:$4 sm:$0xff] %v497
      %845 = vst [vmem:[%s758] ss:$4 sm:$0xff] %v498
      %846 = vst [vmem:[%s760] ss:$4 sm:$0xff] %v499
      %847 = vst [vmem:[%s762] ss:$4 sm:$0xff] %v500
      %848 = vst [vmem:[%s764] ss:$4 sm:$0xff] %v501
      %849 = vst [vmem:[%s766] ss:$4 sm:$0xff] %v502
      %850 = vst [vmem:[%s768] ss:$4 sm:$0xff] %v503
      %851 = vst [vmem:[%s770] ss:$4 sm:$0xff] %v504
      %v852 = vld.sshfl [vmem:[#allocation1] sm:$0xff pattern:$0x73625140]
      %v853 = vld.sshfl [vmem:[#allocation1 + $0x20] sm:$0xff pattern:$0x73625140]
      %854 = vst [vmem:[#allocation1] ss:$4 sm:$0xff] %v497
      %855 = vst [vmem:[%s758] ss:$4 sm:$0xff] %v498
      %856 = vst [vmem:[%s760] ss:$4 sm:$0xff] %v499
      %857 = vst [vmem:[%s762] ss:$4 sm:$0xff] %v500
      %858 = vst [vmem:[%s764] ss:$4 sm:$0xff] %v501
      %859 = vst [vmem:[%s766] ss:$4 sm:$0xff] %v502
      %860 = vst [vmem:[%s768] ss:$4 sm:$0xff] %v503
      %861 = vst [vmem:[%s770] ss:$4 sm:$0xff] %v504
      %v862 = vld.sshfl [vmem:[#allocation1] sm:$0xff pattern:$0x73625140]
      %v863 = vld.sshfl [vmem:[#allocation1 + $0x20] sm:$0xff pattern:$0x73625140]
      %864 = vst [vmem:[#allocation1] ss:$4 sm:$0xff] %v505
      %865 = vst [vmem:[%s758] ss:$4 sm:$0xff] %v506
      %866 = vst [vmem:[%s760] ss:$4 sm:$0xff] %v507
      %867 = vst [vmem:[%s762] ss:$4 sm:$0xff] %v508
      %868 = vst [vmem:[%s764] ss:$4 sm:$0xff] %v509
      %869 = vst [vmem:[%s766] ss:$4 sm:$0xff] %v510
      %870 = vst [vmem:[%s768] ss:$4 sm:$0xff] %v511
      %871 = vst [vmem:[%s770] ss:$4 sm:$0xff] %v512
      %v872 = vld.sshfl [vmem:[#allocation1] sm:$0xff pattern:$0x73625140]
      %v873 = vld.sshfl [vmem:[#allocation1 + $0x20] sm:$0xff pattern:$0x73625140]
      %874 = vst [vmem:[#allocation1] ss:$4 sm:$0xff] %v505
      %875 = vst [vmem:[%s758] ss:$4 sm:$0xff] %v506
      %876 = vst [vmem:[%s760] ss:$4 sm:$0xff] %v507
      %877 = vst [vmem:[%s762] ss:$4 sm:$0xff] %v508
      %878 = vst [vmem:[%s764] ss:$4 sm:$0xff] %v509
      %879 = vst [vmem:[%s766] ss:$4 sm:$0xff] %v510
      %880 = vst [vmem:[%s768] ss:$4 sm:$0xff] %v511
      %881 = vst [vmem:[%s770] ss:$4 sm:$0xff] %v512
      %v882 = vld.sshfl [vmem:[#allocation1] sm:$0xff pattern:$0x73625140]
      %v883 = vld.sshfl [vmem:[#allocation1 + $0x20] sm:$0xff pattern:$0x73625140]
      %884 = vst [vmem:[#allocation1] ss:$4 sm:$0xff] %v513
      %885 = vst [vmem:[%s758] ss:$4 sm:$0xff] %v514
      %886 = vst [vmem:[%s760] ss:$4 sm:$0xff] %v515
      %887 = vst [vmem:[%s762] ss:$4 sm:$0xff] %v516
      %888 = vst [vmem:[%s764] ss:$4 sm:$0xff] %v517
      %889 = vst [vmem:[%s766] ss:$4 sm:$0xff] %v518
      %890 = vst [vmem:[%s768] ss:$4 sm:$0xff] %v519
      %891 = vst [vmem:[%s770] ss:$4 sm:$0xff] %v520
      %v892 = vld.sshfl [vmem:[#allocation1] sm:$0xff pattern:$0x73625140]
      %v893 = vld.sshfl [vmem:[#allocation1 + $0x20] sm:$0xff pattern:$0x73625140]
      %894 = vst [vmem:[#allocation1] ss:$4 sm:$0xff] %v513
      %895 = vst [vmem:[%s758] ss:$4 sm:$0xff] %v514
      %896 = vst [vmem:[%s760] ss:$4 sm:$0xff] %v515
      %897 = vst [vmem:[%s762] ss:$4 sm:$0xff] %v516
      %898 = vst [vmem:[%s764] ss:$4 sm:$0xff] %v517
      %899 = vst [vmem:[%s766] ss:$4 sm:$0xff] %v518
      %900 = vst [vmem:[%s768] ss:$4 sm:$0xff] %v519
      %901 = vst [vmem:[%s770] ss:$4 sm:$0xff] %v520
      %v902 = vld.sshfl [vmem:[#allocation1] sm:$0xff pattern:$0x73625140]
      %v903 = vld.sshfl [vmem:[#allocation1 + $0x20] sm:$0xff pattern:$0x73625140]
      %904 = vst [vmem:[#allocation1] ss:$4 sm:$0xff] %v521
      %905 = vst [vmem:[%s758] ss:$4 sm:$0xff] %v522
      %906 = vst [vmem:[%s760] ss:$4 sm:$0xff] %v523
      %907 = vst [vmem:[%s762] ss:$4 sm:$0xff] %v524
      %908 = vst [vmem:[%s764] ss:$4 sm:$0xff] %v525
      %909 = vst [vmem:[%s766] ss:$4 sm:$0xff] %v526
      %910 = vst [vmem:[%s768] ss:$4 sm:$0xff] %v527
      %911 = vst [vmem:[%s770] ss:$4 sm:$0xff] %v528
      %v912 = vld.sshfl [vmem:[#allocation1] sm:$0xff pattern:$0x73625140]
      %v913 = vld.sshfl [vmem:[#allocation1 + $0x20] sm:$0xff pattern:$0x73625140]
      %914 = vst [vmem:[#allocation1] ss:$4 sm:$0xff] %v521
      %915 = vst [vmem:[%s758] ss:$4 sm:$0xff] %v522
      %916 = vst [vmem:[%s760] ss:$4 sm:$0xff] %v523
      %917 = vst [vmem:[%s762] ss:$4 sm:$0xff] %v524
      %918 = vst [vmem:[%s764] ss:$4 sm:$0xff] %v525
      %919 = vst [vmem:[%s766] ss:$4 sm:$0xff] %v526
      %920 = vst [vmem:[%s768] ss:$4 sm:$0xff] %v527
      %921 = vst [vmem:[%s770] ss:$4 sm:$0xff] %v528
      %v922 = vld.sshfl [vmem:[#allocation1] sm:$0xff pattern:$0x73625140]
      %v923 = vld.sshfl [vmem:[#allocation1 + $0x20] sm:$0xff pattern:$0x73625140]
      %924 = vrot.lane.b32.xlu0 %v772, 124
      %v925 = vpop.permute.xlu0 %924
      %926 = vrot.lane.b32.xlu0 %v773, 124
      %v927 = vpop.permute.xlu0 %926
      %928 = vrot.lane.b32.xlu0 %v782, 124
      %v929 = vpop.permute.xlu0 %928
      %930 = vrot.lane.b32.xlu0 %v783, 124
      %v931 = vpop.permute.xlu0 %930
      %932 = vrot.lane.b32.xlu0 %v792, 124
      %v933 = vpop.permute.xlu0 %932
      %934 = vrot.lane.b32.xlu0 %v793, 124
      %v935 = vpop.permute.xlu0 %934
      %936 = vrot.lane.b32.xlu0 %v802, 124
      %v937 = vpop.permute.xlu0 %936
      %938 = vrot.lane.b32.xlu0 %v803, 124
      %v939 = vpop.permute.xlu0 %938
      %940 = vrot.lane.b32.xlu0 %v812, 124
      %v941 = vpop.permute.xlu0 %940
      %942 = vrot.lane.b32.xlu0 %v813, 124
      %v943 = vpop.permute.xlu0 %942
      %944 = vrot.lane.b32.xlu0 %v822, 124
      %v945 = vpop.permute.xlu0 %944
      %946 = vrot.lane.b32.xlu0 %v823, 124
      %v947 = vpop.permute.xlu0 %946
      %948 = vrot.lane.b32.xlu0 %v832, 124
      %v949 = vpop.permute.xlu0 %948
      %950 = vrot.lane.b32.xlu0 %v833, 124
      %v951 = vpop.permute.xlu0 %950
      %952 = vrot.lane.b32.xlu0 %v842, 124
      %v953 = vpop.permute.xlu0 %952
      %954 = vrot.lane.b32.xlu0 %v843, 124
      %v955 = vpop.permute.xlu0 %954
      %956 = vrot.lane.b32.xlu0 %v852, 124
      %v957 = vpop.permute.xlu0 %956
      %958 = vrot.lane.b32.xlu0 %v853, 124
      %v959 = vpop.permute.xlu0 %958
      %960 = vrot.lane.b32.xlu0 %v862, 124
      %v961 = vpop.permute.xlu0 %960
      %962 = vrot.lane.b32.xlu0 %v863, 124
      %v963 = vpop.permute.xlu0 %962
      %964 = vrot.lane.b32.xlu0 %v872, 124
      %v965 = vpop.permute.xlu0 %964
      %966 = vrot.lane.b32.xlu0 %v873, 124
      %v967 = vpop.permute.xlu0 %966
      %968 = vrot.lane.b32.xlu0 %v882, 124
      %v969 = vpop.permute.xlu0 %968
      %970 = vrot.lane.b32.xlu0 %v883, 124
      %v971 = vpop.permute.xlu0 %970
      %972 = vrot.lane.b32.xlu0 %v892, 124
      %v973 = vpop.permute.xlu0 %972
      %974 = vrot.lane.b32.xlu0 %v893, 124
      %v975 = vpop.permute.xlu0 %974
      %976 = vrot.lane.b32.xlu0 %v902, 124
      %v977 = vpop.permute.xlu0 %976
      %978 = vrot.lane.b32.xlu0 %v903, 124
      %v979 = vpop.permute.xlu0 %978
      %980 = vrot.lane.b32.xlu0 %v912, 124
      %v981 = vpop.permute.xlu0 %980
      %982 = vrot.lane.b32.xlu0 %v913, 124
      %v983 = vpop.permute.xlu0 %982
      %984 = vrot.lane.b32.xlu0 %v922, 124
      %v985 = vpop.permute.xlu0 %984
      %986 = vrot.lane.b32.xlu0 %v923, 124
      %v987 = vpop.permute.xlu0 %986
      %v1020 = vsel %vm556, %v573, %v925
      %v1021 = vsel %vm557, %v574, %v927
      %v1022 = vsel %vm556, %v583, %v929
      %v1023 = vsel %vm557, %v584, %v931
      %v1024 = vsel %vm556, %v593, %v933
      %v1025 = vsel %vm557, %v594, %v935
      %v1026 = vsel %vm556, %v603, %v937
      %v1027 = vsel %vm557, %v604, %v939
      %v1028 = vsel %vm556, %v613, %v941
      %v1029 = vsel %vm557, %v614, %v943
      %v1030 = vsel %vm556, %v623, %v945
      %v1031 = vsel %vm557, %v624, %v947
      %v1032 = vsel %vm556, %v633, %v949
      %v1033 = vsel %vm557, %v634, %v951
      %v1034 = vsel %vm556, %v643, %v953
      %v1035 = vsel %vm557, %v644, %v955
      %v1036 = vsel %vm556, %v653, %v957
      %v1037 = vsel %vm557, %v654, %v959
      %v1038 = vsel %vm556, %v663, %v961
      %v1039 = vsel %vm557, %v664, %v963
      %v1040 = vsel %vm556, %v673, %v965
      %v1041 = vsel %vm557, %v674, %v967
      %v1042 = vsel %vm556, %v683, %v969
      %v1043 = vsel %vm557, %v684, %v971
      %v1044 = vsel %vm556, %v693, %v973
      %v1045 = vsel %vm557, %v694, %v975
      %v1046 = vsel %vm556, %v703, %v977
      %v1047 = vsel %vm557, %v704, %v979
      %v1048 = vsel %vm556, %v713, %v981
      %v1049 = vsel %vm557, %v714, %v983
      %v1050 = vsel %vm556, %v723, %v985
      %v1051 = vsel %vm557, %v724, %v987
      %1052 = vst [vmem:[#allocation1] ss:$4 sm:$0xff] %v465
      %s1053 = scalar_lea.vmem [#allocation1], 1
      %1054 = vst [vmem:[%s1053] ss:$4 sm:$0xff] %v466
      %s1055 = scalar_lea.vmem [#allocation1], 2
      %1056 = vst [vmem:[%s1055] ss:$4 sm:$0xff] %v467
      %s1057 = scalar_lea.vmem [#allocation1], 3
      %1058 = vst [vmem:[%s1057] ss:$4 sm:$0xff] %v468
      %s1059 = scalar_lea.vmem [#allocation1], 32
      %1060 = vst [vmem:[%s1059] ss:$4 sm:$0xff] %v469
      %s1061 = scalar_lea.vmem [#allocation1], 33
      %1062 = vst [vmem:[%s1061] ss:$4 sm:$0xff] %v470
      %s1063 = scalar_lea.vmem [#allocation1], 34
      %1064 = vst [vmem:[%s1063] ss:$4 sm:$0xff] %v471
      %s1065 = scalar_lea.vmem [#allocation1], 35
      %1066 = vst [vmem:[%s1065] ss:$4 sm:$0xff] %v472
      %v1067 = vld.sshfl [vmem:[#allocation1] sm:$0xff pattern:$0x73625140]
      %v1068 = vld.sshfl [vmem:[#allocation1 + $0x20] sm:$0xff pattern:$0x73625140]
      %1069 = vst [vmem:[#allocation1] ss:$4 sm:$0xff] %v465
      %1070 = vst [vmem:[%s1053] ss:$4 sm:$0xff] %v466
      %1071 = vst [vmem:[%s1055] ss:$4 sm:$0xff] %v467
      %1072 = vst [vmem:[%s1057] ss:$4 sm:$0xff] %v468
      %1073 = vst [vmem:[%s1059] ss:$4 sm:$0xff] %v469
      %1074 = vst [vmem:[%s1061] ss:$4 sm:$0xff] %v470
      %1075 = vst [vmem:[%s1063] ss:$4 sm:$0xff] %v471
      %1076 = vst [vmem:[%s1065] ss:$4 sm:$0xff] %v472
      %v1077 = vld.sshfl [vmem:[#allocation1] sm:$0xff pattern:$0x73625140]
      %v1078 = vld.sshfl [vmem:[#allocation1 + $0x20] sm:$0xff pattern:$0x73625140]
      %1079 = vst [vmem:[#allocation1] ss:$4 sm:$0xff] %v473
      %1080 = vst [vmem:[%s1053] ss:$4 sm:$0xff] %v474
      %1081 = vst [vmem:[%s1055] ss:$4 sm:$0xff] %v475
      %1082 = vst [vmem:[%s1057] ss:$4 sm:$0xff] %v476
      %1083 = vst [vmem:[%s1059] ss:$4 sm:$0xff] %v477
      %1084 = vst [vmem:[%s1061] ss:$4 sm:$0xff] %v478
      %1085 = vst [vmem:[%s1063] ss:$4 sm:$0xff] %v479
      %1086 = vst [vmem:[%s1065] ss:$4 sm:$0xff] %v480
      %v1087 = vld.sshfl [vmem:[#allocation1] sm:$0xff pattern:$0x73625140]
      %v1088 = vld.sshfl [vmem:[#allocation1 + $0x20] sm:$0xff pattern:$0x73625140]
      %1089 = vst [vmem:[#allocation1] ss:$4 sm:$0xff] %v473
      %1090 = vst [vmem:[%s1053] ss:$4 sm:$0xff] %v474
      %1091 = vst [vmem:[%s1055] ss:$4 sm:$0xff] %v475
      %1092 = vst [vmem:[%s1057] ss:$4 sm:$0xff] %v476
      %1093 = vst [vmem:[%s1059] ss:$4 sm:$0xff] %v477
      %1094 = vst [vmem:[%s1061] ss:$4 sm:$0xff] %v478
      %1095 = vst [vmem:[%s1063] ss:$4 sm:$0xff] %v479
      %1096 = vst [vmem:[%s1065] ss:$4 sm:$0xff] %v480
      %v1097 = vld.sshfl [vmem:[#allocation1] sm:$0xff pattern:$0x73625140]
      %v1098 = vld.sshfl [vmem:[#allocation1 + $0x20] sm:$0xff pattern:$0x73625140]
      %1099 = vst [vmem:[#allocation1] ss:$4 sm:$0xff] %v481
      %1100 = vst [vmem:[%s1053] ss:$4 sm:$0xff] %v482
      %1101 = vst [vmem:[%s1055] ss:$4 sm:$0xff] %v483
      %1102 = vst [vmem:[%s1057] ss:$4 sm:$0xff] %v484
      %1103 = vst [vmem:[%s1059] ss:$4 sm:$0xff] %v485
      %1104 = vst [vmem:[%s1061] ss:$4 sm:$0xff] %v486
      %1105 = vst [vmem:[%s1063] ss:$4 sm:$0xff] %v487
      %1106 = vst [vmem:[%s1065] ss:$4 sm:$0xff] %v488
      %v1107 = vld.sshfl [vmem:[#allocation1] sm:$0xff pattern:$0x73625140]
      %v1108 = vld.sshfl [vmem:[#allocation1 + $0x20] sm:$0xff pattern:$0x73625140]
      %1109 = vst [vmem:[#allocation1] ss:$4 sm:$0xff] %v481
      %1110 = vst [vmem:[%s1053] ss:$4 sm:$0xff] %v482
      %1111 = vst [vmem:[%s1055] ss:$4 sm:$0xff] %v483
      %1112 = vst [vmem:[%s1057] ss:$4 sm:$0xff] %v484
      %1113 = vst [vmem:[%s1059] ss:$4 sm:$0xff] %v485
      %1114 = vst [vmem:[%s1061] ss:$4 sm:$0xff] %v486
      %1115 = vst [vmem:[%s1063] ss:$4 sm:$0xff] %v487
      %1116 = vst [vmem:[%s1065] ss:$4 sm:$0xff] %v488
      %v1117 = vld.sshfl [vmem:[#allocation1] sm:$0xff pattern:$0x73625140]
      %v1118 = vld.sshfl [vmem:[#allocation1 + $0x20] sm:$0xff pattern:$0x73625140]
      %1119 = vst [vmem:[#allocation1] ss:$4 sm:$0xff] %v489
      %1120 = vst [vmem:[%s1053] ss:$4 sm:$0xff] %v490
      %1121 = vst [vmem:[%s1055] ss:$4 sm:$0xff] %v491
      %1122 = vst [vmem:[%s1057] ss:$4 sm:$0xff] %v492
      %1123 = vst [vmem:[%s1059] ss:$4 sm:$0xff] %v493
      %1124 = vst [vmem:[%s1061] ss:$4 sm:$0xff] %v494
      %1125 = vst [vmem:[%s1063] ss:$4 sm:$0xff] %v495
      %1126 = vst [vmem:[%s1065] ss:$4 sm:$0xff] %v496
      %v1127 = vld.sshfl [vmem:[#allocation1] sm:$0xff pattern:$0x73625140]
      %v1128 = vld.sshfl [vmem:[#allocation1 + $0x20] sm:$0xff pattern:$0x73625140]
      %1129 = vst [vmem:[#allocation1] ss:$4 sm:$0xff] %v489
      %1130 = vst [vmem:[%s1053] ss:$4 sm:$0xff] %v490
      %1131 = vst [vmem:[%s1055] ss:$4 sm:$0xff] %v491
      %1132 = vst [vmem:[%s1057] ss:$4 sm:$0xff] %v492
      %1133 = vst [vmem:[%s1059] ss:$4 sm:$0xff] %v493
      %1134 = vst [vmem:[%s1061] ss:$4 sm:$0xff] %v494
      %1135 = vst [vmem:[%s1063] ss:$4 sm:$0xff] %v495
      %1136 = vst [vmem:[%s1065] ss:$4 sm:$0xff] %v496
      %v1137 = vld.sshfl [vmem:[#allocation1] sm:$0xff pattern:$0x73625140]
      %v1138 = vld.sshfl [vmem:[#allocation1 + $0x20] sm:$0xff pattern:$0x73625140]
      %1139 = vst [vmem:[#allocation1] ss:$4 sm:$0xff] %v497
      %1140 = vst [vmem:[%s1053] ss:$4 sm:$0xff] %v498
      %1141 = vst [vmem:[%s1055] ss:$4 sm:$0xff] %v499
      %1142 = vst [vmem:[%s1057] ss:$4 sm:$0xff] %v500
      %1143 = vst [vmem:[%s1059] ss:$4 sm:$0xff] %v501
      %1144 = vst [vmem:[%s1061] ss:$4 sm:$0xff] %v502
      %1145 = vst [vmem:[%s1063] ss:$4 sm:$0xff] %v503
      %1146 = vst [vmem:[%s1065] ss:$4 sm:$0xff] %v504
      %v1147 = vld.sshfl [vmem:[#allocation1] sm:$0xff pattern:$0x73625140]
      %v1148 = vld.sshfl [vmem:[#allocation1 + $0x20] sm:$0xff pattern:$0x73625140]
      %1149 = vst [vmem:[#allocation1] ss:$4 sm:$0xff] %v497
      %1150 = vst [vmem:[%s1053] ss:$4 sm:$0xff] %v498
      %1151 = vst [vmem:[%s1055] ss:$4 sm:$0xff] %v499
      %1152 = vst [vmem:[%s1057] ss:$4 sm:$0xff] %v500
      %1153 = vst [vmem:[%s1059] ss:$4 sm:$0xff] %v501
      %1154 = vst [vmem:[%s1061] ss:$4 sm:$0xff] %v502
      %1155 = vst [vmem:[%s1063] ss:$4 sm:$0xff] %v503
      %1156 = vst [vmem:[%s1065] ss:$4 sm:$0xff] %v504
      %v1157 = vld.sshfl [vmem:[#allocation1] sm:$0xff pattern:$0x73625140]
      %v1158 = vld.sshfl [vmem:[#allocation1 + $0x20] sm:$0xff pattern:$0x73625140]
      %1159 = vst [vmem:[#allocation1] ss:$4 sm:$0xff] %v505
      %1160 = vst [vmem:[%s1053] ss:$4 sm:$0xff] %v506
      %1161 = vst [vmem:[%s1055] ss:$4 sm:$0xff] %v507
      %1162 = vst [vmem:[%s1057] ss:$4 sm:$0xff] %v508
      %1163 = vst [vmem:[%s1059] ss:$4 sm:$0xff] %v509
      %1164 = vst [vmem:[%s1061] ss:$4 sm:$0xff] %v510
      %1165 = vst [vmem:[%s1063] ss:$4 sm:$0xff] %v511
      %1166 = vst [vmem:[%s1065] ss:$4 sm:$0xff] %v512
      %v1167 = vld.sshfl [vmem:[#allocation1] sm:$0xff pattern:$0x73625140]
      %v1168 = vld.sshfl [vmem:[#allocation1 + $0x20] sm:$0xff pattern:$0x73625140]
      %1169 = vst [vmem:[#allocation1] ss:$4 sm:$0xff] %v505
      %1170 = vst [vmem:[%s1053] ss:$4 sm:$0xff] %v506
      %1171 = vst [vmem:[%s1055] ss:$4 sm:$0xff] %v507
      %1172 = vst [vmem:[%s1057] ss:$4 sm:$0xff] %v508
      %1173 = vst [vmem:[%s1059] ss:$4 sm:$0xff] %v509
      %1174 = vst [vmem:[%s1061] ss:$4 sm:$0xff] %v510
      %1175 = vst [vmem:[%s1063] ss:$4 sm:$0xff] %v511
      %1176 = vst [vmem:[%s1065] ss:$4 sm:$0xff] %v512
      %v1177 = vld.sshfl [vmem:[#allocation1] sm:$0xff pattern:$0x73625140]
      %v1178 = vld.sshfl [vmem:[#allocation1 + $0x20] sm:$0xff pattern:$0x73625140]
      %1179 = vst [vmem:[#allocation1] ss:$4 sm:$0xff] %v513
      %1180 = vst [vmem:[%s1053] ss:$4 sm:$0xff] %v514
      %1181 = vst [vmem:[%s1055] ss:$4 sm:$0xff] %v515
      %1182 = vst [vmem:[%s1057] ss:$4 sm:$0xff] %v516
      %1183 = vst [vmem:[%s1059] ss:$4 sm:$0xff] %v517
      %1184 = vst [vmem:[%s1061] ss:$4 sm:$0xff] %v518
      %1185 = vst [vmem:[%s1063] ss:$4 sm:$0xff] %v519
      %1186 = vst [vmem:[%s1065] ss:$4 sm:$0xff] %v520
      %v1187 = vld.sshfl [vmem:[#allocation1] sm:$0xff pattern:$0x73625140]
      %v1188 = vld.sshfl [vmem:[#allocation1 + $0x20] sm:$0xff pattern:$0x73625140]
      %1189 = vst [vmem:[#allocation1] ss:$4 sm:$0xff] %v513
      %1190 = vst [vmem:[%s1053] ss:$4 sm:$0xff] %v514
      %1191 = vst [vmem:[%s1055] ss:$4 sm:$0xff] %v515
      %1192 = vst [vmem:[%s1057] ss:$4 sm:$0xff] %v516
      %1193 = vst [vmem:[%s1059] ss:$4 sm:$0xff] %v517
      %1194 = vst [vmem:[%s1061] ss:$4 sm:$0xff] %v518
      %1195 = vst [vmem:[%s1063] ss:$4 sm:$0xff] %v519
      %1196 = vst [vmem:[%s1065] ss:$4 sm:$0xff] %v520
      %v1197 = vld.sshfl [vmem:[#allocation1] sm:$0xff pattern:$0x73625140]
      %v1198 = vld.sshfl [vmem:[#allocation1 + $0x20] sm:$0xff pattern:$0x73625140]
      %1199 = vst [vmem:[#allocation1] ss:$4 sm:$0xff] %v521
      %1200 = vst [vmem:[%s1053] ss:$4 sm:$0xff] %v522
      %1201 = vst [vmem:[%s1055] ss:$4 sm:$0xff] %v523
      %1202 = vst [vmem:[%s1057] ss:$4 sm:$0xff] %v524
      %1203 = vst [vmem:[%s1059] ss:$4 sm:$0xff] %v525
      %1204 = vst [vmem:[%s1061] ss:$4 sm:$0xff] %v526
      %1205 = vst [vmem:[%s1063] ss:$4 sm:$0xff] %v527
      %1206 = vst [vmem:[%s1065] ss:$4 sm:$0xff] %v528
      %v1207 = vld.sshfl [vmem:[#allocation1] sm:$0xff pattern:$0x73625140]
      %v1208 = vld.sshfl [vmem:[#allocation1 + $0x20] sm:$0xff pattern:$0x73625140]
      %1209 = vst [vmem:[#allocation1] ss:$4 sm:$0xff] %v521
      %1210 = vst [vmem:[%s1053] ss:$4 sm:$0xff] %v522
      %1211 = vst [vmem:[%s1055] ss:$4 sm:$0xff] %v523
      %1212 = vst [vmem:[%s1057] ss:$4 sm:$0xff] %v524
      %1213 = vst [vmem:[%s1059] ss:$4 sm:$0xff] %v525
      %1214 = vst [vmem:[%s1061] ss:$4 sm:$0xff] %v526
      %1215 = vst [vmem:[%s1063] ss:$4 sm:$0xff] %v527
      %1216 = vst [vmem:[%s1065] ss:$4 sm:$0xff] %v528
      %v1217 = vld.sshfl [vmem:[#allocation1] sm:$0xff pattern:$0x73625140]
      %v1218 = vld.sshfl [vmem:[#allocation1 + $0x20] sm:$0xff pattern:$0x73625140]
      %1219 = vrot.lane.b32.xlu0 %v1067, 120
      %v1220 = vpop.permute.xlu0 %1219
      %1221 = vrot.lane.b32.xlu0 %v1068, 120
      %v1222 = vpop.permute.xlu0 %1221
      %1223 = vrot.lane.b32.xlu0 %v1077, 120
      %v1224 = vpop.permute.xlu0 %1223
      %1225 = vrot.lane.b32.xlu0 %v1078, 120
      %v1226 = vpop.permute.xlu0 %1225
      %1227 = vrot.lane.b32.xlu0 %v1087, 120
      %v1228 = vpop.permute.xlu0 %1227
      %1229 = vrot.lane.b32.xlu0 %v1088, 120
      %v1230 = vpop.permute.xlu0 %1229
      %1231 = vrot.lane.b32.xlu0 %v1097, 120
      %v1232 = vpop.permute.xlu0 %1231
      %1233 = vrot.lane.b32.xlu0 %v1098, 120
      %v1234 = vpop.permute.xlu0 %1233
      %1235 = vrot.lane.b32.xlu0 %v1107, 120
      %v1236 = vpop.permute.xlu0 %1235
      %1237 = vrot.lane.b32.xlu0 %v1108, 120
      %v1238 = vpop.permute.xlu0 %1237
      %1239 = vrot.lane.b32.xlu0 %v1117, 120
      %v1240 = vpop.permute.xlu0 %1239
      %1241 = vrot.lane.b32.xlu0 %v1118, 120
      %v1242 = vpop.permute.xlu0 %1241
      %1243 = vrot.lane.b32.xlu0 %v1127, 120
      %v1244 = vpop.permute.xlu0 %1243
      %1245 = vrot.lane.b32.xlu0 %v1128, 120
      %v1246 = vpop.permute.xlu0 %1245
      %1247 = vrot.lane.b32.xlu0 %v1137, 120
      %v1248 = vpop.permute.xlu0 %1247
      %1249 = vrot.lane.b32.xlu0 %v1138, 120
      %v1250 = vpop.permute.xlu0 %1249
      %1251 = vrot.lane.b32.xlu0 %v1147, 120
      %v1252 = vpop.permute.xlu0 %1251
      %1253 = vrot.lane.b32.xlu0 %v1148, 120
      %v1254 = vpop.permute.xlu0 %1253
      %1255 = vrot.lane.b32.xlu0 %v1157, 120
      %v1256 = vpop.permute.xlu0 %1255
      %1257 = vrot.lane.b32.xlu0 %v1158, 120
      %v1258 = vpop.permute.xlu0 %1257
      %1259 = vrot.lane.b32.xlu0 %v1167, 120
      %v1260 = vpop.permute.xlu0 %1259
      %1261 = vrot.lane.b32.xlu0 %v1168, 120
      %v1262 = vpop.permute.xlu0 %1261
      %1263 = vrot.lane.b32.xlu0 %v1177, 120
      %v1264 = vpop.permute.xlu0 %1263
      %1265 = vrot.lane.b32.xlu0 %v1178, 120
      %v1266 = vpop.permute.xlu0 %1265
      %1267 = vrot.lane.b32.xlu0 %v1187, 120
      %v1268 = vpop.permute.xlu0 %1267
      %1269 = vrot.lane.b32.xlu0 %v1188, 120
      %v1270 = vpop.permute.xlu0 %1269
      %1271 = vrot.lane.b32.xlu0 %v1197, 120
      %v1272 = vpop.permute.xlu0 %1271
      %1273 = vrot.lane.b32.xlu0 %v1198, 120
      %v1274 = vpop.permute.xlu0 %1273
      %1275 = vrot.lane.b32.xlu0 %v1207, 120
      %v1276 = vpop.permute.xlu0 %1275
      %1277 = vrot.lane.b32.xlu0 %v1208, 120
      %v1278 = vpop.permute.xlu0 %1277
      %1279 = vrot.lane.b32.xlu0 %v1217, 120
      %v1280 = vpop.permute.xlu0 %1279
      %1281 = vrot.lane.b32.xlu0 %v1218, 120
      %v1282 = vpop.permute.xlu0 %1281
      %1315 = vst [vmem:[#allocation1] ss:$4 sm:$0xff] %v465
      %s1316 = scalar_lea.vmem [#allocation1], 1
      %1317 = vst [vmem:[%s1316] ss:$4 sm:$0xff] %v466
      %s1318 = scalar_lea.vmem [#allocation1], 2
      %1319 = vst [vmem:[%s1318] ss:$4 sm:$0xff] %v467
      %s1320 = scalar_lea.vmem [#allocation1], 3
      %1321 = vst [vmem:[%s1320] ss:$4 sm:$0xff] %v468
      %s1322 = scalar_lea.vmem [#allocation1], 32
      %1323 = vst [vmem:[%s1322] ss:$4 sm:$0xff] %v469
      %s1324 = scalar_lea.vmem [#allocation1], 33
      %1325 = vst [vmem:[%s1324] ss:$4 sm:$0xff] %v470
      %s1326 = scalar_lea.vmem [#allocation1], 34
      %1327 = vst [vmem:[%s1326] ss:$4 sm:$0xff] %v471
      %s1328 = scalar_lea.vmem [#allocation1], 35
      %1329 = vst [vmem:[%s1328] ss:$4 sm:$0xff] %v472
      %v1330 = vld.sshfl [vmem:[#allocation1] sm:$0xff pattern:$0x73625140]
      %v1331 = vld.sshfl [vmem:[#allocation1 + $0x20] sm:$0xff pattern:$0x73625140]
      %1332 = vst [vmem:[#allocation1] ss:$4 sm:$0xff] %v465
      %1333 = vst [vmem:[%s1316] ss:$4 sm:$0xff] %v466
      %1334 = vst [vmem:[%s1318] ss:$4 sm:$0xff] %v467
      %1335 = vst [vmem:[%s1320] ss:$4 sm:$0xff] %v468
      %1336 = vst [vmem:[%s1322] ss:$4 sm:$0xff] %v469
      %1337 = vst [vmem:[%s1324] ss:$4 sm:$0xff] %v470
      %1338 = vst [vmem:[%s1326] ss:$4 sm:$0xff] %v471
      %1339 = vst [vmem:[%s1328] ss:$4 sm:$0xff] %v472
      %v1340 = vld.sshfl [vmem:[#allocation1] sm:$0xff pattern:$0x73625140]
      %v1341 = vld.sshfl [vmem:[#allocation1 + $0x20] sm:$0xff pattern:$0x73625140]
      %1342 = vst [vmem:[#allocation1] ss:$4 sm:$0xff] %v473
      %1343 = vst [vmem:[%s1316] ss:$4 sm:$0xff] %v474
      %1344 = vst [vmem:[%s1318] ss:$4 sm:$0xff] %v475
      %1345 = vst [vmem:[%s1320] ss:$4 sm:$0xff] %v476
      %1346 = vst [vmem:[%s1322] ss:$4 sm:$0xff] %v477
      %1347 = vst [vmem:[%s1324] ss:$4 sm:$0xff] %v478
      %1348 = vst [vmem:[%s1326] ss:$4 sm:$0xff] %v479
      %1349 = vst [vmem:[%s1328] ss:$4 sm:$0xff] %v480
      %v1350 = vld.sshfl [vmem:[#allocation1] sm:$0xff pattern:$0x73625140]
      %v1351 = vld.sshfl [vmem:[#allocation1 + $0x20] sm:$0xff pattern:$0x73625140]
      %1352 = vst [vmem:[#allocation1] ss:$4 sm:$0xff] %v473
      %1353 = vst [vmem:[%s1316] ss:$4 sm:$0xff] %v474
      %1354 = vst [vmem:[%s1318] ss:$4 sm:$0xff] %v475
      %1355 = vst [vmem:[%s1320] ss:$4 sm:$0xff] %v476
      %1356 = vst [vmem:[%s1322] ss:$4 sm:$0xff] %v477
      %1357 = vst [vmem:[%s1324] ss:$4 sm:$0xff] %v478
      %1358 = vst [vmem:[%s1326] ss:$4 sm:$0xff] %v479
      %1359 = vst [vmem:[%s1328] ss:$4 sm:$0xff] %v480
      %v1360 = vld.sshfl [vmem:[#allocation1] sm:$0xff pattern:$0x73625140]
      %v1361 = vld.sshfl [vmem:[#allocation1 + $0x20] sm:$0xff pattern:$0x73625140]
      %1362 = vst [vmem:[#allocation1] ss:$4 sm:$0xff] %v481
      %1363 = vst [vmem:[%s1316] ss:$4 sm:$0xff] %v482
      %1364 = vst [vmem:[%s1318] ss:$4 sm:$0xff] %v483
      %1365 = vst [vmem:[%s1320] ss:$4 sm:$0xff] %v484
      %1366 = vst [vmem:[%s1322] ss:$4 sm:$0xff] %v485
      %1367 = vst [vmem:[%s1324] ss:$4 sm:$0xff] %v486
      %1368 = vst [vmem:[%s1326] ss:$4 sm:$0xff] %v487
      %1369 = vst [vmem:[%s1328] ss:$4 sm:$0xff] %v488
      %v1370 = vld.sshfl [vmem:[#allocation1] sm:$0xff pattern:$0x73625140]
      %v1371 = vld.sshfl [vmem:[#allocation1 + $0x20] sm:$0xff pattern:$0x73625140]
      %1372 = vst [vmem:[#allocation1] ss:$4 sm:$0xff] %v481
      %1373 = vst [vmem:[%s1316] ss:$4 sm:$0xff] %v482
      %1374 = vst [vmem:[%s1318] ss:$4 sm:$0xff] %v483
      %1375 = vst [vmem:[%s1320] ss:$4 sm:$0xff] %v484
      %1376 = vst [vmem:[%s1322] ss:$4 sm:$0xff] %v485
      %1377 = vst [vmem:[%s1324] ss:$4 sm:$0xff] %v486
      %1378 = vst [vmem:[%s1326] ss:$4 sm:$0xff] %v487
      %1379 = vst [vmem:[%s1328] ss:$4 sm:$0xff] %v488
      %v1380 = vld.sshfl [vmem:[#allocation1] sm:$0xff pattern:$0x73625140]
      %v1381 = vld.sshfl [vmem:[#allocation1 + $0x20] sm:$0xff pattern:$0x73625140]
      %1382 = vst [vmem:[#allocation1] ss:$4 sm:$0xff] %v489
      %1383 = vst [vmem:[%s1316] ss:$4 sm:$0xff] %v490
      %1384 = vst [vmem:[%s1318] ss:$4 sm:$0xff] %v491
      %1385 = vst [vmem:[%s1320] ss:$4 sm:$0xff] %v492
      %1386 = vst [vmem:[%s1322] ss:$4 sm:$0xff] %v493
      %1387 = vst [vmem:[%s1324] ss:$4 sm:$0xff] %v494
      %1388 = vst [vmem:[%s1326] ss:$4 sm:$0xff] %v495
      %1389 = vst [vmem:[%s1328] ss:$4 sm:$0xff] %v496
      %v1390 = vld.sshfl [vmem:[#allocation1] sm:$0xff pattern:$0x73625140]
      %v1391 = vld.sshfl [vmem:[#allocation1 + $0x20] sm:$0xff pattern:$0x73625140]
      %1392 = vst [vmem:[#allocation1] ss:$4 sm:$0xff] %v489
      %1393 = vst [vmem:[%s1316] ss:$4 sm:$0xff] %v490
      %1394 = vst [vmem:[%s1318] ss:$4 sm:$0xff] %v491
      %1395 = vst [vmem:[%s1320] ss:$4 sm:$0xff] %v492
      %1396 = vst [vmem:[%s1322] ss:$4 sm:$0xff] %v493
      %1397 = vst [vmem:[%s1324] ss:$4 sm:$0xff] %v494
      %1398 = vst [vmem:[%s1326] ss:$4 sm:$0xff] %v495
      %1399 = vst [vmem:[%s1328] ss:$4 sm:$0xff] %v496
      %v1400 = vld.sshfl [vmem:[#allocation1] sm:$0xff pattern:$0x73625140]
      %v1401 = vld.sshfl [vmem:[#allocation1 + $0x20] sm:$0xff pattern:$0x73625140]
      %1402 = vst [vmem:[#allocation1] ss:$4 sm:$0xff] %v497
      %1403 = vst [vmem:[%s1316] ss:$4 sm:$0xff] %v498
      %1404 = vst [vmem:[%s1318] ss:$4 sm:$0xff] %v499
      %1405 = vst [vmem:[%s1320] ss:$4 sm:$0xff] %v500
      %1406 = vst [vmem:[%s1322] ss:$4 sm:$0xff] %v501
      %1407 = vst [vmem:[%s1324] ss:$4 sm:$0xff] %v502
      %1408 = vst [vmem:[%s1326] ss:$4 sm:$0xff] %v503
      %1409 = vst [vmem:[%s1328] ss:$4 sm:$0xff] %v504
      %v1410 = vld.sshfl [vmem:[#allocation1] sm:$0xff pattern:$0x73625140]
      %v1411 = vld.sshfl [vmem:[#allocation1 + $0x20] sm:$0xff pattern:$0x73625140]
      %1412 = vst [vmem:[#allocation1] ss:$4 sm:$0xff] %v497
      %1413 = vst [vmem:[%s1316] ss:$4 sm:$0xff] %v498
      %1414 = vst [vmem:[%s1318] ss:$4 sm:$0xff] %v499
      %1415 = vst [vmem:[%s1320] ss:$4 sm:$0xff] %v500
      %1416 = vst [vmem:[%s1322] ss:$4 sm:$0xff] %v501
      %1417 = vst [vmem:[%s1324] ss:$4 sm:$0xff] %v502
      %1418 = vst [vmem:[%s1326] ss:$4 sm:$0xff] %v503
      %1419 = vst [vmem:[%s1328] ss:$4 sm:$0xff] %v504
      %v1420 = vld.sshfl [vmem:[#allocation1] sm:$0xff pattern:$0x73625140]
      %v1421 = vld.sshfl [vmem:[#allocation1 + $0x20] sm:$0xff pattern:$0x73625140]
      %1422 = vst [vmem:[#allocation1] ss:$4 sm:$0xff] %v505
      %1423 = vst [vmem:[%s1316] ss:$4 sm:$0xff] %v506
      %1424 = vst [vmem:[%s1318] ss:$4 sm:$0xff] %v507
      %1425 = vst [vmem:[%s1320] ss:$4 sm:$0xff] %v508
      %1426 = vst [vmem:[%s1322] ss:$4 sm:$0xff] %v509
      %1427 = vst [vmem:[%s1324] ss:$4 sm:$0xff] %v510
      %1428 = vst [vmem:[%s1326] ss:$4 sm:$0xff] %v511
      %1429 = vst [vmem:[%s1328] ss:$4 sm:$0xff] %v512
      %v1430 = vld.sshfl [vmem:[#allocation1] sm:$0xff pattern:$0x73625140]
      %v1431 = vld.sshfl [vmem:[#allocation1 + $0x20] sm:$0xff pattern:$0x73625140]
      %1432 = vst [vmem:[#allocation1] ss:$4 sm:$0xff] %v505
      %1433 = vst [vmem:[%s1316] ss:$4 sm:$0xff] %v506
      %1434 = vst [vmem:[%s1318] ss:$4 sm:$0xff] %v507
      %1435 = vst [vmem:[%s1320] ss:$4 sm:$0xff] %v508
      %1436 = vst [vmem:[%s1322] ss:$4 sm:$0xff] %v509
      %1437 = vst [vmem:[%s1324] ss:$4 sm:$0xff] %v510
      %1438 = vst [vmem:[%s1326] ss:$4 sm:$0xff] %v511
      %1439 = vst [vmem:[%s1328] ss:$4 sm:$0xff] %v512
      %v1440 = vld.sshfl [vmem:[#allocation1] sm:$0xff pattern:$0x73625140]
      %v1441 = vld.sshfl [vmem:[#allocation1 + $0x20] sm:$0xff pattern:$0x73625140]
      %1442 = vst [vmem:[#allocation1] ss:$4 sm:$0xff] %v513
      %1443 = vst [vmem:[%s1316] ss:$4 sm:$0xff] %v514
      %1444 = vst [vmem:[%s1318] ss:$4 sm:$0xff] %v515
      %1445 = vst [vmem:[%s1320] ss:$4 sm:$0xff] %v516
      %1446 = vst [vmem:[%s1322] ss:$4 sm:$0xff] %v517
      %1447 = vst [vmem:[%s1324] ss:$4 sm:$0xff] %v518
      %1448 = vst [vmem:[%s1326] ss:$4 sm:$0xff] %v519
      %1449 = vst [vmem:[%s1328] ss:$4 sm:$0xff] %v520
      %v1450 = vld.sshfl [vmem:[#allocation1] sm:$0xff pattern:$0x73625140]
      %v1451 = vld.sshfl [vmem:[#allocation1 + $0x20] sm:$0xff pattern:$0x73625140]
      %1452 = vst [vmem:[#allocation1] ss:$4 sm:$0xff] %v513
      %1453 = vst [vmem:[%s1316] ss:$4 sm:$0xff] %v514
      %1454 = vst [vmem:[%s1318] ss:$4 sm:$0xff] %v515
      %1455 = vst [vmem:[%s1320] ss:$4 sm:$0xff] %v516
      %1456 = vst [vmem:[%s1322] ss:$4 sm:$0xff] %v517
      %1457 = vst [vmem:[%s1324] ss:$4 sm:$0xff] %v518
      %1458 = vst [vmem:[%s1326] ss:$4 sm:$0xff] %v519
      %1459 = vst [vmem:[%s1328] ss:$4 sm:$0xff] %v520
      %v1460 = vld.sshfl [vmem:[#allocation1] sm:$0xff pattern:$0x73625140]
      %v1461 = vld.sshfl [vmem:[#allocation1 + $0x20] sm:$0xff pattern:$0x73625140]
      %1462 = vst [vmem:[#allocation1] ss:$4 sm:$0xff] %v521
      %1463 = vst [vmem:[%s1316] ss:$4 sm:$0xff] %v522
      %1464 = vst [vmem:[%s1318] ss:$4 sm:$0xff] %v523
      %1465 = vst [vmem:[%s1320] ss:$4 sm:$0xff] %v524
      %1466 = vst [vmem:[%s1322] ss:$4 sm:$0xff] %v525
      %1467 = vst [vmem:[%s1324] ss:$4 sm:$0xff] %v526
      %1468 = vst [vmem:[%s1326] ss:$4 sm:$0xff] %v527
      %1469 = vst [vmem:[%s1328] ss:$4 sm:$0xff] %v528
      %v1470 = vld.sshfl [vmem:[#allocation1] sm:$0xff pattern:$0x73625140]
      %v1471 = vld.sshfl [vmem:[#allocation1 + $0x20] sm:$0xff pattern:$0x73625140]
      %1472 = vst [vmem:[#allocation1] ss:$4 sm:$0xff] %v521
      %1473 = vst [vmem:[%s1316] ss:$4 sm:$0xff] %v522
      %1474 = vst [vmem:[%s1318] ss:$4 sm:$0xff] %v523
      %1475 = vst [vmem:[%s1320] ss:$4 sm:$0xff] %v524
      %1476 = vst [vmem:[%s1322] ss:$4 sm:$0xff] %v525
      %1477 = vst [vmem:[%s1324] ss:$4 sm:$0xff] %v526
      %1478 = vst [vmem:[%s1326] ss:$4 sm:$0xff] %v527
      %1479 = vst [vmem:[%s1328] ss:$4 sm:$0xff] %v528
      %v1480 = vld.sshfl [vmem:[#allocation1] sm:$0xff pattern:$0x73625140]
      %v1481 = vld.sshfl [vmem:[#allocation1 + $0x20] sm:$0xff pattern:$0x73625140]
      %1482 = vrot.lane.b32.xlu0 %v1330, 116
      %v1483 = vpop.permute.xlu0 %1482
      %1484 = vrot.lane.b32.xlu0 %v1331, 116
      %v1485 = vpop.permute.xlu0 %1484
      %1486 = vrot.lane.b32.xlu0 %v1340, 116
      %v1487 = vpop.permute.xlu0 %1486
      %1488 = vrot.lane.b32.xlu0 %v1341, 116
      %v1489 = vpop.permute.xlu0 %1488
      %1490 = vrot.lane.b32.xlu0 %v1350, 116
      %v1491 = vpop.permute.xlu0 %1490
      %1492 = vrot.lane.b32.xlu0 %v1351, 116
      %v1493 = vpop.permute.xlu0 %1492
      %1494 = vrot.lane.b32.xlu0 %v1360, 116
      %v1495 = vpop.permute.xlu0 %1494
      %1496 = vrot.lane.b32.xlu0 %v1361, 116
      %v1497 = vpop.permute.xlu0 %1496
      %1498 = vrot.lane.b32.xlu0 %v1370, 116
      %v1499 = vpop.permute.xlu0 %1498
      %1500 = vrot.lane.b32.xlu0 %v1371, 116
      %v1501 = vpop.permute.xlu0 %1500
      %1502 = vrot.lane.b32.xlu0 %v1380, 116
      %v1503 = vpop.permute.xlu0 %1502
      %1504 = vrot.lane.b32.xlu0 %v1381, 116
      %v1505 = vpop.permute.xlu0 %1504
      %1506 = vrot.lane.b32.xlu0 %v1390, 116
      %v1507 = vpop.permute.xlu0 %1506
      %1508 = vrot.lane.b32.xlu0 %v1391, 116
      %v1509 = vpop.permute.xlu0 %1508
      %1510 = vrot.lane.b32.xlu0 %v1400, 116
      %v1511 = vpop.permute.xlu0 %1510
      %1512 = vrot.lane.b32.xlu0 %v1401, 116
      %v1513 = vpop.permute.xlu0 %1512
      %1514 = vrot.lane.b32.xlu0 %v1410, 116
      %v1515 = vpop.permute.xlu0 %1514
      %1516 = vrot.lane.b32.xlu0 %v1411, 116
      %v1517 = vpop.permute.xlu0 %1516
      %1518 = vrot.lane.b32.xlu0 %v1420, 116
      %v1519 = vpop.permute.xlu0 %1518
      %1520 = vrot.lane.b32.xlu0 %v1421, 116
      %v1521 = vpop.permute.xlu0 %1520
      %1522 = vrot.lane.b32.xlu0 %v1430, 116
      %v1523 = vpop.permute.xlu0 %1522
      %1524 = vrot.lane.b32.xlu0 %v1431, 116
      %v1525 = vpop.permute.xlu0 %1524
      %1526 = vrot.lane.b32.xlu0 %v1440, 116
      %v1527 = vpop.permute.xlu0 %1526
      %1528 = vrot.lane.b32.xlu0 %v1441, 116
      %v1529 = vpop.permute.xlu0 %1528
      %1530 = vrot.lane.b32.xlu0 %v1450, 116
      %v1531 = vpop.permute.xlu0 %1530
      %1532 = vrot.lane.b32.xlu0 %v1451, 116
      %v1533 = vpop.permute.xlu0 %1532
      %1534 = vrot.lane.b32.xlu0 %v1460, 116
      %v1535 = vpop.permute.xlu0 %1534
      %1536 = vrot.lane.b32.xlu0 %v1461, 116
      %v1537 = vpop.permute.xlu0 %1536
      %1538 = vrot.lane.b32.xlu0 %v1470, 116
      %v1539 = vpop.permute.xlu0 %1538
      %1540 = vrot.lane.b32.xlu0 %v1471, 116
      %v1541 = vpop.permute.xlu0 %1540
      %1542 = vrot.lane.b32.xlu0 %v1480, 116
      %v1543 = vpop.permute.xlu0 %1542
      %1544 = vrot.lane.b32.xlu0 %v1481, 116
      %v1545 = vpop.permute.xlu0 %1544
      %v1578 = vsel %vm556, %v1220, %v1483
      %v1579 = vsel %vm557, %v1222, %v1485
      %v1580 = vsel %vm556, %v1224, %v1487
      %v1581 = vsel %vm557, %v1226, %v1489
      %v1582 = vsel %vm556, %v1228, %v1491
      %v1583 = vsel %vm557, %v1230, %v1493
      %v1584 = vsel %vm556, %v1232, %v1495
      %v1585 = vsel %vm557, %v1234, %v1497
      %v1586 = vsel %vm556, %v1236, %v1499
      %v1587 = vsel %vm557, %v1238, %v1501
      %v1588 = vsel %vm556, %v1240, %v1503
      %v1589 = vsel %vm557, %v1242, %v1505
      %v1590 = vsel %vm556, %v1244, %v1507
      %v1591 = vsel %vm557, %v1246, %v1509
      %v1592 = vsel %vm556, %v1248, %v1511
      %v1593 = vsel %vm557, %v1250, %v1513
      %v1594 = vsel %vm556, %v1252, %v1515
      %v1595 = vsel %vm557, %v1254, %v1517
      %v1596 = vsel %vm556, %v1256, %v1519
      %v1597 = vsel %vm557, %v1258, %v1521
      %v1598 = vsel %vm556, %v1260, %v1523
      %v1599 = vsel %vm557, %v1262, %v1525
      %v1600 = vsel %vm556, %v1264, %v1527
      %v1601 = vsel %vm557, %v1266, %v1529
      %v1602 = vsel %vm556, %v1268, %v1531
      %v1603 = vsel %vm557, %v1270, %v1533
      %v1604 = vsel %vm556, %v1272, %v1535
      %v1605 = vsel %vm557, %v1274, %v1537
      %v1606 = vsel %vm556, %v1276, %v1539
      %v1607 = vsel %vm557, %v1278, %v1541
      %v1608 = vsel %vm556, %v1280, %v1543
      %v1609 = vsel %vm557, %v1282, %v1545
      %v1610 = vsel 1, %v1020, %v1578
      %v1611 = vsel 1, %v1021, %v1579
      %v1612 = vsel 0, %v1022, %v1580
      %v1613 = vsel 0, %v1023, %v1581
      %v1614 = vsel 1, %v1024, %v1582
      %v1615 = vsel 1, %v1025, %v1583
      %v1616 = vsel 0, %v1026, %v1584
      %v1617 = vsel 0, %v1027, %v1585
      %v1618 = vsel 1, %v1028, %v1586
      %v1619 = vsel 1, %v1029, %v1587
      %v1620 = vsel 0, %v1030, %v1588
      %v1621 = vsel 0, %v1031, %v1589
      %v1622 = vsel 1, %v1032, %v1590
      %v1623 = vsel 1, %v1033, %v1591
      %v1624 = vsel 0, %v1034, %v1592
      %v1625 = vsel 0, %v1035, %v1593
      %v1626 = vsel 1, %v1036, %v1594
      %v1627 = vsel 1, %v1037, %v1595
      %v1628 = vsel 0, %v1038, %v1596
      %v1629 = vsel 0, %v1039, %v1597
      %v1630 = vsel 1, %v1040, %v1598
      %v1631 = vsel 1, %v1041, %v1599
      %v1632 = vsel 0, %v1042, %v1600
      %v1633 = vsel 0, %v1043, %v1601
      %v1634 = vsel 1, %v1044, %v1602
      %v1635 = vsel 1, %v1045, %v1603
      %v1636 = vsel 0, %v1046, %v1604
      %v1637 = vsel 0, %v1047, %v1605
      %v1638 = vsel 1, %v1048, %v1606
      %v1639 = vsel 1, %v1049, %v1607
      %v1640 = vsel 0, %v1050, %v1608
      %v1641 = vsel 0, %v1051, %v1609
      %v1642 = vld [vmem:[%s3] sm:$0x1]
      %v1644 = vperm.slane %v1642, 0
      %v1646 = vadd.f32 %v1610, %v1644
      %v1647 = vadd.f32 %v1611, %v1644
      %v1648 = vadd.f32 %v1612, %v1644
      %v1649 = vadd.f32 %v1613, %v1644
      %v1650 = vadd.f32 %v1614, %v1644
      %v1651 = vadd.f32 %v1615, %v1644
      %v1652 = vadd.f32 %v1616, %v1644
      %v1653 = vadd.f32 %v1617, %v1644
      %v1654 = vadd.f32 %v1618, %v1644
      %v1655 = vadd.f32 %v1619, %v1644
      %v1656 = vadd.f32 %v1620, %v1644
      %v1657 = vadd.f32 %v1621, %v1644
      %v1658 = vadd.f32 %v1622, %v1644
      %v1659 = vadd.f32 %v1623, %v1644
      %v1660 = vadd.f32 %v1624, %v1644
      %v1661 = vadd.f32 %v1625, %v1644
      %v1662 = vadd.f32 %v1626, %v1644
      %v1663 = vadd.f32 %v1627, %v1644
      %v1664 = vadd.f32 %v1628, %v1644
      %v1665 = vadd.f32 %v1629, %v1644
      %v1666 = vadd.f32 %v1630, %v1644
      %v1667 = vadd.f32 %v1631, %v1644
      %v1668 = vadd.f32 %v1632, %v1644
      %v1669 = vadd.f32 %v1633, %v1644
      %v1670 = vadd.f32 %v1634, %v1644
      %v1671 = vadd.f32 %v1635, %v1644
      %v1672 = vadd.f32 %v1636, %v1644
      %v1673 = vadd.f32 %v1637, %v1644
      %v1674 = vadd.f32 %v1638, %v1644
      %v1675 = vadd.f32 %v1639, %v1644
      %v1676 = vadd.f32 %v1640, %v1644
      %v1677 = vadd.f32 %v1641, %v1644
      %vm1678 = vcmask 31744
      %1679 = vst.msk [vmem:[#allocation2] sm:$0xff] %vm1678, 0.0
      %1680 = vst.msk [vmem:[#allocation2 + $0x8] sm:$0xff] %vm1678, 0.0
      %vm1681 = vcmask 25600
      %1682 = vst.msk [vmem:[#allocation2 + $0x10] sm:$0x3] %vm1681, 0.0
      %1683 = vst.msk [vmem:[#allocation2 + $0x18] sm:$0xff] %vm1678, 0.0
      %1684 = vst.msk [vmem:[#allocation2 + $0x20] sm:$0xff] %vm1678, 0.0
      %1685 = vst.msk [vmem:[#allocation2 + $0x28] sm:$0x3] %vm1681, 0.0
      %1686 = vst.msk [vmem:[#allocation2 + $0x30] sm:$0xff] %vm1678, 0.0
      %1687 = vst.msk [vmem:[#allocation2 + $0x38] sm:$0xff] %vm1678, 0.0
      %1688 = vst.msk [vmem:[#allocation2 + $0x40] sm:$0x3] %vm1681, 0.0
      %1689 = vst.msk [vmem:[#allocation2 + $0x48] sm:$0xff] %vm1678, 0.0
      %1690 = vst.msk [vmem:[#allocation2 + $0x50] sm:$0xff] %vm1678, 0.0
      %1691 = vst.msk [vmem:[#allocation2 + $0x58] sm:$0x3] %vm1681, 0.0
      %1692 = vst.msk [vmem:[#allocation2 + $0x60] sm:$0xff] %vm1678, 0.0
      %1693 = vst.msk [vmem:[#allocation2 + $0x68] sm:$0xff] %vm1678, 0.0
      %1694 = vst.msk [vmem:[#allocation2 + $0x70] sm:$0x3] %vm1681, 0.0
      %1695 = vst.msk [vmem:[#allocation2 + $0x78] sm:$0xff] %vm1678, 0.0
      %1696 = vst.msk [vmem:[#allocation2 + $0x80] sm:$0xff] %vm1678, 0.0
      %1697 = vst.msk [vmem:[#allocation2 + $0x88] sm:$0x3] %vm1681, 0.0
      %1698 = vst.msk [vmem:[#allocation2 + $0x90] sm:$0xff] %vm1678, 0.0
      %1699 = vst.msk [vmem:[#allocation2 + $0x98] sm:$0xff] %vm1678, 0.0
      %1700 = vst.msk [vmem:[#allocation2 + $0xa0] sm:$0x3] %vm1681, 0.0
      %1701 = vst.msk [vmem:[#allocation2 + $0xa8] sm:$0xff] %vm1678, 0.0
      %1702 = vst.msk [vmem:[#allocation2 + $0xb0] sm:$0xff] %vm1678, 0.0
      %1703 = vst.msk [vmem:[#allocation2 + $0xb8] sm:$0x3] %vm1681, 0.0
      %1704 = vst.msk [vmem:[#allocation2 + $0xc0] sm:$0xff] %vm1678, 0.0
      %1705 = vst.msk [vmem:[#allocation2 + $0xc8] sm:$0xff] %vm1678, 0.0
      %1706 = vst.msk [vmem:[#allocation2 + $0xd0] sm:$0x3] %vm1681, 0.0
      %1707 = vst.msk [vmem:[#allocation2 + $0xd8] sm:$0xff] %vm1678, 0.0
      %1708 = vst.msk [vmem:[#allocation2 + $0xe0] sm:$0xff] %vm1678, 0.0
      %1709 = vst.msk [vmem:[#allocation2 + $0xe8] sm:$0x3] %vm1681, 0.0
      %1710 = vst.msk [vmem:[#allocation2 + $0xf0] sm:$0xff] %vm1678, 0.0
      %1711 = vst.msk [vmem:[#allocation2 + $0xf8] sm:$0xff] %vm1678, 0.0
      %1712 = vst.msk [vmem:[#allocation2 + $0x100] sm:$0x3] %vm1681, 0.0
      %1713 = vst.msk [vmem:[#allocation2 + $0x108] sm:$0xff] %vm1678, 0.0
      %1714 = vst.msk [vmem:[#allocation2 + $0x110] sm:$0xff] %vm1678, 0.0
      %1715 = vst.msk [vmem:[#allocation2 + $0x118] sm:$0x3] %vm1681, 0.0
      %1716 = vst.msk [vmem:[#allocation2 + $0x120] sm:$0xff] %vm1678, 0.0
      %1717 = vst.msk [vmem:[#allocation2 + $0x128] sm:$0xff] %vm1678, 0.0
      %1718 = vst.msk [vmem:[#allocation2 + $0x130] sm:$0x3] %vm1681, 0.0
      %1719 = vst.msk [vmem:[#allocation2 + $0x138] sm:$0xff] %vm1678, 0.0
      %1720 = vst.msk [vmem:[#allocation2 + $0x140] sm:$0xff] %vm1678, 0.0
      %1721 = vst.msk [vmem:[#allocation2 + $0x148] sm:$0x3] %vm1681, 0.0
      %1722 = vst.msk [vmem:[#allocation2 + $0x150] sm:$0xff] %vm1678, 0.0
      %1723 = vst.msk [vmem:[#allocation2 + $0x158] sm:$0xff] %vm1678, 0.0
      %1724 = vst.msk [vmem:[#allocation2 + $0x160] sm:$0x3] %vm1681, 0.0
      %1725 = vst.msk [vmem:[#allocation2 + $0x168] sm:$0xff] %vm1678, 0.0
      %1726 = vst.msk [vmem:[#allocation2 + $0x170] sm:$0xff] %vm1678, 0.0
      %1727 = vst.msk [vmem:[#allocation2 + $0x178] sm:$0x3] %vm1681, 0.0
      %1728 = vst.msk [vmem:[#allocation2 + $0x180] sm:$0xff] %vm1678, 0.0
      %1729 = vst.msk [vmem:[#allocation2 + $0x188] sm:$0xff] %vm1678, 0.0
      %1730 = vst.msk [vmem:[#allocation2 + $0x190] sm:$0x3] %vm1681, 0.0
      %1731 = vst.msk [vmem:[#allocation2 + $0x198] sm:$0xff] %vm1678, 0.0
      %1732 = vst.msk [vmem:[#allocation2 + $0x1a0] sm:$0xff] %vm1678, 0.0
      %1733 = vst.msk [vmem:[#allocation2 + $0x1a8] sm:$0x3] %vm1681, 0.0
      %1734 = vst.msk [vmem:[#allocation3] sm:$0xff] %vm1678, 0.0
      %1735 = vst.msk [vmem:[#allocation3 + $0x8] sm:$0xff] %vm1678, 0.0
      %1736 = vst.msk [vmem:[#allocation3 + $0x10] sm:$0x3] %vm1681, 0.0
      %1737 = vst.msk [vmem:[#allocation3 + $0x18] sm:$0xff] %vm1678, 0.0
      %1738 = vst.msk [vmem:[#allocation3 + $0x20] sm:$0xff] %vm1678, 0.0
      %1739 = vst.msk [vmem:[#allocation3 + $0x28] sm:$0x3] %vm1681, 0.0
      %1740 = vst.msk [vmem:[#allocation3 + $0x30] sm:$0xff] %vm1678, 0.0
      %1741 = vst.msk [vmem:[#allocation3 + $0x38] sm:$0xff] %vm1678, 0.0
      %1742 = vst.msk [vmem:[#allocation3 + $0x40] sm:$0x3] %vm1681, 0.0
      %1743 = vst.msk [vmem:[#allocation3 + $0x48] sm:$0xff] %vm1678, 0.0
      %1744 = vst.msk [vmem:[#allocation3 + $0x50] sm:$0xff] %vm1678, 0.0
      %1745 = vst.msk [vmem:[#allocation3 + $0x58] sm:$0x3] %vm1681, 0.0
      %1746 = vst.msk [vmem:[#allocation3 + $0x60] sm:$0xff] %vm1678, 0.0
      %1747 = vst.msk [vmem:[#allocation3 + $0x68] sm:$0xff] %vm1678, 0.0
      %1748 = vst.msk [vmem:[#allocation3 + $0x70] sm:$0x3] %vm1681, 0.0
      %1749 = vst.msk [vmem:[#allocation3 + $0x78] sm:$0xff] %vm1678, 0.0
      %1750 = vst.msk [vmem:[#allocation3 + $0x80] sm:$0xff] %vm1678, 0.0
      %1751 = vst.msk [vmem:[#allocation3 + $0x88] sm:$0x3] %vm1681, 0.0
      %1752 = vst.msk [vmem:[#allocation3 + $0x90] sm:$0xff] %vm1678, 0.0
      %1753 = vst.msk [vmem:[#allocation3 + $0x98] sm:$0xff] %vm1678, 0.0
      %1754 = vst.msk [vmem:[#allocation3 + $0xa0] sm:$0x3] %vm1681, 0.0
      %1755 = vst.msk [vmem:[#allocation3 + $0xa8] sm:$0xff] %vm1678, 0.0
      %1756 = vst.msk [vmem:[#allocation3 + $0xb0] sm:$0xff] %vm1678, 0.0
      %1757 = vst.msk [vmem:[#allocation3 + $0xb8] sm:$0x3] %vm1681, 0.0
      %1758 = vst.msk [vmem:[#allocation3 + $0xc0] sm:$0xff] %vm1678, 0.0
      %1759 = vst.msk [vmem:[#allocation3 + $0xc8] sm:$0xff] %vm1678, 0.0
      %1760 = vst.msk [vmem:[#allocation3 + $0xd0] sm:$0x3] %vm1681, 0.0
      %1761 = vst.msk [vmem:[#allocation3 + $0xd8] sm:$0xff] %vm1678, 0.0
      %1762 = vst.msk [vmem:[#allocation3 + $0xe0] sm:$0xff] %vm1678, 0.0
      %1763 = vst.msk [vmem:[#allocation3 + $0xe8] sm:$0x3] %vm1681, 0.0
      %1764 = vst.msk [vmem:[#allocation3 + $0xf0] sm:$0xff] %vm1678, 0.0
      %1765 = vst.msk [vmem:[#allocation3 + $0xf8] sm:$0xff] %vm1678, 0.0
      %1766 = vst.msk [vmem:[#allocation3 + $0x100] sm:$0x3] %vm1681, 0.0
      %1767 = vst.msk [vmem:[#allocation3 + $0x108] sm:$0xff] %vm1678, 0.0
      %1768 = vst.msk [vmem:[#allocation3 + $0x110] sm:$0xff] %vm1678, 0.0
      %1769 = vst.msk [vmem:[#allocation3 + $0x118] sm:$0x3] %vm1681, 0.0
      %1770 = vst.msk [vmem:[#allocation3 + $0x120] sm:$0xff] %vm1678, 0.0
      %1771 = vst.msk [vmem:[#allocation3 + $0x128] sm:$0xff] %vm1678, 0.0
      %1772 = vst.msk [vmem:[#allocation3 + $0x130] sm:$0x3] %vm1681, 0.0
      %1773 = vst.msk [vmem:[#allocation3 + $0x138] sm:$0xff] %vm1678, 0.0
      %1774 = vst.msk [vmem:[#allocation3 + $0x140] sm:$0xff] %vm1678, 0.0
      %1775 = vst.msk [vmem:[#allocation3 + $0x148] sm:$0x3] %vm1681, 0.0
      %1776 = vst.msk [vmem:[#allocation3 + $0x150] sm:$0xff] %vm1678, 0.0
      %1777 = vst.msk [vmem:[#allocation3 + $0x158] sm:$0xff] %vm1678, 0.0
      %1778 = vst.msk [vmem:[#allocation3 + $0x160] sm:$0x3] %vm1681, 0.0
      %1779 = vst.msk [vmem:[#allocation3 + $0x168] sm:$0xff] %vm1678, 0.0
      %1780 = vst.msk [vmem:[#allocation3 + $0x170] sm:$0xff] %vm1678, 0.0
      %1781 = vst.msk [vmem:[#allocation3 + $0x178] sm:$0x3] %vm1681, 0.0
      %1782 = vst.msk [vmem:[#allocation3 + $0x180] sm:$0xff] %vm1678, 0.0
      %1783 = vst.msk [vmem:[#allocation3 + $0x188] sm:$0xff] %vm1678, 0.0
      %1784 = vst.msk [vmem:[#allocation3 + $0x190] sm:$0x3] %vm1681, 0.0
      %1785 = vst.msk [vmem:[#allocation3 + $0x198] sm:$0xff] %vm1678, 0.0
      %1786 = vst.msk [vmem:[#allocation3 + $0x1a0] sm:$0xff] %vm1678, 0.0
      %1787 = vst.msk [vmem:[#allocation3 + $0x1a8] sm:$0x3] %vm1681, 0.0
      %s1788 = scalar_lea.vmem [#allocation2], 24
      %1789 = vst.msk [vmem:[%s1788 + $0x1] sm:$0xff] %vm1678, %v1646
      %1790 = vst.msk [vmem:[%s1788 + $0x9] sm:$0xff] %vm1678, %v1647
      %1791 = vst.msk [vmem:[%s1788 + $0x19] sm:$0xff] %vm1678, %v1648
      %1792 = vst.msk [vmem:[%s1788 + $0x21] sm:$0xff] %vm1678, %v1649
      %1793 = vst.msk [vmem:[%s1788 + $0x31] sm:$0xff] %vm1678, %v1650
      %1794 = vst.msk [vmem:[%s1788 + $0x39] sm:$0xff] %vm1678, %v1651
      %1795 = vst.msk [vmem:[%s1788 + $0x49] sm:$0xff] %vm1678, %v1652
      %1796 = vst.msk [vmem:[%s1788 + $0x51] sm:$0xff] %vm1678, %v1653
      %1797 = vst.msk [vmem:[%s1788 + $0x61] sm:$0xff] %vm1678, %v1654
      %1798 = vst.msk [vmem:[%s1788 + $0x69] sm:$0xff] %vm1678, %v1655
      %1799 = vst.msk [vmem:[%s1788 + $0x79] sm:$0xff] %vm1678, %v1656
      %1800 = vst.msk [vmem:[%s1788 + $0x81] sm:$0xff] %vm1678, %v1657
      %1801 = vst.msk [vmem:[%s1788 + $0x91] sm:$0xff] %vm1678, %v1658
      %1802 = vst.msk [vmem:[%s1788 + $0x99] sm:$0xff] %vm1678, %v1659
      %1803 = vst.msk [vmem:[%s1788 + $0xa9] sm:$0xff] %vm1678, %v1660
      %1804 = vst.msk [vmem:[%s1788 + $0xb1] sm:$0xff] %vm1678, %v1661
      %1805 = vst.msk [vmem:[%s1788 + $0xc1] sm:$0xff] %vm1678, %v1662
      %1806 = vst.msk [vmem:[%s1788 + $0xc9] sm:$0xff] %vm1678, %v1663
      %1807 = vst.msk [vmem:[%s1788 + $0xd9] sm:$0xff] %vm1678, %v1664
      %1808 = vst.msk [vmem:[%s1788 + $0xe1] sm:$0xff] %vm1678, %v1665
      %1809 = vst.msk [vmem:[%s1788 + $0xf1] sm:$0xff] %vm1678, %v1666
      %1810 = vst.msk [vmem:[%s1788 + $0xf9] sm:$0xff] %vm1678, %v1667
      %1811 = vst.msk [vmem:[%s1788 + $0x109] sm:$0xff] %vm1678, %v1668
      %1812 = vst.msk [vmem:[%s1788 + $0x111] sm:$0xff] %vm1678, %v1669
      %1813 = vst.msk [vmem:[%s1788 + $0x121] sm:$0xff] %vm1678, %v1670
      %1814 = vst.msk [vmem:[%s1788 + $0x129] sm:$0xff] %vm1678, %v1671
      %1815 = vst.msk [vmem:[%s1788 + $0x139] sm:$0xff] %vm1678, %v1672
      %1816 = vst.msk [vmem:[%s1788 + $0x141] sm:$0xff] %vm1678, %v1673
      %1817 = vst.msk [vmem:[%s1788 + $0x151] sm:$0xff] %vm1678, %v1674
      %1818 = vst.msk [vmem:[%s1788 + $0x159] sm:$0xff] %vm1678, %v1675
      %1819 = vst.msk [vmem:[%s1788 + $0x169] sm:$0xff] %vm1678, %v1676
      %1820 = vst.msk [vmem:[%s1788 + $0x171] sm:$0xff] %vm1678, %v1677
      %v1821 = vld [vmem:[%s320] sm:$0xff]
      %v1822 = vld [vmem:[%s320 + $0x8] sm:$0xff]
      %v1823 = vld [vmem:[%s320 + $0x10] sm:$0xff]
      %v1824 = vld [vmem:[%s320 + $0x18] sm:$0xff]
      %v1825 = vld [vmem:[%s320 + $0x20] sm:$0xff]
      %v1826 = vld [vmem:[%s320 + $0x28] sm:$0xff]
      %v1827 = vld [vmem:[%s320 + $0x30] sm:$0xff]
      %v1828 = vld [vmem:[%s320 + $0x38] sm:$0xff]
      %v1829 = vld [vmem:[%s320 + $0x40] sm:$0xff]
      %v1830 = vld [vmem:[%s320 + $0x48] sm:$0xff]
      %v1831 = vld [vmem:[%s320 + $0x50] sm:$0xff]
      %v1832 = vld [vmem:[%s320 + $0x58] sm:$0xff]
      %v1833 = vld [vmem:[%s320 + $0x60] sm:$0xff]
      %v1834 = vld [vmem:[%s320 + $0x68] sm:$0xff]
      %v1835 = vld [vmem:[%s320 + $0x70] sm:$0xff]
      %v1836 = vld [vmem:[%s320 + $0x78] sm:$0xff]
      %v1837 = vld [vmem:[%s320 + $0x80] sm:$0xff]
      %v1838 = vld [vmem:[%s320 + $0x88] sm:$0xff]
      %v1839 = vld [vmem:[%s320 + $0x90] sm:$0xff]
      %v1840 = vld [vmem:[%s320 + $0x98] sm:$0xff]
      %v1841 = vld [vmem:[%s320 + $0xa0] sm:$0xff]
      %v1842 = vld [vmem:[%s320 + $0xa8] sm:$0xff]
      %v1843 = vld [vmem:[%s320 + $0xb0] sm:$0xff]
      %v1844 = vld [vmem:[%s320 + $0xb8] sm:$0xff]
      %v1845 = vld [vmem:[%s320 + $0xc0] sm:$0xff]
      %v1846 = vld [vmem:[%s320 + $0xc8] sm:$0xff]
      %v1847 = vld [vmem:[%s320 + $0xd0] sm:$0xff]
      %v1848 = vld [vmem:[%s320 + $0xd8] sm:$0xff]
      %v1849 = vld [vmem:[%s320 + $0xe0] sm:$0xff]
      %v1850 = vld [vmem:[%s320 + $0xe8] sm:$0xff]
      %v1851 = vld [vmem:[%s320 + $0xf0] sm:$0xff]
      %v1852 = vld [vmem:[%s320 + $0xf8] sm:$0xff]
      %s1853 = scalar_lea.vmem [#allocation3], 24
      %1854 = vst.msk [vmem:[%s1853 + $0x1] sm:$0xff] %vm1678, %v1821
      %1855 = vst.msk [vmem:[%s1853 + $0x9] sm:$0xff] %vm1678, %v1822
      %1856 = vst.msk [vmem:[%s1853 + $0x19] sm:$0xff] %vm1678, %v1823
      %1857 = vst.msk [vmem:[%s1853 + $0x21] sm:$0xff] %vm1678, %v1824
      %1858 = vst.msk [vmem:[%s1853 + $0x31] sm:$0xff] %vm1678, %v1825
      %1859 = vst.msk [vmem:[%s1853 + $0x39] sm:$0xff] %vm1678, %v1826
      %1860 = vst.msk [vmem:[%s1853 + $0x49] sm:$0xff] %vm1678, %v1827
      %1861 = vst.msk [vmem:[%s1853 + $0x51] sm:$0xff] %vm1678, %v1828
      %1862 = vst.msk [vmem:[%s1853 + $0x61] sm:$0xff] %vm1678, %v1829
      %1863 = vst.msk [vmem:[%s1853 + $0x69] sm:$0xff] %vm1678, %v1830
      %1864 = vst.msk [vmem:[%s1853 + $0x79] sm:$0xff] %vm1678, %v1831
      %1865 = vst.msk [vmem:[%s1853 + $0x81] sm:$0xff] %vm1678, %v1832
      %1866 = vst.msk [vmem:[%s1853 + $0x91] sm:$0xff] %vm1678, %v1833
      %1867 = vst.msk [vmem:[%s1853 + $0x99] sm:$0xff] %vm1678, %v1834
      %1868 = vst.msk [vmem:[%s1853 + $0xa9] sm:$0xff] %vm1678, %v1835
      %1869 = vst.msk [vmem:[%s1853 + $0xb1] sm:$0xff] %vm1678, %v1836
      %1870 = vst.msk [vmem:[%s1853 + $0xc1] sm:$0xff] %vm1678, %v1837
      %1871 = vst.msk [vmem:[%s1853 + $0xc9] sm:$0xff] %vm1678, %v1838
      %1872 = vst.msk [vmem:[%s1853 + $0xd9] sm:$0xff] %vm1678, %v1839
      %1873 = vst.msk [vmem:[%s1853 + $0xe1] sm:$0xff] %vm1678, %v1840
      %1874 = vst.msk [vmem:[%s1853 + $0xf1] sm:$0xff] %vm1678, %v1841
      %1875 = vst.msk [vmem:[%s1853 + $0xf9] sm:$0xff] %vm1678, %v1842
      %1876 = vst.msk [vmem:[%s1853 + $0x109] sm:$0xff] %vm1678, %v1843
      %1877 = vst.msk [vmem:[%s1853 + $0x111] sm:$0xff] %vm1678, %v1844
      %1878 = vst.msk [vmem:[%s1853 + $0x121] sm:$0xff] %vm1678, %v1845
      %1879 = vst.msk [vmem:[%s1853 + $0x129] sm:$0xff] %vm1678, %v1846
      %1880 = vst.msk [vmem:[%s1853 + $0x139] sm:$0xff] %vm1678, %v1847
      %1881 = vst.msk [vmem:[%s1853 + $0x141] sm:$0xff] %vm1678, %v1848
      %1882 = vst.msk [vmem:[%s1853 + $0x151] sm:$0xff] %vm1678, %v1849
      %1883 = vst.msk [vmem:[%s1853 + $0x159] sm:$0xff] %vm1678, %v1850
      %1884 = vst.msk [vmem:[%s1853 + $0x169] sm:$0xff] %vm1678, %v1851
      %1885 = vst.msk [vmem:[%s1853 + $0x171] sm:$0xff] %vm1678, %v1852
      %v1886 = vld [vmem:[#allocation2] sm:$0xff]
      %v1887 = vld [vmem:[#allocation2 + $0x8] sm:$0xff]
      %v1888 = vld [vmem:[#allocation2 + $0x10] sm:$0x3]
      %v1889 = vld [vmem:[#allocation2 + $0x18] sm:$0xff]
      %v1890 = vld [vmem:[#allocation2 + $0x20] sm:$0xff]
      %v1891 = vld [vmem:[#allocation2 + $0x28] sm:$0x3]
      %v1892 = vld [vmem:[#allocation2 + $0x30] sm:$0xff]
      %v1893 = vld [vmem:[#allocation2 + $0x38] sm:$0xff]
      %v1894 = vld [vmem:[#allocation2 + $0x40] sm:$0x3]
      %v1895 = vld [vmem:[#allocation2 + $0x48] sm:$0xff]
      %v1896 = vld [vmem:[#allocation2 + $0x50] sm:$0xff]
      %v1897 = vld [vmem:[#allocation2 + $0x58] sm:$0x3]
      %v1898 = vld [vmem:[#allocation2 + $0x60] sm:$0xff]
      %v1899 = vld [vmem:[#allocation2 + $0x68] sm:$0xff]
      %v1900 = vld [vmem:[#allocation2 + $0x70] sm:$0x3]
      %v1901 = vld [vmem:[#allocation2 + $0x78] sm:$0xff]
      %v1902 = vld [vmem:[#allocation2 + $0x80] sm:$0xff]
      %v1903 = vld [vmem:[#allocation2 + $0x88] sm:$0x3]
      %v1904 = vld [vmem:[#allocation2 + $0x90] sm:$0xff]
      %v1905 = vld [vmem:[#allocation2 + $0x98] sm:$0xff]
      %v1906 = vld [vmem:[#allocation2 + $0xa0] sm:$0x3]
      %v1907 = vld [vmem:[#allocation2 + $0xa8] sm:$0xff]
      %v1908 = vld [vmem:[#allocation2 + $0xb0] sm:$0xff]
      %v1909 = vld [vmem:[#allocation2 + $0xb8] sm:$0x3]
      %v1910 = vld [vmem:[#allocation2 + $0xc0] sm:$0xff]
      %v1911 = vld [vmem:[#allocation2 + $0xc8] sm:$0xff]
      %v1912 = vld [vmem:[#allocation2 + $0xd0] sm:$0x3]
      %v1913 = vld [vmem:[#allocation2 + $0xd8] sm:$0xff]
      %v1914 = vld [vmem:[#allocation2 + $0xe0] sm:$0xff]
      %v1915 = vld [vmem:[#allocation2 + $0xe8] sm:$0x3]
      %v1916 = vld [vmem:[#allocation2 + $0xf0] sm:$0xff]
      %v1917 = vld [vmem:[#allocation2 + $0xf8] sm:$0xff]
      %v1918 = vld [vmem:[#allocation2 + $0x100] sm:$0x3]
      %v1919 = vld [vmem:[#allocation2 + $0x108] sm:$0xff]
      %v1920 = vld [vmem:[#allocation2 + $0x110] sm:$0xff]
      %v1921 = vld [vmem:[#allocation2 + $0x118] sm:$0x3]
      %v1922 = vld [vmem:[#allocation2 + $0x120] sm:$0xff]
      %v1923 = vld [vmem:[#allocation2 + $0x128] sm:$0xff]
      %v1924 = vld [vmem:[#allocation2 + $0x130] sm:$0x3]
      %v1925 = vld [vmem:[#allocation2 + $0x138] sm:$0xff]
      %v1926 = vld [vmem:[#allocation2 + $0x140] sm:$0xff]
      %v1927 = vld [vmem:[#allocation2 + $0x148] sm:$0x3]
      %v1928 = vld [vmem:[#allocation2 + $0x150] sm:$0xff]
      %v1929 = vld [vmem:[#allocation2 + $0x158] sm:$0xff]
      %v1930 = vld [vmem:[#allocation2 + $0x160] sm:$0x3]
      %v1931 = vld [vmem:[#allocation2 + $0x168] sm:$0xff]
      %v1932 = vld [vmem:[#allocation2 + $0x170] sm:$0xff]
      %v1933 = vld [vmem:[#allocation2 + $0x178] sm:$0x3]
      %v1934 = vld [vmem:[#allocation2 + $0x180] sm:$0xff]
      %v1935 = vld [vmem:[#allocation2 + $0x188] sm:$0xff]
      %v1936 = vld [vmem:[#allocation2 + $0x190] sm:$0x3]
      %v1937 = vld [vmem:[#allocation2 + $0x198] sm:$0xff]
      %v1938 = vld [vmem:[#allocation2 + $0x1a0] sm:$0xff]
      %v1939 = vld [vmem:[#allocation2 + $0x1a8] sm:$0x3]
      %v1940 = vld [vmem:[#allocation3] sm:$0xff]
      %v1941 = vld [vmem:[#allocation3 + $0x8] sm:$0xff]
      %v1942 = vld [vmem:[#allocation3 + $0x10] sm:$0x3]
      %v1943 = vld [vmem:[#allocation3 + $0x18] sm:$0xff]
      %v1944 = vld [vmem:[#allocation3 + $0x20] sm:$0xff]
      %v1945 = vld [vmem:[#allocation3 + $0x28] sm:$0x3]
      %v1946 = vld [vmem:[#allocation3 + $0x30] sm:$0xff]
      %v1947 = vld [vmem:[#allocation3 + $0x38] sm:$0xff]
      %v1948 = vld [vmem:[#allocation3 + $0x40] sm:$0x3]
      %v1949 = vld [vmem:[#allocation3 + $0x48] sm:$0xff]
      %v1950 = vld [vmem:[#allocation3 + $0x50] sm:$0xff]
      %v1951 = vld [vmem:[#allocation3 + $0x58] sm:$0x3]
      %v1952 = vld [vmem:[#allocation3 + $0x60] sm:$0xff]
      %v1953 = vld [vmem:[#allocation3 + $0x68] sm:$0xff]
      %v1954 = vld [vmem:[#allocation3 + $0x70] sm:$0x3]
      %v1955 = vld [vmem:[#allocation3 + $0x78] sm:$0xff]
      %v1956 = vld [vmem:[#allocation3 + $0x80] sm:$0xff]
      %v1957 = vld [vmem:[#allocation3 + $0x88] sm:$0x3]
      %v1958 = vld [vmem:[#allocation3 + $0x90] sm:$0xff]
      %v1959 = vld [vmem:[#allocation3 + $0x98] sm:$0xff]
      %v1960 = vld [vmem:[#allocation3 + $0xa0] sm:$0x3]
      %v1961 = vld [vmem:[#allocation3 + $0xa8] sm:$0xff]
      %v1962 = vld [vmem:[#allocation3 + $0xb0] sm:$0xff]
      %v1963 = vld [vmem:[#allocation3 + $0xb8] sm:$0x3]
      %v1964 = vld [vmem:[#allocation3 + $0xc0] sm:$0xff]
      %v1965 = vld [vmem:[#allocation3 + $0xc8] sm:$0xff]
      %v1966 = vld [vmem:[#allocation3 + $0xd0] sm:$0x3]
      %v1967 = vld [vmem:[#allocation3 + $0xd8] sm:$0xff]
      %v1968 = vld [vmem:[#allocation3 + $0xe0] sm:$0xff]
      %v1969 = vld [vmem:[#allocation3 + $0xe8] sm:$0x3]
      %v1970 = vld [vmem:[#allocation3 + $0xf0] sm:$0xff]
      %v1971 = vld [vmem:[#allocation3 + $0xf8] sm:$0xff]
      %v1972 = vld [vmem:[#allocation3 + $0x100] sm:$0x3]
      %v1973 = vld [vmem:[#allocation3 + $0x108] sm:$0xff]
      %v1974 = vld [vmem:[#allocation3 + $0x110] sm:$0xff]
      %v1975 = vld [vmem:[#allocation3 + $0x118] sm:$0x3]
      %v1976 = vld [vmem:[#allocation3 + $0x120] sm:$0xff]
      %v1977 = vld [vmem:[#allocation3 + $0x128] sm:$0xff]
      %v1978 = vld [vmem:[#allocation3 + $0x130] sm:$0x3]
      %v1979 = vld [vmem:[#allocation3 + $0x138] sm:$0xff]
      %v1980 = vld [vmem:[#allocation3 + $0x140] sm:$0xff]
      %v1981 = vld [vmem:[#allocation3 + $0x148] sm:$0x3]
      %v1982 = vld [vmem:[#allocation3 + $0x150] sm:$0xff]
      %v1983 = vld [vmem:[#allocation3 + $0x158] sm:$0xff]
      %v1984 = vld [vmem:[#allocation3 + $0x160] sm:$0x3]
      %v1985 = vld [vmem:[#allocation3 + $0x168] sm:$0xff]
      %v1986 = vld [vmem:[#allocation3 + $0x170] sm:$0xff]
      %v1987 = vld [vmem:[#allocation3 + $0x178] sm:$0x3]
      %v1988 = vld [vmem:[#allocation3 + $0x180] sm:$0xff]
      %v1989 = vld [vmem:[#allocation3 + $0x188] sm:$0xff]
      %v1990 = vld [vmem:[#allocation3 + $0x190] sm:$0x3]
      %v1991 = vld [vmem:[#allocation3 + $0x198] sm:$0xff]
      %v1992 = vld [vmem:[#allocation3 + $0x1a0] sm:$0xff]
      %v1993 = vld [vmem:[#allocation3 + $0x1a8] sm:$0x3]
      %vm2042 = vcmask 1046528
      %v2043 = vrot.slane %v1886, 1
      %v2044 = vrot.slane %v1887, 1
      %v2045 = vsel %vm2042, %v2043, %v2044
      %v2046 = vrot.slane %v1888, 1
      %v2047 = vsel %vm2042, %v2044, %v2046
      %v2048 = vrot.slane %v1889, 1
      %v2049 = vrot.slane %v1890, 1
      %v2050 = vsel %vm2042, %v2048, %v2049
      %v2051 = vrot.slane %v1891, 1
      %v2052 = vsel %vm2042, %v2049, %v2051
      %v2053 = vrot.slane %v1892, 1
      %v2054 = vrot.slane %v1893, 1
      %v2055 = vsel %vm2042, %v2053, %v2054
      %v2056 = vrot.slane %v1894, 1
      %v2057 = vsel %vm2042, %v2054, %v2056
      %v2058 = vrot.slane %v1895, 1
      %v2059 = vrot.slane %v1896, 1
      %v2060 = vsel %vm2042, %v2058, %v2059
      %v2061 = vrot.slane %v1897, 1
      %v2062 = vsel %vm2042, %v2059, %v2061
      %v2063 = vrot.slane %v1898, 1
      %v2064 = vrot.slane %v1899, 1
      %v2065 = vsel %vm2042, %v2063, %v2064
      %v2066 = vrot.slane %v1900, 1
      %v2067 = vsel %vm2042, %v2064, %v2066
      %v2068 = vrot.slane %v1901, 1
      %v2069 = vrot.slane %v1902, 1
      %v2070 = vsel %vm2042, %v2068, %v2069
      %v2071 = vrot.slane %v1903, 1
      %v2072 = vsel %vm2042, %v2069, %v2071
      %v2073 = vrot.slane %v1904, 1
      %v2074 = vrot.slane %v1905, 1
      %v2075 = vsel %vm2042, %v2073, %v2074
      %v2076 = vrot.slane %v1906, 1
      %v2077 = vsel %vm2042, %v2074, %v2076
      %v2078 = vrot.slane %v1907, 1
      %v2079 = vrot.slane %v1908, 1
      %v2080 = vsel %vm2042, %v2078, %v2079
      %v2081 = vrot.slane %v1909, 1
      %v2082 = vsel %vm2042, %v2079, %v2081
      %v2083 = vrot.slane %v1910, 1
      %v2084 = vrot.slane %v1911, 1
      %v2085 = vsel %vm2042, %v2083, %v2084
      %v2086 = vrot.slane %v1912, 1
      %v2087 = vsel %vm2042, %v2084, %v2086
      %v2088 = vrot.slane %v1913, 1
      %v2089 = vrot.slane %v1914, 1
      %v2090 = vsel %vm2042, %v2088, %v2089
      %v2091 = vrot.slane %v1915, 1
      %v2092 = vsel %vm2042, %v2089, %v2091
      %v2093 = vrot.slane %v1916, 1
      %v2094 = vrot.slane %v1917, 1
      %v2095 = vsel %vm2042, %v2093, %v2094
      %v2096 = vrot.slane %v1918, 1
      %v2097 = vsel %vm2042, %v2094, %v2096
      %v2098 = vrot.slane %v1919, 1
      %v2099 = vrot.slane %v1920, 1
      %v2100 = vsel %vm2042, %v2098, %v2099
      %v2101 = vrot.slane %v1921, 1
      %v2102 = vsel %vm2042, %v2099, %v2101
      %v2103 = vrot.slane %v1922, 1
      %v2104 = vrot.slane %v1923, 1
      %v2105 = vsel %vm2042, %v2103, %v2104
      %v2106 = vrot.slane %v1924, 1
      %v2107 = vsel %vm2042, %v2104, %v2106
      %v2108 = vrot.slane %v1925, 1
      %v2109 = vrot.slane %v1926, 1
      %v2110 = vsel %vm2042, %v2108, %v2109
      %v2111 = vrot.slane %v1927, 1
      %v2112 = vsel %vm2042, %v2109, %v2111
      %v2113 = vrot.slane %v1928, 1
      %v2114 = vrot.slane %v1929, 1
      %v2115 = vsel %vm2042, %v2113, %v2114
      %v2116 = vrot.slane %v1930, 1
      %v2117 = vsel %vm2042, %v2114, %v2116
      %v2118 = vrot.slane %v1931, 1
      %v2119 = vrot.slane %v1932, 1
      %v2120 = vsel %vm2042, %v2118, %v2119
      %v2121 = vrot.slane %v1933, 1
      %v2122 = vsel %vm2042, %v2119, %v2121
      %v2171 = vrot.slane %v1940, 1
      %v2172 = vrot.slane %v1941, 1
      %v2173 = vsel %vm2042, %v2171, %v2172
      %v2174 = vrot.slane %v1942, 1
      %v2175 = vsel %vm2042, %v2172, %v2174
      %v2176 = vrot.slane %v1943, 1
      %v2177 = vrot.slane %v1944, 1
      %v2178 = vsel %vm2042, %v2176, %v2177
      %v2179 = vrot.slane %v1945, 1
      %v2180 = vsel %vm2042, %v2177, %v2179
      %v2181 = vrot.slane %v1946, 1
      %v2182 = vrot.slane %v1947, 1
      %v2183 = vsel %vm2042, %v2181, %v2182
      %v2184 = vrot.slane %v1948, 1
      %v2185 = vsel %vm2042, %v2182, %v2184
      %v2186 = vrot.slane %v1949, 1
      %v2187 = vrot.slane %v1950, 1
      %v2188 = vsel %vm2042, %v2186, %v2187
      %v2189 = vrot.slane %v1951, 1
      %v2190 = vsel %vm2042, %v2187, %v2189
      %v2191 = vrot.slane %v1952, 1
      %v2192 = vrot.slane %v1953, 1
      %v2193 = vsel %vm2042, %v2191, %v2192
      %v2194 = vrot.slane %v1954, 1
      %v2195 = vsel %vm2042, %v2192, %v2194
      %v2196 = vrot.slane %v1955, 1
      %v2197 = vrot.slane %v1956, 1
      %v2198 = vsel %vm2042, %v2196, %v2197
      %v2199 = vrot.slane %v1957, 1
      %v2200 = vsel %vm2042, %v2197, %v2199
      %v2201 = vrot.slane %v1958, 1
      %v2202 = vrot.slane %v1959, 1
      %v2203 = vsel %vm2042, %v2201, %v2202
      %v2204 = vrot.slane %v1960, 1
      %v2205 = vsel %vm2042, %v2202, %v2204
      %v2206 = vrot.slane %v1961, 1
      %v2207 = vrot.slane %v1962, 1
      %v2208 = vsel %vm2042, %v2206, %v2207
      %v2209 = vrot.slane %v1963, 1
      %v2210 = vsel %vm2042, %v2207, %v2209
      %v2211 = vrot.slane %v1964, 1
      %v2212 = vrot.slane %v1965, 1
      %v2213 = vsel %vm2042, %v2211, %v2212
      %v2214 = vrot.slane %v1966, 1
      %v2215 = vsel %vm2042, %v2212, %v2214
      %v2216 = vrot.slane %v1967, 1
      %v2217 = vrot.slane %v1968, 1
      %v2218 = vsel %vm2042, %v2216, %v2217
      %v2219 = vrot.slane %v1969, 1
      %v2220 = vsel %vm2042, %v2217, %v2219
      %v2221 = vrot.slane %v1970, 1
      %v2222 = vrot.slane %v1971, 1
      %v2223 = vsel %vm2042, %v2221, %v2222
      %v2224 = vrot.slane %v1972, 1
      %v2225 = vsel %vm2042, %v2222, %v2224
      %v2226 = vrot.slane %v1973, 1
      %v2227 = vrot.slane %v1974, 1
      %v2228 = vsel %vm2042, %v2226, %v2227
      %v2229 = vrot.slane %v1975, 1
      %v2230 = vsel %vm2042, %v2227, %v2229
      %v2231 = vrot.slane %v1976, 1
      %v2232 = vrot.slane %v1977, 1
      %v2233 = vsel %vm2042, %v2231, %v2232
      %v2234 = vrot.slane %v1978, 1
      %v2235 = vsel %vm2042, %v2232, %v2234
      %v2236 = vrot.slane %v1979, 1
      %v2237 = vrot.slane %v1980, 1
      %v2238 = vsel %vm2042, %v2236, %v2237
      %v2239 = vrot.slane %v1981, 1
      %v2240 = vsel %vm2042, %v2237, %v2239
      %v2241 = vrot.slane %v1982, 1
      %v2242 = vrot.slane %v1983, 1
      %v2243 = vsel %vm2042, %v2241, %v2242
      %v2244 = vrot.slane %v1984, 1
      %v2245 = vsel %vm2042, %v2242, %v2244
      %v2246 = vrot.slane %v1985, 1
      %v2247 = vrot.slane %v1986, 1
      %v2248 = vsel %vm2042, %v2246, %v2247
      %v2249 = vrot.slane %v1987, 1
      %v2250 = vsel %vm2042, %v2247, %v2249
      %vm2251 = vcmask 1045504
      %v2252 = vrot.slane %v1886, 2
      %v2253 = vrot.slane %v1887, 2
      %v2254 = vsel %vm2251, %v2252, %v2253
      %v2255 = vrot.slane %v1888, 2
      %v2256 = vsel %vm2251, %v2253, %v2255
      %v2257 = vrot.slane %v1889, 2
      %v2258 = vrot.slane %v1890, 2
      %v2259 = vsel %vm2251, %v2257, %v2258
      %v2260 = vrot.slane %v1891, 2
      %v2261 = vsel %vm2251, %v2258, %v2260
      %v2262 = vrot.slane %v1892, 2
      %v2263 = vrot.slane %v1893, 2
      %v2264 = vsel %vm2251, %v2262, %v2263
      %v2265 = vrot.slane %v1894, 2
      %v2266 = vsel %vm2251, %v2263, %v2265
      %v2267 = vrot.slane %v1895, 2
      %v2268 = vrot.slane %v1896, 2
      %v2269 = vsel %vm2251, %v2267, %v2268
      %v2270 = vrot.slane %v1897, 2
      %v2271 = vsel %vm2251, %v2268, %v2270
      %v2272 = vrot.slane %v1898, 2
      %v2273 = vrot.slane %v1899, 2
      %v2274 = vsel %vm2251, %v2272, %v2273
      %v2275 = vrot.slane %v1900, 2
      %v2276 = vsel %vm2251, %v2273, %v2275
      %v2277 = vrot.slane %v1901, 2
      %v2278 = vrot.slane %v1902, 2
      %v2279 = vsel %vm2251, %v2277, %v2278
      %v2280 = vrot.slane %v1903, 2
      %v2281 = vsel %vm2251, %v2278, %v2280
      %v2282 = vrot.slane %v1904, 2
      %v2283 = vrot.slane %v1905, 2
      %v2284 = vsel %vm2251, %v2282, %v2283
      %v2285 = vrot.slane %v1906, 2
      %v2286 = vsel %vm2251, %v2283, %v2285
      %v2287 = vrot.slane %v1907, 2
      %v2288 = vrot.slane %v1908, 2
      %v2289 = vsel %vm2251, %v2287, %v2288
      %v2290 = vrot.slane %v1909, 2
      %v2291 = vsel %vm2251, %v2288, %v2290
      %v2292 = vrot.slane %v1910, 2
      %v2293 = vrot.slane %v1911, 2
      %v2294 = vsel %vm2251, %v2292, %v2293
      %v2295 = vrot.slane %v1912, 2
      %v2296 = vsel %vm2251, %v2293, %v2295
      %v2297 = vrot.slane %v1913, 2
      %v2298 = vrot.slane %v1914, 2
      %v2299 = vsel %vm2251, %v2297, %v2298
      %v2300 = vrot.slane %v1915, 2
      %v2301 = vsel %vm2251, %v2298, %v2300
      %v2302 = vrot.slane %v1916, 2
      %v2303 = vrot.slane %v1917, 2
      %v2304 = vsel %vm2251, %v2302, %v2303
      %v2305 = vrot.slane %v1918, 2
      %v2306 = vsel %vm2251, %v2303, %v2305
      %v2307 = vrot.slane %v1919, 2
      %v2308 = vrot.slane %v1920, 2
      %v2309 = vsel %vm2251, %v2307, %v2308
      %v2310 = vrot.slane %v1921, 2
      %v2311 = vsel %vm2251, %v2308, %v2310
      %v2312 = vrot.slane %v1922, 2
      %v2313 = vrot.slane %v1923, 2
      %v2314 = vsel %vm2251, %v2312, %v2313
      %v2315 = vrot.slane %v1924, 2
      %v2316 = vsel %vm2251, %v2313, %v2315
      %v2317 = vrot.slane %v1925, 2
      %v2318 = vrot.slane %v1926, 2
      %v2319 = vsel %vm2251, %v2317, %v2318
      %v2320 = vrot.slane %v1927, 2
      %v2321 = vsel %vm2251, %v2318, %v2320
      %v2322 = vrot.slane %v1928, 2
      %v2323 = vrot.slane %v1929, 2
      %v2324 = vsel %vm2251, %v2322, %v2323
      %v2325 = vrot.slane %v1930, 2
      %v2326 = vsel %vm2251, %v2323, %v2325
      %v2327 = vrot.slane %v1931, 2
      %v2328 = vrot.slane %v1932, 2
      %v2329 = vsel %vm2251, %v2327, %v2328
      %v2330 = vrot.slane %v1933, 2
      %v2331 = vsel %vm2251, %v2328, %v2330
      %v2332 = vrot.slane %v1940, 2
      %v2333 = vrot.slane %v1941, 2
      %v2334 = vsel %vm2251, %v2332, %v2333
      %v2335 = vrot.slane %v1942, 2
      %v2336 = vsel %vm2251, %v2333, %v2335
      %v2337 = vrot.slane %v1943, 2
      %v2338 = vrot.slane %v1944, 2
      %v2339 = vsel %vm2251, %v2337, %v2338
      %v2340 = vrot.slane %v1945, 2
      %v2341 = vsel %vm2251, %v2338, %v2340
      %v2342 = vrot.slane %v1946, 2
      %v2343 = vrot.slane %v1947, 2
      %v2344 = vsel %vm2251, %v2342, %v2343
      %v2345 = vrot.slane %v1948, 2
      %v2346 = vsel %vm2251, %v2343, %v2345
      %v2347 = vrot.slane %v1949, 2
      %v2348 = vrot.slane %v1950, 2
      %v2349 = vsel %vm2251, %v2347, %v2348
      %v2350 = vrot.slane %v1951, 2
      %v2351 = vsel %vm2251, %v2348, %v2350
      %v2352 = vrot.slane %v1952, 2
      %v2353 = vrot.slane %v1953, 2
      %v2354 = vsel %vm2251, %v2352, %v2353
      %v2355 = vrot.slane %v1954, 2
      %v2356 = vsel %vm2251, %v2353, %v2355
      %v2357 = vrot.slane %v1955, 2
      %v2358 = vrot.slane %v1956, 2
      %v2359 = vsel %vm2251, %v2357, %v2358
      %v2360 = vrot.slane %v1957, 2
      %v2361 = vsel %vm2251, %v2358, %v2360
      %v2362 = vrot.slane %v1958, 2
      %v2363 = vrot.slane %v1959, 2
      %v2364 = vsel %vm2251, %v2362, %v2363
      %v2365 = vrot.slane %v1960, 2
      %v2366 = vsel %vm2251, %v2363, %v2365
      %v2367 = vrot.slane %v1961, 2
      %v2368 = vrot.slane %v1962, 2
      %v2369 = vsel %vm2251, %v2367, %v2368
      %v2370 = vrot.slane %v1963, 2
      %v2371 = vsel %vm2251, %v2368, %v2370
      %v2372 = vrot.slane %v1964, 2
      %v2373 = vrot.slane %v1965, 2
      %v2374 = vsel %vm2251, %v2372, %v2373
      %v2375 = vrot.slane %v1966, 2
      %v2376 = vsel %vm2251, %v2373, %v2375
      %v2377 = vrot.slane %v1967, 2
      %v2378 = vrot.slane %v1968, 2
      %v2379 = vsel %vm2251, %v2377, %v2378
      %v2380 = vrot.slane %v1969, 2
      %v2381 = vsel %vm2251, %v2378, %v2380
      %v2382 = vrot.slane %v1970, 2
      %v2383 = vrot.slane %v1971, 2
      %v2384 = vsel %vm2251, %v2382, %v2383
      %v2385 = vrot.slane %v1972, 2
      %v2386 = vsel %vm2251, %v2383, %v2385
      %v2387 = vrot.slane %v1973, 2
      %v2388 = vrot.slane %v1974, 2
      %v2389 = vsel %vm2251, %v2387, %v2388
      %v2390 = vrot.slane %v1975, 2
      %v2391 = vsel %vm2251, %v2388, %v2390
      %v2392 = vrot.slane %v1976, 2
      %v2393 = vrot.slane %v1977, 2
      %v2394 = vsel %vm2251, %v2392, %v2393
      %v2395 = vrot.slane %v1978, 2
      %v2396 = vsel %vm2251, %v2393, %v2395
      %v2397 = vrot.slane %v1979, 2
      %v2398 = vrot.slane %v1980, 2
      %v2399 = vsel %vm2251, %v2397, %v2398
      %v2400 = vrot.slane %v1981, 2
      %v2401 = vsel %vm2251, %v2398, %v2400
      %v2402 = vrot.slane %v1982, 2
      %v2403 = vrot.slane %v1983, 2
      %v2404 = vsel %vm2251, %v2402, %v2403
      %v2405 = vrot.slane %v1984, 2
      %v2406 = vsel %vm2251, %v2403, %v2405
      %v2407 = vrot.slane %v1985, 2
      %v2408 = vrot.slane %v1986, 2
      %v2409 = vsel %vm2251, %v2407, %v2408
      %v2410 = vrot.slane %v1987, 2
      %v2411 = vsel %vm2251, %v2408, %v2410
      %v2415 = vrot.slane %v1934, 1
      %v2416 = vrot.slane %v1935, 1
      %v2417 = vsel %vm2042, %v2415, %v2416
      %v2418 = vrot.slane %v1936, 1
      %v2419 = vsel %vm2042, %v2416, %v2418
      %v2423 = vrot.slane %v1988, 1
      %v2424 = vrot.slane %v1989, 1
      %v2425 = vsel %vm2042, %v2423, %v2424
      %v2426 = vrot.slane %v1990, 1
      %v2427 = vsel %vm2042, %v2424, %v2426
      %v2428 = vrot.slane %v1934, 2
      %v2429 = vrot.slane %v1935, 2
      %v2430 = vsel %vm2251, %v2428, %v2429
      %v2431 = vrot.slane %v1936, 2
      %v2432 = vsel %vm2251, %v2429, %v2431
      %v2433 = vrot.slane %v1988, 2
      %v2434 = vrot.slane %v1989, 2
      %v2435 = vsel %vm2251, %v2433, %v2434
      %v2436 = vrot.slane %v1990, 2
      %v2437 = vsel %vm2251, %v2434, %v2436
      %v2441 = vrot.slane %v1937, 1
      %v2442 = vrot.slane %v1938, 1
      %v2443 = vsel %vm2042, %v2441, %v2442
      %v2444 = vrot.slane %v1939, 1
      %v2445 = vsel %vm2042, %v2442, %v2444
      %v2449 = vrot.slane %v1991, 1
      %v2450 = vrot.slane %v1992, 1
      %v2451 = vsel %vm2042, %v2449, %v2450
      %v2452 = vrot.slane %v1993, 1
      %v2453 = vsel %vm2042, %v2450, %v2452
      %v2454 = vrot.slane %v1937, 2
      %v2455 = vrot.slane %v1938, 2
      %v2456 = vsel %vm2251, %v2454, %v2455
      %v2457 = vrot.slane %v1939, 2
      %v2458 = vsel %vm2251, %v2455, %v2457
      %v2491 = vrot.slane %v1991, 2
      %v2492 = vrot.slane %v1992, 2
      %v2493 = vsel %vm2251, %v2491, %v2492
      %v2494 = vrot.slane %v1993, 2
      %v2495 = vsel %vm2251, %v2492, %v2494
      %2496 = vrot.lane.b32.xlu0 %v1940, 4
      %v2497 = vpop.permute.xlu0 %2496
      %2498 = vrot.lane.b32.xlu0 %v1941, 4
      %v2499 = vpop.permute.xlu0 %2498
      %2500 = vrot.lane.b32.xlu0 %v1943, 4
      %v2501 = vpop.permute.xlu0 %2500
      %2502 = vrot.lane.b32.xlu0 %v1944, 4
      %v2503 = vpop.permute.xlu0 %2502
      %2504 = vrot.lane.b32.xlu0 %v1946, 4
      %v2505 = vpop.permute.xlu0 %2504
      %2506 = vrot.lane.b32.xlu0 %v1947, 4
      %v2507 = vpop.permute.xlu0 %2506
      %2508 = vrot.lane.b32.xlu0 %v1949, 4
      %v2509 = vpop.permute.xlu0 %2508
      %2510 = vrot.lane.b32.xlu0 %v1950, 4
      %v2511 = vpop.permute.xlu0 %2510
      %2512 = vrot.lane.b32.xlu0 %v1952, 4
      %v2513 = vpop.permute.xlu0 %2512
      %2514 = vrot.lane.b32.xlu0 %v1953, 4
      %v2515 = vpop.permute.xlu0 %2514
      %2516 = vrot.lane.b32.xlu0 %v1955, 4
      %v2517 = vpop.permute.xlu0 %2516
      %2518 = vrot.lane.b32.xlu0 %v1956, 4
      %v2519 = vpop.permute.xlu0 %2518
      %2520 = vrot.lane.b32.xlu0 %v1958, 4
      %v2521 = vpop.permute.xlu0 %2520
      %2522 = vrot.lane.b32.xlu0 %v1959, 4
      %v2523 = vpop.permute.xlu0 %2522
      %2524 = vrot.lane.b32.xlu0 %v1961, 4
      %v2525 = vpop.permute.xlu0 %2524
      %2526 = vrot.lane.b32.xlu0 %v1962, 4
      %v2527 = vpop.permute.xlu0 %2526
      %2528 = vrot.lane.b32.xlu0 %v1964, 4
      %v2529 = vpop.permute.xlu0 %2528
      %2530 = vrot.lane.b32.xlu0 %v1965, 4
      %v2531 = vpop.permute.xlu0 %2530
      %2532 = vrot.lane.b32.xlu0 %v1967, 4
      %v2533 = vpop.permute.xlu0 %2532
      %2534 = vrot.lane.b32.xlu0 %v1968, 4
      %v2535 = vpop.permute.xlu0 %2534
      %2536 = vrot.lane.b32.xlu0 %v1970, 4
      %v2537 = vpop.permute.xlu0 %2536
      %2538 = vrot.lane.b32.xlu0 %v1971, 4
      %v2539 = vpop.permute.xlu0 %2538
      %2540 = vrot.lane.b32.xlu0 %v1973, 4
      %v2541 = vpop.permute.xlu0 %2540
      %2542 = vrot.lane.b32.xlu0 %v1974, 4
      %v2543 = vpop.permute.xlu0 %2542
      %2544 = vrot.lane.b32.xlu0 %v1976, 4
      %v2545 = vpop.permute.xlu0 %2544
      %2546 = vrot.lane.b32.xlu0 %v1977, 4
      %v2547 = vpop.permute.xlu0 %2546
      %2548 = vrot.lane.b32.xlu0 %v1979, 4
      %v2549 = vpop.permute.xlu0 %2548
      %2550 = vrot.lane.b32.xlu0 %v1980, 4
      %v2551 = vpop.permute.xlu0 %2550
      %2552 = vrot.lane.b32.xlu0 %v1982, 4
      %v2553 = vpop.permute.xlu0 %2552
      %2554 = vrot.lane.b32.xlu0 %v1983, 4
      %v2555 = vpop.permute.xlu0 %2554
      %2556 = vrot.lane.b32.xlu0 %v1985, 4
      %v2557 = vpop.permute.xlu0 %2556
      %2558 = vrot.lane.b32.xlu0 %v1986, 4
      %v2559 = vpop.permute.xlu0 %2558
      %2592 = vrot.lane.b32.xlu0 %v2045, 8
      %v2593 = vpop.permute.xlu0 %2592
      %2594 = vrot.lane.b32.xlu0 %v2047, 8
      %v2595 = vpop.permute.xlu0 %2594
      %2596 = vrot.lane.b32.xlu0 %v2050, 8
      %v2597 = vpop.permute.xlu0 %2596
      %2598 = vrot.lane.b32.xlu0 %v2052, 8
      %v2599 = vpop.permute.xlu0 %2598
      %2600 = vrot.lane.b32.xlu0 %v2055, 8
      %v2601 = vpop.permute.xlu0 %2600
      %2602 = vrot.lane.b32.xlu0 %v2057, 8
      %v2603 = vpop.permute.xlu0 %2602
      %2604 = vrot.lane.b32.xlu0 %v2060, 8
      %v2605 = vpop.permute.xlu0 %2604
      %2606 = vrot.lane.b32.xlu0 %v2062, 8
      %v2607 = vpop.permute.xlu0 %2606
      %2608 = vrot.lane.b32.xlu0 %v2065, 8
      %v2609 = vpop.permute.xlu0 %2608
      %2610 = vrot.lane.b32.xlu0 %v2067, 8
      %v2611 = vpop.permute.xlu0 %2610
      %2612 = vrot.lane.b32.xlu0 %v2070, 8
      %v2613 = vpop.permute.xlu0 %2612
      %2614 = vrot.lane.b32.xlu0 %v2072, 8
      %v2615 = vpop.permute.xlu0 %2614
      %2616 = vrot.lane.b32.xlu0 %v2075, 8
      %v2617 = vpop.permute.xlu0 %2616
      %2618 = vrot.lane.b32.xlu0 %v2077, 8
      %v2619 = vpop.permute.xlu0 %2618
      %2620 = vrot.lane.b32.xlu0 %v2080, 8
      %v2621 = vpop.permute.xlu0 %2620
      %2622 = vrot.lane.b32.xlu0 %v2082, 8
      %v2623 = vpop.permute.xlu0 %2622
      %2624 = vrot.lane.b32.xlu0 %v2085, 8
      %v2625 = vpop.permute.xlu0 %2624
      %2626 = vrot.lane.b32.xlu0 %v2087, 8
      %v2627 = vpop.permute.xlu0 %2626
      %2628 = vrot.lane.b32.xlu0 %v2090, 8
      %v2629 = vpop.permute.xlu0 %2628
      %2630 = vrot.lane.b32.xlu0 %v2092, 8
      %v2631 = vpop.permute.xlu0 %2630
      %2632 = vrot.lane.b32.xlu0 %v2095, 8
      %v2633 = vpop.permute.xlu0 %2632
      %2634 = vrot.lane.b32.xlu0 %v2097, 8
      %v2635 = vpop.permute.xlu0 %2634
      %2636 = vrot.lane.b32.xlu0 %v2100, 8
      %v2637 = vpop.permute.xlu0 %2636
      %2638 = vrot.lane.b32.xlu0 %v2102, 8
      %v2639 = vpop.permute.xlu0 %2638
      %2640 = vrot.lane.b32.xlu0 %v2105, 8
      %v2641 = vpop.permute.xlu0 %2640
      %2642 = vrot.lane.b32.xlu0 %v2107, 8
      %v2643 = vpop.permute.xlu0 %2642
      %2644 = vrot.lane.b32.xlu0 %v2110, 8
      %v2645 = vpop.permute.xlu0 %2644
      %2646 = vrot.lane.b32.xlu0 %v2112, 8
      %v2647 = vpop.permute.xlu0 %2646
      %2648 = vrot.lane.b32.xlu0 %v2115, 8
      %v2649 = vpop.permute.xlu0 %2648
      %2650 = vrot.lane.b32.xlu0 %v2117, 8
      %v2651 = vpop.permute.xlu0 %2650
      %2652 = vrot.lane.b32.xlu0 %v2120, 8
      %v2653 = vpop.permute.xlu0 %2652
      %2654 = vrot.lane.b32.xlu0 %v2122, 8
      %v2655 = vpop.permute.xlu0 %2654
      %2688 = vrot.lane.b32.xlu0 %v2173, 12
      %v2689 = vpop.permute.xlu0 %2688
      %2690 = vrot.lane.b32.xlu0 %v2175, 12
      %v2691 = vpop.permute.xlu0 %2690
      %2692 = vrot.lane.b32.xlu0 %v2178, 12
      %v2693 = vpop.permute.xlu0 %2692
      %2694 = vrot.lane.b32.xlu0 %v2180, 12
      %v2695 = vpop.permute.xlu0 %2694
      %2696 = vrot.lane.b32.xlu0 %v2183, 12
      %v2697 = vpop.permute.xlu0 %2696
      %2698 = vrot.lane.b32.xlu0 %v2185, 12
      %v2699 = vpop.permute.xlu0 %2698
      %2700 = vrot.lane.b32.xlu0 %v2188, 12
      %v2701 = vpop.permute.xlu0 %2700
      %2702 = vrot.lane.b32.xlu0 %v2190, 12
      %v2703 = vpop.permute.xlu0 %2702
      %2704 = vrot.lane.b32.xlu0 %v2193, 12
      %v2705 = vpop.permute.xlu0 %2704
      %2706 = vrot.lane.b32.xlu0 %v2195, 12
      %v2707 = vpop.permute.xlu0 %2706
      %2708 = vrot.lane.b32.xlu0 %v2198, 12
      %v2709 = vpop.permute.xlu0 %2708
      %2710 = vrot.lane.b32.xlu0 %v2200, 12
      %v2711 = vpop.permute.xlu0 %2710
      %2712 = vrot.lane.b32.xlu0 %v2203, 12
      %v2713 = vpop.permute.xlu0 %2712
      %2714 = vrot.lane.b32.xlu0 %v2205, 12
      %v2715 = vpop.permute.xlu0 %2714
      %2716 = vrot.lane.b32.xlu0 %v2208, 12
      %v2717 = vpop.permute.xlu0 %2716
      %2718 = vrot.lane.b32.xlu0 %v2210, 12
      %v2719 = vpop.permute.xlu0 %2718
      %2720 = vrot.lane.b32.xlu0 %v2213, 12
      %v2721 = vpop.permute.xlu0 %2720
      %2722 = vrot.lane.b32.xlu0 %v2215, 12
      %v2723 = vpop.permute.xlu0 %2722
      %2724 = vrot.lane.b32.xlu0 %v2218, 12
      %v2725 = vpop.permute.xlu0 %2724
      %2726 = vrot.lane.b32.xlu0 %v2220, 12
      %v2727 = vpop.permute.xlu0 %2726
      %2728 = vrot.lane.b32.xlu0 %v2223, 12
      %v2729 = vpop.permute.xlu0 %2728
      %2730 = vrot.lane.b32.xlu0 %v2225, 12
      %v2731 = vpop.permute.xlu0 %2730
      %2732 = vrot.lane.b32.xlu0 %v2228, 12
      %v2733 = vpop.permute.xlu0 %2732
      %2734 = vrot.lane.b32.xlu0 %v2230, 12
      %v2735 = vpop.permute.xlu0 %2734
      %2736 = vrot.lane.b32.xlu0 %v2233, 12
      %v2737 = vpop.permute.xlu0 %2736
      %2738 = vrot.lane.b32.xlu0 %v2235, 12
      %v2739 = vpop.permute.xlu0 %2738
      %2740 = vrot.lane.b32.xlu0 %v2238, 12
      %v2741 = vpop.permute.xlu0 %2740
      %2742 = vrot.lane.b32.xlu0 %v2240, 12
      %v2743 = vpop.permute.xlu0 %2742
      %2744 = vrot.lane.b32.xlu0 %v2243, 12
      %v2745 = vpop.permute.xlu0 %2744
      %2746 = vrot.lane.b32.xlu0 %v2245, 12
      %v2747 = vpop.permute.xlu0 %2746
      %2748 = vrot.lane.b32.xlu0 %v2248, 12
      %v2749 = vpop.permute.xlu0 %2748
      %2750 = vrot.lane.b32.xlu0 %v2250, 12
      %v2751 = vpop.permute.xlu0 %2750
      %2784 = vrot.lane.b32.xlu0 %v2254, 16
      %v2785 = vpop.permute.xlu0 %2784
      %2786 = vrot.lane.b32.xlu0 %v2256, 16
      %v2787 = vpop.permute.xlu0 %2786
      %2788 = vrot.lane.b32.xlu0 %v2259, 16
      %v2789 = vpop.permute.xlu0 %2788
      %2790 = vrot.lane.b32.xlu0 %v2261, 16
      %v2791 = vpop.permute.xlu0 %2790
      %2792 = vrot.lane.b32.xlu0 %v2264, 16
      %v2793 = vpop.permute.xlu0 %2792
      %2794 = vrot.lane.b32.xlu0 %v2266, 16
      %v2795 = vpop.permute.xlu0 %2794
      %2796 = vrot.lane.b32.xlu0 %v2269, 16
      %v2797 = vpop.permute.xlu0 %2796
      %2798 = vrot.lane.b32.xlu0 %v2271, 16
      %v2799 = vpop.permute.xlu0 %2798
      %2800 = vrot.lane.b32.xlu0 %v2274, 16
      %v2801 = vpop.permute.xlu0 %2800
      %2802 = vrot.lane.b32.xlu0 %v2276, 16
      %v2803 = vpop.permute.xlu0 %2802
      %2804 = vrot.lane.b32.xlu0 %v2279, 16
      %v2805 = vpop.permute.xlu0 %2804
      %2806 = vrot.lane.b32.xlu0 %v2281, 16
      %v2807 = vpop.permute.xlu0 %2806
      %2808 = vrot.lane.b32.xlu0 %v2284, 16
      %v2809 = vpop.permute.xlu0 %2808
      %2810 = vrot.lane.b32.xlu0 %v2286, 16
      %v2811 = vpop.permute.xlu0 %2810
      %2812 = vrot.lane.b32.xlu0 %v2289, 16
      %v2813 = vpop.permute.xlu0 %2812
      %2814 = vrot.lane.b32.xlu0 %v2291, 16
      %v2815 = vpop.permute.xlu0 %2814
      %2816 = vrot.lane.b32.xlu0 %v2294, 16
      %v2817 = vpop.permute.xlu0 %2816
      %2818 = vrot.lane.b32.xlu0 %v2296, 16
      %v2819 = vpop.permute.xlu0 %2818
      %2820 = vrot.lane.b32.xlu0 %v2299, 16
      %v2821 = vpop.permute.xlu0 %2820
      %2822 = vrot.lane.b32.xlu0 %v2301, 16
      %v2823 = vpop.permute.xlu0 %2822
      %2824 = vrot.lane.b32.xlu0 %v2304, 16
      %v2825 = vpop.permute.xlu0 %2824
      %2826 = vrot.lane.b32.xlu0 %v2306, 16
      %v2827 = vpop.permute.xlu0 %2826
      %2828 = vrot.lane.b32.xlu0 %v2309, 16
      %v2829 = vpop.permute.xlu0 %2828
      %2830 = vrot.lane.b32.xlu0 %v2311, 16
      %v2831 = vpop.permute.xlu0 %2830
      %2832 = vrot.lane.b32.xlu0 %v2314, 16
      %v2833 = vpop.permute.xlu0 %2832
      %2834 = vrot.lane.b32.xlu0 %v2316, 16
      %v2835 = vpop.permute.xlu0 %2834
      %2836 = vrot.lane.b32.xlu0 %v2319, 16
      %v2837 = vpop.permute.xlu0 %2836
      %2838 = vrot.lane.b32.xlu0 %v2321, 16
      %v2839 = vpop.permute.xlu0 %2838
      %2840 = vrot.lane.b32.xlu0 %v2324, 16
      %v2841 = vpop.permute.xlu0 %2840
      %2842 = vrot.lane.b32.xlu0 %v2326, 16
      %v2843 = vpop.permute.xlu0 %2842
      %2844 = vrot.lane.b32.xlu0 %v2329, 16
      %v2845 = vpop.permute.xlu0 %2844
      %2846 = vrot.lane.b32.xlu0 %v2331, 16
      %v2847 = vpop.permute.xlu0 %2846
      %2880 = vrot.lane.b32.xlu0 %v2334, 20
      %v2881 = vpop.permute.xlu0 %2880
      %2882 = vrot.lane.b32.xlu0 %v2336, 20
      %v2883 = vpop.permute.xlu0 %2882
      %2884 = vrot.lane.b32.xlu0 %v2339, 20
      %v2885 = vpop.permute.xlu0 %2884
      %2886 = vrot.lane.b32.xlu0 %v2341, 20
      %v2887 = vpop.permute.xlu0 %2886
      %2888 = vrot.lane.b32.xlu0 %v2344, 20
      %v2889 = vpop.permute.xlu0 %2888
      %2890 = vrot.lane.b32.xlu0 %v2346, 20
      %v2891 = vpop.permute.xlu0 %2890
      %2892 = vrot.lane.b32.xlu0 %v2349, 20
      %v2893 = vpop.permute.xlu0 %2892
      %2894 = vrot.lane.b32.xlu0 %v2351, 20
      %v2895 = vpop.permute.xlu0 %2894
      %2896 = vrot.lane.b32.xlu0 %v2354, 20
      %v2897 = vpop.permute.xlu0 %2896
      %2898 = vrot.lane.b32.xlu0 %v2356, 20
      %v2899 = vpop.permute.xlu0 %2898
      %2900 = vrot.lane.b32.xlu0 %v2359, 20
      %v2901 = vpop.permute.xlu0 %2900
      %2902 = vrot.lane.b32.xlu0 %v2361, 20
      %v2903 = vpop.permute.xlu0 %2902
      %2904 = vrot.lane.b32.xlu0 %v2364, 20
      %v2905 = vpop.permute.xlu0 %2904
      %2906 = vrot.lane.b32.xlu0 %v2366, 20
      %v2907 = vpop.permute.xlu0 %2906
      %2908 = vrot.lane.b32.xlu0 %v2369, 20
      %v2909 = vpop.permute.xlu0 %2908
      %2910 = vrot.lane.b32.xlu0 %v2371, 20
      %v2911 = vpop.permute.xlu0 %2910
      %2912 = vrot.lane.b32.xlu0 %v2374, 20
      %v2913 = vpop.permute.xlu0 %2912
      %2914 = vrot.lane.b32.xlu0 %v2376, 20
      %v2915 = vpop.permute.xlu0 %2914
      %2916 = vrot.lane.b32.xlu0 %v2379, 20
      %v2917 = vpop.permute.xlu0 %2916
      %2918 = vrot.lane.b32.xlu0 %v2381, 20
      %v2919 = vpop.permute.xlu0 %2918
      %2920 = vrot.lane.b32.xlu0 %v2384, 20
      %v2921 = vpop.permute.xlu0 %2920
      %2922 = vrot.lane.b32.xlu0 %v2386, 20
      %v2923 = vpop.permute.xlu0 %2922
      %2924 = vrot.lane.b32.xlu0 %v2389, 20
      %v2925 = vpop.permute.xlu0 %2924
      %2926 = vrot.lane.b32.xlu0 %v2391, 20
      %v2927 = vpop.permute.xlu0 %2926
      %2928 = vrot.lane.b32.xlu0 %v2394, 20
      %v2929 = vpop.permute.xlu0 %2928
      %2930 = vrot.lane.b32.xlu0 %v2396, 20
      %v2931 = vpop.permute.xlu0 %2930
      %2932 = vrot.lane.b32.xlu0 %v2399, 20
      %v2933 = vpop.permute.xlu0 %2932
      %2934 = vrot.lane.b32.xlu0 %v2401, 20
      %v2935 = vpop.permute.xlu0 %2934
      %2936 = vrot.lane.b32.xlu0 %v2404, 20
      %v2937 = vpop.permute.xlu0 %2936
      %2938 = vrot.lane.b32.xlu0 %v2406, 20
      %v2939 = vpop.permute.xlu0 %2938
      %2940 = vrot.lane.b32.xlu0 %v2409, 20
      %v2941 = vpop.permute.xlu0 %2940
      %2942 = vrot.lane.b32.xlu0 %v2411, 20
      %v2943 = vpop.permute.xlu0 %2942
      %2976 = vrot.lane.b32.xlu0 %v1889, 24
      %v2977 = vpop.permute.xlu0 %2976
      %2978 = vrot.lane.b32.xlu0 %v1890, 24
      %v2979 = vpop.permute.xlu0 %2978
      %2980 = vrot.lane.b32.xlu0 %v1892, 24
      %v2981 = vpop.permute.xlu0 %2980
      %2982 = vrot.lane.b32.xlu0 %v1893, 24
      %v2983 = vpop.permute.xlu0 %2982
      %2984 = vrot.lane.b32.xlu0 %v1895, 24
      %v2985 = vpop.permute.xlu0 %2984
      %2986 = vrot.lane.b32.xlu0 %v1896, 24
      %v2987 = vpop.permute.xlu0 %2986
      %2988 = vrot.lane.b32.xlu0 %v1898, 24
      %v2989 = vpop.permute.xlu0 %2988
      %2990 = vrot.lane.b32.xlu0 %v1899, 24
      %v2991 = vpop.permute.xlu0 %2990
      %2992 = vrot.lane.b32.xlu0 %v1901, 24
      %v2993 = vpop.permute.xlu0 %2992
      %2994 = vrot.lane.b32.xlu0 %v1902, 24
      %v2995 = vpop.permute.xlu0 %2994
      %2996 = vrot.lane.b32.xlu0 %v1904, 24
      %v2997 = vpop.permute.xlu0 %2996
      %2998 = vrot.lane.b32.xlu0 %v1905, 24
      %v2999 = vpop.permute.xlu0 %2998
      %3000 = vrot.lane.b32.xlu0 %v1907, 24
      %v3001 = vpop.permute.xlu0 %3000
      %3002 = vrot.lane.b32.xlu0 %v1908, 24
      %v3003 = vpop.permute.xlu0 %3002
      %3004 = vrot.lane.b32.xlu0 %v1910, 24
      %v3005 = vpop.permute.xlu0 %3004
      %3006 = vrot.lane.b32.xlu0 %v1911, 24
      %v3007 = vpop.permute.xlu0 %3006
      %3008 = vrot.lane.b32.xlu0 %v1913, 24
      %v3009 = vpop.permute.xlu0 %3008
      %3010 = vrot.lane.b32.xlu0 %v1914, 24
      %v3011 = vpop.permute.xlu0 %3010
      %3012 = vrot.lane.b32.xlu0 %v1916, 24
      %v3013 = vpop.permute.xlu0 %3012
      %3014 = vrot.lane.b32.xlu0 %v1917, 24
      %v3015 = vpop.permute.xlu0 %3014
      %3016 = vrot.lane.b32.xlu0 %v1919, 24
      %v3017 = vpop.permute.xlu0 %3016
      %3018 = vrot.lane.b32.xlu0 %v1920, 24
      %v3019 = vpop.permute.xlu0 %3018
      %3020 = vrot.lane.b32.xlu0 %v1922, 24
      %v3021 = vpop.permute.xlu0 %3020
      %3022 = vrot.lane.b32.xlu0 %v1923, 24
      %v3023 = vpop.permute.xlu0 %3022
      %3024 = vrot.lane.b32.xlu0 %v1925, 24
      %v3025 = vpop.permute.xlu0 %3024
      %3026 = vrot.lane.b32.xlu0 %v1926, 24
      %v3027 = vpop.permute.xlu0 %3026
      %3028 = vrot.lane.b32.xlu0 %v1928, 24
      %v3029 = vpop.permute.xlu0 %3028
      %3030 = vrot.lane.b32.xlu0 %v1929, 24
      %v3031 = vpop.permute.xlu0 %3030
      %3032 = vrot.lane.b32.xlu0 %v1931, 24
      %v3033 = vpop.permute.xlu0 %3032
      %3034 = vrot.lane.b32.xlu0 %v1932, 24
      %v3035 = vpop.permute.xlu0 %3034
      %3036 = vrot.lane.b32.xlu0 %v1934, 24
      %v3037 = vpop.permute.xlu0 %3036
      %3038 = vrot.lane.b32.xlu0 %v1935, 24
      %v3039 = vpop.permute.xlu0 %3038
      %3072 = vrot.lane.b32.xlu0 %v1943, 28
      %v3073 = vpop.permute.xlu0 %3072
      %3074 = vrot.lane.b32.xlu0 %v1944, 28
      %v3075 = vpop.permute.xlu0 %3074
      %3076 = vrot.lane.b32.xlu0 %v1946, 28
      %v3077 = vpop.permute.xlu0 %3076
      %3078 = vrot.lane.b32.xlu0 %v1947, 28
      %v3079 = vpop.permute.xlu0 %3078
      %3080 = vrot.lane.b32.xlu0 %v1949, 28
      %v3081 = vpop.permute.xlu0 %3080
      %3082 = vrot.lane.b32.xlu0 %v1950, 28
      %v3083 = vpop.permute.xlu0 %3082
      %3084 = vrot.lane.b32.xlu0 %v1952, 28
      %v3085 = vpop.permute.xlu0 %3084
      %3086 = vrot.lane.b32.xlu0 %v1953, 28
      %v3087 = vpop.permute.xlu0 %3086
      %3088 = vrot.lane.b32.xlu0 %v1955, 28
      %v3089 = vpop.permute.xlu0 %3088
      %3090 = vrot.lane.b32.xlu0 %v1956, 28
      %v3091 = vpop.permute.xlu0 %3090
      %3092 = vrot.lane.b32.xlu0 %v1958, 28
      %v3093 = vpop.permute.xlu0 %3092
      %3094 = vrot.lane.b32.xlu0 %v1959, 28
      %v3095 = vpop.permute.xlu0 %3094
      %3096 = vrot.lane.b32.xlu0 %v1961, 28
      %v3097 = vpop.permute.xlu0 %3096
      %3098 = vrot.lane.b32.xlu0 %v1962, 28
      %v3099 = vpop.permute.xlu0 %3098
      %3100 = vrot.lane.b32.xlu0 %v1964, 28
      %v3101 = vpop.permute.xlu0 %3100
      %3102 = vrot.lane.b32.xlu0 %v1965, 28
      %v3103 = vpop.permute.xlu0 %3102
      %3104 = vrot.lane.b32.xlu0 %v1967, 28
      %v3105 = vpop.permute.xlu0 %3104
      %3106 = vrot.lane.b32.xlu0 %v1968, 28
      %v3107 = vpop.permute.xlu0 %3106
      %3108 = vrot.lane.b32.xlu0 %v1970, 28
      %v3109 = vpop.permute.xlu0 %3108
      %3110 = vrot.lane.b32.xlu0 %v1971, 28
      %v3111 = vpop.permute.xlu0 %3110
      %3112 = vrot.lane.b32.xlu0 %v1973, 28
      %v3113 = vpop.permute.xlu0 %3112
      %3114 = vrot.lane.b32.xlu0 %v1974, 28
      %v3115 = vpop.permute.xlu0 %3114
      %3116 = vrot.lane.b32.xlu0 %v1976, 28
      %v3117 = vpop.permute.xlu0 %3116
      %3118 = vrot.lane.b32.xlu0 %v1977, 28
      %v3119 = vpop.permute.xlu0 %3118
      %3120 = vrot.lane.b32.xlu0 %v1979, 28
      %v3121 = vpop.permute.xlu0 %3120
      %3122 = vrot.lane.b32.xlu0 %v1980, 28
      %v3123 = vpop.permute.xlu0 %3122
      %3124 = vrot.lane.b32.xlu0 %v1982, 28
      %v3125 = vpop.permute.xlu0 %3124
      %3126 = vrot.lane.b32.xlu0 %v1983, 28
      %v3127 = vpop.permute.xlu0 %3126
      %3128 = vrot.lane.b32.xlu0 %v1985, 28
      %v3129 = vpop.permute.xlu0 %3128
      %3130 = vrot.lane.b32.xlu0 %v1986, 28
      %v3131 = vpop.permute.xlu0 %3130
      %3132 = vrot.lane.b32.xlu0 %v1988, 28
      %v3133 = vpop.permute.xlu0 %3132
      %3134 = vrot.lane.b32.xlu0 %v1989, 28
      %v3135 = vpop.permute.xlu0 %3134
      %3168 = vrot.lane.b32.xlu0 %v2050, 32
      %v3169 = vpop.permute.xlu0 %3168
      %3170 = vrot.lane.b32.xlu0 %v2052, 32
      %v3171 = vpop.permute.xlu0 %3170
      %3172 = vrot.lane.b32.xlu0 %v2055, 32
      %v3173 = vpop.permute.xlu0 %3172
      %3174 = vrot.lane.b32.xlu0 %v2057, 32
      %v3175 = vpop.permute.xlu0 %3174
      %3176 = vrot.lane.b32.xlu0 %v2060, 32
      %v3177 = vpop.permute.xlu0 %3176
      %3178 = vrot.lane.b32.xlu0 %v2062, 32
      %v3179 = vpop.permute.xlu0 %3178
      %3180 = vrot.lane.b32.xlu0 %v2065, 32
      %v3181 = vpop.permute.xlu0 %3180
      %3182 = vrot.lane.b32.xlu0 %v2067, 32
      %v3183 = vpop.permute.xlu0 %3182
      %3184 = vrot.lane.b32.xlu0 %v2070, 32
      %v3185 = vpop.permute.xlu0 %3184
      %3186 = vrot.lane.b32.xlu0 %v2072, 32
      %v3187 = vpop.permute.xlu0 %3186
      %3188 = vrot.lane.b32.xlu0 %v2075, 32
      %v3189 = vpop.permute.xlu0 %3188
      %3190 = vrot.lane.b32.xlu0 %v2077, 32
      %v3191 = vpop.permute.xlu0 %3190
      %3192 = vrot.lane.b32.xlu0 %v2080, 32
      %v3193 = vpop.permute.xlu0 %3192
      %3194 = vrot.lane.b32.xlu0 %v2082, 32
      %v3195 = vpop.permute.xlu0 %3194
      %3196 = vrot.lane.b32.xlu0 %v2085, 32
      %v3197 = vpop.permute.xlu0 %3196
      %3198 = vrot.lane.b32.xlu0 %v2087, 32
      %v3199 = vpop.permute.xlu0 %3198
      %3200 = vrot.lane.b32.xlu0 %v2090, 32
      %v3201 = vpop.permute.xlu0 %3200
      %3202 = vrot.lane.b32.xlu0 %v2092, 32
      %v3203 = vpop.permute.xlu0 %3202
      %3204 = vrot.lane.b32.xlu0 %v2095, 32
      %v3205 = vpop.permute.xlu0 %3204
      %3206 = vrot.lane.b32.xlu0 %v2097, 32
      %v3207 = vpop.permute.xlu0 %3206
      %3208 = vrot.lane.b32.xlu0 %v2100, 32
      %v3209 = vpop.permute.xlu0 %3208
      %3210 = vrot.lane.b32.xlu0 %v2102, 32
      %v3211 = vpop.permute.xlu0 %3210
      %3212 = vrot.lane.b32.xlu0 %v2105, 32
      %v3213 = vpop.permute.xlu0 %3212
      %3214 = vrot.lane.b32.xlu0 %v2107, 32
      %v3215 = vpop.permute.xlu0 %3214
      %3216 = vrot.lane.b32.xlu0 %v2110, 32
      %v3217 = vpop.permute.xlu0 %3216
      %3218 = vrot.lane.b32.xlu0 %v2112, 32
      %v3219 = vpop.permute.xlu0 %3218
      %3220 = vrot.lane.b32.xlu0 %v2115, 32
      %v3221 = vpop.permute.xlu0 %3220
      %3222 = vrot.lane.b32.xlu0 %v2117, 32
      %v3223 = vpop.permute.xlu0 %3222
      %3224 = vrot.lane.b32.xlu0 %v2120, 32
      %v3225 = vpop.permute.xlu0 %3224
      %3226 = vrot.lane.b32.xlu0 %v2122, 32
      %v3227 = vpop.permute.xlu0 %3226
      %3228 = vrot.lane.b32.xlu0 %v2417, 32
      %v3229 = vpop.permute.xlu0 %3228
      %3230 = vrot.lane.b32.xlu0 %v2419, 32
      %v3231 = vpop.permute.xlu0 %3230
      %3264 = vrot.lane.b32.xlu0 %v2178, 36
      %v3265 = vpop.permute.xlu0 %3264
      %3266 = vrot.lane.b32.xlu0 %v2180, 36
      %v3267 = vpop.permute.xlu0 %3266
      %3268 = vrot.lane.b32.xlu0 %v2183, 36
      %v3269 = vpop.permute.xlu0 %3268
      %3270 = vrot.lane.b32.xlu0 %v2185, 36
      %v3271 = vpop.permute.xlu0 %3270
      %3272 = vrot.lane.b32.xlu0 %v2188, 36
      %v3273 = vpop.permute.xlu0 %3272
      %3274 = vrot.lane.b32.xlu0 %v2190, 36
      %v3275 = vpop.permute.xlu0 %3274
      %3276 = vrot.lane.b32.xlu0 %v2193, 36
      %v3277 = vpop.permute.xlu0 %3276
      %3278 = vrot.lane.b32.xlu0 %v2195, 36
      %v3279 = vpop.permute.xlu0 %3278
      %3280 = vrot.lane.b32.xlu0 %v2198, 36
      %v3281 = vpop.permute.xlu0 %3280
      %3282 = vrot.lane.b32.xlu0 %v2200, 36
      %v3283 = vpop.permute.xlu0 %3282
      %3284 = vrot.lane.b32.xlu0 %v2203, 36
      %v3285 = vpop.permute.xlu0 %3284
      %3286 = vrot.lane.b32.xlu0 %v2205, 36
      %v3287 = vpop.permute.xlu0 %3286
      %3288 = vrot.lane.b32.xlu0 %v2208, 36
      %v3289 = vpop.permute.xlu0 %3288
      %3290 = vrot.lane.b32.xlu0 %v2210, 36
      %v3291 = vpop.permute.xlu0 %3290
      %3292 = vrot.lane.b32.xlu0 %v2213, 36
      %v3293 = vpop.permute.xlu0 %3292
      %3294 = vrot.lane.b32.xlu0 %v2215, 36
      %v3295 = vpop.permute.xlu0 %3294
      %3296 = vrot.lane.b32.xlu0 %v2218, 36
      %v3297 = vpop.permute.xlu0 %3296
      %3298 = vrot.lane.b32.xlu0 %v2220, 36
      %v3299 = vpop.permute.xlu0 %3298
      %3300 = vrot.lane.b32.xlu0 %v2223, 36
      %v3301 = vpop.permute.xlu0 %3300
      %3302 = vrot.lane.b32.xlu0 %v2225, 36
      %v3303 = vpop.permute.xlu0 %3302
      %3304 = vrot.lane.b32.xlu0 %v2228, 36
      %v3305 = vpop.permute.xlu0 %3304
      %3306 = vrot.lane.b32.xlu0 %v2230, 36
      %v3307 = vpop.permute.xlu0 %3306
      %3308 = vrot.lane.b32.xlu0 %v2233, 36
      %v3309 = vpop.permute.xlu0 %3308
      %3310 = vrot.lane.b32.xlu0 %v2235, 36
      %v3311 = vpop.permute.xlu0 %3310
      %3312 = vrot.lane.b32.xlu0 %v2238, 36
      %v3313 = vpop.permute.xlu0 %3312
      %3314 = vrot.lane.b32.xlu0 %v2240, 36
      %v3315 = vpop.permute.xlu0 %3314
      %3316 = vrot.lane.b32.xlu0 %v2243, 36
      %v3317 = vpop.permute.xlu0 %3316
      %3318 = vrot.lane.b32.xlu0 %v2245, 36
      %v3319 = vpop.permute.xlu0 %3318
      %3320 = vrot.lane.b32.xlu0 %v2248, 36
      %v3321 = vpop.permute.xlu0 %3320
      %3322 = vrot.lane.b32.xlu0 %v2250, 36
      %v3323 = vpop.permute.xlu0 %3322
      %3324 = vrot.lane.b32.xlu0 %v2425, 36
      %v3325 = vpop.permute.xlu0 %3324
      %3326 = vrot.lane.b32.xlu0 %v2427, 36
      %v3327 = vpop.permute.xlu0 %3326
      %3360 = vrot.lane.b32.xlu0 %v2259, 40
      %v3361 = vpop.permute.xlu0 %3360
      %3362 = vrot.lane.b32.xlu0 %v2261, 40
      %v3363 = vpop.permute.xlu0 %3362
      %3364 = vrot.lane.b32.xlu0 %v2264, 40
      %v3365 = vpop.permute.xlu0 %3364
      %3366 = vrot.lane.b32.xlu0 %v2266, 40
      %v3367 = vpop.permute.xlu0 %3366
      %3368 = vrot.lane.b32.xlu0 %v2269, 40
      %v3369 = vpop.permute.xlu0 %3368
      %3370 = vrot.lane.b32.xlu0 %v2271, 40
      %v3371 = vpop.permute.xlu0 %3370
      %3372 = vrot.lane.b32.xlu0 %v2274, 40
      %v3373 = vpop.permute.xlu0 %3372
      %3374 = vrot.lane.b32.xlu0 %v2276, 40
      %v3375 = vpop.permute.xlu0 %3374
      %3376 = vrot.lane.b32.xlu0 %v2279, 40
      %v3377 = vpop.permute.xlu0 %3376
      %3378 = vrot.lane.b32.xlu0 %v2281, 40
      %v3379 = vpop.permute.xlu0 %3378
      %3380 = vrot.lane.b32.xlu0 %v2284, 40
      %v3381 = vpop.permute.xlu0 %3380
      %3382 = vrot.lane.b32.xlu0 %v2286, 40
      %v3383 = vpop.permute.xlu0 %3382
      %3384 = vrot.lane.b32.xlu0 %v2289, 40
      %v3385 = vpop.permute.xlu0 %3384
      %3386 = vrot.lane.b32.xlu0 %v2291, 40
      %v3387 = vpop.permute.xlu0 %3386
      %3388 = vrot.lane.b32.xlu0 %v2294, 40
      %v3389 = vpop.permute.xlu0 %3388
      %3390 = vrot.lane.b32.xlu0 %v2296, 40
      %v3391 = vpop.permute.xlu0 %3390
      %3392 = vrot.lane.b32.xlu0 %v2299, 40
      %v3393 = vpop.permute.xlu0 %3392
      %3394 = vrot.lane.b32.xlu0 %v2301, 40
      %v3395 = vpop.permute.xlu0 %3394
      %3396 = vrot.lane.b32.xlu0 %v2304, 40
      %v3397 = vpop.permute.xlu0 %3396
      %3398 = vrot.lane.b32.xlu0 %v2306, 40
      %v3399 = vpop.permute.xlu0 %3398
      %3400 = vrot.lane.b32.xlu0 %v2309, 40
      %v3401 = vpop.permute.xlu0 %3400
      %3402 = vrot.lane.b32.xlu0 %v2311, 40
      %v3403 = vpop.permute.xlu0 %3402
      %3404 = vrot.lane.b32.xlu0 %v2314, 40
      %v3405 = vpop.permute.xlu0 %3404
      %3406 = vrot.lane.b32.xlu0 %v2316, 40
      %v3407 = vpop.permute.xlu0 %3406
      %3408 = vrot.lane.b32.xlu0 %v2319, 40
      %v3409 = vpop.permute.xlu0 %3408
      %3410 = vrot.lane.b32.xlu0 %v2321, 40
      %v3411 = vpop.permute.xlu0 %3410
      %3412 = vrot.lane.b32.xlu0 %v2324, 40
      %v3413 = vpop.permute.xlu0 %3412
      %3414 = vrot.lane.b32.xlu0 %v2326, 40
      %v3415 = vpop.permute.xlu0 %3414
      %3416 = vrot.lane.b32.xlu0 %v2329, 40
      %v3417 = vpop.permute.xlu0 %3416
      %3418 = vrot.lane.b32.xlu0 %v2331, 40
      %v3419 = vpop.permute.xlu0 %3418
      %3420 = vrot.lane.b32.xlu0 %v2430, 40
      %v3421 = vpop.permute.xlu0 %3420
      %3422 = vrot.lane.b32.xlu0 %v2432, 40
      %v3423 = vpop.permute.xlu0 %3422
      %3456 = vrot.lane.b32.xlu0 %v2339, 44
      %v3457 = vpop.permute.xlu0 %3456
      %3458 = vrot.lane.b32.xlu0 %v2341, 44
      %v3459 = vpop.permute.xlu0 %3458
      %3460 = vrot.lane.b32.xlu0 %v2344, 44
      %v3461 = vpop.permute.xlu0 %3460
      %3462 = vrot.lane.b32.xlu0 %v2346, 44
      %v3463 = vpop.permute.xlu0 %3462
      %3464 = vrot.lane.b32.xlu0 %v2349, 44
      %v3465 = vpop.permute.xlu0 %3464
      %3466 = vrot.lane.b32.xlu0 %v2351, 44
      %v3467 = vpop.permute.xlu0 %3466
      %3468 = vrot.lane.b32.xlu0 %v2354, 44
      %v3469 = vpop.permute.xlu0 %3468
      %3470 = vrot.lane.b32.xlu0 %v2356, 44
      %v3471 = vpop.permute.xlu0 %3470
      %3472 = vrot.lane.b32.xlu0 %v2359, 44
      %v3473 = vpop.permute.xlu0 %3472
      %3474 = vrot.lane.b32.xlu0 %v2361, 44
      %v3475 = vpop.permute.xlu0 %3474
      %3476 = vrot.lane.b32.xlu0 %v2364, 44
      %v3477 = vpop.permute.xlu0 %3476
      %3478 = vrot.lane.b32.xlu0 %v2366, 44
      %v3479 = vpop.permute.xlu0 %3478
      %3480 = vrot.lane.b32.xlu0 %v2369, 44
      %v3481 = vpop.permute.xlu0 %3480
      %3482 = vrot.lane.b32.xlu0 %v2371, 44
      %v3483 = vpop.permute.xlu0 %3482
      %3484 = vrot.lane.b32.xlu0 %v2374, 44
      %v3485 = vpop.permute.xlu0 %3484
      %3486 = vrot.lane.b32.xlu0 %v2376, 44
      %v3487 = vpop.permute.xlu0 %3486
      %3488 = vrot.lane.b32.xlu0 %v2379, 44
      %v3489 = vpop.permute.xlu0 %3488
      %3490 = vrot.lane.b32.xlu0 %v2381, 44
      %v3491 = vpop.permute.xlu0 %3490
      %3492 = vrot.lane.b32.xlu0 %v2384, 44
      %v3493 = vpop.permute.xlu0 %3492
      %3494 = vrot.lane.b32.xlu0 %v2386, 44
      %v3495 = vpop.permute.xlu0 %3494
      %3496 = vrot.lane.b32.xlu0 %v2389, 44
      %v3497 = vpop.permute.xlu0 %3496
      %3498 = vrot.lane.b32.xlu0 %v2391, 44
      %v3499 = vpop.permute.xlu0 %3498
      %3500 = vrot.lane.b32.xlu0 %v2394, 44
      %v3501 = vpop.permute.xlu0 %3500
      %3502 = vrot.lane.b32.xlu0 %v2396, 44
      %v3503 = vpop.permute.xlu0 %3502
      %3504 = vrot.lane.b32.xlu0 %v2399, 44
      %v3505 = vpop.permute.xlu0 %3504
      %3506 = vrot.lane.b32.xlu0 %v2401, 44
      %v3507 = vpop.permute.xlu0 %3506
      %3508 = vrot.lane.b32.xlu0 %v2404, 44
      %v3509 = vpop.permute.xlu0 %3508
      %3510 = vrot.lane.b32.xlu0 %v2406, 44
      %v3511 = vpop.permute.xlu0 %3510
      %3512 = vrot.lane.b32.xlu0 %v2409, 44
      %v3513 = vpop.permute.xlu0 %3512
      %3514 = vrot.lane.b32.xlu0 %v2411, 44
      %v3515 = vpop.permute.xlu0 %3514
      %3516 = vrot.lane.b32.xlu0 %v2435, 44
      %v3517 = vpop.permute.xlu0 %3516
      %3518 = vrot.lane.b32.xlu0 %v2437, 44
      %v3519 = vpop.permute.xlu0 %3518
      %3552 = vrot.lane.b32.xlu0 %v1892, 48
      %v3553 = vpop.permute.xlu0 %3552
      %3554 = vrot.lane.b32.xlu0 %v1893, 48
      %v3555 = vpop.permute.xlu0 %3554
      %3556 = vrot.lane.b32.xlu0 %v1895, 48
      %v3557 = vpop.permute.xlu0 %3556
      %3558 = vrot.lane.b32.xlu0 %v1896, 48
      %v3559 = vpop.permute.xlu0 %3558
      %3560 = vrot.lane.b32.xlu0 %v1898, 48
      %v3561 = vpop.permute.xlu0 %3560
      %3562 = vrot.lane.b32.xlu0 %v1899, 48
      %v3563 = vpop.permute.xlu0 %3562
      %3564 = vrot.lane.b32.xlu0 %v1901, 48
      %v3565 = vpop.permute.xlu0 %3564
      %3566 = vrot.lane.b32.xlu0 %v1902, 48
      %v3567 = vpop.permute.xlu0 %3566
      %3568 = vrot.lane.b32.xlu0 %v1904, 48
      %v3569 = vpop.permute.xlu0 %3568
      %3570 = vrot.lane.b32.xlu0 %v1905, 48
      %v3571 = vpop.permute.xlu0 %3570
      %3572 = vrot.lane.b32.xlu0 %v1907, 48
      %v3573 = vpop.permute.xlu0 %3572
      %3574 = vrot.lane.b32.xlu0 %v1908, 48
      %v3575 = vpop.permute.xlu0 %3574
      %3576 = vrot.lane.b32.xlu0 %v1910, 48
      %v3577 = vpop.permute.xlu0 %3576
      %3578 = vrot.lane.b32.xlu0 %v1911, 48
      %v3579 = vpop.permute.xlu0 %3578
      %3580 = vrot.lane.b32.xlu0 %v1913, 48
      %v3581 = vpop.permute.xlu0 %3580
      %3582 = vrot.lane.b32.xlu0 %v1914, 48
      %v3583 = vpop.permute.xlu0 %3582
      %3584 = vrot.lane.b32.xlu0 %v1916, 48
      %v3585 = vpop.permute.xlu0 %3584
      %3586 = vrot.lane.b32.xlu0 %v1917, 48
      %v3587 = vpop.permute.xlu0 %3586
      %3588 = vrot.lane.b32.xlu0 %v1919, 48
      %v3589 = vpop.permute.xlu0 %3588
      %3590 = vrot.lane.b32.xlu0 %v1920, 48
      %v3591 = vpop.permute.xlu0 %3590
      %3592 = vrot.lane.b32.xlu0 %v1922, 48
      %v3593 = vpop.permute.xlu0 %3592
      %3594 = vrot.lane.b32.xlu0 %v1923, 48
      %v3595 = vpop.permute.xlu0 %3594
      %3596 = vrot.lane.b32.xlu0 %v1925, 48
      %v3597 = vpop.permute.xlu0 %3596
      %3598 = vrot.lane.b32.xlu0 %v1926, 48
      %v3599 = vpop.permute.xlu0 %3598
      %3600 = vrot.lane.b32.xlu0 %v1928, 48
      %v3601 = vpop.permute.xlu0 %3600
      %3602 = vrot.lane.b32.xlu0 %v1929, 48
      %v3603 = vpop.permute.xlu0 %3602
      %3604 = vrot.lane.b32.xlu0 %v1931, 48
      %v3605 = vpop.permute.xlu0 %3604
      %3606 = vrot.lane.b32.xlu0 %v1932, 48
      %v3607 = vpop.permute.xlu0 %3606
      %3608 = vrot.lane.b32.xlu0 %v1934, 48
      %v3609 = vpop.permute.xlu0 %3608
      %3610 = vrot.lane.b32.xlu0 %v1935, 48
      %v3611 = vpop.permute.xlu0 %3610
      %3612 = vrot.lane.b32.xlu0 %v1937, 48
      %v3613 = vpop.permute.xlu0 %3612
      %3614 = vrot.lane.b32.xlu0 %v1938, 48
      %v3615 = vpop.permute.xlu0 %3614
      %3648 = vrot.lane.b32.xlu0 %v1946, 52
      %v3649 = vpop.permute.xlu0 %3648
      %3650 = vrot.lane.b32.xlu0 %v1947, 52
      %v3651 = vpop.permute.xlu0 %3650
      %3652 = vrot.lane.b32.xlu0 %v1949, 52
      %v3653 = vpop.permute.xlu0 %3652
      %3654 = vrot.lane.b32.xlu0 %v1950, 52
      %v3655 = vpop.permute.xlu0 %3654
      %3656 = vrot.lane.b32.xlu0 %v1952, 52
      %v3657 = vpop.permute.xlu0 %3656
      %3658 = vrot.lane.b32.xlu0 %v1953, 52
      %v3659 = vpop.permute.xlu0 %3658
      %3660 = vrot.lane.b32.xlu0 %v1955, 52
      %v3661 = vpop.permute.xlu0 %3660
      %3662 = vrot.lane.b32.xlu0 %v1956, 52
      %v3663 = vpop.permute.xlu0 %3662
      %3664 = vrot.lane.b32.xlu0 %v1958, 52
      %v3665 = vpop.permute.xlu0 %3664
      %3666 = vrot.lane.b32.xlu0 %v1959, 52
      %v3667 = vpop.permute.xlu0 %3666
      %3668 = vrot.lane.b32.xlu0 %v1961, 52
      %v3669 = vpop.permute.xlu0 %3668
      %3670 = vrot.lane.b32.xlu0 %v1962, 52
      %v3671 = vpop.permute.xlu0 %3670
      %3672 = vrot.lane.b32.xlu0 %v1964, 52
      %v3673 = vpop.permute.xlu0 %3672
      %3674 = vrot.lane.b32.xlu0 %v1965, 52
      %v3675 = vpop.permute.xlu0 %3674
      %3676 = vrot.lane.b32.xlu0 %v1967, 52
      %v3677 = vpop.permute.xlu0 %3676
      %3678 = vrot.lane.b32.xlu0 %v1968, 52
      %v3679 = vpop.permute.xlu0 %3678
      %3680 = vrot.lane.b32.xlu0 %v1970, 52
      %v3681 = vpop.permute.xlu0 %3680
      %3682 = vrot.lane.b32.xlu0 %v1971, 52
      %v3683 = vpop.permute.xlu0 %3682
      %3684 = vrot.lane.b32.xlu0 %v1973, 52
      %v3685 = vpop.permute.xlu0 %3684
      %3686 = vrot.lane.b32.xlu0 %v1974, 52
      %v3687 = vpop.permute.xlu0 %3686
      %3688 = vrot.lane.b32.xlu0 %v1976, 52
      %v3689 = vpop.permute.xlu0 %3688
      %3690 = vrot.lane.b32.xlu0 %v1977, 52
      %v3691 = vpop.permute.xlu0 %3690
      %3692 = vrot.lane.b32.xlu0 %v1979, 52
      %v3693 = vpop.permute.xlu0 %3692
      %3694 = vrot.lane.b32.xlu0 %v1980, 52
      %v3695 = vpop.permute.xlu0 %3694
      %3696 = vrot.lane.b32.xlu0 %v1982, 52
      %v3697 = vpop.permute.xlu0 %3696
      %3698 = vrot.lane.b32.xlu0 %v1983, 52
      %v3699 = vpop.permute.xlu0 %3698
      %3700 = vrot.lane.b32.xlu0 %v1985, 52
      %v3701 = vpop.permute.xlu0 %3700
      %3702 = vrot.lane.b32.xlu0 %v1986, 52
      %v3703 = vpop.permute.xlu0 %3702
      %3704 = vrot.lane.b32.xlu0 %v1988, 52
      %v3705 = vpop.permute.xlu0 %3704
      %3706 = vrot.lane.b32.xlu0 %v1989, 52
      %v3707 = vpop.permute.xlu0 %3706
      %3708 = vrot.lane.b32.xlu0 %v1991, 52
      %v3709 = vpop.permute.xlu0 %3708
      %3710 = vrot.lane.b32.xlu0 %v1992, 52
      %v3711 = vpop.permute.xlu0 %3710
      %3744 = vrot.lane.b32.xlu0 %v2055, 56
      %v3745 = vpop.permute.xlu0 %3744
      %3746 = vrot.lane.b32.xlu0 %v2057, 56
      %v3747 = vpop.permute.xlu0 %3746
      %3748 = vrot.lane.b32.xlu0 %v2060, 56
      %v3749 = vpop.permute.xlu0 %3748
      %3750 = vrot.lane.b32.xlu0 %v2062, 56
      %v3751 = vpop.permute.xlu0 %3750
      %3752 = vrot.lane.b32.xlu0 %v2065, 56
      %v3753 = vpop.permute.xlu0 %3752
      %3754 = vrot.lane.b32.xlu0 %v2067, 56
      %v3755 = vpop.permute.xlu0 %3754
      %3756 = vrot.lane.b32.xlu0 %v2070, 56
      %v3757 = vpop.permute.xlu0 %3756
      %3758 = vrot.lane.b32.xlu0 %v2072, 56
      %v3759 = vpop.permute.xlu0 %3758
      %3760 = vrot.lane.b32.xlu0 %v2075, 56
      %v3761 = vpop.permute.xlu0 %3760
      %3762 = vrot.lane.b32.xlu0 %v2077, 56
      %v3763 = vpop.permute.xlu0 %3762
      %3764 = vrot.lane.b32.xlu0 %v2080, 56
      %v3765 = vpop.permute.xlu0 %3764
      %3766 = vrot.lane.b32.xlu0 %v2082, 56
      %v3767 = vpop.permute.xlu0 %3766
      %3768 = vrot.lane.b32.xlu0 %v2085, 56
      %v3769 = vpop.permute.xlu0 %3768
      %3770 = vrot.lane.b32.xlu0 %v2087, 56
      %v3771 = vpop.permute.xlu0 %3770
      %3772 = vrot.lane.b32.xlu0 %v2090, 56
      %v3773 = vpop.permute.xlu0 %3772
      %3774 = vrot.lane.b32.xlu0 %v2092, 56
      %v3775 = vpop.permute.xlu0 %3774
      %3776 = vrot.lane.b32.xlu0 %v2095, 56
      %v3777 = vpop.permute.xlu0 %3776
      %3778 = vrot.lane.b32.xlu0 %v2097, 56
      %v3779 = vpop.permute.xlu0 %3778
      %3780 = vrot.lane.b32.xlu0 %v2100, 56
      %v3781 = vpop.permute.xlu0 %3780
      %3782 = vrot.lane.b32.xlu0 %v2102, 56
      %v3783 = vpop.permute.xlu0 %3782
      %3784 = vrot.lane.b32.xlu0 %v2105, 56
      %v3785 = vpop.permute.xlu0 %3784
      %3786 = vrot.lane.b32.xlu0 %v2107, 56
      %v3787 = vpop.permute.xlu0 %3786
      %3788 = vrot.lane.b32.xlu0 %v2110, 56
      %v3789 = vpop.permute.xlu0 %3788
      %3790 = vrot.lane.b32.xlu0 %v2112, 56
      %v3791 = vpop.permute.xlu0 %3790
      %3792 = vrot.lane.b32.xlu0 %v2115, 56
      %v3793 = vpop.permute.xlu0 %3792
      %3794 = vrot.lane.b32.xlu0 %v2117, 56
      %v3795 = vpop.permute.xlu0 %3794
      %3796 = vrot.lane.b32.xlu0 %v2120, 56
      %v3797 = vpop.permute.xlu0 %3796
      %3798 = vrot.lane.b32.xlu0 %v2122, 56
      %v3799 = vpop.permute.xlu0 %3798
      %3800 = vrot.lane.b32.xlu0 %v2417, 56
      %v3801 = vpop.permute.xlu0 %3800
      %3802 = vrot.lane.b32.xlu0 %v2419, 56
      %v3803 = vpop.permute.xlu0 %3802
      %3804 = vrot.lane.b32.xlu0 %v2443, 56
      %v3805 = vpop.permute.xlu0 %3804
      %3806 = vrot.lane.b32.xlu0 %v2445, 56
      %v3807 = vpop.permute.xlu0 %3806
      %3840 = vrot.lane.b32.xlu0 %v2183, 60
      %v3841 = vpop.permute.xlu0 %3840
      %3842 = vrot.lane.b32.xlu0 %v2185, 60
      %v3843 = vpop.permute.xlu0 %3842
      %3844 = vrot.lane.b32.xlu0 %v2188, 60
      %v3845 = vpop.permute.xlu0 %3844
      %3846 = vrot.lane.b32.xlu0 %v2190, 60
      %v3847 = vpop.permute.xlu0 %3846
      %3848 = vrot.lane.b32.xlu0 %v2193, 60
      %v3849 = vpop.permute.xlu0 %3848
      %3850 = vrot.lane.b32.xlu0 %v2195, 60
      %v3851 = vpop.permute.xlu0 %3850
      %3852 = vrot.lane.b32.xlu0 %v2198, 60
      %v3853 = vpop.permute.xlu0 %3852
      %3854 = vrot.lane.b32.xlu0 %v2200, 60
      %v3855 = vpop.permute.xlu0 %3854
      %3856 = vrot.lane.b32.xlu0 %v2203, 60
      %v3857 = vpop.permute.xlu0 %3856
      %3858 = vrot.lane.b32.xlu0 %v2205, 60
      %v3859 = vpop.permute.xlu0 %3858
      %3860 = vrot.lane.b32.xlu0 %v2208, 60
      %v3861 = vpop.permute.xlu0 %3860
      %3862 = vrot.lane.b32.xlu0 %v2210, 60
      %v3863 = vpop.permute.xlu0 %3862
      %3864 = vrot.lane.b32.xlu0 %v2213, 60
      %v3865 = vpop.permute.xlu0 %3864
      %3866 = vrot.lane.b32.xlu0 %v2215, 60
      %v3867 = vpop.permute.xlu0 %3866
      %3868 = vrot.lane.b32.xlu0 %v2218, 60
      %v3869 = vpop.permute.xlu0 %3868
      %3870 = vrot.lane.b32.xlu0 %v2220, 60
      %v3871 = vpop.permute.xlu0 %3870
      %3872 = vrot.lane.b32.xlu0 %v2223, 60
      %v3873 = vpop.permute.xlu0 %3872
      %3874 = vrot.lane.b32.xlu0 %v2225, 60
      %v3875 = vpop.permute.xlu0 %3874
      %3876 = vrot.lane.b32.xlu0 %v2228, 60
      %v3877 = vpop.permute.xlu0 %3876
      %3878 = vrot.lane.b32.xlu0 %v2230, 60
      %v3879 = vpop.permute.xlu0 %3878
      %3880 = vrot.lane.b32.xlu0 %v2233, 60
      %v3881 = vpop.permute.xlu0 %3880
      %3882 = vrot.lane.b32.xlu0 %v2235, 60
      %v3883 = vpop.permute.xlu0 %3882
      %3884 = vrot.lane.b32.xlu0 %v2238, 60
      %v3885 = vpop.permute.xlu0 %3884
      %3886 = vrot.lane.b32.xlu0 %v2240, 60
      %v3887 = vpop.permute.xlu0 %3886
      %3888 = vrot.lane.b32.xlu0 %v2243, 60
      %v3889 = vpop.permute.xlu0 %3888
      %3890 = vrot.lane.b32.xlu0 %v2245, 60
      %v3891 = vpop.permute.xlu0 %3890
      %3892 = vrot.lane.b32.xlu0 %v2248, 60
      %v3893 = vpop.permute.xlu0 %3892
      %3894 = vrot.lane.b32.xlu0 %v2250, 60
      %v3895 = vpop.permute.xlu0 %3894
      %3896 = vrot.lane.b32.xlu0 %v2425, 60
      %v3897 = vpop.permute.xlu0 %3896
      %3898 = vrot.lane.b32.xlu0 %v2427, 60
      %v3899 = vpop.permute.xlu0 %3898
      %3900 = vrot.lane.b32.xlu0 %v2451, 60
      %v3901 = vpop.permute.xlu0 %3900
      %3902 = vrot.lane.b32.xlu0 %v2453, 60
      %v3903 = vpop.permute.xlu0 %3902
      %v3936 = vsel %vm1678, %v1886, %v2497
      %v3937 = vsel %vm1678, %v1887, %v2499
      %v3938 = vsel %vm1678, %v1889, %v2501
      %v3939 = vsel %vm1678, %v1890, %v2503
      %v3940 = vsel %vm1678, %v1892, %v2505
      %v3941 = vsel %vm1678, %v1893, %v2507
      %v3942 = vsel %vm1678, %v1895, %v2509
      %v3943 = vsel %vm1678, %v1896, %v2511
      %v3944 = vsel %vm1678, %v1898, %v2513
      %v3945 = vsel %vm1678, %v1899, %v2515
      %v3946 = vsel %vm1678, %v1901, %v2517
      %v3947 = vsel %vm1678, %v1902, %v2519
      %v3948 = vsel %vm1678, %v1904, %v2521
      %v3949 = vsel %vm1678, %v1905, %v2523
      %v3950 = vsel %vm1678, %v1907, %v2525
      %v3951 = vsel %vm1678, %v1908, %v2527
      %v3952 = vsel %vm1678, %v1910, %v2529
      %v3953 = vsel %vm1678, %v1911, %v2531
      %v3954 = vsel %vm1678, %v1913, %v2533
      %v3955 = vsel %vm1678, %v1914, %v2535
      %v3956 = vsel %vm1678, %v1916, %v2537
      %v3957 = vsel %vm1678, %v1917, %v2539
      %v3958 = vsel %vm1678, %v1919, %v2541
      %v3959 = vsel %vm1678, %v1920, %v2543
      %v3960 = vsel %vm1678, %v1922, %v2545
      %v3961 = vsel %vm1678, %v1923, %v2547
      %v3962 = vsel %vm1678, %v1925, %v2549
      %v3963 = vsel %vm1678, %v1926, %v2551
      %v3964 = vsel %vm1678, %v1928, %v2553
      %v3965 = vsel %vm1678, %v1929, %v2555
      %v3966 = vsel %vm1678, %v1931, %v2557
      %v3967 = vsel %vm1678, %v1932, %v2559
      %v3968 = vsel %vm335, %v3936, %v2593
      %v3969 = vsel %vm335, %v3937, %v2595
      %v3970 = vsel %vm335, %v3938, %v2597
      %v3971 = vsel %vm335, %v3939, %v2599
      %v3972 = vsel %vm335, %v3940, %v2601
      %v3973 = vsel %vm335, %v3941, %v2603
      %v3974 = vsel %vm335, %v3942, %v2605
      %v3975 = vsel %vm335, %v3943, %v2607
      %v3976 = vsel %vm335, %v3944, %v2609
      %v3977 = vsel %vm335, %v3945, %v2611
      %v3978 = vsel %vm335, %v3946, %v2613
      %v3979 = vsel %vm335, %v3947, %v2615
      %v3980 = vsel %vm335, %v3948, %v2617
      %v3981 = vsel %vm335, %v3949, %v2619
      %v3982 = vsel %vm335, %v3950, %v2621
      %v3983 = vsel %vm335, %v3951, %v2623
      %v3984 = vsel %vm335, %v3952, %v2625
      %v3985 = vsel %vm335, %v3953, %v2627
      %v3986 = vsel %vm335, %v3954, %v2629
      %v3987 = vsel %vm335, %v3955, %v2631
      %v3988 = vsel %vm335, %v3956, %v2633
      %v3989 = vsel %vm335, %v3957, %v2635
      %v3990 = vsel %vm335, %v3958, %v2637
      %v3991 = vsel %vm335, %v3959, %v2639
      %v3992 = vsel %vm335, %v3960, %v2641
      %v3993 = vsel %vm335, %v3961, %v2643
      %v3994 = vsel %vm335, %v3962, %v2645
      %v3995 = vsel %vm335, %v3963, %v2647
      %v3996 = vsel %vm335, %v3964, %v2649
      %v3997 = vsel %vm335, %v3965, %v2651
      %v3998 = vsel %vm335, %v3966, %v2653
      %v3999 = vsel %vm335, %v3967, %v2655
      %vm4000 = vcmask 97280
      %v4001 = vsel %vm4000, %v3968, %v2689
      %v4002 = vsel %vm4000, %v3969, %v2691
      %v4003 = vsel %vm4000, %v3970, %v2693
      %v4004 = vsel %vm4000, %v3971, %v2695
      %v4005 = vsel %vm4000, %v3972, %v2697
      %v4006 = vsel %vm4000, %v3973, %v2699
      %v4007 = vsel %vm4000, %v3974, %v2701
      %v4008 = vsel %vm4000, %v3975, %v2703
      %v4009 = vsel %vm4000, %v3976, %v2705
      %v4010 = vsel %vm4000, %v3977, %v2707
      %v4011 = vsel %vm4000, %v3978, %v2709
      %v4012 = vsel %vm4000, %v3979, %v2711
      %v4013 = vsel %vm4000, %v3980, %v2713
      %v4014 = vsel %vm4000, %v3981, %v2715
      %v4015 = vsel %vm4000, %v3982, %v2717
      %v4016 = vsel %vm4000, %v3983, %v2719
      %v4017 = vsel %vm4000, %v3984, %v2721
      %v4018 = vsel %vm4000, %v3985, %v2723
      %v4019 = vsel %vm4000, %v3986, %v2725
      %v4020 = vsel %vm4000, %v3987, %v2727
      %v4021 = vsel %vm4000, %v3988, %v2729
      %v4022 = vsel %vm4000, %v3989, %v2731
      %v4023 = vsel %vm4000, %v3990, %v2733
      %v4024 = vsel %vm4000, %v3991, %v2735
      %v4025 = vsel %vm4000, %v3992, %v2737
      %v4026 = vsel %vm4000, %v3993, %v2739
      %v4027 = vsel %vm4000, %v3994, %v2741
      %v4028 = vsel %vm4000, %v3995, %v2743
      %v4029 = vsel %vm4000, %v3996, %v2745
      %v4030 = vsel %vm4000, %v3997, %v2747
      %v4031 = vsel %vm4000, %v3998, %v2749
      %v4032 = vsel %vm4000, %v3999, %v2751
      %vm4033 = vcmask 130048
      %v4034 = vsel %vm4033, %v4001, %v2785
      %v4035 = vsel %vm4033, %v4002, %v2787
      %v4036 = vsel %vm4033, %v4003, %v2789
      %v4037 = vsel %vm4033, %v4004, %v2791
      %v4038 = vsel %vm4033, %v4005, %v2793
      %v4039 = vsel %vm4033, %v4006, %v2795
      %v4040 = vsel %vm4033, %v4007, %v2797
      %v4041 = vsel %vm4033, %v4008, %v2799
      %v4042 = vsel %vm4033, %v4009, %v2801
      %v4043 = vsel %vm4033, %v4010, %v2803
      %v4044 = vsel %vm4033, %v4011, %v2805
      %v4045 = vsel %vm4033, %v4012, %v2807
      %v4046 = vsel %vm4033, %v4013, %v2809
      %v4047 = vsel %vm4033, %v4014, %v2811
      %v4048 = vsel %vm4033, %v4015, %v2813
      %v4049 = vsel %vm4033, %v4016, %v2815
      %v4050 = vsel %vm4033, %v4017, %v2817
      %v4051 = vsel %vm4033, %v4018, %v2819
      %v4052 = vsel %vm4033, %v4019, %v2821
      %v4053 = vsel %vm4033, %v4020, %v2823
      %v4054 = vsel %vm4033, %v4021, %v2825
      %v4055 = vsel %vm4033, %v4022, %v2827
      %v4056 = vsel %vm4033, %v4023, %v2829
      %v4057 = vsel %vm4033, %v4024, %v2831
      %v4058 = vsel %vm4033, %v4025, %v2833
      %v4059 = vsel %vm4033, %v4026, %v2835
      %v4060 = vsel %vm4033, %v4027, %v2837
      %v4061 = vsel %vm4033, %v4028, %v2839
      %v4062 = vsel %vm4033, %v4029, %v2841
      %v4063 = vsel %vm4033, %v4030, %v2843
      %v4064 = vsel %vm4033, %v4031, %v2845
      %v4065 = vsel %vm4033, %v4032, %v2847
      %vm4066 = vcmask 162816
      %v4067 = vsel %vm4066, %v4034, %v2881
      %v4068 = vsel %vm4066, %v4035, %v2883
      %v4069 = vsel %vm4066, %v4036, %v2885
      %v4070 = vsel %vm4066, %v4037, %v2887
      %v4071 = vsel %vm4066, %v4038, %v2889
      %v4072 = vsel %vm4066, %v4039, %v2891
      %v4073 = vsel %vm4066, %v4040, %v2893
      %v4074 = vsel %vm4066, %v4041, %v2895
      %v4075 = vsel %vm4066, %v4042, %v2897
      %v4076 = vsel %vm4066, %v4043, %v2899
      %v4077 = vsel %vm4066, %v4044, %v2901
      %v4078 = vsel %vm4066, %v4045, %v2903
      %v4079 = vsel %vm4066, %v4046, %v2905
      %v4080 = vsel %vm4066, %v4047, %v2907
      %v4081 = vsel %vm4066, %v4048, %v2909
      %v4082 = vsel %vm4066, %v4049, %v2911
      %v4083 = vsel %vm4066, %v4050, %v2913
      %v4084 = vsel %vm4066, %v4051, %v2915
      %v4085 = vsel %vm4066, %v4052, %v2917
      %v4086 = vsel %vm4066, %v4053, %v2919
      %v4087 = vsel %vm4066, %v4054, %v2921
      %v4088 = vsel %vm4066, %v4055, %v2923
      %v4089 = vsel %vm4066, %v4056, %v2925
      %v4090 = vsel %vm4066, %v4057, %v2927
      %v4091 = vsel %vm4066, %v4058, %v2929
      %v4092 = vsel %vm4066, %v4059, %v2931
      %v4093 = vsel %vm4066, %v4060, %v2933
      %v4094 = vsel %vm4066, %v4061, %v2935
      %v4095 = vsel %vm4066, %v4062, %v2937
      %v4096 = vsel %vm4066, %v4063, %v2939
      %v4097 = vsel %vm4066, %v4064, %v2941
      %v4098 = vsel %vm4066, %v4065, %v2943
      %vm4099 = vcmask 195584
      %v4100 = vsel %vm4099, %v4067, %v2977
      %v4101 = vsel %vm4099, %v4068, %v2979
      %v4102 = vsel %vm4099, %v4069, %v2981
      %v4103 = vsel %vm4099, %v4070, %v2983
      %v4104 = vsel %vm4099, %v4071, %v2985
      %v4105 = vsel %vm4099, %v4072, %v2987
      %v4106 = vsel %vm4099, %v4073, %v2989
      %v4107 = vsel %vm4099, %v4074, %v2991
      %v4108 = vsel %vm4099, %v4075, %v2993
      %v4109 = vsel %vm4099, %v4076, %v2995
      %v4110 = vsel %vm4099, %v4077, %v2997
      %v4111 = vsel %vm4099, %v4078, %v2999
      %v4112 = vsel %vm4099, %v4079, %v3001
      %v4113 = vsel %vm4099, %v4080, %v3003
      %v4114 = vsel %vm4099, %v4081, %v3005
      %v4115 = vsel %vm4099, %v4082, %v3007
      %v4116 = vsel %vm4099, %v4083, %v3009
      %v4117 = vsel %vm4099, %v4084, %v3011
      %v4118 = vsel %vm4099, %v4085, %v3013
      %v4119 = vsel %vm4099, %v4086, %v3015
      %v4120 = vsel %vm4099, %v4087, %v3017
      %v4121 = vsel %vm4099, %v4088, %v3019
      %v4122 = vsel %vm4099, %v4089, %v3021
      %v4123 = vsel %vm4099, %v4090, %v3023
      %v4124 = vsel %vm4099, %v4091, %v3025
      %v4125 = vsel %vm4099, %v4092, %v3027
      %v4126 = vsel %vm4099, %v4093, %v3029
      %v4127 = vsel %vm4099, %v4094, %v3031
      %v4128 = vsel %vm4099, %v4095, %v3033
      %v4129 = vsel %vm4099, %v4096, %v3035
      %v4130 = vsel %vm4099, %v4097, %v3037
      %v4131 = vsel %vm4099, %v4098, %v3039
      %vm4132 = vcmask 228352
      %v4133 = vsel %vm4132, %v4100, %v3073
      %v4134 = vsel %vm4132, %v4101, %v3075
      %v4135 = vsel %vm4132, %v4102, %v3077
      %v4136 = vsel %vm4132, %v4103, %v3079
      %v4137 = vsel %vm4132, %v4104, %v3081
      %v4138 = vsel %vm4132, %v4105, %v3083
      %v4139 = vsel %vm4132, %v4106, %v3085
      %v4140 = vsel %vm4132, %v4107, %v3087
      %v4141 = vsel %vm4132, %v4108, %v3089
      %v4142 = vsel %vm4132, %v4109, %v3091
      %v4143 = vsel %vm4132, %v4110, %v3093
      %v4144 = vsel %vm4132, %v4111, %v3095
      %v4145 = vsel %vm4132, %v4112, %v3097
      %v4146 = vsel %vm4132, %v4113, %v3099
      %v4147 = vsel %vm4132, %v4114, %v3101
      %v4148 = vsel %vm4132, %v4115, %v3103
      %v4149 = vsel %vm4132, %v4116, %v3105
      %v4150 = vsel %vm4132, %v4117, %v3107
      %v4151 = vsel %vm4132, %v4118, %v3109
      %v4152 = vsel %vm4132, %v4119, %v3111
      %v4153 = vsel %vm4132, %v4120, %v3113
      %v4154 = vsel %vm4132, %v4121, %v3115
      %v4155 = vsel %vm4132, %v4122, %v3117
      %v4156 = vsel %vm4132, %v4123, %v3119
      %v4157 = vsel %vm4132, %v4124, %v3121
      %v4158 = vsel %vm4132, %v4125, %v3123
      %v4159 = vsel %vm4132, %v4126, %v3125
      %v4160 = vsel %vm4132, %v4127, %v3127
      %v4161 = vsel %vm4132, %v4128, %v3129
      %v4162 = vsel %vm4132, %v4129, %v3131
      %v4163 = vsel %vm4132, %v4130, %v3133
      %v4164 = vsel %vm4132, %v4131, %v3135
      %vm4165 = vcmask 261120
      %v4166 = vsel %vm4165, %v4133, %v3169
      %v4167 = vsel %vm4165, %v4134, %v3171
      %v4168 = vsel %vm4165, %v4135, %v3173
      %v4169 = vsel %vm4165, %v4136, %v3175
      %v4170 = vsel %vm4165, %v4137, %v3177
      %v4171 = vsel %vm4165, %v4138, %v3179
      %v4172 = vsel %vm4165, %v4139, %v3181
      %v4173 = vsel %vm4165, %v4140, %v3183
      %v4174 = vsel %vm4165, %v4141, %v3185
      %v4175 = vsel %vm4165, %v4142, %v3187
      %v4176 = vsel %vm4165, %v4143, %v3189
      %v4177 = vsel %vm4165, %v4144, %v3191
      %v4178 = vsel %vm4165, %v4145, %v3193
      %v4179 = vsel %vm4165, %v4146, %v3195
      %v4180 = vsel %vm4165, %v4147, %v3197
      %v4181 = vsel %vm4165, %v4148, %v3199
      %v4182 = vsel %vm4165, %v4149, %v3201
      %v4183 = vsel %vm4165, %v4150, %v3203
      %v4184 = vsel %vm4165, %v4151, %v3205
      %v4185 = vsel %vm4165, %v4152, %v3207
      %v4186 = vsel %vm4165, %v4153, %v3209
      %v4187 = vsel %vm4165, %v4154, %v3211
      %v4188 = vsel %vm4165, %v4155, %v3213
      %v4189 = vsel %vm4165, %v4156, %v3215
      %v4190 = vsel %vm4165, %v4157, %v3217
      %v4191 = vsel %vm4165, %v4158, %v3219
      %v4192 = vsel %vm4165, %v4159, %v3221
      %v4193 = vsel %vm4165, %v4160, %v3223
      %v4194 = vsel %vm4165, %v4161, %v3225
      %v4195 = vsel %vm4165, %v4162, %v3227
      %v4196 = vsel %vm4165, %v4163, %v3229
      %v4197 = vsel %vm4165, %v4164, %v3231
      %vm4198 = vcmask 293888
      %v4199 = vsel %vm4198, %v4166, %v3265
      %v4200 = vsel %vm4198, %v4167, %v3267
      %v4201 = vsel %vm4198, %v4168, %v3269
      %v4202 = vsel %vm4198, %v4169, %v3271
      %v4203 = vsel %vm4198, %v4170, %v3273
      %v4204 = vsel %vm4198, %v4171, %v3275
      %v4205 = vsel %vm4198, %v4172, %v3277
      %v4206 = vsel %vm4198, %v4173, %v3279
      %v4207 = vsel %vm4198, %v4174, %v3281
      %v4208 = vsel %vm4198, %v4175, %v3283
      %v4209 = vsel %vm4198, %v4176, %v3285
      %v4210 = vsel %vm4198, %v4177, %v3287
      %v4211 = vsel %vm4198, %v4178, %v3289
      %v4212 = vsel %vm4198, %v4179, %v3291
      %v4213 = vsel %vm4198, %v4180, %v3293
      %v4214 = vsel %vm4198, %v4181, %v3295
      %v4215 = vsel %vm4198, %v4182, %v3297
      %v4216 = vsel %vm4198, %v4183, %v3299
      %v4217 = vsel %vm4198, %v4184, %v3301
      %v4218 = vsel %vm4198, %v4185, %v3303
      %v4219 = vsel %vm4198, %v4186, %v3305
      %v4220 = vsel %vm4198, %v4187, %v3307
      %v4221 = vsel %vm4198, %v4188, %v3309
      %v4222 = vsel %vm4198, %v4189, %v3311
      %v4223 = vsel %vm4198, %v4190, %v3313
      %v4224 = vsel %vm4198, %v4191, %v3315
      %v4225 = vsel %vm4198, %v4192, %v3317
      %v4226 = vsel %vm4198, %v4193, %v3319
      %v4227 = vsel %vm4198, %v4194, %v3321
      %v4228 = vsel %vm4198, %v4195, %v3323
      %v4229 = vsel %vm4198, %v4196, %v3325
      %v4230 = vsel %vm4198, %v4197, %v3327
      %vm4231 = vcmask 326656
      %v4232 = vsel %vm4231, %v4199, %v3361
      %v4233 = vsel %vm4231, %v4200, %v3363
      %v4234 = vsel %vm4231, %v4201, %v3365
      %v4235 = vsel %vm4231, %v4202, %v3367
      %v4236 = vsel %vm4231, %v4203, %v3369
      %v4237 = vsel %vm4231, %v4204, %v3371
      %v4238 = vsel %vm4231, %v4205, %v3373
      %v4239 = vsel %vm4231, %v4206, %v3375
      %v4240 = vsel %vm4231, %v4207, %v3377
      %v4241 = vsel %vm4231, %v4208, %v3379
      %v4242 = vsel %vm4231, %v4209, %v3381
      %v4243 = vsel %vm4231, %v4210, %v3383
      %v4244 = vsel %vm4231, %v4211, %v3385
      %v4245 = vsel %vm4231, %v4212, %v3387
      %v4246 = vsel %vm4231, %v4213, %v3389
      %v4247 = vsel %vm4231, %v4214, %v3391
      %v4248 = vsel %vm4231, %v4215, %v3393
      %v4249 = vsel %vm4231, %v4216, %v3395
      %v4250 = vsel %vm4231, %v4217, %v3397
      %v4251 = vsel %vm4231, %v4218, %v3399
      %v4252 = vsel %vm4231, %v4219, %v3401
      %v4253 = vsel %vm4231, %v4220, %v3403
      %v4254 = vsel %vm4231, %v4221, %v3405
      %v4255 = vsel %vm4231, %v4222, %v3407
      %v4256 = vsel %vm4231, %v4223, %v3409
      %v4257 = vsel %vm4231, %v4224, %v3411
      %v4258 = vsel %vm4231, %v4225, %v3413
      %v4259 = vsel %vm4231, %v4226, %v3415
      %v4260 = vsel %vm4231, %v4227, %v3417
      %v4261 = vsel %vm4231, %v4228, %v3419
      %v4262 = vsel %vm4231, %v4229, %v3421
      %v4263 = vsel %vm4231, %v4230, %v3423
      %vm4264 = vcmask 359424
      %v4265 = vsel %vm4264, %v4232, %v3457
      %v4266 = vsel %vm4264, %v4233, %v3459
      %v4267 = vsel %vm4264, %v4234, %v3461
      %v4268 = vsel %vm4264, %v4235, %v3463
      %v4269 = vsel %vm4264, %v4236, %v3465
      %v4270 = vsel %vm4264, %v4237, %v3467
      %v4271 = vsel %vm4264, %v4238, %v3469
      %v4272 = vsel %vm4264, %v4239, %v3471
      %v4273 = vsel %vm4264, %v4240, %v3473
      %v4274 = vsel %vm4264, %v4241, %v3475
      %v4275 = vsel %vm4264, %v4242, %v3477
      %v4276 = vsel %vm4264, %v4243, %v3479
      %v4277 = vsel %vm4264, %v4244, %v3481
      %v4278 = vsel %vm4264, %v4245, %v3483
      %v4279 = vsel %vm4264, %v4246, %v3485
      %v4280 = vsel %vm4264, %v4247, %v3487
      %v4281 = vsel %vm4264, %v4248, %v3489
      %v4282 = vsel %vm4264, %v4249, %v3491
      %v4283 = vsel %vm4264, %v4250, %v3493
      %v4284 = vsel %vm4264, %v4251, %v3495
      %v4285 = vsel %vm4264, %v4252, %v3497
      %v4286 = vsel %vm4264, %v4253, %v3499
      %v4287 = vsel %vm4264, %v4254, %v3501
      %v4288 = vsel %vm4264, %v4255, %v3503
      %v4289 = vsel %vm4264, %v4256, %v3505
      %v4290 = vsel %vm4264, %v4257, %v3507
      %v4291 = vsel %vm4264, %v4258, %v3509
      %v4292 = vsel %vm4264, %v4259, %v3511
      %v4293 = vsel %vm4264, %v4260, %v3513
      %v4294 = vsel %vm4264, %v4261, %v3515
      %v4295 = vsel %vm4264, %v4262, %v3517
      %v4296 = vsel %vm4264, %v4263, %v3519
      %vm4297 = vcmask 392192
      %v4298 = vsel %vm4297, %v4265, %v3553
      %v4299 = vsel %vm4297, %v4266, %v3555
      %v4300 = vsel %vm4297, %v4267, %v3557
      %v4301 = vsel %vm4297, %v4268, %v3559
      %v4302 = vsel %vm4297, %v4269, %v3561
      %v4303 = vsel %vm4297, %v4270, %v3563
      %v4304 = vsel %vm4297, %v4271, %v3565
      %v4305 = vsel %vm4297, %v4272, %v3567
      %v4306 = vsel %vm4297, %v4273, %v3569
      %v4307 = vsel %vm4297, %v4274, %v3571
      %v4308 = vsel %vm4297, %v4275, %v3573
      %v4309 = vsel %vm4297, %v4276, %v3575
      %v4310 = vsel %vm4297, %v4277, %v3577
      %v4311 = vsel %vm4297, %v4278, %v3579
      %v4312 = vsel %vm4297, %v4279, %v3581
      %v4313 = vsel %vm4297, %v4280, %v3583
      %v4314 = vsel %vm4297, %v4281, %v3585
      %v4315 = vsel %vm4297, %v4282, %v3587
      %v4316 = vsel %vm4297, %v4283, %v3589
      %v4317 = vsel %vm4297, %v4284, %v3591
      %v4318 = vsel %vm4297, %v4285, %v3593
      %v4319 = vsel %vm4297, %v4286, %v3595
      %v4320 = vsel %vm4297, %v4287, %v3597
      %v4321 = vsel %vm4297, %v4288, %v3599
      %v4322 = vsel %vm4297, %v4289, %v3601
      %v4323 = vsel %vm4297, %v4290, %v3603
      %v4324 = vsel %vm4297, %v4291, %v3605
      %v4325 = vsel %vm4297, %v4292, %v3607
      %v4326 = vsel %vm4297, %v4293, %v3609
      %v4327 = vsel %vm4297, %v4294, %v3611
      %v4328 = vsel %vm4297, %v4295, %v3613
      %v4329 = vsel %vm4297, %v4296, %v3615
      %vm4330 = vcmask 424960
      %v4331 = vsel %vm4330, %v4298, %v3649
      %v4332 = vsel %vm4330, %v4299, %v3651
      %v4333 = vsel %vm4330, %v4300, %v3653
      %v4334 = vsel %vm4330, %v4301, %v3655
      %v4335 = vsel %vm4330, %v4302, %v3657
      %v4336 = vsel %vm4330, %v4303, %v3659
      %v4337 = vsel %vm4330, %v4304, %v3661
      %v4338 = vsel %vm4330, %v4305, %v3663
      %v4339 = vsel %vm4330, %v4306, %v3665
      %v4340 = vsel %vm4330, %v4307, %v3667
      %v4341 = vsel %vm4330, %v4308, %v3669
      %v4342 = vsel %vm4330, %v4309, %v3671
      %v4343 = vsel %vm4330, %v4310, %v3673
      %v4344 = vsel %vm4330, %v4311, %v3675
      %v4345 = vsel %vm4330, %v4312, %v3677
      %v4346 = vsel %vm4330, %v4313, %v3679
      %v4347 = vsel %vm4330, %v4314, %v3681
      %v4348 = vsel %vm4330, %v4315, %v3683
      %v4349 = vsel %vm4330, %v4316, %v3685
      %v4350 = vsel %vm4330, %v4317, %v3687
      %v4351 = vsel %vm4330, %v4318, %v3689
      %v4352 = vsel %vm4330, %v4319, %v3691
      %v4353 = vsel %vm4330, %v4320, %v3693
      %v4354 = vsel %vm4330, %v4321, %v3695
      %v4355 = vsel %vm4330, %v4322, %v3697
      %v4356 = vsel %vm4330, %v4323, %v3699
      %v4357 = vsel %vm4330, %v4324, %v3701
      %v4358 = vsel %vm4330, %v4325, %v3703
      %v4359 = vsel %vm4330, %v4326, %v3705
      %v4360 = vsel %vm4330, %v4327, %v3707
      %v4361 = vsel %vm4330, %v4328, %v3709
      %v4362 = vsel %vm4330, %v4329, %v3711
      %vm4363 = vcmask 457728
      %v4364 = vsel %vm4363, %v4331, %v3745
      %v4365 = vsel %vm4363, %v4332, %v3747
      %v4366 = vsel %vm4363, %v4333, %v3749
      %v4367 = vsel %vm4363, %v4334, %v3751
      %v4368 = vsel %vm4363, %v4335, %v3753
      %v4369 = vsel %vm4363, %v4336, %v3755
      %v4370 = vsel %vm4363, %v4337, %v3757
      %v4371 = vsel %vm4363, %v4338, %v3759
      %v4372 = vsel %vm4363, %v4339, %v3761
      %v4373 = vsel %vm4363, %v4340, %v3763
      %v4374 = vsel %vm4363, %v4341, %v3765
      %v4375 = vsel %vm4363, %v4342, %v3767
      %v4376 = vsel %vm4363, %v4343, %v3769
      %v4377 = vsel %vm4363, %v4344, %v3771
      %v4378 = vsel %vm4363, %v4345, %v3773
      %v4379 = vsel %vm4363, %v4346, %v3775
      %v4380 = vsel %vm4363, %v4347, %v3777
      %v4381 = vsel %vm4363, %v4348, %v3779
      %v4382 = vsel %vm4363, %v4349, %v3781
      %v4383 = vsel %vm4363, %v4350, %v3783
      %v4384 = vsel %vm4363, %v4351, %v3785
      %v4385 = vsel %vm4363, %v4352, %v3787
      %v4386 = vsel %vm4363, %v4353, %v3789
      %v4387 = vsel %vm4363, %v4354, %v3791
      %v4388 = vsel %vm4363, %v4355, %v3793
      %v4389 = vsel %vm4363, %v4356, %v3795
      %v4390 = vsel %vm4363, %v4357, %v3797
      %v4391 = vsel %vm4363, %v4358, %v3799
      %v4392 = vsel %vm4363, %v4359, %v3801
      %v4393 = vsel %vm4363, %v4360, %v3803
      %v4394 = vsel %vm4363, %v4361, %v3805
      %v4395 = vsel %vm4363, %v4362, %v3807
      %vm4396 = vcmask 490496
      %v4397 = vsel %vm4396, %v4364, %v3841
      %v4398 = vsel %vm4396, %v4365, %v3843
      %v4399 = vsel %vm4396, %v4366, %v3845
      %v4400 = vsel %vm4396, %v4367, %v3847
      %v4401 = vsel %vm4396, %v4368, %v3849
      %v4402 = vsel %vm4396, %v4369, %v3851
      %v4403 = vsel %vm4396, %v4370, %v3853
      %v4404 = vsel %vm4396, %v4371, %v3855
      %v4405 = vsel %vm4396, %v4372, %v3857
      %v4406 = vsel %vm4396, %v4373, %v3859
      %v4407 = vsel %vm4396, %v4374, %v3861
      %v4408 = vsel %vm4396, %v4375, %v3863
      %v4409 = vsel %vm4396, %v4376, %v3865
      %v4410 = vsel %vm4396, %v4377, %v3867
      %v4411 = vsel %vm4396, %v4378, %v3869
      %v4412 = vsel %vm4396, %v4379, %v3871
      %v4413 = vsel %vm4396, %v4380, %v3873
      %v4414 = vsel %vm4396, %v4381, %v3875
      %v4415 = vsel %vm4396, %v4382, %v3877
      %v4416 = vsel %vm4396, %v4383, %v3879
      %v4417 = vsel %vm4396, %v4384, %v3881
      %v4418 = vsel %vm4396, %v4385, %v3883
      %v4419 = vsel %vm4396, %v4386, %v3885
      %v4420 = vsel %vm4396, %v4387, %v3887
      %v4421 = vsel %vm4396, %v4388, %v3889
      %v4422 = vsel %vm4396, %v4389, %v3891
      %v4423 = vsel %vm4396, %v4390, %v3893
      %v4424 = vsel %vm4396, %v4391, %v3895
      %v4425 = vsel %vm4396, %v4392, %v3897
      %v4426 = vsel %vm4396, %v4393, %v3899
      %v4427 = vsel %vm4396, %v4394, %v3901
      %v4428 = vsel %vm4396, %v4395, %v3903
      %4429 = vrot.lane.b32.xlu0 %v2344, 4
      %v4430 = vpop.permute.xlu0 %4429
      %4431 = vrot.lane.b32.xlu0 %v2346, 4
      %v4432 = vpop.permute.xlu0 %4431
      %4433 = vrot.lane.b32.xlu0 %v2349, 4
      %v4434 = vpop.permute.xlu0 %4433
      %4435 = vrot.lane.b32.xlu0 %v2351, 4
      %v4436 = vpop.permute.xlu0 %4435
      %4437 = vrot.lane.b32.xlu0 %v2354, 4
      %v4438 = vpop.permute.xlu0 %4437
      %4439 = vrot.lane.b32.xlu0 %v2356, 4
      %v4440 = vpop.permute.xlu0 %4439
      %4441 = vrot.lane.b32.xlu0 %v2359, 4
      %v4442 = vpop.permute.xlu0 %4441
      %4443 = vrot.lane.b32.xlu0 %v2361, 4
      %v4444 = vpop.permute.xlu0 %4443
      %4445 = vrot.lane.b32.xlu0 %v2364, 4
      %v4446 = vpop.permute.xlu0 %4445
      %4447 = vrot.lane.b32.xlu0 %v2366, 4
      %v4448 = vpop.permute.xlu0 %4447
      %4449 = vrot.lane.b32.xlu0 %v2369, 4
      %v4450 = vpop.permute.xlu0 %4449
      %4451 = vrot.lane.b32.xlu0 %v2371, 4
      %v4452 = vpop.permute.xlu0 %4451
      %4453 = vrot.lane.b32.xlu0 %v2374, 4
      %v4454 = vpop.permute.xlu0 %4453
      %4455 = vrot.lane.b32.xlu0 %v2376, 4
      %v4456 = vpop.permute.xlu0 %4455
      %4457 = vrot.lane.b32.xlu0 %v2379, 4
      %v4458 = vpop.permute.xlu0 %4457
      %4459 = vrot.lane.b32.xlu0 %v2381, 4
      %v4460 = vpop.permute.xlu0 %4459
      %4461 = vrot.lane.b32.xlu0 %v2384, 4
      %v4462 = vpop.permute.xlu0 %4461
      %4463 = vrot.lane.b32.xlu0 %v2386, 4
      %v4464 = vpop.permute.xlu0 %4463
      %4465 = vrot.lane.b32.xlu0 %v2389, 4
      %v4466 = vpop.permute.xlu0 %4465
      %4467 = vrot.lane.b32.xlu0 %v2391, 4
      %v4468 = vpop.permute.xlu0 %4467
      %4469 = vrot.lane.b32.xlu0 %v2394, 4
      %v4470 = vpop.permute.xlu0 %4469
      %4471 = vrot.lane.b32.xlu0 %v2396, 4
      %v4472 = vpop.permute.xlu0 %4471
      %4473 = vrot.lane.b32.xlu0 %v2399, 4
      %v4474 = vpop.permute.xlu0 %4473
      %4475 = vrot.lane.b32.xlu0 %v2401, 4
      %v4476 = vpop.permute.xlu0 %4475
      %4477 = vrot.lane.b32.xlu0 %v2404, 4
      %v4478 = vpop.permute.xlu0 %4477
      %4479 = vrot.lane.b32.xlu0 %v2406, 4
      %v4480 = vpop.permute.xlu0 %4479
      %4481 = vrot.lane.b32.xlu0 %v2409, 4
      %v4482 = vpop.permute.xlu0 %4481
      %4483 = vrot.lane.b32.xlu0 %v2411, 4
      %v4484 = vpop.permute.xlu0 %4483
      %4485 = vrot.lane.b32.xlu0 %v2435, 4
      %v4486 = vpop.permute.xlu0 %4485
      %4487 = vrot.lane.b32.xlu0 %v2437, 4
      %v4488 = vpop.permute.xlu0 %4487
      %4489 = vrot.lane.b32.xlu0 %v2493, 4
      %v4490 = vpop.permute.xlu0 %4489
      %4491 = vrot.lane.b32.xlu0 %v2495, 4
      %v4492 = vpop.permute.xlu0 %4491
      %v4525 = vsel %vm1678, %v2264, %v4430
      %v4526 = vsel %vm1678, %v2266, %v4432
      %v4527 = vsel %vm1678, %v2269, %v4434
      %v4528 = vsel %vm1678, %v2271, %v4436
      %v4529 = vsel %vm1678, %v2274, %v4438
      %v4530 = vsel %vm1678, %v2276, %v4440
      %v4531 = vsel %vm1678, %v2279, %v4442
      %v4532 = vsel %vm1678, %v2281, %v4444
      %v4533 = vsel %vm1678, %v2284, %v4446
      %v4534 = vsel %vm1678, %v2286, %v4448
      %v4535 = vsel %vm1678, %v2289, %v4450
      %v4536 = vsel %vm1678, %v2291, %v4452
      %v4537 = vsel %vm1678, %v2294, %v4454
      %v4538 = vsel %vm1678, %v2296, %v4456
      %v4539 = vsel %vm1678, %v2299, %v4458
      %v4540 = vsel %vm1678, %v2301, %v4460
      %v4541 = vsel %vm1678, %v2304, %v4462
      %v4542 = vsel %vm1678, %v2306, %v4464
      %v4543 = vsel %vm1678, %v2309, %v4466
      %v4544 = vsel %vm1678, %v2311, %v4468
      %v4545 = vsel %vm1678, %v2314, %v4470
      %v4546 = vsel %vm1678, %v2316, %v4472
      %v4547 = vsel %vm1678, %v2319, %v4474
      %v4548 = vsel %vm1678, %v2321, %v4476
      %v4549 = vsel %vm1678, %v2324, %v4478
      %v4550 = vsel %vm1678, %v2326, %v4480
      %v4551 = vsel %vm1678, %v2329, %v4482
      %v4552 = vsel %vm1678, %v2331, %v4484
      %v4553 = vsel %vm1678, %v2430, %v4486
      %v4554 = vsel %vm1678, %v2432, %v4488
      %v4555 = vsel %vm1678, %v2456, %v4490
      %v4556 = vsel %vm1678, %v2458, %v4492
      %4589 = vrot.lane.b32.xlu0 %v4525, 64
      %v4590 = vpop.permute.xlu0 %4589
      %4591 = vrot.lane.b32.xlu0 %v4526, 64
      %v4592 = vpop.permute.xlu0 %4591
      %4593 = vrot.lane.b32.xlu0 %v4527, 64
      %v4594 = vpop.permute.xlu0 %4593
      %4595 = vrot.lane.b32.xlu0 %v4528, 64
      %v4596 = vpop.permute.xlu0 %4595
      %4597 = vrot.lane.b32.xlu0 %v4529, 64
      %v4598 = vpop.permute.xlu0 %4597
      %4599 = vrot.lane.b32.xlu0 %v4530, 64
      %v4600 = vpop.permute.xlu0 %4599
      %4601 = vrot.lane.b32.xlu0 %v4531, 64
      %v4602 = vpop.permute.xlu0 %4601
      %4603 = vrot.lane.b32.xlu0 %v4532, 64
      %v4604 = vpop.permute.xlu0 %4603
      %4605 = vrot.lane.b32.xlu0 %v4533, 64
      %v4606 = vpop.permute.xlu0 %4605
      %4607 = vrot.lane.b32.xlu0 %v4534, 64
      %v4608 = vpop.permute.xlu0 %4607
      %4609 = vrot.lane.b32.xlu0 %v4535, 64
      %v4610 = vpop.permute.xlu0 %4609
      %4611 = vrot.lane.b32.xlu0 %v4536, 64
      %v4612 = vpop.permute.xlu0 %4611
      %4613 = vrot.lane.b32.xlu0 %v4537, 64
      %v4614 = vpop.permute.xlu0 %4613
      %4615 = vrot.lane.b32.xlu0 %v4538, 64
      %v4616 = vpop.permute.xlu0 %4615
      %4617 = vrot.lane.b32.xlu0 %v4539, 64
      %v4618 = vpop.permute.xlu0 %4617
      %4619 = vrot.lane.b32.xlu0 %v4540, 64
      %v4620 = vpop.permute.xlu0 %4619
      %4621 = vrot.lane.b32.xlu0 %v4541, 64
      %v4622 = vpop.permute.xlu0 %4621
      %4623 = vrot.lane.b32.xlu0 %v4542, 64
      %v4624 = vpop.permute.xlu0 %4623
      %4625 = vrot.lane.b32.xlu0 %v4543, 64
      %v4626 = vpop.permute.xlu0 %4625
      %4627 = vrot.lane.b32.xlu0 %v4544, 64
      %v4628 = vpop.permute.xlu0 %4627
      %4629 = vrot.lane.b32.xlu0 %v4545, 64
      %v4630 = vpop.permute.xlu0 %4629
      %4631 = vrot.lane.b32.xlu0 %v4546, 64
      %v4632 = vpop.permute.xlu0 %4631
      %4633 = vrot.lane.b32.xlu0 %v4547, 64
      %v4634 = vpop.permute.xlu0 %4633
      %4635 = vrot.lane.b32.xlu0 %v4548, 64
      %v4636 = vpop.permute.xlu0 %4635
      %4637 = vrot.lane.b32.xlu0 %v4549, 64
      %v4638 = vpop.permute.xlu0 %4637
      %4639 = vrot.lane.b32.xlu0 %v4550, 64
      %v4640 = vpop.permute.xlu0 %4639
      %4641 = vrot.lane.b32.xlu0 %v4551, 64
      %v4642 = vpop.permute.xlu0 %4641
      %4643 = vrot.lane.b32.xlu0 %v4552, 64
      %v4644 = vpop.permute.xlu0 %4643
      %4645 = vrot.lane.b32.xlu0 %v4553, 64
      %v4646 = vpop.permute.xlu0 %4645
      %4647 = vrot.lane.b32.xlu0 %v4554, 64
      %v4648 = vpop.permute.xlu0 %4647
      %4649 = vrot.lane.b32.xlu0 %v4555, 64
      %v4650 = vpop.permute.xlu0 %4649
      %4651 = vrot.lane.b32.xlu0 %v4556, 64
      %v4652 = vpop.permute.xlu0 %4651
      %vm4685 = vcmask 523264
      %v4686 = vsel %vm4685, %v4397, %v4590
      %v4687 = vsel %vm4685, %v4398, %v4592
      %v4688 = vsel %vm4685, %v4399, %v4594
      %v4689 = vsel %vm4685, %v4400, %v4596
      %v4690 = vsel %vm4685, %v4401, %v4598
      %v4691 = vsel %vm4685, %v4402, %v4600
      %v4692 = vsel %vm4685, %v4403, %v4602
      %v4693 = vsel %vm4685, %v4404, %v4604
      %v4694 = vsel %vm4685, %v4405, %v4606
      %v4695 = vsel %vm4685, %v4406, %v4608
      %v4696 = vsel %vm4685, %v4407, %v4610
      %v4697 = vsel %vm4685, %v4408, %v4612
      %v4698 = vsel %vm4685, %v4409, %v4614
      %v4699 = vsel %vm4685, %v4410, %v4616
      %v4700 = vsel %vm4685, %v4411, %v4618
      %v4701 = vsel %vm4685, %v4412, %v4620
      %v4702 = vsel %vm4685, %v4413, %v4622
      %v4703 = vsel %vm4685, %v4414, %v4624
      %v4704 = vsel %vm4685, %v4415, %v4626
      %v4705 = vsel %vm4685, %v4416, %v4628
      %v4706 = vsel %vm4685, %v4417, %v4630
      %v4707 = vsel %vm4685, %v4418, %v4632
      %v4708 = vsel %vm4685, %v4419, %v4634
      %v4709 = vsel %vm4685, %v4420, %v4636
      %v4710 = vsel %vm4685, %v4421, %v4638
      %v4711 = vsel %vm4685, %v4422, %v4640
      %v4712 = vsel %vm4685, %v4423, %v4642
      %v4713 = vsel %vm4685, %v4424, %v4644
      %v4714 = vsel %vm4685, %v4425, %v4646
      %v4715 = vsel %vm4685, %v4426, %v4648
      %v4716 = vsel %vm4685, %v4427, %v4650
      %v4717 = vsel %vm4685, %v4428, %v4652
      %v4718 = vld [vmem:[%s4] sm:$0xff]
      %v4719 = vld [vmem:[%s4 + $0x8] sm:$0xff]
      %v4720 = vld [vmem:[%s4 + $0x10] sm:$0xff]
      %v4721 = vld [vmem:[%s4 + $0x18] sm:$0xff]
      %v4722 = vld [vmem:[%s4 + $0x20] sm:$0xff]
      %v4723 = vld [vmem:[%s4 + $0x28] sm:$0xff]
      %v4724 = vld [vmem:[%s4 + $0x30] sm:$0xff]
      %v4725 = vld [vmem:[%s4 + $0x38] sm:$0xff]
      %v4726 = vld [vmem:[%s4 + $0x40] sm:$0xff]
      %v4727 = vld [vmem:[%s5] sm:$0x1]
      %v4729 = vperm.slane %v4727, 0
      %vm4731 = vcmask 588800
      %v4733 = vsel %vm4731, %v4686, 0
      %v4736 = vsel %vm4731, %v4687, 0
      %v4739 = vsel %vm4731, %v4688, 0
      %v4742 = vsel %vm4731, %v4689, 0
      %v4745 = vsel %vm4731, %v4690, 0
      %v4748 = vsel %vm4731, %v4691, 0
      %v4751 = vsel %vm4731, %v4692, 0
      %v4754 = vsel %vm4731, %v4693, 0
      %v4757 = vsel %vm4731, %v4694, 0
      %v4760 = vsel %vm4731, %v4695, 0
      %v4763 = vsel %vm4731, %v4696, 0
      %v4766 = vsel %vm4731, %v4697, 0
      %v4769 = vsel %vm4731, %v4698, 0
      %v4772 = vsel %vm4731, %v4699, 0
      %v4775 = vsel %vm4731, %v4700, 0
      %v4778 = vsel %vm4731, %v4701, 0
      %v4781 = vsel %vm4731, %v4702, 0
      %v4784 = vsel %vm4731, %v4703, 0
      %v4787 = vsel %vm4731, %v4704, 0
      %v4790 = vsel %vm4731, %v4705, 0
      %v4793 = vsel %vm4731, %v4706, 0
      %v4796 = vsel %vm4731, %v4707, 0
      %v4799 = vsel %vm4731, %v4708, 0
      %v4802 = vsel %vm4731, %v4709, 0
      %v4805 = vsel %vm4731, %v4710, 0
      %v4808 = vsel %vm4731, %v4711, 0
      %v4811 = vsel %vm4731, %v4712, 0
      %v4814 = vsel %vm4731, %v4713, 0
      %v4817 = vsel %vm4731, %v4714, 0
      %v4820 = vsel %vm4731, %v4715, 0
      %v4823 = vsel %vm4731, %v4716, 0
      %v4826 = vsel %vm4731, %v4717, 0
      %4828 = vmatpush.msra.mxu0 0.0
      %4829 = vmatpush.msra.mxu0 0.0
      %4830 = vmatpush.msra.mxu0 0.0
      %4831 = vmatpush.msra.mxu0 0.0
      %4832 = vmatpush.msra.mxu0 0.0
      %4833 = vmatpush.msra.mxu0 0.0
      %4834 = vmatpush.msra.mxu0 0.0
      %4835 = vmatpush.msra.mxu0 %v4726
      %4836 = vmatpush.msra.mxu0 %v4725
      %4837 = vmatpush.msra.mxu0 %v4724
      %4838 = vmatpush.msra.mxu0 %v4723
      %4839 = vmatpush.msra.mxu0 %v4722
      %4840 = vmatpush.msra.mxu0 %v4721
      %4841 = vmatpush.msra.mxu0 %v4720
      %4842 = vmatpush.msra.mxu0 %v4719
      %4843 = vmatpush.msra.mxu0 %v4718
      %4844 = vmatmul.f32.gmra.mxu0 %v4733
      %v4845 = vpop.f32.mrf.mxu0
      %v4846 = vadd.f32 %v4729, %v4845
      %4847 = vmatmul.f32.gmra.mxu0 %v4736
      %v4848 = vpop.f32.mrf.mxu0
      %v4849 = vadd.f32 %v4729, %v4848
      %4850 = vmatmul.f32.gmra.mxu0 %v4739
      %v4851 = vpop.f32.mrf.mxu0
      %v4852 = vadd.f32 %v4729, %v4851
      %4853 = vmatmul.f32.gmra.mxu0 %v4742
      %v4854 = vpop.f32.mrf.mxu0
      %v4855 = vadd.f32 %v4729, %v4854
      %4856 = vmatmul.f32.gmra.mxu0 %v4745
      %v4857 = vpop.f32.mrf.mxu0
      %v4858 = vadd.f32 %v4729, %v4857
      %4859 = vmatmul.f32.gmra.mxu0 %v4748
      %v4860 = vpop.f32.mrf.mxu0
      %v4861 = vadd.f32 %v4729, %v4860
      %4862 = vmatmul.f32.gmra.mxu0 %v4751
      %v4863 = vpop.f32.mrf.mxu0
      %v4864 = vadd.f32 %v4729, %v4863
      %4865 = vmatmul.f32.gmra.mxu0 %v4754
      %v4866 = vpop.f32.mrf.mxu0
      %v4867 = vadd.f32 %v4729, %v4866
      %4868 = vmatmul.f32.gmra.mxu0 %v4757
      %v4869 = vpop.f32.mrf.mxu0
      %v4870 = vadd.f32 %v4729, %v4869
      %4871 = vmatmul.f32.gmra.mxu0 %v4760
      %v4872 = vpop.f32.mrf.mxu0
      %v4873 = vadd.f32 %v4729, %v4872
      %4874 = vmatmul.f32.gmra.mxu0 %v4763
      %v4875 = vpop.f32.mrf.mxu0
      %v4876 = vadd.f32 %v4729, %v4875
      %4877 = vmatmul.f32.gmra.mxu0 %v4766
      %v4878 = vpop.f32.mrf.mxu0
      %v4879 = vadd.f32 %v4729, %v4878
      %4880 = vmatmul.f32.gmra.mxu0 %v4769
      %v4881 = vpop.f32.mrf.mxu0
      %v4882 = vadd.f32 %v4729, %v4881
      %4883 = vmatmul.f32.gmra.mxu0 %v4772
      %v4884 = vpop.f32.mrf.mxu0
      %v4885 = vadd.f32 %v4729, %v4884
      %4886 = vmatmul.f32.gmra.mxu0 %v4775
      %v4887 = vpop.f32.mrf.mxu0
      %v4888 = vadd.f32 %v4729, %v4887
      %4889 = vmatmul.f32.gmra.mxu0 %v4778
      %v4890 = vpop.f32.mrf.mxu0
      %v4891 = vadd.f32 %v4729, %v4890
      %4892 = vmatmul.f32.gmra.mxu0 %v4781
      %v4893 = vpop.f32.mrf.mxu0
      %v4894 = vadd.f32 %v4729, %v4893
      %4895 = vmatmul.f32.gmra.mxu0 %v4784
      %v4896 = vpop.f32.mrf.mxu0
      %v4897 = vadd.f32 %v4729, %v4896
      %4898 = vmatmul.f32.gmra.mxu0 %v4787
      %v4899 = vpop.f32.mrf.mxu0
      %v4900 = vadd.f32 %v4729, %v4899
      %4901 = vmatmul.f32.gmra.mxu0 %v4790
      %v4902 = vpop.f32.mrf.mxu0
      %v4903 = vadd.f32 %v4729, %v4902
      %4904 = vmatmul.f32.gmra.mxu0 %v4793
      %v4905 = vpop.f32.mrf.mxu0
      %v4906 = vadd.f32 %v4729, %v4905
      %4907 = vmatmul.f32.gmra.mxu0 %v4796
      %v4908 = vpop.f32.mrf.mxu0
      %v4909 = vadd.f32 %v4729, %v4908
      %4910 = vmatmul.f32.gmra.mxu0 %v4799
      %v4911 = vpop.f32.mrf.mxu0
      %v4912 = vadd.f32 %v4729, %v4911
      %4913 = vmatmul.f32.gmra.mxu0 %v4802
      %v4914 = vpop.f32.mrf.mxu0
      %v4915 = vadd.f32 %v4729, %v4914
      %4916 = vmatmul.f32.gmra.mxu0 %v4805
      %v4917 = vpop.f32.mrf.mxu0
      %v4918 = vadd.f32 %v4729, %v4917
      %4919 = vmatmul.f32.gmra.mxu0 %v4808
      %v4920 = vpop.f32.mrf.mxu0
      %v4921 = vadd.f32 %v4729, %v4920
      %4922 = vmatmul.f32.gmra.mxu0 %v4811
      %v4923 = vpop.f32.mrf.mxu0
      %v4924 = vadd.f32 %v4729, %v4923
      %4925 = vmatmul.f32.gmra.mxu0 %v4814
      %v4926 = vpop.f32.mrf.mxu0
      %v4927 = vadd.f32 %v4729, %v4926
      %4928 = vmatmul.f32.gmra.mxu0 %v4817
      %v4929 = vpop.f32.mrf.mxu0
      %v4930 = vadd.f32 %v4729, %v4929
      %4931 = vmatmul.f32.gmra.mxu0 %v4820
      %v4932 = vpop.f32.mrf.mxu0
      %v4933 = vadd.f32 %v4729, %v4932
      %4934 = vmatmul.f32.gmra.mxu0 %v4823
      %v4935 = vpop.f32.mrf.mxu0
      %v4936 = vadd.f32 %v4729, %v4935
      %4937 = vmatmul.f32.gmra.mxu0 %v4826
      %v4938 = vpop.f32.mrf.mxu0
      %v4939 = vadd.f32 %v4729, %v4938
      %4940 = vdwg.mxu0
      %vm4941 = vcmp.ge.f32.partialorder %v4846, 0.0
      %vm4942 = vcmp.ge.f32.partialorder %v4849, 0.0
      %vm4943 = vcmp.ge.f32.partialorder %v4852, 0.0
      %vm4944 = vcmp.ge.f32.partialorder %v4855, 0.0
      %vm4945 = vcmp.ge.f32.partialorder %v4858, 0.0
      %vm4946 = vcmp.ge.f32.partialorder %v4861, 0.0
      %vm4947 = vcmp.ge.f32.partialorder %v4864, 0.0
      %vm4948 = vcmp.ge.f32.partialorder %v4867, 0.0
      %vm4949 = vcmp.ge.f32.partialorder %v4870, 0.0
      %vm4950 = vcmp.ge.f32.partialorder %v4873, 0.0
      %vm4951 = vcmp.ge.f32.partialorder %v4876, 0.0
      %vm4952 = vcmp.ge.f32.partialorder %v4879, 0.0
      %vm4953 = vcmp.ge.f32.partialorder %v4882, 0.0
      %vm4954 = vcmp.ge.f32.partialorder %v4885, 0.0
      %vm4955 = vcmp.ge.f32.partialorder %v4888, 0.0
      %vm4956 = vcmp.ge.f32.partialorder %v4891, 0.0
      %vm4957 = vcmp.ge.f32.partialorder %v4894, 0.0
      %vm4958 = vcmp.ge.f32.partialorder %v4897, 0.0
      %vm4959 = vcmp.ge.f32.partialorder %v4900, 0.0
      %vm4960 = vcmp.ge.f32.partialorder %v4903, 0.0
      %vm4961 = vcmp.ge.f32.partialorder %v4906, 0.0
      %vm4962 = vcmp.ge.f32.partialorder %v4909, 0.0
      %vm4963 = vcmp.ge.f32.partialorder %v4912, 0.0
      %vm4964 = vcmp.ge.f32.partialorder %v4915, 0.0
      %vm4965 = vcmp.ge.f32.partialorder %v4918, 0.0
      %vm4966 = vcmp.ge.f32.partialorder %v4921, 0.0
      %vm4967 = vcmp.ge.f32.partialorder %v4924, 0.0
      %vm4968 = vcmp.ge.f32.partialorder %v4927, 0.0
      %vm4969 = vcmp.ge.f32.partialorder %v4930, 0.0
      %vm4970 = vcmp.ge.f32.partialorder %v4933, 0.0
      %vm4971 = vcmp.ge.f32.partialorder %v4936, 0.0
      %vm4972 = vcmp.ge.f32.partialorder %v4939, 0.0
      %v4973 = vmul.f32 %v4846, 0.2
      %v4974 = vmul.f32 %v4849, 0.2
      %v4975 = vmul.f32 %v4852, 0.2
      %v4976 = vmul.f32 %v4855, 0.2
      %v4977 = vmul.f32 %v4858, 0.2
      %v4978 = vmul.f32 %v4861, 0.2
      %v4979 = vmul.f32 %v4864, 0.2
      %v4980 = vmul.f32 %v4867, 0.2
      %v4981 = vmul.f32 %v4870, 0.2
      %v4982 = vmul.f32 %v4873, 0.2
      %v4983 = vmul.f32 %v4876, 0.2
      %v4984 = vmul.f32 %v4879, 0.2
      %v4985 = vmul.f32 %v4882, 0.2
      %v4986 = vmul.f32 %v4885, 0.2
      %v4987 = vmul.f32 %v4888, 0.2
      %v4988 = vmul.f32 %v4891, 0.2
      %v4989 = vmul.f32 %v4894, 0.2
      %v4990 = vmul.f32 %v4897, 0.2
      %v4991 = vmul.f32 %v4900, 0.2
      %v4992 = vmul.f32 %v4903, 0.2
      %v4993 = vmul.f32 %v4906, 0.2
      %v4994 = vmul.f32 %v4909, 0.2
      %v4995 = vmul.f32 %v4912, 0.2
      %v4996 = vmul.f32 %v4915, 0.2
      %v4997 = vmul.f32 %v4918, 0.2
      %v4998 = vmul.f32 %v4921, 0.2
      %v4999 = vmul.f32 %v4924, 0.2
      %v5000 = vmul.f32 %v4927, 0.2
      %v5001 = vmul.f32 %v4930, 0.2
      %v5002 = vmul.f32 %v4933, 0.2
      %v5003 = vmul.f32 %v4936, 0.2
      %v5004 = vmul.f32 %v4939, 0.2
      %v5005 = vsel %vm4941, %v4846, %v4973
      %v5006 = vsel %vm4942, %v4849, %v4974
      %v5007 = vsel %vm4943, %v4852, %v4975
      %v5008 = vsel %vm4944, %v4855, %v4976
      %v5009 = vsel %vm4945, %v4858, %v4977
      %v5010 = vsel %vm4946, %v4861, %v4978
      %v5011 = vsel %vm4947, %v4864, %v4979
      %v5012 = vsel %vm4948, %v4867, %v4980
      %v5013 = vsel %vm4949, %v4870, %v4981
      %v5014 = vsel %vm4950, %v4873, %v4982
      %v5015 = vsel %vm4951, %v4876, %v4983
      %v5016 = vsel %vm4952, %v4879, %v4984
      %v5017 = vsel %vm4953, %v4882, %v4985
      %v5018 = vsel %vm4954, %v4885, %v4986
      %v5019 = vsel %vm4955, %v4888, %v4987
      %v5020 = vsel %vm4956, %v4891, %v4988
      %v5021 = vsel %vm4957, %v4894, %v4989
      %v5022 = vsel %vm4958, %v4897, %v4990
      %v5023 = vsel %vm4959, %v4900, %v4991
      %v5024 = vsel %vm4960, %v4903, %v4992
      %v5025 = vsel %vm4961, %v4906, %v4993
      %v5026 = vsel %vm4962, %v4909, %v4994
      %v5027 = vsel %vm4963, %v4912, %v4995
      %v5028 = vsel %vm4964, %v4915, %v4996
      %v5029 = vsel %vm4965, %v4918, %v4997
      %v5030 = vsel %vm4966, %v4921, %v4998
      %v5031 = vsel %vm4967, %v4924, %v4999
      %v5032 = vsel %vm4968, %v4927, %v5000
      %v5033 = vsel %vm4969, %v4930, %v5001
      %v5034 = vsel %vm4970, %v4933, %v5002
      %v5035 = vsel %vm4971, %v4936, %v5003
      %v5036 = vsel %vm4972, %v4939, %v5004
      %5037 = vst.msk [vmem:[#allocation4] sm:$0xff] %vm1678, 0.0
      %5038 = vst.msk [vmem:[#allocation4 + $0x8] sm:$0xff] %vm1678, 0.0
      %5039 = vst.msk [vmem:[#allocation4 + $0x10] sm:$0x3] %vm1681, 0.0
      %5040 = vst.msk [vmem:[#allocation4 + $0x18] sm:$0xff] %vm1678, 0.0
      %5041 = vst.msk [vmem:[#allocation4 + $0x20] sm:$0xff] %vm1678, 0.0
      %5042 = vst.msk [vmem:[#allocation4 + $0x28] sm:$0x3] %vm1681, 0.0
      %5043 = vst.msk [vmem:[#allocation4 + $0x30] sm:$0xff] %vm1678, 0.0
      %5044 = vst.msk [vmem:[#allocation4 + $0x38] sm:$0xff] %vm1678, 0.0
      %5045 = vst.msk [vmem:[#allocation4 + $0x40] sm:$0x3] %vm1681, 0.0
      %5046 = vst.msk [vmem:[#allocation4 + $0x48] sm:$0xff] %vm1678, 0.0
      %5047 = vst.msk [vmem:[#allocation4 + $0x50] sm:$0xff] %vm1678, 0.0
      %5048 = vst.msk [vmem:[#allocation4 + $0x58] sm:$0x3] %vm1681, 0.0
      %5049 = vst.msk [vmem:[#allocation4 + $0x60] sm:$0xff] %vm1678, 0.0
      %5050 = vst.msk [vmem:[#allocation4 + $0x68] sm:$0xff] %vm1678, 0.0
      %5051 = vst.msk [vmem:[#allocation4 + $0x70] sm:$0x3] %vm1681, 0.0
      %5052 = vst.msk [vmem:[#allocation4 + $0x78] sm:$0xff] %vm1678, 0.0
      %5053 = vst.msk [vmem:[#allocation4 + $0x80] sm:$0xff] %vm1678, 0.0
      %5054 = vst.msk [vmem:[#allocation4 + $0x88] sm:$0x3] %vm1681, 0.0
      %5055 = vst.msk [vmem:[#allocation4 + $0x90] sm:$0xff] %vm1678, 0.0
      %5056 = vst.msk [vmem:[#allocation4 + $0x98] sm:$0xff] %vm1678, 0.0
      %5057 = vst.msk [vmem:[#allocation4 + $0xa0] sm:$0x3] %vm1681, 0.0
      %5058 = vst.msk [vmem:[#allocation4 + $0xa8] sm:$0xff] %vm1678, 0.0
      %5059 = vst.msk [vmem:[#allocation4 + $0xb0] sm:$0xff] %vm1678, 0.0
      %5060 = vst.msk [vmem:[#allocation4 + $0xb8] sm:$0x3] %vm1681, 0.0
      %5061 = vst.msk [vmem:[#allocation4 + $0xc0] sm:$0xff] %vm1678, 0.0
      %5062 = vst.msk [vmem:[#allocation4 + $0xc8] sm:$0xff] %vm1678, 0.0
      %5063 = vst.msk [vmem:[#allocation4 + $0xd0] sm:$0x3] %vm1681, 0.0
      %5064 = vst.msk [vmem:[#allocation4 + $0xd8] sm:$0xff] %vm1678, 0.0
      %5065 = vst.msk [vmem:[#allocation4 + $0xe0] sm:$0xff] %vm1678, 0.0
      %5066 = vst.msk [vmem:[#allocation4 + $0xe8] sm:$0x3] %vm1681, 0.0
      %5067 = vst.msk [vmem:[#allocation4 + $0xf0] sm:$0xff] %vm1678, 0.0
      %5068 = vst.msk [vmem:[#allocation4 + $0xf8] sm:$0xff] %vm1678, 0.0
      %5069 = vst.msk [vmem:[#allocation4 + $0x100] sm:$0x3] %vm1681, 0.0
      %5070 = vst.msk [vmem:[#allocation4 + $0x108] sm:$0xff] %vm1678, 0.0
      %5071 = vst.msk [vmem:[#allocation4 + $0x110] sm:$0xff] %vm1678, 0.0
      %5072 = vst.msk [vmem:[#allocation4 + $0x118] sm:$0x3] %vm1681, 0.0
      %5073 = vst.msk [vmem:[#allocation4 + $0x120] sm:$0xff] %vm1678, 0.0
      %5074 = vst.msk [vmem:[#allocation4 + $0x128] sm:$0xff] %vm1678, 0.0
      %5075 = vst.msk [vmem:[#allocation4 + $0x130] sm:$0x3] %vm1681, 0.0
      %5076 = vst.msk [vmem:[#allocation4 + $0x138] sm:$0xff] %vm1678, 0.0
      %5077 = vst.msk [vmem:[#allocation4 + $0x140] sm:$0xff] %vm1678, 0.0
      %5078 = vst.msk [vmem:[#allocation4 + $0x148] sm:$0x3] %vm1681, 0.0
      %5079 = vst.msk [vmem:[#allocation4 + $0x150] sm:$0xff] %vm1678, 0.0
      %5080 = vst.msk [vmem:[#allocation4 + $0x158] sm:$0xff] %vm1678, 0.0
      %5081 = vst.msk [vmem:[#allocation4 + $0x160] sm:$0x3] %vm1681, 0.0
      %5082 = vst.msk [vmem:[#allocation4 + $0x168] sm:$0xff] %vm1678, 0.0
      %5083 = vst.msk [vmem:[#allocation4 + $0x170] sm:$0xff] %vm1678, 0.0
      %5084 = vst.msk [vmem:[#allocation4 + $0x178] sm:$0x3] %vm1681, 0.0
      %5085 = vst.msk [vmem:[#allocation4 + $0x180] sm:$0xff] %vm1678, 0.0
      %5086 = vst.msk [vmem:[#allocation4 + $0x188] sm:$0xff] %vm1678, 0.0
      %5087 = vst.msk [vmem:[#allocation4 + $0x190] sm:$0x3] %vm1681, 0.0
      %5088 = vst.msk [vmem:[#allocation4 + $0x198] sm:$0xff] %vm1678, 0.0
      %5089 = vst.msk [vmem:[#allocation4 + $0x1a0] sm:$0xff] %vm1678, 0.0
      %5090 = vst.msk [vmem:[#allocation4 + $0x1a8] sm:$0x3] %vm1681, 0.0
      %s5091 = scalar_lea.vmem [#allocation4], 24
      %5092 = vst.msk [vmem:[%s5091 + $0x1] sm:$0xff] %vm1678, %v5005
      %5093 = vst.msk [vmem:[%s5091 + $0x9] sm:$0xff] %vm1678, %v5006
      %5094 = vst.msk [vmem:[%s5091 + $0x19] sm:$0xff] %vm1678, %v5007
      %5095 = vst.msk [vmem:[%s5091 + $0x21] sm:$0xff] %vm1678, %v5008
      %5096 = vst.msk [vmem:[%s5091 + $0x31] sm:$0xff] %vm1678, %v5009
      %5097 = vst.msk [vmem:[%s5091 + $0x39] sm:$0xff] %vm1678, %v5010
      %5098 = vst.msk [vmem:[%s5091 + $0x49] sm:$0xff] %vm1678, %v5011
      %5099 = vst.msk [vmem:[%s5091 + $0x51] sm:$0xff] %vm1678, %v5012
      %5100 = vst.msk [vmem:[%s5091 + $0x61] sm:$0xff] %vm1678, %v5013
      %5101 = vst.msk [vmem:[%s5091 + $0x69] sm:$0xff] %vm1678, %v5014
      %5102 = vst.msk [vmem:[%s5091 + $0x79] sm:$0xff] %vm1678, %v5015
      %5103 = vst.msk [vmem:[%s5091 + $0x81] sm:$0xff] %vm1678, %v5016
      %5104 = vst.msk [vmem:[%s5091 + $0x91] sm:$0xff] %vm1678, %v5017
      %5105 = vst.msk [vmem:[%s5091 + $0x99] sm:$0xff] %vm1678, %v5018
      %5106 = vst.msk [vmem:[%s5091 + $0xa9] sm:$0xff] %vm1678, %v5019
      %5107 = vst.msk [vmem:[%s5091 + $0xb1] sm:$0xff] %vm1678, %v5020
      %5108 = vst.msk [vmem:[%s5091 + $0xc1] sm:$0xff] %vm1678, %v5021
      %5109 = vst.msk [vmem:[%s5091 + $0xc9] sm:$0xff] %vm1678, %v5022
      %5110 = vst.msk [vmem:[%s5091 + $0xd9] sm:$0xff] %vm1678, %v5023
      %5111 = vst.msk [vmem:[%s5091 + $0xe1] sm:$0xff] %vm1678, %v5024
      %5112 = vst.msk [vmem:[%s5091 + $0xf1] sm:$0xff] %vm1678, %v5025
      %5113 = vst.msk [vmem:[%s5091 + $0xf9] sm:$0xff] %vm1678, %v5026
      %5114 = vst.msk [vmem:[%s5091 + $0x109] sm:$0xff] %vm1678, %v5027
      %5115 = vst.msk [vmem:[%s5091 + $0x111] sm:$0xff] %vm1678, %v5028
      %5116 = vst.msk [vmem:[%s5091 + $0x121] sm:$0xff] %vm1678, %v5029
      %5117 = vst.msk [vmem:[%s5091 + $0x129] sm:$0xff] %vm1678, %v5030
      %5118 = vst.msk [vmem:[%s5091 + $0x139] sm:$0xff] %vm1678, %v5031
      %5119 = vst.msk [vmem:[%s5091 + $0x141] sm:$0xff] %vm1678, %v5032
      %5120 = vst.msk [vmem:[%s5091 + $0x151] sm:$0xff] %vm1678, %v5033
      %5121 = vst.msk [vmem:[%s5091 + $0x159] sm:$0xff] %vm1678, %v5034
      %5122 = vst.msk [vmem:[%s5091 + $0x169] sm:$0xff] %vm1678, %v5035
      %5123 = vst.msk [vmem:[%s5091 + $0x171] sm:$0xff] %vm1678, %v5036
      %v5124 = vld [vmem:[#allocation4] sm:$0xff]
      %v5125 = vld [vmem:[#allocation4 + $0x8] sm:$0xff]
      %v5126 = vld [vmem:[#allocation4 + $0x10] sm:$0x3]
      %v5127 = vld [vmem:[#allocation4 + $0x18] sm:$0xff]
      %v5128 = vld [vmem:[#allocation4 + $0x20] sm:$0xff]
      %v5129 = vld [vmem:[#allocation4 + $0x28] sm:$0x3]
      %v5130 = vld [vmem:[#allocation4 + $0x30] sm:$0xff]
      %v5131 = vld [vmem:[#allocation4 + $0x38] sm:$0xff]
      %v5132 = vld [vmem:[#allocation4 + $0x40] sm:$0x3]
      %v5133 = vld [vmem:[#allocation4 + $0x48] sm:$0xff]
      %v5134 = vld [vmem:[#allocation4 + $0x50] sm:$0xff]
      %v5135 = vld [vmem:[#allocation4 + $0x58] sm:$0x3]
      %v5136 = vld [vmem:[#allocation4 + $0x60] sm:$0xff]
      %v5137 = vld [vmem:[#allocation4 + $0x68] sm:$0xff]
      %v5138 = vld [vmem:[#allocation4 + $0x70] sm:$0x3]
      %v5139 = vld [vmem:[#allocation4 + $0x78] sm:$0xff]
      %v5140 = vld [vmem:[#allocation4 + $0x80] sm:$0xff]
      %v5141 = vld [vmem:[#allocation4 + $0x88] sm:$0x3]
      %v5142 = vld [vmem:[#allocation4 + $0x90] sm:$0xff]
      %v5143 = vld [vmem:[#allocation4 + $0x98] sm:$0xff]
      %v5144 = vld [vmem:[#allocation4 + $0xa0] sm:$0x3]
      %v5145 = vld [vmem:[#allocation4 + $0xa8] sm:$0xff]
      %v5146 = vld [vmem:[#allocation4 + $0xb0] sm:$0xff]
      %v5147 = vld [vmem:[#allocation4 + $0xb8] sm:$0x3]
      %v5148 = vld [vmem:[#allocation4 + $0xc0] sm:$0xff]
      %v5149 = vld [vmem:[#allocation4 + $0xc8] sm:$0xff]
      %v5150 = vld [vmem:[#allocation4 + $0xd0] sm:$0x3]
      %v5151 = vld [vmem:[#allocation4 + $0xd8] sm:$0xff]
      %v5152 = vld [vmem:[#allocation4 + $0xe0] sm:$0xff]
      %v5153 = vld [vmem:[#allocation4 + $0xe8] sm:$0x3]
      %v5154 = vld [vmem:[#allocation4 + $0xf0] sm:$0xff]
      %v5155 = vld [vmem:[#allocation4 + $0xf8] sm:$0xff]
      %v5156 = vld [vmem:[#allocation4 + $0x100] sm:$0x3]
      %v5157 = vld [vmem:[#allocation4 + $0x108] sm:$0xff]
      %v5158 = vld [vmem:[#allocation4 + $0x110] sm:$0xff]
      %v5159 = vld [vmem:[#allocation4 + $0x118] sm:$0x3]
      %v5160 = vld [vmem:[#allocation4 + $0x120] sm:$0xff]
      %v5161 = vld [vmem:[#allocation4 + $0x128] sm:$0xff]
      %v5162 = vld [vmem:[#allocation4 + $0x130] sm:$0x3]
      %v5163 = vld [vmem:[#allocation4 + $0x138] sm:$0xff]
      %v5164 = vld [vmem:[#allocation4 + $0x140] sm:$0xff]
      %v5165 = vld [vmem:[#allocation4 + $0x148] sm:$0x3]
      %v5166 = vld [vmem:[#allocation4 + $0x150] sm:$0xff]
      %v5167 = vld [vmem:[#allocation4 + $0x158] sm:$0xff]
      %v5168 = vld [vmem:[#allocation4 + $0x160] sm:$0x3]
      %v5169 = vld [vmem:[#allocation4 + $0x168] sm:$0xff]
      %v5170 = vld [vmem:[#allocation4 + $0x170] sm:$0xff]
      %v5171 = vld [vmem:[#allocation4 + $0x178] sm:$0x3]
      %v5172 = vld [vmem:[#allocation4 + $0x180] sm:$0xff]
      %v5173 = vld [vmem:[#allocation4 + $0x188] sm:$0xff]
      %v5174 = vld [vmem:[#allocation4 + $0x190] sm:$0x3]
      %v5175 = vld [vmem:[#allocation4 + $0x198] sm:$0xff]
      %v5176 = vld [vmem:[#allocation4 + $0x1a0] sm:$0xff]
      %v5177 = vld [vmem:[#allocation4 + $0x1a8] sm:$0x3]
      %v5226 = vrot.slane %v5124, 1
      %v5227 = vrot.slane %v5125, 1
      %v5228 = vsel %vm2042, %v5226, %v5227
      %v5229 = vrot.slane %v5126, 1
      %v5230 = vsel %vm2042, %v5227, %v5229
      %v5231 = vrot.slane %v5127, 1
      %v5232 = vrot.slane %v5128, 1
      %v5233 = vsel %vm2042, %v5231, %v5232
      %v5234 = vrot.slane %v5129, 1
      %v5235 = vsel %vm2042, %v5232, %v5234
      %v5236 = vrot.slane %v5130, 1
      %v5237 = vrot.slane %v5131, 1
      %v5238 = vsel %vm2042, %v5236, %v5237
      %v5239 = vrot.slane %v5132, 1
      %v5240 = vsel %vm2042, %v5237, %v5239
      %v5241 = vrot.slane %v5133, 1
      %v5242 = vrot.slane %v5134, 1
      %v5243 = vsel %vm2042, %v5241, %v5242
      %v5244 = vrot.slane %v5135, 1
      %v5245 = vsel %vm2042, %v5242, %v5244
      %v5246 = vrot.slane %v5136, 1
      %v5247 = vrot.slane %v5137, 1
      %v5248 = vsel %vm2042, %v5246, %v5247
      %v5249 = vrot.slane %v5138, 1
      %v5250 = vsel %vm2042, %v5247, %v5249
      %v5251 = vrot.slane %v5139, 1
      %v5252 = vrot.slane %v5140, 1
      %v5253 = vsel %vm2042, %v5251, %v5252
      %v5254 = vrot.slane %v5141, 1
      %v5255 = vsel %vm2042, %v5252, %v5254
      %v5256 = vrot.slane %v5142, 1
      %v5257 = vrot.slane %v5143, 1
      %v5258 = vsel %vm2042, %v5256, %v5257
      %v5259 = vrot.slane %v5144, 1
      %v5260 = vsel %vm2042, %v5257, %v5259
      %v5261 = vrot.slane %v5145, 1
      %v5262 = vrot.slane %v5146, 1
      %v5263 = vsel %vm2042, %v5261, %v5262
      %v5264 = vrot.slane %v5147, 1
      %v5265 = vsel %vm2042, %v5262, %v5264
      %v5266 = vrot.slane %v5148, 1
      %v5267 = vrot.slane %v5149, 1
      %v5268 = vsel %vm2042, %v5266, %v5267
      %v5269 = vrot.slane %v5150, 1
      %v5270 = vsel %vm2042, %v5267, %v5269
      %v5271 = vrot.slane %v5151, 1
      %v5272 = vrot.slane %v5152, 1
      %v5273 = vsel %vm2042, %v5271, %v5272
      %v5274 = vrot.slane %v5153, 1
      %v5275 = vsel %vm2042, %v5272, %v5274
      %v5276 = vrot.slane %v5154, 1
      %v5277 = vrot.slane %v5155, 1
      %v5278 = vsel %vm2042, %v5276, %v5277
      %v5279 = vrot.slane %v5156, 1
      %v5280 = vsel %vm2042, %v5277, %v5279
      %v5281 = vrot.slane %v5157, 1
      %v5282 = vrot.slane %v5158, 1
      %v5283 = vsel %vm2042, %v5281, %v5282
      %v5284 = vrot.slane %v5159, 1
      %v5285 = vsel %vm2042, %v5282, %v5284
      %v5286 = vrot.slane %v5160, 1
      %v5287 = vrot.slane %v5161, 1
      %v5288 = vsel %vm2042, %v5286, %v5287
      %v5289 = vrot.slane %v5162, 1
      %v5290 = vsel %vm2042, %v5287, %v5289
      %v5291 = vrot.slane %v5163, 1
      %v5292 = vrot.slane %v5164, 1
      %v5293 = vsel %vm2042, %v5291, %v5292
      %v5294 = vrot.slane %v5165, 1
      %v5295 = vsel %vm2042, %v5292, %v5294
      %v5296 = vrot.slane %v5166, 1
      %v5297 = vrot.slane %v5167, 1
      %v5298 = vsel %vm2042, %v5296, %v5297
      %v5299 = vrot.slane %v5168, 1
      %v5300 = vsel %vm2042, %v5297, %v5299
      %v5301 = vrot.slane %v5169, 1
      %v5302 = vrot.slane %v5170, 1
      %v5303 = vsel %vm2042, %v5301, %v5302
      %v5304 = vrot.slane %v5171, 1
      %v5305 = vsel %vm2042, %v5302, %v5304
      %v5306 = vrot.slane %v5124, 2
      %v5307 = vrot.slane %v5125, 2
      %v5308 = vsel %vm2251, %v5306, %v5307
      %v5309 = vrot.slane %v5126, 2
      %v5310 = vsel %vm2251, %v5307, %v5309
      %v5311 = vrot.slane %v5127, 2
      %v5312 = vrot.slane %v5128, 2
      %v5313 = vsel %vm2251, %v5311, %v5312
      %v5314 = vrot.slane %v5129, 2
      %v5315 = vsel %vm2251, %v5312, %v5314
      %v5316 = vrot.slane %v5130, 2
      %v5317 = vrot.slane %v5131, 2
      %v5318 = vsel %vm2251, %v5316, %v5317
      %v5319 = vrot.slane %v5132, 2
      %v5320 = vsel %vm2251, %v5317, %v5319
      %v5321 = vrot.slane %v5133, 2
      %v5322 = vrot.slane %v5134, 2
      %v5323 = vsel %vm2251, %v5321, %v5322
      %v5324 = vrot.slane %v5135, 2
      %v5325 = vsel %vm2251, %v5322, %v5324
      %v5326 = vrot.slane %v5136, 2
      %v5327 = vrot.slane %v5137, 2
      %v5328 = vsel %vm2251, %v5326, %v5327
      %v5329 = vrot.slane %v5138, 2
      %v5330 = vsel %vm2251, %v5327, %v5329
      %v5331 = vrot.slane %v5139, 2
      %v5332 = vrot.slane %v5140, 2
      %v5333 = vsel %vm2251, %v5331, %v5332
      %v5334 = vrot.slane %v5141, 2
      %v5335 = vsel %vm2251, %v5332, %v5334
      %v5336 = vrot.slane %v5142, 2
      %v5337 = vrot.slane %v5143, 2
      %v5338 = vsel %vm2251, %v5336, %v5337
      %v5339 = vrot.slane %v5144, 2
      %v5340 = vsel %vm2251, %v5337, %v5339
      %v5341 = vrot.slane %v5145, 2
      %v5342 = vrot.slane %v5146, 2
      %v5343 = vsel %vm2251, %v5341, %v5342
      %v5344 = vrot.slane %v5147, 2
      %v5345 = vsel %vm2251, %v5342, %v5344
      %v5346 = vrot.slane %v5148, 2
      %v5347 = vrot.slane %v5149, 2
      %v5348 = vsel %vm2251, %v5346, %v5347
      %v5349 = vrot.slane %v5150, 2
      %v5350 = vsel %vm2251, %v5347, %v5349
      %v5351 = vrot.slane %v5151, 2
      %v5352 = vrot.slane %v5152, 2
      %v5353 = vsel %vm2251, %v5351, %v5352
      %v5354 = vrot.slane %v5153, 2
      %v5355 = vsel %vm2251, %v5352, %v5354
      %v5356 = vrot.slane %v5154, 2
      %v5357 = vrot.slane %v5155, 2
      %v5358 = vsel %vm2251, %v5356, %v5357
      %v5359 = vrot.slane %v5156, 2
      %v5360 = vsel %vm2251, %v5357, %v5359
      %v5361 = vrot.slane %v5157, 2
      %v5362 = vrot.slane %v5158, 2
      %v5363 = vsel %vm2251, %v5361, %v5362
      %v5364 = vrot.slane %v5159, 2
      %v5365 = vsel %vm2251, %v5362, %v5364
      %v5366 = vrot.slane %v5160, 2
      %v5367 = vrot.slane %v5161, 2
      %v5368 = vsel %vm2251, %v5366, %v5367
      %v5369 = vrot.slane %v5162, 2
      %v5370 = vsel %vm2251, %v5367, %v5369
      %v5371 = vrot.slane %v5163, 2
      %v5372 = vrot.slane %v5164, 2
      %v5373 = vsel %vm2251, %v5371, %v5372
      %v5374 = vrot.slane %v5165, 2
      %v5375 = vsel %vm2251, %v5372, %v5374
      %v5376 = vrot.slane %v5166, 2
      %v5377 = vrot.slane %v5167, 2
      %v5378 = vsel %vm2251, %v5376, %v5377
      %v5379 = vrot.slane %v5168, 2
      %v5380 = vsel %vm2251, %v5377, %v5379
      %v5381 = vrot.slane %v5169, 2
      %v5382 = vrot.slane %v5170, 2
      %v5383 = vsel %vm2251, %v5381, %v5382
      %v5384 = vrot.slane %v5171, 2
      %v5385 = vsel %vm2251, %v5382, %v5384
      %v5389 = vrot.slane %v5172, 1
      %v5390 = vrot.slane %v5173, 1
      %v5391 = vsel %vm2042, %v5389, %v5390
      %v5392 = vrot.slane %v5174, 1
      %v5393 = vsel %vm2042, %v5390, %v5392
      %v5394 = vrot.slane %v5172, 2
      %v5395 = vrot.slane %v5173, 2
      %v5396 = vsel %vm2251, %v5394, %v5395
      %v5397 = vrot.slane %v5174, 2
      %v5398 = vsel %vm2251, %v5395, %v5397
      %v5402 = vrot.slane %v5175, 1
      %v5403 = vrot.slane %v5176, 1
      %v5404 = vsel %vm2042, %v5402, %v5403
      %v5405 = vrot.slane %v5177, 1
      %v5406 = vsel %vm2042, %v5403, %v5405
      %v5407 = vrot.slane %v5175, 2
      %v5408 = vrot.slane %v5176, 2
      %v5409 = vsel %vm2251, %v5407, %v5408
      %v5410 = vrot.slane %v5177, 2
      %v5411 = vsel %vm2251, %v5408, %v5410
      %5412 = vrot.lane.b32.xlu0 %v5228, 4
      %v5413 = vpop.permute.xlu0 %5412
      %5414 = vrot.lane.b32.xlu0 %v5230, 4
      %v5415 = vpop.permute.xlu0 %5414
      %5416 = vrot.lane.b32.xlu0 %v5233, 4
      %v5417 = vpop.permute.xlu0 %5416
      %5418 = vrot.lane.b32.xlu0 %v5235, 4
      %v5419 = vpop.permute.xlu0 %5418
      %5420 = vrot.lane.b32.xlu0 %v5238, 4
      %v5421 = vpop.permute.xlu0 %5420
      %5422 = vrot.lane.b32.xlu0 %v5240, 4
      %v5423 = vpop.permute.xlu0 %5422
      %5424 = vrot.lane.b32.xlu0 %v5243, 4
      %v5425 = vpop.permute.xlu0 %5424
      %5426 = vrot.lane.b32.xlu0 %v5245, 4
      %v5427 = vpop.permute.xlu0 %5426
      %5428 = vrot.lane.b32.xlu0 %v5248, 4
      %v5429 = vpop.permute.xlu0 %5428
      %5430 = vrot.lane.b32.xlu0 %v5250, 4
      %v5431 = vpop.permute.xlu0 %5430
      %5432 = vrot.lane.b32.xlu0 %v5253, 4
      %v5433 = vpop.permute.xlu0 %5432
      %5434 = vrot.lane.b32.xlu0 %v5255, 4
      %v5435 = vpop.permute.xlu0 %5434
      %5436 = vrot.lane.b32.xlu0 %v5258, 4
      %v5437 = vpop.permute.xlu0 %5436
      %5438 = vrot.lane.b32.xlu0 %v5260, 4
      %v5439 = vpop.permute.xlu0 %5438
      %5440 = vrot.lane.b32.xlu0 %v5263, 4
      %v5441 = vpop.permute.xlu0 %5440
      %5442 = vrot.lane.b32.xlu0 %v5265, 4
      %v5443 = vpop.permute.xlu0 %5442
      %5444 = vrot.lane.b32.xlu0 %v5268, 4
      %v5445 = vpop.permute.xlu0 %5444
      %5446 = vrot.lane.b32.xlu0 %v5270, 4
      %v5447 = vpop.permute.xlu0 %5446
      %5448 = vrot.lane.b32.xlu0 %v5273, 4
      %v5449 = vpop.permute.xlu0 %5448
      %5450 = vrot.lane.b32.xlu0 %v5275, 4
      %v5451 = vpop.permute.xlu0 %5450
      %5452 = vrot.lane.b32.xlu0 %v5278, 4
      %v5453 = vpop.permute.xlu0 %5452
      %5454 = vrot.lane.b32.xlu0 %v5280, 4
      %v5455 = vpop.permute.xlu0 %5454
      %5456 = vrot.lane.b32.xlu0 %v5283, 4
      %v5457 = vpop.permute.xlu0 %5456
      %5458 = vrot.lane.b32.xlu0 %v5285, 4
      %v5459 = vpop.permute.xlu0 %5458
      %5460 = vrot.lane.b32.xlu0 %v5288, 4
      %v5461 = vpop.permute.xlu0 %5460
      %5462 = vrot.lane.b32.xlu0 %v5290, 4
      %v5463 = vpop.permute.xlu0 %5462
      %5464 = vrot.lane.b32.xlu0 %v5293, 4
      %v5465 = vpop.permute.xlu0 %5464
      %5466 = vrot.lane.b32.xlu0 %v5295, 4
      %v5467 = vpop.permute.xlu0 %5466
      %5468 = vrot.lane.b32.xlu0 %v5298, 4
      %v5469 = vpop.permute.xlu0 %5468
      %5470 = vrot.lane.b32.xlu0 %v5300, 4
      %v5471 = vpop.permute.xlu0 %5470
      %5472 = vrot.lane.b32.xlu0 %v5303, 4
      %v5473 = vpop.permute.xlu0 %5472
      %5474 = vrot.lane.b32.xlu0 %v5305, 4
      %v5475 = vpop.permute.xlu0 %5474
      %5508 = vrot.lane.b32.xlu0 %v5308, 8
      %v5509 = vpop.permute.xlu0 %5508
      %5510 = vrot.lane.b32.xlu0 %v5310, 8
      %v5511 = vpop.permute.xlu0 %5510
      %5512 = vrot.lane.b32.xlu0 %v5313, 8
      %v5513 = vpop.permute.xlu0 %5512
      %5514 = vrot.lane.b32.xlu0 %v5315, 8
      %v5515 = vpop.permute.xlu0 %5514
      %5516 = vrot.lane.b32.xlu0 %v5318, 8
      %v5517 = vpop.permute.xlu0 %5516
      %5518 = vrot.lane.b32.xlu0 %v5320, 8
      %v5519 = vpop.permute.xlu0 %5518
      %5520 = vrot.lane.b32.xlu0 %v5323, 8
      %v5521 = vpop.permute.xlu0 %5520
      %5522 = vrot.lane.b32.xlu0 %v5325, 8
      %v5523 = vpop.permute.xlu0 %5522
      %5524 = vrot.lane.b32.xlu0 %v5328, 8
      %v5525 = vpop.permute.xlu0 %5524
      %5526 = vrot.lane.b32.xlu0 %v5330, 8
      %v5527 = vpop.permute.xlu0 %5526
      %5528 = vrot.lane.b32.xlu0 %v5333, 8
      %v5529 = vpop.permute.xlu0 %5528
      %5530 = vrot.lane.b32.xlu0 %v5335, 8
      %v5531 = vpop.permute.xlu0 %5530
      %5532 = vrot.lane.b32.xlu0 %v5338, 8
      %v5533 = vpop.permute.xlu0 %5532
      %5534 = vrot.lane.b32.xlu0 %v5340, 8
      %v5535 = vpop.permute.xlu0 %5534
      %5536 = vrot.lane.b32.xlu0 %v5343, 8
      %v5537 = vpop.permute.xlu0 %5536
      %5538 = vrot.lane.b32.xlu0 %v5345, 8
      %v5539 = vpop.permute.xlu0 %5538
      %5540 = vrot.lane.b32.xlu0 %v5348, 8
      %v5541 = vpop.permute.xlu0 %5540
      %5542 = vrot.lane.b32.xlu0 %v5350, 8
      %v5543 = vpop.permute.xlu0 %5542
      %5544 = vrot.lane.b32.xlu0 %v5353, 8
      %v5545 = vpop.permute.xlu0 %5544
      %5546 = vrot.lane.b32.xlu0 %v5355, 8
      %v5547 = vpop.permute.xlu0 %5546
      %5548 = vrot.lane.b32.xlu0 %v5358, 8
      %v5549 = vpop.permute.xlu0 %5548
      %5550 = vrot.lane.b32.xlu0 %v5360, 8
      %v5551 = vpop.permute.xlu0 %5550
      %5552 = vrot.lane.b32.xlu0 %v5363, 8
      %v5553 = vpop.permute.xlu0 %5552
      %5554 = vrot.lane.b32.xlu0 %v5365, 8
      %v5555 = vpop.permute.xlu0 %5554
      %5556 = vrot.lane.b32.xlu0 %v5368, 8
      %v5557 = vpop.permute.xlu0 %5556
      %5558 = vrot.lane.b32.xlu0 %v5370, 8
      %v5559 = vpop.permute.xlu0 %5558
      %5560 = vrot.lane.b32.xlu0 %v5373, 8
      %v5561 = vpop.permute.xlu0 %5560
      %5562 = vrot.lane.b32.xlu0 %v5375, 8
      %v5563 = vpop.permute.xlu0 %5562
      %5564 = vrot.lane.b32.xlu0 %v5378, 8
      %v5565 = vpop.permute.xlu0 %5564
      %5566 = vrot.lane.b32.xlu0 %v5380, 8
      %v5567 = vpop.permute.xlu0 %5566
      %5568 = vrot.lane.b32.xlu0 %v5383, 8
      %v5569 = vpop.permute.xlu0 %5568
      %5570 = vrot.lane.b32.xlu0 %v5385, 8
      %v5571 = vpop.permute.xlu0 %5570
      %5604 = vrot.lane.b32.xlu0 %v5127, 12
      %v5605 = vpop.permute.xlu0 %5604
      %5606 = vrot.lane.b32.xlu0 %v5128, 12
      %v5607 = vpop.permute.xlu0 %5606
      %5608 = vrot.lane.b32.xlu0 %v5130, 12
      %v5609 = vpop.permute.xlu0 %5608
      %5610 = vrot.lane.b32.xlu0 %v5131, 12
      %v5611 = vpop.permute.xlu0 %5610
      %5612 = vrot.lane.b32.xlu0 %v5133, 12
      %v5613 = vpop.permute.xlu0 %5612
      %5614 = vrot.lane.b32.xlu0 %v5134, 12
      %v5615 = vpop.permute.xlu0 %5614
      %5616 = vrot.lane.b32.xlu0 %v5136, 12
      %v5617 = vpop.permute.xlu0 %5616
      %5618 = vrot.lane.b32.xlu0 %v5137, 12
      %v5619 = vpop.permute.xlu0 %5618
      %5620 = vrot.lane.b32.xlu0 %v5139, 12
      %v5621 = vpop.permute.xlu0 %5620
      %5622 = vrot.lane.b32.xlu0 %v5140, 12
      %v5623 = vpop.permute.xlu0 %5622
      %5624 = vrot.lane.b32.xlu0 %v5142, 12
      %v5625 = vpop.permute.xlu0 %5624
      %5626 = vrot.lane.b32.xlu0 %v5143, 12
      %v5627 = vpop.permute.xlu0 %5626
      %5628 = vrot.lane.b32.xlu0 %v5145, 12
      %v5629 = vpop.permute.xlu0 %5628
      %5630 = vrot.lane.b32.xlu0 %v5146, 12
      %v5631 = vpop.permute.xlu0 %5630
      %5632 = vrot.lane.b32.xlu0 %v5148, 12
      %v5633 = vpop.permute.xlu0 %5632
      %5634 = vrot.lane.b32.xlu0 %v5149, 12
      %v5635 = vpop.permute.xlu0 %5634
      %5636 = vrot.lane.b32.xlu0 %v5151, 12
      %v5637 = vpop.permute.xlu0 %5636
      %5638 = vrot.lane.b32.xlu0 %v5152, 12
      %v5639 = vpop.permute.xlu0 %5638
      %5640 = vrot.lane.b32.xlu0 %v5154, 12
      %v5641 = vpop.permute.xlu0 %5640
      %5642 = vrot.lane.b32.xlu0 %v5155, 12
      %v5643 = vpop.permute.xlu0 %5642
      %5644 = vrot.lane.b32.xlu0 %v5157, 12
      %v5645 = vpop.permute.xlu0 %5644
      %5646 = vrot.lane.b32.xlu0 %v5158, 12
      %v5647 = vpop.permute.xlu0 %5646
      %5648 = vrot.lane.b32.xlu0 %v5160, 12
      %v5649 = vpop.permute.xlu0 %5648
      %5650 = vrot.lane.b32.xlu0 %v5161, 12
      %v5651 = vpop.permute.xlu0 %5650
      %5652 = vrot.lane.b32.xlu0 %v5163, 12
      %v5653 = vpop.permute.xlu0 %5652
      %5654 = vrot.lane.b32.xlu0 %v5164, 12
      %v5655 = vpop.permute.xlu0 %5654
      %5656 = vrot.lane.b32.xlu0 %v5166, 12
      %v5657 = vpop.permute.xlu0 %5656
      %5658 = vrot.lane.b32.xlu0 %v5167, 12
      %v5659 = vpop.permute.xlu0 %5658
      %5660 = vrot.lane.b32.xlu0 %v5169, 12
      %v5661 = vpop.permute.xlu0 %5660
      %5662 = vrot.lane.b32.xlu0 %v5170, 12
      %v5663 = vpop.permute.xlu0 %5662
      %5664 = vrot.lane.b32.xlu0 %v5172, 12
      %v5665 = vpop.permute.xlu0 %5664
      %5666 = vrot.lane.b32.xlu0 %v5173, 12
      %v5667 = vpop.permute.xlu0 %5666
      %5700 = vrot.lane.b32.xlu0 %v5233, 16
      %v5701 = vpop.permute.xlu0 %5700
      %5702 = vrot.lane.b32.xlu0 %v5235, 16
      %v5703 = vpop.permute.xlu0 %5702
      %5704 = vrot.lane.b32.xlu0 %v5238, 16
      %v5705 = vpop.permute.xlu0 %5704
      %5706 = vrot.lane.b32.xlu0 %v5240, 16
      %v5707 = vpop.permute.xlu0 %5706
      %5708 = vrot.lane.b32.xlu0 %v5243, 16
      %v5709 = vpop.permute.xlu0 %5708
      %5710 = vrot.lane.b32.xlu0 %v5245, 16
      %v5711 = vpop.permute.xlu0 %5710
      %5712 = vrot.lane.b32.xlu0 %v5248, 16
      %v5713 = vpop.permute.xlu0 %5712
      %5714 = vrot.lane.b32.xlu0 %v5250, 16
      %v5715 = vpop.permute.xlu0 %5714
      %5716 = vrot.lane.b32.xlu0 %v5253, 16
      %v5717 = vpop.permute.xlu0 %5716
      %5718 = vrot.lane.b32.xlu0 %v5255, 16
      %v5719 = vpop.permute.xlu0 %5718
      %5720 = vrot.lane.b32.xlu0 %v5258, 16
      %v5721 = vpop.permute.xlu0 %5720
      %5722 = vrot.lane.b32.xlu0 %v5260, 16
      %v5723 = vpop.permute.xlu0 %5722
      %5724 = vrot.lane.b32.xlu0 %v5263, 16
      %v5725 = vpop.permute.xlu0 %5724
      %5726 = vrot.lane.b32.xlu0 %v5265, 16
      %v5727 = vpop.permute.xlu0 %5726
      %5728 = vrot.lane.b32.xlu0 %v5268, 16
      %v5729 = vpop.permute.xlu0 %5728
      %5730 = vrot.lane.b32.xlu0 %v5270, 16
      %v5731 = vpop.permute.xlu0 %5730
      %5732 = vrot.lane.b32.xlu0 %v5273, 16
      %v5733 = vpop.permute.xlu0 %5732
      %5734 = vrot.lane.b32.xlu0 %v5275, 16
      %v5735 = vpop.permute.xlu0 %5734
      %5736 = vrot.lane.b32.xlu0 %v5278, 16
      %v5737 = vpop.permute.xlu0 %5736
      %5738 = vrot.lane.b32.xlu0 %v5280, 16
      %v5739 = vpop.permute.xlu0 %5738
      %5740 = vrot.lane.b32.xlu0 %v5283, 16
      %v5741 = vpop.permute.xlu0 %5740
      %5742 = vrot.lane.b32.xlu0 %v5285, 16
      %v5743 = vpop.permute.xlu0 %5742
      %5744 = vrot.lane.b32.xlu0 %v5288, 16
      %v5745 = vpop.permute.xlu0 %5744
      %5746 = vrot.lane.b32.xlu0 %v5290, 16
      %v5747 = vpop.permute.xlu0 %5746
      %5748 = vrot.lane.b32.xlu0 %v5293, 16
      %v5749 = vpop.permute.xlu0 %5748
      %5750 = vrot.lane.b32.xlu0 %v5295, 16
      %v5751 = vpop.permute.xlu0 %5750
      %5752 = vrot.lane.b32.xlu0 %v5298, 16
      %v5753 = vpop.permute.xlu0 %5752
      %5754 = vrot.lane.b32.xlu0 %v5300, 16
      %v5755 = vpop.permute.xlu0 %5754
      %5756 = vrot.lane.b32.xlu0 %v5303, 16
      %v5757 = vpop.permute.xlu0 %5756
      %5758 = vrot.lane.b32.xlu0 %v5305, 16
      %v5759 = vpop.permute.xlu0 %5758
      %5760 = vrot.lane.b32.xlu0 %v5391, 16
      %v5761 = vpop.permute.xlu0 %5760
      %5762 = vrot.lane.b32.xlu0 %v5393, 16
      %v5763 = vpop.permute.xlu0 %5762
      %5796 = vrot.lane.b32.xlu0 %v5313, 20
      %v5797 = vpop.permute.xlu0 %5796
      %5798 = vrot.lane.b32.xlu0 %v5315, 20
      %v5799 = vpop.permute.xlu0 %5798
      %5800 = vrot.lane.b32.xlu0 %v5318, 20
      %v5801 = vpop.permute.xlu0 %5800
      %5802 = vrot.lane.b32.xlu0 %v5320, 20
      %v5803 = vpop.permute.xlu0 %5802
      %5804 = vrot.lane.b32.xlu0 %v5323, 20
      %v5805 = vpop.permute.xlu0 %5804
      %5806 = vrot.lane.b32.xlu0 %v5325, 20
      %v5807 = vpop.permute.xlu0 %5806
      %5808 = vrot.lane.b32.xlu0 %v5328, 20
      %v5809 = vpop.permute.xlu0 %5808
      %5810 = vrot.lane.b32.xlu0 %v5330, 20
      %v5811 = vpop.permute.xlu0 %5810
      %5812 = vrot.lane.b32.xlu0 %v5333, 20
      %v5813 = vpop.permute.xlu0 %5812
      %5814 = vrot.lane.b32.xlu0 %v5335, 20
      %v5815 = vpop.permute.xlu0 %5814
      %5816 = vrot.lane.b32.xlu0 %v5338, 20
      %v5817 = vpop.permute.xlu0 %5816
      %5818 = vrot.lane.b32.xlu0 %v5340, 20
      %v5819 = vpop.permute.xlu0 %5818
      %5820 = vrot.lane.b32.xlu0 %v5343, 20
      %v5821 = vpop.permute.xlu0 %5820
      %5822 = vrot.lane.b32.xlu0 %v5345, 20
      %v5823 = vpop.permute.xlu0 %5822
      %5824 = vrot.lane.b32.xlu0 %v5348, 20
      %v5825 = vpop.permute.xlu0 %5824
      %5826 = vrot.lane.b32.xlu0 %v5350, 20
      %v5827 = vpop.permute.xlu0 %5826
      %5828 = vrot.lane.b32.xlu0 %v5353, 20
      %v5829 = vpop.permute.xlu0 %5828
      %5830 = vrot.lane.b32.xlu0 %v5355, 20
      %v5831 = vpop.permute.xlu0 %5830
      %5832 = vrot.lane.b32.xlu0 %v5358, 20
      %v5833 = vpop.permute.xlu0 %5832
      %5834 = vrot.lane.b32.xlu0 %v5360, 20
      %v5835 = vpop.permute.xlu0 %5834
      %5836 = vrot.lane.b32.xlu0 %v5363, 20
      %v5837 = vpop.permute.xlu0 %5836
      %5838 = vrot.lane.b32.xlu0 %v5365, 20
      %v5839 = vpop.permute.xlu0 %5838
      %5840 = vrot.lane.b32.xlu0 %v5368, 20
      %v5841 = vpop.permute.xlu0 %5840
      %5842 = vrot.lane.b32.xlu0 %v5370, 20
      %v5843 = vpop.permute.xlu0 %5842
      %5844 = vrot.lane.b32.xlu0 %v5373, 20
      %v5845 = vpop.permute.xlu0 %5844
      %5846 = vrot.lane.b32.xlu0 %v5375, 20
      %v5847 = vpop.permute.xlu0 %5846
      %5848 = vrot.lane.b32.xlu0 %v5378, 20
      %v5849 = vpop.permute.xlu0 %5848
      %5850 = vrot.lane.b32.xlu0 %v5380, 20
      %v5851 = vpop.permute.xlu0 %5850
      %5852 = vrot.lane.b32.xlu0 %v5383, 20
      %v5853 = vpop.permute.xlu0 %5852
      %5854 = vrot.lane.b32.xlu0 %v5385, 20
      %v5855 = vpop.permute.xlu0 %5854
      %5856 = vrot.lane.b32.xlu0 %v5396, 20
      %v5857 = vpop.permute.xlu0 %5856
      %5858 = vrot.lane.b32.xlu0 %v5398, 20
      %v5859 = vpop.permute.xlu0 %5858
      %5892 = vrot.lane.b32.xlu0 %v5130, 24
      %v5893 = vpop.permute.xlu0 %5892
      %5894 = vrot.lane.b32.xlu0 %v5131, 24
      %v5895 = vpop.permute.xlu0 %5894
      %5896 = vrot.lane.b32.xlu0 %v5133, 24
      %v5897 = vpop.permute.xlu0 %5896
      %5898 = vrot.lane.b32.xlu0 %v5134, 24
      %v5899 = vpop.permute.xlu0 %5898
      %5900 = vrot.lane.b32.xlu0 %v5136, 24
      %v5901 = vpop.permute.xlu0 %5900
      %5902 = vrot.lane.b32.xlu0 %v5137, 24
      %v5903 = vpop.permute.xlu0 %5902
      %5904 = vrot.lane.b32.xlu0 %v5139, 24
      %v5905 = vpop.permute.xlu0 %5904
      %5906 = vrot.lane.b32.xlu0 %v5140, 24
      %v5907 = vpop.permute.xlu0 %5906
      %5908 = vrot.lane.b32.xlu0 %v5142, 24
      %v5909 = vpop.permute.xlu0 %5908
      %5910 = vrot.lane.b32.xlu0 %v5143, 24
      %v5911 = vpop.permute.xlu0 %5910
      %5912 = vrot.lane.b32.xlu0 %v5145, 24
      %v5913 = vpop.permute.xlu0 %5912
      %5914 = vrot.lane.b32.xlu0 %v5146, 24
      %v5915 = vpop.permute.xlu0 %5914
      %5916 = vrot.lane.b32.xlu0 %v5148, 24
      %v5917 = vpop.permute.xlu0 %5916
      %5918 = vrot.lane.b32.xlu0 %v5149, 24
      %v5919 = vpop.permute.xlu0 %5918
      %5920 = vrot.lane.b32.xlu0 %v5151, 24
      %v5921 = vpop.permute.xlu0 %5920
      %5922 = vrot.lane.b32.xlu0 %v5152, 24
      %v5923 = vpop.permute.xlu0 %5922
      %5924 = vrot.lane.b32.xlu0 %v5154, 24
      %v5925 = vpop.permute.xlu0 %5924
      %5926 = vrot.lane.b32.xlu0 %v5155, 24
      %v5927 = vpop.permute.xlu0 %5926
      %5928 = vrot.lane.b32.xlu0 %v5157, 24
      %v5929 = vpop.permute.xlu0 %5928
      %5930 = vrot.lane.b32.xlu0 %v5158, 24
      %v5931 = vpop.permute.xlu0 %5930
      %5932 = vrot.lane.b32.xlu0 %v5160, 24
      %v5933 = vpop.permute.xlu0 %5932
      %5934 = vrot.lane.b32.xlu0 %v5161, 24
      %v5935 = vpop.permute.xlu0 %5934
      %5936 = vrot.lane.b32.xlu0 %v5163, 24
      %v5937 = vpop.permute.xlu0 %5936
      %5938 = vrot.lane.b32.xlu0 %v5164, 24
      %v5939 = vpop.permute.xlu0 %5938
      %5940 = vrot.lane.b32.xlu0 %v5166, 24
      %v5941 = vpop.permute.xlu0 %5940
      %5942 = vrot.lane.b32.xlu0 %v5167, 24
      %v5943 = vpop.permute.xlu0 %5942
      %5944 = vrot.lane.b32.xlu0 %v5169, 24
      %v5945 = vpop.permute.xlu0 %5944
      %5946 = vrot.lane.b32.xlu0 %v5170, 24
      %v5947 = vpop.permute.xlu0 %5946
      %5948 = vrot.lane.b32.xlu0 %v5172, 24
      %v5949 = vpop.permute.xlu0 %5948
      %5950 = vrot.lane.b32.xlu0 %v5173, 24
      %v5951 = vpop.permute.xlu0 %5950
      %5952 = vrot.lane.b32.xlu0 %v5175, 24
      %v5953 = vpop.permute.xlu0 %5952
      %5954 = vrot.lane.b32.xlu0 %v5176, 24
      %v5955 = vpop.permute.xlu0 %5954
      %5988 = vrot.lane.b32.xlu0 %v5238, 28
      %v5989 = vpop.permute.xlu0 %5988
      %5990 = vrot.lane.b32.xlu0 %v5240, 28
      %v5991 = vpop.permute.xlu0 %5990
      %5992 = vrot.lane.b32.xlu0 %v5243, 28
      %v5993 = vpop.permute.xlu0 %5992
      %5994 = vrot.lane.b32.xlu0 %v5245, 28
      %v5995 = vpop.permute.xlu0 %5994
      %5996 = vrot.lane.b32.xlu0 %v5248, 28
      %v5997 = vpop.permute.xlu0 %5996
      %5998 = vrot.lane.b32.xlu0 %v5250, 28
      %v5999 = vpop.permute.xlu0 %5998
      %6000 = vrot.lane.b32.xlu0 %v5253, 28
      %v6001 = vpop.permute.xlu0 %6000
      %6002 = vrot.lane.b32.xlu0 %v5255, 28
      %v6003 = vpop.permute.xlu0 %6002
      %6004 = vrot.lane.b32.xlu0 %v5258, 28
      %v6005 = vpop.permute.xlu0 %6004
      %6006 = vrot.lane.b32.xlu0 %v5260, 28
      %v6007 = vpop.permute.xlu0 %6006
      %6008 = vrot.lane.b32.xlu0 %v5263, 28
      %v6009 = vpop.permute.xlu0 %6008
      %6010 = vrot.lane.b32.xlu0 %v5265, 28
      %v6011 = vpop.permute.xlu0 %6010
      %6012 = vrot.lane.b32.xlu0 %v5268, 28
      %v6013 = vpop.permute.xlu0 %6012
      %6014 = vrot.lane.b32.xlu0 %v5270, 28
      %v6015 = vpop.permute.xlu0 %6014
      %6016 = vrot.lane.b32.xlu0 %v5273, 28
      %v6017 = vpop.permute.xlu0 %6016
      %6018 = vrot.lane.b32.xlu0 %v5275, 28
      %v6019 = vpop.permute.xlu0 %6018
      %6020 = vrot.lane.b32.xlu0 %v5278, 28
      %v6021 = vpop.permute.xlu0 %6020
      %6022 = vrot.lane.b32.xlu0 %v5280, 28
      %v6023 = vpop.permute.xlu0 %6022
      %6024 = vrot.lane.b32.xlu0 %v5283, 28
      %v6025 = vpop.permute.xlu0 %6024
      %6026 = vrot.lane.b32.xlu0 %v5285, 28
      %v6027 = vpop.permute.xlu0 %6026
      %6028 = vrot.lane.b32.xlu0 %v5288, 28
      %v6029 = vpop.permute.xlu0 %6028
      %6030 = vrot.lane.b32.xlu0 %v5290, 28
      %v6031 = vpop.permute.xlu0 %6030
      %6032 = vrot.lane.b32.xlu0 %v5293, 28
      %v6033 = vpop.permute.xlu0 %6032
      %6034 = vrot.lane.b32.xlu0 %v5295, 28
      %v6035 = vpop.permute.xlu0 %6034
      %6036 = vrot.lane.b32.xlu0 %v5298, 28
      %v6037 = vpop.permute.xlu0 %6036
      %6038 = vrot.lane.b32.xlu0 %v5300, 28
      %v6039 = vpop.permute.xlu0 %6038
      %6040 = vrot.lane.b32.xlu0 %v5303, 28
      %v6041 = vpop.permute.xlu0 %6040
      %6042 = vrot.lane.b32.xlu0 %v5305, 28
      %v6043 = vpop.permute.xlu0 %6042
      %6044 = vrot.lane.b32.xlu0 %v5391, 28
      %v6045 = vpop.permute.xlu0 %6044
      %6046 = vrot.lane.b32.xlu0 %v5393, 28
      %v6047 = vpop.permute.xlu0 %6046
      %6048 = vrot.lane.b32.xlu0 %v5404, 28
      %v6049 = vpop.permute.xlu0 %6048
      %6050 = vrot.lane.b32.xlu0 %v5406, 28
      %v6051 = vpop.permute.xlu0 %6050
      %6084 = vrot.lane.b32.xlu0 %v5318, 32
      %v6085 = vpop.permute.xlu0 %6084
      %6086 = vrot.lane.b32.xlu0 %v5320, 32
      %v6087 = vpop.permute.xlu0 %6086
      %6088 = vrot.lane.b32.xlu0 %v5323, 32
      %v6089 = vpop.permute.xlu0 %6088
      %6090 = vrot.lane.b32.xlu0 %v5325, 32
      %v6091 = vpop.permute.xlu0 %6090
      %6092 = vrot.lane.b32.xlu0 %v5328, 32
      %v6093 = vpop.permute.xlu0 %6092
      %6094 = vrot.lane.b32.xlu0 %v5330, 32
      %v6095 = vpop.permute.xlu0 %6094
      %6096 = vrot.lane.b32.xlu0 %v5333, 32
      %v6097 = vpop.permute.xlu0 %6096
      %6098 = vrot.lane.b32.xlu0 %v5335, 32
      %v6099 = vpop.permute.xlu0 %6098
      %6100 = vrot.lane.b32.xlu0 %v5338, 32
      %v6101 = vpop.permute.xlu0 %6100
      %6102 = vrot.lane.b32.xlu0 %v5340, 32
      %v6103 = vpop.permute.xlu0 %6102
      %6104 = vrot.lane.b32.xlu0 %v5343, 32
      %v6105 = vpop.permute.xlu0 %6104
      %6106 = vrot.lane.b32.xlu0 %v5345, 32
      %v6107 = vpop.permute.xlu0 %6106
      %6108 = vrot.lane.b32.xlu0 %v5348, 32
      %v6109 = vpop.permute.xlu0 %6108
      %6110 = vrot.lane.b32.xlu0 %v5350, 32
      %v6111 = vpop.permute.xlu0 %6110
      %6112 = vrot.lane.b32.xlu0 %v5353, 32
      %v6113 = vpop.permute.xlu0 %6112
      %6114 = vrot.lane.b32.xlu0 %v5355, 32
      %v6115 = vpop.permute.xlu0 %6114
      %6116 = vrot.lane.b32.xlu0 %v5358, 32
      %v6117 = vpop.permute.xlu0 %6116
      %6118 = vrot.lane.b32.xlu0 %v5360, 32
      %v6119 = vpop.permute.xlu0 %6118
      %6120 = vrot.lane.b32.xlu0 %v5363, 32
      %v6121 = vpop.permute.xlu0 %6120
      %6122 = vrot.lane.b32.xlu0 %v5365, 32
      %v6123 = vpop.permute.xlu0 %6122
      %6124 = vrot.lane.b32.xlu0 %v5368, 32
      %v6125 = vpop.permute.xlu0 %6124
      %6126 = vrot.lane.b32.xlu0 %v5370, 32
      %v6127 = vpop.permute.xlu0 %6126
      %6128 = vrot.lane.b32.xlu0 %v5373, 32
      %v6129 = vpop.permute.xlu0 %6128
      %6130 = vrot.lane.b32.xlu0 %v5375, 32
      %v6131 = vpop.permute.xlu0 %6130
      %6132 = vrot.lane.b32.xlu0 %v5378, 32
      %v6133 = vpop.permute.xlu0 %6132
      %6134 = vrot.lane.b32.xlu0 %v5380, 32
      %v6135 = vpop.permute.xlu0 %6134
      %6136 = vrot.lane.b32.xlu0 %v5383, 32
      %v6137 = vpop.permute.xlu0 %6136
      %6138 = vrot.lane.b32.xlu0 %v5385, 32
      %v6139 = vpop.permute.xlu0 %6138
      %6140 = vrot.lane.b32.xlu0 %v5396, 32
      %v6141 = vpop.permute.xlu0 %6140
      %6142 = vrot.lane.b32.xlu0 %v5398, 32
      %v6143 = vpop.permute.xlu0 %6142
      %6144 = vrot.lane.b32.xlu0 %v5409, 32
      %v6145 = vpop.permute.xlu0 %6144
      %6146 = vrot.lane.b32.xlu0 %v5411, 32
      %v6147 = vpop.permute.xlu0 %6146
      %v6180 = vsel %vm1678, %v5124, %v5413
      %v6181 = vsel %vm1678, %v5125, %v5415
      %v6182 = vsel %vm1678, %v5127, %v5417
      %v6183 = vsel %vm1678, %v5128, %v5419
      %v6184 = vsel %vm1678, %v5130, %v5421
      %v6185 = vsel %vm1678, %v5131, %v5423
      %v6186 = vsel %vm1678, %v5133, %v5425
      %v6187 = vsel %vm1678, %v5134, %v5427
      %v6188 = vsel %vm1678, %v5136, %v5429
      %v6189 = vsel %vm1678, %v5137, %v5431
      %v6190 = vsel %vm1678, %v5139, %v5433
      %v6191 = vsel %vm1678, %v5140, %v5435
      %v6192 = vsel %vm1678, %v5142, %v5437
      %v6193 = vsel %vm1678, %v5143, %v5439
      %v6194 = vsel %vm1678, %v5145, %v5441
      %v6195 = vsel %vm1678, %v5146, %v5443
      %v6196 = vsel %vm1678, %v5148, %v5445
      %v6197 = vsel %vm1678, %v5149, %v5447
      %v6198 = vsel %vm1678, %v5151, %v5449
      %v6199 = vsel %vm1678, %v5152, %v5451
      %v6200 = vsel %vm1678, %v5154, %v5453
      %v6201 = vsel %vm1678, %v5155, %v5455
      %v6202 = vsel %vm1678, %v5157, %v5457
      %v6203 = vsel %vm1678, %v5158, %v5459
      %v6204 = vsel %vm1678, %v5160, %v5461
      %v6205 = vsel %vm1678, %v5161, %v5463
      %v6206 = vsel %vm1678, %v5163, %v5465
      %v6207 = vsel %vm1678, %v5164, %v5467
      %v6208 = vsel %vm1678, %v5166, %v5469
      %v6209 = vsel %vm1678, %v5167, %v5471
      %v6210 = vsel %vm1678, %v5169, %v5473
      %v6211 = vsel %vm1678, %v5170, %v5475
      %v6212 = vsel %vm335, %v6180, %v5509
      %v6213 = vsel %vm335, %v6181, %v5511
      %v6214 = vsel %vm335, %v6182, %v5513
      %v6215 = vsel %vm335, %v6183, %v5515
      %v6216 = vsel %vm335, %v6184, %v5517
      %v6217 = vsel %vm335, %v6185, %v5519
      %v6218 = vsel %vm335, %v6186, %v5521
      %v6219 = vsel %vm335, %v6187, %v5523
      %v6220 = vsel %vm335, %v6188, %v5525
      %v6221 = vsel %vm335, %v6189, %v5527
      %v6222 = vsel %vm335, %v6190, %v5529
      %v6223 = vsel %vm335, %v6191, %v5531
      %v6224 = vsel %vm335, %v6192, %v5533
      %v6225 = vsel %vm335, %v6193, %v5535
      %v6226 = vsel %vm335, %v6194, %v5537
      %v6227 = vsel %vm335, %v6195, %v5539
      %v6228 = vsel %vm335, %v6196, %v5541
      %v6229 = vsel %vm335, %v6197, %v5543
      %v6230 = vsel %vm335, %v6198, %v5545
      %v6231 = vsel %vm335, %v6199, %v5547
      %v6232 = vsel %vm335, %v6200, %v5549
      %v6233 = vsel %vm335, %v6201, %v5551
      %v6234 = vsel %vm335, %v6202, %v5553
      %v6235 = vsel %vm335, %v6203, %v5555
      %v6236 = vsel %vm335, %v6204, %v5557
      %v6237 = vsel %vm335, %v6205, %v5559
      %v6238 = vsel %vm335, %v6206, %v5561
      %v6239 = vsel %vm335, %v6207, %v5563
      %v6240 = vsel %vm335, %v6208, %v5565
      %v6241 = vsel %vm335, %v6209, %v5567
      %v6242 = vsel %vm335, %v6210, %v5569
      %v6243 = vsel %vm335, %v6211, %v5571
      %v6244 = vsel %vm4000, %v6212, %v5605
      %v6245 = vsel %vm4000, %v6213, %v5607
      %v6246 = vsel %vm4000, %v6214, %v5609
      %v6247 = vsel %vm4000, %v6215, %v5611
      %v6248 = vsel %vm4000, %v6216, %v5613
      %v6249 = vsel %vm4000, %v6217, %v5615
      %v6250 = vsel %vm4000, %v6218, %v5617
      %v6251 = vsel %vm4000, %v6219, %v5619
      %v6252 = vsel %vm4000, %v6220, %v5621
      %v6253 = vsel %vm4000, %v6221, %v5623
      %v6254 = vsel %vm4000, %v6222, %v5625
      %v6255 = vsel %vm4000, %v6223, %v5627
      %v6256 = vsel %vm4000, %v6224, %v5629
      %v6257 = vsel %vm4000, %v6225, %v5631
      %v6258 = vsel %vm4000, %v6226, %v5633
      %v6259 = vsel %vm4000, %v6227, %v5635
      %v6260 = vsel %vm4000, %v6228, %v5637
      %v6261 = vsel %vm4000, %v6229, %v5639
      %v6262 = vsel %vm4000, %v6230, %v5641
      %v6263 = vsel %vm4000, %v6231, %v5643
      %v6264 = vsel %vm4000, %v6232, %v5645
      %v6265 = vsel %vm4000, %v6233, %v5647
      %v6266 = vsel %vm4000, %v6234, %v5649
      %v6267 = vsel %vm4000, %v6235, %v5651
      %v6268 = vsel %vm4000, %v6236, %v5653
      %v6269 = vsel %vm4000, %v6237, %v5655
      %v6270 = vsel %vm4000, %v6238, %v5657
      %v6271 = vsel %vm4000, %v6239, %v5659
      %v6272 = vsel %vm4000, %v6240, %v5661
      %v6273 = vsel %vm4000, %v6241, %v5663
      %v6274 = vsel %vm4000, %v6242, %v5665
      %v6275 = vsel %vm4000, %v6243, %v5667
      %v6276 = vsel %vm4033, %v6244, %v5701
      %v6277 = vsel %vm4033, %v6245, %v5703
      %v6278 = vsel %vm4033, %v6246, %v5705
      %v6279 = vsel %vm4033, %v6247, %v5707
      %v6280 = vsel %vm4033, %v6248, %v5709
      %v6281 = vsel %vm4033, %v6249, %v5711
      %v6282 = vsel %vm4033, %v6250, %v5713
      %v6283 = vsel %vm4033, %v6251, %v5715
      %v6284 = vsel %vm4033, %v6252, %v5717
      %v6285 = vsel %vm4033, %v6253, %v5719
      %v6286 = vsel %vm4033, %v6254, %v5721
      %v6287 = vsel %vm4033, %v6255, %v5723
      %v6288 = vsel %vm4033, %v6256, %v5725
      %v6289 = vsel %vm4033, %v6257, %v5727
      %v6290 = vsel %vm4033, %v6258, %v5729
      %v6291 = vsel %vm4033, %v6259, %v5731
      %v6292 = vsel %vm4033, %v6260, %v5733
      %v6293 = vsel %vm4033, %v6261, %v5735
      %v6294 = vsel %vm4033, %v6262, %v5737
      %v6295 = vsel %vm4033, %v6263, %v5739
      %v6296 = vsel %vm4033, %v6264, %v5741
      %v6297 = vsel %vm4033, %v6265, %v5743
      %v6298 = vsel %vm4033, %v6266, %v5745
      %v6299 = vsel %vm4033, %v6267, %v5747
      %v6300 = vsel %vm4033, %v6268, %v5749
      %v6301 = vsel %vm4033, %v6269, %v5751
      %v6302 = vsel %vm4033, %v6270, %v5753
      %v6303 = vsel %vm4033, %v6271, %v5755
      %v6304 = vsel %vm4033, %v6272, %v5757
      %v6305 = vsel %vm4033, %v6273, %v5759
      %v6306 = vsel %vm4033, %v6274, %v5761
      %v6307 = vsel %vm4033, %v6275, %v5763
      %v6308 = vsel %vm4066, %v6276, %v5797
      %v6309 = vsel %vm4066, %v6277, %v5799
      %v6310 = vsel %vm4066, %v6278, %v5801
      %v6311 = vsel %vm4066, %v6279, %v5803
      %v6312 = vsel %vm4066, %v6280, %v5805
      %v6313 = vsel %vm4066, %v6281, %v5807
      %v6314 = vsel %vm4066, %v6282, %v5809
      %v6315 = vsel %vm4066, %v6283, %v5811
      %v6316 = vsel %vm4066, %v6284, %v5813
      %v6317 = vsel %vm4066, %v6285, %v5815
      %v6318 = vsel %vm4066, %v6286, %v5817
      %v6319 = vsel %vm4066, %v6287, %v5819
      %v6320 = vsel %vm4066, %v6288, %v5821
      %v6321 = vsel %vm4066, %v6289, %v5823
      %v6322 = vsel %vm4066, %v6290, %v5825
      %v6323 = vsel %vm4066, %v6291, %v5827
      %v6324 = vsel %vm4066, %v6292, %v5829
      %v6325 = vsel %vm4066, %v6293, %v5831
      %v6326 = vsel %vm4066, %v6294, %v5833
      %v6327 = vsel %vm4066, %v6295, %v5835
      %v6328 = vsel %vm4066, %v6296, %v5837
      %v6329 = vsel %vm4066, %v6297, %v5839
      %v6330 = vsel %vm4066, %v6298, %v5841
      %v6331 = vsel %vm4066, %v6299, %v5843
      %v6332 = vsel %vm4066, %v6300, %v5845
      %v6333 = vsel %vm4066, %v6301, %v5847
      %v6334 = vsel %vm4066, %v6302, %v5849
      %v6335 = vsel %vm4066, %v6303, %v5851
      %v6336 = vsel %vm4066, %v6304, %v5853
      %v6337 = vsel %vm4066, %v6305, %v5855
      %v6338 = vsel %vm4066, %v6306, %v5857
      %v6339 = vsel %vm4066, %v6307, %v5859
      %v6340 = vsel %vm4099, %v6308, %v5893
      %v6341 = vsel %vm4099, %v6309, %v5895
      %v6342 = vsel %vm4099, %v6310, %v5897
      %v6343 = vsel %vm4099, %v6311, %v5899
      %v6344 = vsel %vm4099, %v6312, %v5901
      %v6345 = vsel %vm4099, %v6313, %v5903
      %v6346 = vsel %vm4099, %v6314, %v5905
      %v6347 = vsel %vm4099, %v6315, %v5907
      %v6348 = vsel %vm4099, %v6316, %v5909
      %v6349 = vsel %vm4099, %v6317, %v5911
      %v6350 = vsel %vm4099, %v6318, %v5913
      %v6351 = vsel %vm4099, %v6319, %v5915
      %v6352 = vsel %vm4099, %v6320, %v5917
      %v6353 = vsel %vm4099, %v6321, %v5919
      %v6354 = vsel %vm4099, %v6322, %v5921
      %v6355 = vsel %vm4099, %v6323, %v5923
      %v6356 = vsel %vm4099, %v6324, %v5925
      %v6357 = vsel %vm4099, %v6325, %v5927
      %v6358 = vsel %vm4099, %v6326, %v5929
      %v6359 = vsel %vm4099, %v6327, %v5931
      %v6360 = vsel %vm4099, %v6328, %v5933
      %v6361 = vsel %vm4099, %v6329, %v5935
      %v6362 = vsel %vm4099, %v6330, %v5937
      %v6363 = vsel %vm4099, %v6331, %v5939
      %v6364 = vsel %vm4099, %v6332, %v5941
      %v6365 = vsel %vm4099, %v6333, %v5943
      %v6366 = vsel %vm4099, %v6334, %v5945
      %v6367 = vsel %vm4099, %v6335, %v5947
      %v6368 = vsel %vm4099, %v6336, %v5949
      %v6369 = vsel %vm4099, %v6337, %v5951
      %v6370 = vsel %vm4099, %v6338, %v5953
      %v6371 = vsel %vm4099, %v6339, %v5955
      %v6372 = vsel %vm4132, %v6340, %v5989
      %v6373 = vsel %vm4132, %v6341, %v5991
      %v6374 = vsel %vm4132, %v6342, %v5993
      %v6375 = vsel %vm4132, %v6343, %v5995
      %v6376 = vsel %vm4132, %v6344, %v5997
      %v6377 = vsel %vm4132, %v6345, %v5999
      %v6378 = vsel %vm4132, %v6346, %v6001
      %v6379 = vsel %vm4132, %v6347, %v6003
      %v6380 = vsel %vm4132, %v6348, %v6005
      %v6381 = vsel %vm4132, %v6349, %v6007
      %v6382 = vsel %vm4132, %v6350, %v6009
      %v6383 = vsel %vm4132, %v6351, %v6011
      %v6384 = vsel %vm4132, %v6352, %v6013
      %v6385 = vsel %vm4132, %v6353, %v6015
      %v6386 = vsel %vm4132, %v6354, %v6017
      %v6387 = vsel %vm4132, %v6355, %v6019
      %v6388 = vsel %vm4132, %v6356, %v6021
      %v6389 = vsel %vm4132, %v6357, %v6023
      %v6390 = vsel %vm4132, %v6358, %v6025
      %v6391 = vsel %vm4132, %v6359, %v6027
      %v6392 = vsel %vm4132, %v6360, %v6029
      %v6393 = vsel %vm4132, %v6361, %v6031
      %v6394 = vsel %vm4132, %v6362, %v6033
      %v6395 = vsel %vm4132, %v6363, %v6035
      %v6396 = vsel %vm4132, %v6364, %v6037
      %v6397 = vsel %vm4132, %v6365, %v6039
      %v6398 = vsel %vm4132, %v6366, %v6041
      %v6399 = vsel %vm4132, %v6367, %v6043
      %v6400 = vsel %vm4132, %v6368, %v6045
      %v6401 = vsel %vm4132, %v6369, %v6047
      %v6402 = vsel %vm4132, %v6370, %v6049
      %v6403 = vsel %vm4132, %v6371, %v6051
      %v6404 = vsel %vm4165, %v6372, %v6085
      %v6405 = vsel %vm4165, %v6373, %v6087
      %v6406 = vsel %vm4165, %v6374, %v6089
      %v6407 = vsel %vm4165, %v6375, %v6091
      %v6408 = vsel %vm4165, %v6376, %v6093
      %v6409 = vsel %vm4165, %v6377, %v6095
      %v6410 = vsel %vm4165, %v6378, %v6097
      %v6411 = vsel %vm4165, %v6379, %v6099
      %v6412 = vsel %vm4165, %v6380, %v6101
      %v6413 = vsel %vm4165, %v6381, %v6103
      %v6414 = vsel %vm4165, %v6382, %v6105
      %v6415 = vsel %vm4165, %v6383, %v6107
      %v6416 = vsel %vm4165, %v6384, %v6109
      %v6417 = vsel %vm4165, %v6385, %v6111
      %v6418 = vsel %vm4165, %v6386, %v6113
      %v6419 = vsel %vm4165, %v6387, %v6115
      %v6420 = vsel %vm4165, %v6388, %v6117
      %v6421 = vsel %vm4165, %v6389, %v6119
      %v6422 = vsel %vm4165, %v6390, %v6121
      %v6423 = vsel %vm4165, %v6391, %v6123
      %v6424 = vsel %vm4165, %v6392, %v6125
      %v6425 = vsel %vm4165, %v6393, %v6127
      %v6426 = vsel %vm4165, %v6394, %v6129
      %v6427 = vsel %vm4165, %v6395, %v6131
      %v6428 = vsel %vm4165, %v6396, %v6133
      %v6429 = vsel %vm4165, %v6397, %v6135
      %v6430 = vsel %vm4165, %v6398, %v6137
      %v6431 = vsel %vm4165, %v6399, %v6139
      %v6432 = vsel %vm4165, %v6400, %v6141
      %v6433 = vsel %vm4165, %v6401, %v6143
      %v6434 = vsel %vm4165, %v6402, %v6145
      %v6435 = vsel %vm4165, %v6403, %v6147
      %v6436 = vld [vmem:[%s6] sm:$0xff]
      %v6437 = vld [vmem:[%s6 + $0x8] sm:$0xff]
      %v6438 = vld [vmem:[%s6 + $0x10] sm:$0xff]
      %v6439 = vld [vmem:[%s6 + $0x18] sm:$0xff]
      %v6440 = vld [vmem:[%s6 + $0x20] sm:$0xf]
      %v6441 = vld [vmem:[%s7] sm:$0x1]
      %v6443 = vperm.slane %v6441, 0
      %v6446 = vsel %vm4198, %v6404, 0
      %v6449 = vsel %vm4198, %v6405, 0
      %v6452 = vsel %vm4198, %v6406, 0
      %v6455 = vsel %vm4198, %v6407, 0
      %v6458 = vsel %vm4198, %v6408, 0
      %v6461 = vsel %vm4198, %v6409, 0
      %v6464 = vsel %vm4198, %v6410, 0
      %v6467 = vsel %vm4198, %v6411, 0
      %v6470 = vsel %vm4198, %v6412, 0
      %v6473 = vsel %vm4198, %v6413, 0
      %v6476 = vsel %vm4198, %v6414, 0
      %v6479 = vsel %vm4198, %v6415, 0
      %v6482 = vsel %vm4198, %v6416, 0
      %v6485 = vsel %vm4198, %v6417, 0
      %v6488 = vsel %vm4198, %v6418, 0
      %v6491 = vsel %vm4198, %v6419, 0
      %v6494 = vsel %vm4198, %v6420, 0
      %v6497 = vsel %vm4198, %v6421, 0
      %v6500 = vsel %vm4198, %v6422, 0
      %v6503 = vsel %vm4198, %v6423, 0
      %v6506 = vsel %vm4198, %v6424, 0
      %v6509 = vsel %vm4198, %v6425, 0
      %v6512 = vsel %vm4198, %v6426, 0
      %v6515 = vsel %vm4198, %v6427, 0
      %v6518 = vsel %vm4198, %v6428, 0
      %v6521 = vsel %vm4198, %v6429, 0
      %v6524 = vsel %vm4198, %v6430, 0
      %v6527 = vsel %vm4198, %v6431, 0
      %v6530 = vsel %vm4198, %v6432, 0
      %v6533 = vsel %vm4198, %v6433, 0
      %v6536 = vsel %vm4198, %v6434, 0
      %v6539 = vsel %vm4198, %v6435, 0
      %vm6541 = vcmask 1043456
      %v6543 = vsel %vm6541, %v6440, 0
      %6545 = vmatpush.msra.mxu0 0.0
      %6546 = vmatpush.msra.mxu0 0.0
      %6547 = vmatpush.msra.mxu0 0.0
      %6548 = vmatpush.msra.mxu0 0.0
      %6549 = vmatpush.msra.mxu0 0.0
      %6550 = vmatpush.msra.mxu0 0.0
      %6551 = vmatpush.msra.mxu0 0.0
      %6552 = vmatpush.msra.mxu0 0.0
      %6553 = vmatpush.msra.mxu0 0.0
      %6554 = vmatpush.msra.mxu0 0.0
      %6555 = vmatpush.msra.mxu0 0.0
      %6556 = vmatpush.msra.mxu0 %v6543
      %6557 = vmatpush.msra.mxu0 %v6439
      %6558 = vmatpush.msra.mxu0 %v6438
      %6559 = vmatpush.msra.mxu0 %v6437
      %6560 = vmatpush.msra.mxu0 %v6436
      %6561 = vmatmul.f32.gmra.mxu0 %v6446
      %v6562 = vpop.f32.mrf.mxu0
      %v6563 = vadd.f32 %v6443, %v6562
      %6564 = vmatmul.f32.gmra.mxu0 %v6449
      %v6565 = vpop.f32.mrf.mxu0
      %v6566 = vadd.f32 %v6443, %v6565
      %6567 = vmatmul.f32.gmra.mxu0 %v6452
      %v6568 = vpop.f32.mrf.mxu0
      %v6569 = vadd.f32 %v6443, %v6568
      %6570 = vmatmul.f32.gmra.mxu0 %v6455
      %v6571 = vpop.f32.mrf.mxu0
      %v6572 = vadd.f32 %v6443, %v6571
      %6573 = vmatmul.f32.gmra.mxu0 %v6458
      %v6574 = vpop.f32.mrf.mxu0
      %v6575 = vadd.f32 %v6443, %v6574
      %6576 = vmatmul.f32.gmra.mxu0 %v6461
      %v6577 = vpop.f32.mrf.mxu0
      %v6578 = vadd.f32 %v6443, %v6577
      %6579 = vmatmul.f32.gmra.mxu0 %v6464
      %v6580 = vpop.f32.mrf.mxu0
      %v6581 = vadd.f32 %v6443, %v6580
      %6582 = vmatmul.f32.gmra.mxu0 %v6467
      %v6583 = vpop.f32.mrf.mxu0
      %v6584 = vadd.f32 %v6443, %v6583
      %6585 = vmatmul.f32.gmra.mxu0 %v6470
      %v6586 = vpop.f32.mrf.mxu0
      %v6587 = vadd.f32 %v6443, %v6586
      %6588 = vmatmul.f32.gmra.mxu0 %v6473
      %v6589 = vpop.f32.mrf.mxu0
      %v6590 = vadd.f32 %v6443, %v6589
      %6591 = vmatmul.f32.gmra.mxu0 %v6476
      %v6592 = vpop.f32.mrf.mxu0
      %v6593 = vadd.f32 %v6443, %v6592
      %6594 = vmatmul.f32.gmra.mxu0 %v6479
      %v6595 = vpop.f32.mrf.mxu0
      %v6596 = vadd.f32 %v6443, %v6595
      %6597 = vmatmul.f32.gmra.mxu0 %v6482
      %v6598 = vpop.f32.mrf.mxu0
      %v6599 = vadd.f32 %v6443, %v6598
      %6600 = vmatmul.f32.gmra.mxu0 %v6485
      %v6601 = vpop.f32.mrf.mxu0
      %v6602 = vadd.f32 %v6443, %v6601
      %6603 = vmatmul.f32.gmra.mxu0 %v6488
      %v6604 = vpop.f32.mrf.mxu0
      %v6605 = vadd.f32 %v6443, %v6604
      %6606 = vmatmul.f32.gmra.mxu0 %v6491
      %v6607 = vpop.f32.mrf.mxu0
      %v6608 = vadd.f32 %v6443, %v6607
      %6609 = vmatmul.f32.gmra.mxu0 %v6494
      %v6610 = vpop.f32.mrf.mxu0
      %v6611 = vadd.f32 %v6443, %v6610
      %6612 = vmatmul.f32.gmra.mxu0 %v6497
      %v6613 = vpop.f32.mrf.mxu0
      %v6614 = vadd.f32 %v6443, %v6613
      %6615 = vmatmul.f32.gmra.mxu0 %v6500
      %v6616 = vpop.f32.mrf.mxu0
      %v6617 = vadd.f32 %v6443, %v6616
      %6618 = vmatmul.f32.gmra.mxu0 %v6503
      %v6619 = vpop.f32.mrf.mxu0
      %v6620 = vadd.f32 %v6443, %v6619
      %6621 = vmatmul.f32.gmra.mxu0 %v6506
      %v6622 = vpop.f32.mrf.mxu0
      %v6623 = vadd.f32 %v6443, %v6622
      %6624 = vmatmul.f32.gmra.mxu0 %v6509
      %v6625 = vpop.f32.mrf.mxu0
      %v6626 = vadd.f32 %v6443, %v6625
      %6627 = vmatmul.f32.gmra.mxu0 %v6512
      %v6628 = vpop.f32.mrf.mxu0
      %v6629 = vadd.f32 %v6443, %v6628
      %6630 = vmatmul.f32.gmra.mxu0 %v6515
      %v6631 = vpop.f32.mrf.mxu0
      %v6632 = vadd.f32 %v6443, %v6631
      %6633 = vmatmul.f32.gmra.mxu0 %v6518
      %v6634 = vpop.f32.mrf.mxu0
      %v6635 = vadd.f32 %v6443, %v6634
      %6636 = vmatmul.f32.gmra.mxu0 %v6521
      %v6637 = vpop.f32.mrf.mxu0
      %v6638 = vadd.f32 %v6443, %v6637
      %6639 = vmatmul.f32.gmra.mxu0 %v6524
      %v6640 = vpop.f32.mrf.mxu0
      %v6641 = vadd.f32 %v6443, %v6640
      %6642 = vmatmul.f32.gmra.mxu0 %v6527
      %v6643 = vpop.f32.mrf.mxu0
      %v6644 = vadd.f32 %v6443, %v6643
      %6645 = vmatmul.f32.gmra.mxu0 %v6530
      %v6646 = vpop.f32.mrf.mxu0
      %v6647 = vadd.f32 %v6443, %v6646
      %6648 = vmatmul.f32.gmra.mxu0 %v6533
      %v6649 = vpop.f32.mrf.mxu0
      %v6650 = vadd.f32 %v6443, %v6649
      %6651 = vmatmul.f32.gmra.mxu0 %v6536
      %v6652 = vpop.f32.mrf.mxu0
      %v6653 = vadd.f32 %v6443, %v6652
      %6654 = vmatmul.f32.gmra.mxu0 %v6539
      %v6655 = vpop.f32.mrf.mxu0
      %v6656 = vadd.f32 %v6443, %v6655
      %6657 = vdwg.mxu0
      %vm6658 = vcmp.ge.f32.partialorder %v6563, 0.0
      %vm6659 = vcmp.ge.f32.partialorder %v6566, 0.0
      %vm6660 = vcmp.ge.f32.partialorder %v6569, 0.0
      %vm6661 = vcmp.ge.f32.partialorder %v6572, 0.0
      %vm6662 = vcmp.ge.f32.partialorder %v6575, 0.0
      %vm6663 = vcmp.ge.f32.partialorder %v6578, 0.0
      %vm6664 = vcmp.ge.f32.partialorder %v6581, 0.0
      %vm6665 = vcmp.ge.f32.partialorder %v6584, 0.0
      %vm6666 = vcmp.ge.f32.partialorder %v6587, 0.0
      %vm6667 = vcmp.ge.f32.partialorder %v6590, 0.0
      %vm6668 = vcmp.ge.f32.partialorder %v6593, 0.0
      %vm6669 = vcmp.ge.f32.partialorder %v6596, 0.0
      %vm6670 = vcmp.ge.f32.partialorder %v6599, 0.0
      %vm6671 = vcmp.ge.f32.partialorder %v6602, 0.0
      %vm6672 = vcmp.ge.f32.partialorder %v6605, 0.0
      %vm6673 = vcmp.ge.f32.partialorder %v6608, 0.0
      %vm6674 = vcmp.ge.f32.partialorder %v6611, 0.0
      %vm6675 = vcmp.ge.f32.partialorder %v6614, 0.0
      %vm6676 = vcmp.ge.f32.partialorder %v6617, 0.0
      %vm6677 = vcmp.ge.f32.partialorder %v6620, 0.0
      %vm6678 = vcmp.ge.f32.partialorder %v6623, 0.0
      %vm6679 = vcmp.ge.f32.partialorder %v6626, 0.0
      %vm6680 = vcmp.ge.f32.partialorder %v6629, 0.0
      %vm6681 = vcmp.ge.f32.partialorder %v6632, 0.0
      %vm6682 = vcmp.ge.f32.partialorder %v6635, 0.0
      %vm6683 = vcmp.ge.f32.partialorder %v6638, 0.0
      %vm6684 = vcmp.ge.f32.partialorder %v6641, 0.0
      %vm6685 = vcmp.ge.f32.partialorder %v6644, 0.0
      %vm6686 = vcmp.ge.f32.partialorder %v6647, 0.0
      %vm6687 = vcmp.ge.f32.partialorder %v6650, 0.0
      %vm6688 = vcmp.ge.f32.partialorder %v6653, 0.0
      %vm6689 = vcmp.ge.f32.partialorder %v6656, 0.0
      %v6690 = vmul.f32 %v6563, 0.2
      %v6691 = vmul.f32 %v6566, 0.2
      %v6692 = vmul.f32 %v6569, 0.2
      %v6693 = vmul.f32 %v6572, 0.2
      %v6694 = vmul.f32 %v6575, 0.2
      %v6695 = vmul.f32 %v6578, 0.2
      %v6696 = vmul.f32 %v6581, 0.2
      %v6697 = vmul.f32 %v6584, 0.2
      %v6698 = vmul.f32 %v6587, 0.2
      %v6699 = vmul.f32 %v6590, 0.2
      %v6700 = vmul.f32 %v6593, 0.2
      %v6701 = vmul.f32 %v6596, 0.2
      %v6702 = vmul.f32 %v6599, 0.2
      %v6703 = vmul.f32 %v6602, 0.2
      %v6704 = vmul.f32 %v6605, 0.2
      %v6705 = vmul.f32 %v6608, 0.2
      %v6706 = vmul.f32 %v6611, 0.2
      %v6707 = vmul.f32 %v6614, 0.2
      %v6708 = vmul.f32 %v6617, 0.2
      %v6709 = vmul.f32 %v6620, 0.2
      %v6710 = vmul.f32 %v6623, 0.2
      %v6711 = vmul.f32 %v6626, 0.2
      %v6712 = vmul.f32 %v6629, 0.2
      %v6713 = vmul.f32 %v6632, 0.2
      %v6714 = vmul.f32 %v6635, 0.2
      %v6715 = vmul.f32 %v6638, 0.2
      %v6716 = vmul.f32 %v6641, 0.2
      %v6717 = vmul.f32 %v6644, 0.2
      %v6718 = vmul.f32 %v6647, 0.2
      %v6719 = vmul.f32 %v6650, 0.2
      %v6720 = vmul.f32 %v6653, 0.2
      %v6721 = vmul.f32 %v6656, 0.2
      %v6722 = vsel %vm6658, %v6563, %v6690
      %v6723 = vsel %vm6659, %v6566, %v6691
      %v6724 = vsel %vm6660, %v6569, %v6692
      %v6725 = vsel %vm6661, %v6572, %v6693
      %v6726 = vsel %vm6662, %v6575, %v6694
      %v6727 = vsel %vm6663, %v6578, %v6695
      %v6728 = vsel %vm6664, %v6581, %v6696
      %v6729 = vsel %vm6665, %v6584, %v6697
      %v6730 = vsel %vm6666, %v6587, %v6698
      %v6731 = vsel %vm6667, %v6590, %v6699
      %v6732 = vsel %vm6668, %v6593, %v6700
      %v6733 = vsel %vm6669, %v6596, %v6701
      %v6734 = vsel %vm6670, %v6599, %v6702
      %v6735 = vsel %vm6671, %v6602, %v6703
      %v6736 = vsel %vm6672, %v6605, %v6704
      %v6737 = vsel %vm6673, %v6608, %v6705
      %v6738 = vsel %vm6674, %v6611, %v6706
      %v6739 = vsel %vm6675, %v6614, %v6707
      %v6740 = vsel %vm6676, %v6617, %v6708
      %v6741 = vsel %vm6677, %v6620, %v6709
      %v6742 = vsel %vm6678, %v6623, %v6710
      %v6743 = vsel %vm6679, %v6626, %v6711
      %v6744 = vsel %vm6680, %v6629, %v6712
      %v6745 = vsel %vm6681, %v6632, %v6713
      %v6746 = vsel %vm6682, %v6635, %v6714
      %v6747 = vsel %vm6683, %v6638, %v6715
      %v6748 = vsel %vm6684, %v6641, %v6716
      %v6749 = vsel %vm6685, %v6644, %v6717
      %v6750 = vsel %vm6686, %v6647, %v6718
      %v6751 = vsel %vm6687, %v6650, %v6719
      %v6752 = vsel %vm6688, %v6653, %v6720
      %v6753 = vsel %vm6689, %v6656, %v6721
      %6786 = vrot.lane.b32.xlu0 %v4846, 124
      %v6787 = vpop.permute.xlu0 %6786
      %6788 = vrot.lane.b32.xlu0 %v4849, 124
      %v6789 = vpop.permute.xlu0 %6788
      %6790 = vrot.lane.b32.xlu0 %v4852, 124
      %v6791 = vpop.permute.xlu0 %6790
      %6792 = vrot.lane.b32.xlu0 %v4855, 124
      %v6793 = vpop.permute.xlu0 %6792
      %6794 = vrot.lane.b32.xlu0 %v4858, 124
      %v6795 = vpop.permute.xlu0 %6794
      %6796 = vrot.lane.b32.xlu0 %v4861, 124
      %v6797 = vpop.permute.xlu0 %6796
      %6798 = vrot.lane.b32.xlu0 %v4864, 124
      %v6799 = vpop.permute.xlu0 %6798
      %6800 = vrot.lane.b32.xlu0 %v4867, 124
      %v6801 = vpop.permute.xlu0 %6800
      %6802 = vrot.lane.b32.xlu0 %v4870, 124
      %v6803 = vpop.permute.xlu0 %6802
      %6804 = vrot.lane.b32.xlu0 %v4873, 124
      %v6805 = vpop.permute.xlu0 %6804
      %6806 = vrot.lane.b32.xlu0 %v4876, 124
      %v6807 = vpop.permute.xlu0 %6806
      %6808 = vrot.lane.b32.xlu0 %v4879, 124
      %v6809 = vpop.permute.xlu0 %6808
      %6810 = vrot.lane.b32.xlu0 %v4882, 124
      %v6811 = vpop.permute.xlu0 %6810
      %6812 = vrot.lane.b32.xlu0 %v4885, 124
      %v6813 = vpop.permute.xlu0 %6812
      %6814 = vrot.lane.b32.xlu0 %v4888, 124
      %v6815 = vpop.permute.xlu0 %6814
      %6816 = vrot.lane.b32.xlu0 %v4891, 124
      %v6817 = vpop.permute.xlu0 %6816
      %6818 = vrot.lane.b32.xlu0 %v4894, 124
      %v6819 = vpop.permute.xlu0 %6818
      %6820 = vrot.lane.b32.xlu0 %v4897, 124
      %v6821 = vpop.permute.xlu0 %6820
      %6822 = vrot.lane.b32.xlu0 %v4900, 124
      %v6823 = vpop.permute.xlu0 %6822
      %6824 = vrot.lane.b32.xlu0 %v4903, 124
      %v6825 = vpop.permute.xlu0 %6824
      %6826 = vrot.lane.b32.xlu0 %v4906, 124
      %v6827 = vpop.permute.xlu0 %6826
      %6828 = vrot.lane.b32.xlu0 %v4909, 124
      %v6829 = vpop.permute.xlu0 %6828
      %6830 = vrot.lane.b32.xlu0 %v4912, 124
      %v6831 = vpop.permute.xlu0 %6830
      %6832 = vrot.lane.b32.xlu0 %v4915, 124
      %v6833 = vpop.permute.xlu0 %6832
      %6834 = vrot.lane.b32.xlu0 %v4918, 124
      %v6835 = vpop.permute.xlu0 %6834
      %6836 = vrot.lane.b32.xlu0 %v4921, 124
      %v6837 = vpop.permute.xlu0 %6836
      %6838 = vrot.lane.b32.xlu0 %v4924, 124
      %v6839 = vpop.permute.xlu0 %6838
      %6840 = vrot.lane.b32.xlu0 %v4927, 124
      %v6841 = vpop.permute.xlu0 %6840
      %6842 = vrot.lane.b32.xlu0 %v4930, 124
      %v6843 = vpop.permute.xlu0 %6842
      %6844 = vrot.lane.b32.xlu0 %v4933, 124
      %v6845 = vpop.permute.xlu0 %6844
      %6846 = vrot.lane.b32.xlu0 %v4936, 124
      %v6847 = vpop.permute.xlu0 %6846
      %6848 = vrot.lane.b32.xlu0 %v4939, 124
      %v6849 = vpop.permute.xlu0 %6848
      %v6882 = vadd.f32 %v6722, %v6787
      %v6883 = vadd.f32 %v6723, %v6789
      %v6884 = vadd.f32 %v6724, %v6791
      %v6885 = vadd.f32 %v6725, %v6793
      %v6886 = vadd.f32 %v6726, %v6795
      %v6887 = vadd.f32 %v6727, %v6797
      %v6888 = vadd.f32 %v6728, %v6799
      %v6889 = vadd.f32 %v6729, %v6801
      %v6890 = vadd.f32 %v6730, %v6803
      %v6891 = vadd.f32 %v6731, %v6805
      %v6892 = vadd.f32 %v6732, %v6807
      %v6893 = vadd.f32 %v6733, %v6809
      %v6894 = vadd.f32 %v6734, %v6811
      %v6895 = vadd.f32 %v6735, %v6813
      %v6896 = vadd.f32 %v6736, %v6815
      %v6897 = vadd.f32 %v6737, %v6817
      %v6898 = vadd.f32 %v6738, %v6819
      %v6899 = vadd.f32 %v6739, %v6821
      %v6900 = vadd.f32 %v6740, %v6823
      %v6901 = vadd.f32 %v6741, %v6825
      %v6902 = vadd.f32 %v6742, %v6827
      %v6903 = vadd.f32 %v6743, %v6829
      %v6904 = vadd.f32 %v6744, %v6831
      %v6905 = vadd.f32 %v6745, %v6833
      %v6906 = vadd.f32 %v6746, %v6835
      %v6907 = vadd.f32 %v6747, %v6837
      %v6908 = vadd.f32 %v6748, %v6839
      %v6909 = vadd.f32 %v6749, %v6841
      %v6910 = vadd.f32 %v6750, %v6843
      %v6911 = vadd.f32 %v6751, %v6845
      %v6912 = vadd.f32 %v6752, %v6847
      %v6913 = vadd.f32 %v6753, %v6849
      %6914 = vst.msk [vmem:[%s325] sm:$0xff] %vm1678, %v6882
      %6915 = vst.msk [vmem:[%s325 + $0x8] sm:$0xff] %vm1678, %v6883
      %6916 = vst.msk [vmem:[%s325 + $0x10] sm:$0xff] %vm1678, %v6884
      %6917 = vst.msk [vmem:[%s325 + $0x18] sm:$0xff] %vm1678, %v6885
      %6918 = vst.msk [vmem:[%s325 + $0x20] sm:$0xff] %vm1678, %v6886
      %6919 = vst.msk [vmem:[%s325 + $0x28] sm:$0xff] %vm1678, %v6887
      %6920 = vst.msk [vmem:[%s325 + $0x30] sm:$0xff] %vm1678, %v6888
      %6921 = vst.msk [vmem:[%s325 + $0x38] sm:$0xff] %vm1678, %v6889
      %6922 = vst.msk [vmem:[%s325 + $0x40] sm:$0xff] %vm1678, %v6890
      %6923 = vst.msk [vmem:[%s325 + $0x48] sm:$0xff] %vm1678, %v6891
      %6924 = vst.msk [vmem:[%s325 + $0x50] sm:$0xff] %vm1678, %v6892
      %6925 = vst.msk [vmem:[%s325 + $0x58] sm:$0xff] %vm1678, %v6893
      %6926 = vst.msk [vmem:[%s325 + $0x60] sm:$0xff] %vm1678, %v6894
      %6927 = vst.msk [vmem:[%s325 + $0x68] sm:$0xff] %vm1678, %v6895
      %6928 = vst.msk [vmem:[%s325 + $0x70] sm:$0xff] %vm1678, %v6896
      %6929 = vst.msk [vmem:[%s325 + $0x78] sm:$0xff] %vm1678, %v6897
      %6930 = vst.msk [vmem:[%s325 + $0x80] sm:$0xff] %vm1678, %v6898
      %6931 = vst.msk [vmem:[%s325 + $0x88] sm:$0xff] %vm1678, %v6899
      %6932 = vst.msk [vmem:[%s325 + $0x90] sm:$0xff] %vm1678, %v6900
      %6933 = vst.msk [vmem:[%s325 + $0x98] sm:$0xff] %vm1678, %v6901
      %6934 = vst.msk [vmem:[%s325 + $0xa0] sm:$0xff] %vm1678, %v6902
      %6935 = vst.msk [vmem:[%s325 + $0xa8] sm:$0xff] %vm1678, %v6903
      %6936 = vst.msk [vmem:[%s325 + $0xb0] sm:$0xff] %vm1678, %v6904
      %6937 = vst.msk [vmem:[%s325 + $0xb8] sm:$0xff] %vm1678, %v6905
      %6938 = vst.msk [vmem:[%s325 + $0xc0] sm:$0xff] %vm1678, %v6906
      %6939 = vst.msk [vmem:[%s325 + $0xc8] sm:$0xff] %vm1678, %v6907
      %6940 = vst.msk [vmem:[%s325 + $0xd0] sm:$0xff] %vm1678, %v6908
      %6941 = vst.msk [vmem:[%s325 + $0xd8] sm:$0xff] %vm1678, %v6909
      %6942 = vst.msk [vmem:[%s325 + $0xe0] sm:$0xff] %vm1678, %v6910
      %6943 = vst.msk [vmem:[%s325 + $0xe8] sm:$0xff] %vm1678, %v6911
      %6944 = vst.msk [vmem:[%s325 + $0xf0] sm:$0xff] %vm1678, %v6912
      %6945 = vst.msk [vmem:[%s325 + $0xf8] sm:$0xff] %vm1678, %v6913
      %p6946 = scmp.lt.s32.totalorder %s19, 1
      %s6947 = scalar_select %p6946, %s19, 1
      %s6948 = smul.addr %s6947, 32
      %s6949 = smul.addr %s6948, 8
      %s6950 = scalar_lea.vmem %s8, %s6949
      // Predicated region
      $region53: #{unet_up_block_forward.1} parent=51 // pred_check
        %p6951 = pneg %p215
      $region54: #{unet_up_block_forward.1} parent=51 // pred_check_branch
        %6953 = sbr.rel (%p6951) target = $region56
      $region55: #{unet_up_block_forward.1} parent=51 // pred_region
        _
      $region56: #{unet_up_block_forward.1} parent=51 // pred_fallthru
        _
    $region52: #{unet_up_block_forward.1} parent=5 // pred_fallthru
      _
    %p6954 = scmp.le.s32.totalorder 2, %s14
    // Predicated region
    $region57: #{unet_up_block_forward.1} parent=5 // pred_check
      %p6955 = pneg %p6954
    $region58: #{unet_up_block_forward.1} parent=5 // pred_check_branch
      %6957 = sbr.rel (%p6955) target = $region60
    $region59: #{unet_up_block_forward.1} parent=5 // pred_region
      %s6958 = ssub.s32 %s14, 2
      // Predicated region
      $region61: #{unet_up_block_forward.1} parent=59 // pred_check
        %p6959 = pneg %p221
      $region62: #{unet_up_block_forward.1} parent=59 // pred_check_branch
        %6961 = sbr.rel (%p6959) target = $region64
      $region63: #{unet_up_block_forward.1} parent=59 // pred_region
        %p6962 = scmp.lt.s32.totalorder %s20, 1
        %s6963 = scalar_select %p6962, %s20, 1
        %s6964 = smul.addr %s6963, 32
        %s6965 = smul.addr %s6964, 8
        %s6966 = scalar_lea.vmem %s8, %s6965
      $region64: #{unet_up_block_forward.1} parent=59 // pred_fallthru
        _
    $region60: #{unet_up_block_forward.1} parent=5 // pred_fallthru
      _
  $region6: #{unet_up_block_forward.1} parent=0 // loop_footer
    %s18 = sadd.s32 1, %s14
  $region7: #{unet_up_block_forward.1} parent=0 // loop_footer_branch
    %13 = sbr.rel target = $region3
  $region8: #{unet_up_block_forward.1} parent=0 // loop_exit
    _

</llo_original>
